<compile_context>
chip_gen: v5e
topology: v5e:2x2
jax: 0.10.0
libtpu: 0.0.40
codegen_flags: <defaults>
</compile_context>

<pallas_src>
import numpy as np
import jax
import jax.numpy as jnp
from jax.experimental import pallas as pl
from jax.experimental.pallas import tpu as pltpu

IN_CHANNELS_LIST = [16, 32, 64]
OUT_CHANNELS = 32


# ----------------------------------------------------------------------------
# Compile-time 0/1 helper matrices (numpy; baked as bf16 constants)
# ----------------------------------------------------------------------------
def _pool_gather_mat(H, W):
    """Gather the 2x2-window base rows of a pitched (H*(W+2)-2, C) conv output
    and scatter them into the next level's flat zero-padded buffer."""
    P = W + 2
    Ho, Wo = H // 2, W // 2
    Po = Wo + 2
    Lm = H * P - 2 - (W + 3)
    G = np.zeros(((Ho + 2) * Po, Lm), np.float32)
    for i in range(Ho):
        for j in range(Wo):
            G[(i + 1) * Po + (j + 1), (2 * i) * P + 2 * j] = 1.0
    return G


def _upsample_mat(H, W):
    """Nearest 2x upsample: flat-padded (H/2, W/2) map -> flat-padded (H, W) map."""
    P, Ps = W + 2, W // 2 + 2
    U = np.zeros(((H + 2) * P, (H // 2 + 2) * Ps), np.float32)
    for i in range(H):
        for j in range(W):
            U[(i + 1) * P + (j + 1), (i // 2 + 1) * Ps + (j // 2 + 1)] = 1.0
    return U


def _interior_mask(H, W):
    """(L, 1) mask that zeroes the padding-border rows of a flat-padded map."""
    P = W + 2
    m = np.zeros(((H + 2) * P, 1), np.float32)
    for i in range(H):
        for j in range(W):
            m[(i + 1) * P + (j + 1), 0] = 1.0
    return m


# ----------------------------------------------------------------------------
# Fused Pallas kernel (one image per grid step)
# ----------------------------------------------------------------------------
def _fused_kernel(
        x_ref,
        bb0_w, bb0_b, bb1_w, bb1_b, bb2_w, bb2_b,
        in0_w, in0_b, in1_w, in1_b, in2_w, in2_b,
        ly0_w, ly0_b, ly1_w, ly1_b, ly2_w, ly2_b,
        gp0, gp1, gp2, up10, up21, msk0, msk1, msk2,
        out0_ref, out1_ref, out2_ref, pool_ref,
        pf0, pf1, pf2, pli0, pli1, pli2, c0, c1, c2):
    f32 = jnp.float32
    bf16 = jnp.bfloat16

    def conv3x3(load_tap, H, W, w_ref, b_ref, relu):
        # 9 per-tap matmuls over the flat zero-padded input (pitch W+2).
        # Output rows whose column index is >= W are don't-care garbage.
        P = W + 2
        L = H * P - 2
        acc = jnp.zeros((L, w_ref.shape[-1]), f32)
        for ky in range(3):
            for kx in range(3):
                patch = load_tap(ky * P + kx, L)                  # (L, Cin) f32
                acc = acc + jnp.dot(patch.astype(bf16),
                                    w_ref[ky * 3 + kx],
                                    preferred_element_type=f32)
        acc = acc + b_ref[...]
        if relu:
            acc = jnp.maximum(acc, 0.0)
        return acc                                                # (L, Cout) f32

    def maxpool2x2(acc, W, c_ref, g_ref, dst_ref):
        # 2x2 / stride-2 max pool of the pitched conv output; the 0/1 gather
        # matmul also scatters the pooled map into the next zero-padded buffer
        # (border rows of g are all-zero -> dst border rows become exact zeros).
        P = W + 2
        c_ref[...] = acc
        Lm = acc.shape[0] - (W + 3)
        m = jnp.maximum(
            jnp.maximum(c_ref[pl.ds(0, Lm), :], c_ref[pl.ds(1, Lm), :]),
            jnp.maximum(c_ref[pl.ds(P, Lm), :], c_ref[pl.ds(P + 1, Lm), :]))
        dst_ref[...] = jnp.dot(g_ref[...], m.astype(bf16),
                               preferred_element_type=f32)

    def lateral(feat_ref, w_ref, b_ref, mask_ref):
        lat = jnp.dot(feat_ref[...].astype(bf16), w_ref[...],
                      preferred_element_type=f32) + b_ref[...]
        return lat * mask_ref[...]        # zero the padding-border rows again

    def upsample2x(u_ref, li):
        return jnp.dot(u_ref[...], li.astype(bf16), preferred_element_type=f32)

    # ---------------- body: 3 x (conv3x3 + ReLU + maxpool2x2) -----------------
    acc = conv3x3(lambda o, n: x_ref[0, pl.ds(o, n), :], 16, 16, bb0_w, bb0_b, True)
    maxpool2x2(acc, 16, c0, gp0, pf0)                 # feat0: 8x8x16 (padded)
    acc = conv3x3(lambda o, n: pf0[pl.ds(o, n), :], 8, 8, bb1_w, bb1_b, True)
    maxpool2x2(acc, 8, c1, gp1, pf1)                  # feat1: 4x4x32 (padded)
    acc = conv3x3(lambda o, n: pf1[pl.ds(o, n), :], 4, 4, bb2_w, bb2_b, True)
    maxpool2x2(acc, 4, c2, gp2, pf2)                  # feat2: 2x2x64 (padded)

    # ---------------- FeaturePyramidNetwork (top-down) ------------------------
    li2 = lateral(pf2, in2_w, in2_b, msk2)            # last_inner @ level 2
    pli2[...] = li2
    acc2 = conv3x3(lambda o, n: pli2[pl.ds(o, n), :], 2, 2, ly2_w, ly2_b, False)
    out2_ref[0] = acc2
    pool_ref[0] = acc2[0:1, :]                        # LastLevelMaxPool (k=1, s=2)

    li1 = lateral(pf1, in1_w, in1_b, msk1) + upsample2x(up21, li2)
    pli1[...] = li1
    out1_ref[0] = conv3x3(lambda o, n: pli1[pl.ds(o, n), :], 4, 4, ly1_w, ly1_b, False)

    li0 = lateral(pf0, in0_w, in0_b, msk0) + upsample2x(up10, li1)
    pli0[...] = li0
    out0_ref[0] = conv3x3(lambda o, n: pli0[pl.ds(o, n), :], 8, 8, ly0_w, ly0_b, False)


# ----------------------------------------------------------------------------
# Wrapper
# ----------------------------------------------------------------------------
def _replicated_spec(a):
    zeros = (0,) * a.ndim
    return pl.BlockSpec(a.shape, lambda n: zeros)


@jax.jit
def backbone_with_fpn_forward(params, x_nchw):
    N = x_nchw.shape[0]
    # Only the network input is padded / flattened here (one tiny XLA op);
    # all intermediate padding happens inside the fused kernel.
    x = jnp.transpose(x_nchw, (0, 2, 3, 1)).astype(jnp.float32)    # NHWC
    x = jnp.pad(x, ((0, 0), (1, 1), (1, 1), (0, 0)))
    x = x.reshape(N, 18 * 18, 4)                                   # flat padded rows

    # 0/1 helper matrices are exact in bf16 -> half the constant DMA + MXU passes.
    gp0 = jnp.asarray(_pool_gather_mat(16, 16), jnp.bfloat16)
    gp1 = jnp.asarray(_pool_gather_mat(8, 8), jnp.bfloat16)
    gp2 = jnp.asarray(_pool_gather_mat(4, 4), jnp.bfloat16)
    up10 = jnp.asarray(_upsample_mat(8, 8), jnp.bfloat16)
    up21 = jnp.asarray(_upsample_mat(4, 4), jnp.bfloat16)
    msk0, msk1, msk2 = (jnp.asarray(_interior_mask(8, 8)),
                        jnp.asarray(_interior_mask(4, 4)),
                        jnp.asarray(_interior_mask(2, 2)))

    def w16(k):  # bf16 MXU operands (f32 accumulation stays in-kernel)
        return params[k].astype(jnp.bfloat16)

    inputs = [
        x,
        w16("bb0_w"), params["bb0_b"], w16("bb1_w"), params["bb1_b"],
        w16("bb2_w"), params["bb2_b"],
        w16("inner0_w"), params["inner0_b"], w16("inner1_w"), params["inner1_b"],
        w16("inner2_w"), params["inner2_b"],
        w16("layer0_w"), params["layer0_b"], w16("layer1_w"), params["layer1_b"],
        w16("layer2_w"), params["layer2_b"],
        gp0, gp1, gp2, up10, up21, msk0, msk1, msk2,
    ]
    in_specs = [pl.BlockSpec((1, 18 * 18, 4), lambda n: (n, 0, 0))]
    in_specs += [_replicated_spec(a) for a in inputs[1:]]

    out_shape = (
        jax.ShapeDtypeStruct((N, 78, OUT_CHANNELS), jnp.float32),  # level 0 (pitched)
        jax.ShapeDtypeStruct((N, 22, OUT_CHANNELS), jnp.float32),  # level 1 (pitched)
        jax.ShapeDtypeStruct((N, 6, OUT_CHANNELS), jnp.float32),   # level 2 (pitched)
        jax.ShapeDtypeStruct((N, 1, OUT_CHANNELS), jnp.float32),   # pool
    )
    out_specs = (
        pl.BlockSpec((1, 78, OUT_CHANNELS), lambda n: (n, 0, 0)),
        pl.BlockSpec((1, 22, OUT_CHANNELS), lambda n: (n, 0, 0)),
        pl.BlockSpec((1, 6, OUT_CHANNELS), lambda n: (n, 0, 0)),
        pl.BlockSpec((1, 1, OUT_CHANNELS), lambda n: (n, 0, 0)),
    )
    scratch_shapes = [
        pltpu.VMEM((100, 16), jnp.float32),   # pf0: padded feat0 (8x8x16)
        pltpu.VMEM((36, 32), jnp.float32),    # pf1: padded feat1 (4x4x32)
        pltpu.VMEM((16, 64), jnp.float32),    # pf2: padded feat2 (2x2x64)
        pltpu.VMEM((100, 32), jnp.float32),   # pli0: padded last_inner level 0
        pltpu.VMEM((36, 32), jnp.float32),    # pli1
        pltpu.VMEM((16, 32), jnp.float32),    # pli2
        pltpu.VMEM((286, 16), jnp.float32),   # c0: stage-0 conv output (pitched)
        pltpu.VMEM((78, 32), jnp.float32),    # c1
        pltpu.VMEM((22, 64), jnp.float32),    # c2
    ]

    o0, o1, o2, op = pl.pallas_call(
        _fused_kernel,
        out_shape=out_shape,
        grid=(N,),
        in_specs=in_specs,
        out_specs=out_specs,
        scratch_shapes=scratch_shapes,
        compiler_params=pltpu.CompilerParams(
            dimension_semantics=("parallel",)),
    )(*inputs)

    def depitch(y, H, W):   # pitched (N, H*(W+2)-2, C) rows -> NCHW
        y = jnp.pad(y, ((0, 0), (0, 2), (0, 0)))
        y = y.reshape(N, H, W + 2, OUT_CHANNELS)[:, :, :W, :]
        return jnp.transpose(y, (0, 3, 1, 2))

    return {
        "0": depitch(o0, 8, 8),
        "1": depitch(o1, 4, 4),
        "2": depitch(o2, 2, 2),
        "pool": jnp.transpose(op.reshape(N, 1, 1, OUT_CHANNELS), (0, 3, 1, 2)),
    }


# ----------------------------------------------------------------------------
# Parameters (synthetic backbone + FPN)
# ----------------------------------------------------------------------------
def init_params(key):
    p = {}
    cin = 4
    for i, cout in enumerate(IN_CHANNELS_LIST):               # backbone stages
        key, kw, kb = jax.random.split(key, 3)
        scale = 1.0 / jnp.sqrt(9.0 * cin)
        p[f"bb{i}_w"] = scale * jax.random.normal(kw, (9, cin, cout), jnp.float32)
        p[f"bb{i}_b"] = 0.01 * jax.random.normal(kb, (1, cout), jnp.float32)
        cin = cout
    for i, c in enumerate(IN_CHANNELS_LIST):                   # FPN lateral (1x1)
        key, kw, kb = jax.random.split(key, 3)
        p[f"inner{i}_w"] = (1.0 / jnp.sqrt(float(c))) * jax.random.normal(
            kw, (c, OUT_CHANNELS), jnp.float32)
        p[f"inner{i}_b"] = 0.01 * jax.random.normal(kb, (1, OUT_CHANNELS), jnp.float32)
    for i in range(len(IN_CHANNELS_LIST)):                     # FPN output (3x3)
        key, kw, kb = jax.random.split(key, 3)
        p[f"layer{i}_w"] = (1.0 / jnp.sqrt(9.0 * OUT_CHANNELS)) * jax.random.normal(
            kw, (9, OUT_CHANNELS, OUT_CHANNELS), jnp.float32)
        p[f"layer{i}_b"] = 0.01 * jax.random.normal(kb, (1, OUT_CHANNELS), jnp.float32)
    return p


# ----------------------------------------------------------------------------
# Pure-JAX reference (for correctness check)
# ----------------------------------------------------------------------------
def _ref_forward(params, x_nchw):
    def conv3(x, w, b):
        w4 = w.reshape(3, 3, w.shape[1], w.shape[2])
        y = jax.lax.conv_general_dilated(
            x, w4, (1, 1), [(1, 1), (1, 1)],
            dimension_numbers=("NHWC", "HWIO", "NHWC"))
        return y + b.reshape(1, 1, 1, -1)

    def conv1(x, w, b):
        return jnp.einsum("nhwc,cd->nhwd", x, w) + b.reshape(1, 1, 1, -1)

    def mp2(x):
        return jax.lax.reduce_window(x, -jnp.inf, jax.lax.max,
                                     (1, 2, 2, 1), (1, 2, 2, 1), "VALID")

    h = jnp.transpose(x_nchw, (0, 2, 3, 1))
    feats = []
    for i in range(3):
        h = mp2(jnp.maximum(conv3(h, params[f"bb{i}_w"], params[f"bb{i}_b"]), 0.0))
        feats.append(h)
    last = conv1(feats[2], params["inner2_w"], params["inner2_b"])
    results = [None, None, conv3(last, params["layer2_w"], params["layer2_b"])]
    for idx in (1, 0):
        lat = conv1(feats[idx], params[f"inner{idx}_w"], params[f"inner{idx}_b"])
        up = jnp.repeat(jnp.repeat(last, 2, axis=1), 2, axis=2)
        last = lat + up
        results[idx] = conv3(last, params[f"layer{idx}_w"], params[f"layer{idx}_b"])
    pool = results[2][:, ::2, ::2, :]
    out = {"0": results[0], "1": results[1], "2": results[2], "pool": pool}
    return {k: jnp.transpose(v, (0, 3, 1, 2)) for k, v in out.items()}


# ----------------------------------------------------------------------------
if __name__ == "__main__":
    key = jax.random.PRNGKey(0)
    key, kx = jax.random.split(key)
    x = jax.random.normal(kx, (2, 4, 16, 16), jnp.float32)     # NCHW input
    params = init_params(key)

    out = backbone_with_fpn_forward(params, x)
    out = jax.tree_util.tree_map(jax.block_until_ready, out)

    ref = _ref_forward(params, x)
    for k in ("0", "1", "2", "pool"):
        assert out[k].shape == ref[k].shape, (k, out[k].shape, ref[k].shape)
        if not jnp.allclose(out[k], ref[k], atol=3e-2, rtol=3e-2):
            raise RuntimeError(
                f"mismatch at level {k}: max abs err "
                f"{float(jnp.max(jnp.abs(out[k] - ref[k])))}")

    print("KERNEL_OK")
</pallas_src>

<mosaic_0001>
module attributes {stable_mosaic.version = 11 : i64} {
  func.func @_fused_kernel(%arg0: i32, %arg1: memref<1x324x4xf32, #tpu.memory_space<vmem>>, %arg2: memref<9x4x16xbf16, #tpu.memory_space<vmem>>, %arg3: memref<1x16xf32, #tpu.memory_space<vmem>>, %arg4: memref<9x16x32xbf16, #tpu.memory_space<vmem>>, %arg5: memref<1x32xf32, #tpu.memory_space<vmem>>, %arg6: memref<9x32x64xbf16, #tpu.memory_space<vmem>>, %arg7: memref<1x64xf32, #tpu.memory_space<vmem>>, %arg8: memref<16x32xbf16, #tpu.memory_space<vmem>>, %arg9: memref<1x32xf32, #tpu.memory_space<vmem>>, %arg10: memref<32x32xbf16, #tpu.memory_space<vmem>>, %arg11: memref<1x32xf32, #tpu.memory_space<vmem>>, %arg12: memref<64x32xbf16, #tpu.memory_space<vmem>>, %arg13: memref<1x32xf32, #tpu.memory_space<vmem>>, %arg14: memref<9x32x32xbf16, #tpu.memory_space<vmem>>, %arg15: memref<1x32xf32, #tpu.memory_space<vmem>>, %arg16: memref<9x32x32xbf16, #tpu.memory_space<vmem>>, %arg17: memref<1x32xf32, #tpu.memory_space<vmem>>, %arg18: memref<9x32x32xbf16, #tpu.memory_space<vmem>>, %arg19: memref<1x32xf32, #tpu.memory_space<vmem>>, %arg20: memref<100x267xbf16, #tpu.memory_space<vmem>>, %arg21: memref<36x67xbf16, #tpu.memory_space<vmem>>, %arg22: memref<16x15xbf16, #tpu.memory_space<vmem>>, %arg23: memref<100x36xbf16, #tpu.memory_space<vmem>>, %arg24: memref<36x16xbf16, #tpu.memory_space<vmem>>, %arg25: memref<100x1xf32, #tpu.memory_space<vmem>>, %arg26: memref<36x1xf32, #tpu.memory_space<vmem>>, %arg27: memref<16x1xf32, #tpu.memory_space<vmem>>, %arg28: memref<1x78x32xf32, #tpu.memory_space<vmem>>, %arg29: memref<1x22x32xf32, #tpu.memory_space<vmem>>, %arg30: memref<1x6x32xf32, #tpu.memory_space<vmem>>, %arg31: memref<1x1x32xf32, #tpu.memory_space<vmem>>, %arg32: memref<100x16xf32, #tpu.memory_space<vmem>>, %arg33: memref<36x32xf32, #tpu.memory_space<vmem>>, %arg34: memref<16x64xf32, #tpu.memory_space<vmem>>, %arg35: memref<100x32xf32, #tpu.memory_space<vmem>>, %arg36: memref<36x32xf32, #tpu.memory_space<vmem>>, %arg37: memref<16x32xf32, #tpu.memory_space<vmem>>, %arg38: memref<286x16xf32, #tpu.memory_space<vmem>>, %arg39: memref<78x32xf32, #tpu.memory_space<vmem>>, %arg40: memref<22x64xf32, #tpu.memory_space<vmem>>) attributes {dimension_semantics = [#tpu.dimension_semantics<parallel>], iteration_bounds = array<i64: 2>, scalar_prefetch = 0 : i64, scratch_operands = 9 : i64, tpu.core_type = #tpu.core_type<tc>, window_params = [{transform_indices = @transform_0, window_bounds = array<i64: 1, 324, 4>}, {pipeline_mode = #tpu.pipeline_mode<synchronous>, transform_indices = @transform_1, window_bounds = array<i64: 9, 4, 16>}, {pipeline_mode = #tpu.pipeline_mode<synchronous>, transform_indices = @transform_2, window_bounds = array<i64: 1, 16>}, {pipeline_mode = #tpu.pipeline_mode<synchronous>, transform_indices = @transform_3, window_bounds = array<i64: 9, 16, 32>}, {pipeline_mode = #tpu.pipeline_mode<synchronous>, transform_indices = @transform_4, window_bounds = array<i64: 1, 32>}, {pipeline_mode = #tpu.pipeline_mode<synchronous>, transform_indices = @transform_5, window_bounds = array<i64: 9, 32, 64>}, {pipeline_mode = #tpu.pipeline_mode<synchronous>, transform_indices = @transform_6, window_bounds = array<i64: 1, 64>}, {pipeline_mode = #tpu.pipeline_mode<synchronous>, transform_indices = @transform_7, window_bounds = array<i64: 16, 32>}, {pipeline_mode = #tpu.pipeline_mode<synchronous>, transform_indices = @transform_8, window_bounds = array<i64: 1, 32>}, {pipeline_mode = #tpu.pipeline_mode<synchronous>, transform_indices = @transform_9, window_bounds = array<i64: 32, 32>}, {pipeline_mode = #tpu.pipeline_mode<synchronous>, transform_indices = @transform_10, window_bounds = array<i64: 1, 32>}, {pipeline_mode = #tpu.pipeline_mode<synchronous>, transform_indices = @transform_11, window_bounds = array<i64: 64, 32>}, {pipeline_mode = #tpu.pipeline_mode<synchronous>, transform_indices = @transform_12, window_bounds = array<i64: 1, 32>}, {pipeline_mode = #tpu.pipeline_mode<synchronous>, transform_indices = @transform_13, window_bounds = array<i64: 9, 32, 32>}, {pipeline_mode = #tpu.pipeline_mode<synchronous>, transform_indices = @transform_14, window_bounds = array<i64: 1, 32>}, {pipeline_mode = #tpu.pipeline_mode<synchronous>, transform_indices = @transform_15, window_bounds = array<i64: 9, 32, 32>}, {pipeline_mode = #tpu.pipeline_mode<synchronous>, transform_indices = @transform_16, window_bounds = array<i64: 1, 32>}, {pipeline_mode = #tpu.pipeline_mode<synchronous>, transform_indices = @transform_17, window_bounds = array<i64: 9, 32, 32>}, {pipeline_mode = #tpu.pipeline_mode<synchronous>, transform_indices = @transform_18, window_bounds = array<i64: 1, 32>}, {pipeline_mode = #tpu.pipeline_mode<synchronous>, transform_indices = @transform_19, window_bounds = array<i64: 100, 267>}, {pipeline_mode = #tpu.pipeline_mode<synchronous>, transform_indices = @transform_20, window_bounds = array<i64: 36, 67>}, {pipeline_mode = #tpu.pipeline_mode<synchronous>, transform_indices = @transform_21, window_bounds = array<i64: 16, 15>}, {pipeline_mode = #tpu.pipeline_mode<synchronous>, transform_indices = @transform_22, window_bounds = array<i64: 100, 36>}, {pipeline_mode = #tpu.pipeline_mode<synchronous>, transform_indices = @transform_23, window_bounds = array<i64: 36, 16>}, {pipeline_mode = #tpu.pipeline_mode<synchronous>, transform_indices = @transform_24, window_bounds = array<i64: 100, 1>}, {pipeline_mode = #tpu.pipeline_mode<synchronous>, transform_indices = @transform_25, window_bounds = array<i64: 36, 1>}, {pipeline_mode = #tpu.pipeline_mode<synchronous>, transform_indices = @transform_26, window_bounds = array<i64: 16, 1>}, {transform_indices = @transform_27, window_bounds = array<i64: 1, 78, 32>}, {transform_indices = @transform_28, window_bounds = array<i64: 1, 22, 32>}, {transform_indices = @transform_29, window_bounds = array<i64: 1, 6, 32>}, {transform_indices = @transform_30, window_bounds = array<i64: 1, 1, 32>}]} {
    %cst = arith.constant 0.000000e+00 : f32
    %0 = vector.broadcast %cst : f32 to vector<286x16xf32>
    %c0 = arith.constant 0 : index
    %c0_0 = arith.constant 0 : index
    %c0_1 = arith.constant 0 : index
    %1 = vector.load %arg1[%c0, %c0_0, %c0_1] : memref<1x324x4xf32, #tpu.memory_space<vmem>>, vector<1x286x4xf32>
    %2 = vector.shape_cast %1 : vector<1x286x4xf32> to vector<286x4xf32>
    %3 = arith.truncf %2 : vector<286x4xf32> to vector<286x4xbf16>
    %c0_2 = arith.constant 0 : index
    %c0_3 = arith.constant 0 : index
    %c0_4 = arith.constant 0 : index
    %4 = vector.load %arg2[%c0_2, %c0_3, %c0_4] : memref<9x4x16xbf16, #tpu.memory_space<vmem>>, vector<1x4x16xbf16>
    %5 = vector.shape_cast %4 : vector<1x4x16xbf16> to vector<4x16xbf16>
    %cst_5 = arith.constant dense<0.000000e+00> : vector<286x16xf32>
    %6 = tpu.matmul %3, %5, %cst_5 {dimension_numbers = #tpu.dot_dimension_numbers<[1], [0], [0], [1], [0, 0, 1, 1], [], []>} : vector<286x4xbf16>, vector<4x16xbf16>, vector<286x16xf32> -> vector<286x16xf32>
    %7 = arith.addf %0, %6 : vector<286x16xf32>
    %c0_6 = arith.constant 0 : index
    %c1 = arith.constant 1 : index
    %c0_7 = arith.constant 0 : index
    %8 = vector.load %arg1[%c0_6, %c1, %c0_7] : memref<1x324x4xf32, #tpu.memory_space<vmem>>, vector<1x286x4xf32>
    %9 = vector.shape_cast %8 : vector<1x286x4xf32> to vector<286x4xf32>
    %10 = arith.truncf %9 : vector<286x4xf32> to vector<286x4xbf16>
    %c1_8 = arith.constant 1 : index
    %c0_9 = arith.constant 0 : index
    %c0_10 = arith.constant 0 : index
    %11 = vector.load %arg2[%c1_8, %c0_9, %c0_10] : memref<9x4x16xbf16, #tpu.memory_space<vmem>>, vector<1x4x16xbf16>
    %12 = vector.shape_cast %11 : vector<1x4x16xbf16> to vector<4x16xbf16>
    %cst_11 = arith.constant dense<0.000000e+00> : vector<286x16xf32>
    %13 = tpu.matmul %10, %12, %cst_11 {dimension_numbers = #tpu.dot_dimension_numbers<[1], [0], [0], [1], [0, 0, 1, 1], [], []>} : vector<286x4xbf16>, vector<4x16xbf16>, vector<286x16xf32> -> vector<286x16xf32>
    %14 = arith.addf %7, %13 : vector<286x16xf32>
    %c0_12 = arith.constant 0 : index
    %c2 = arith.constant 2 : index
    %c0_13 = arith.constant 0 : index
    %15 = vector.load %arg1[%c0_12, %c2, %c0_13] : memref<1x324x4xf32, #tpu.memory_space<vmem>>, vector<1x286x4xf32>
    %16 = vector.shape_cast %15 : vector<1x286x4xf32> to vector<286x4xf32>
    %17 = arith.truncf %16 : vector<286x4xf32> to vector<286x4xbf16>
    %c2_14 = arith.constant 2 : index
    %c0_15 = arith.constant 0 : index
    %c0_16 = arith.constant 0 : index
    %18 = vector.load %arg2[%c2_14, %c0_15, %c0_16] : memref<9x4x16xbf16, #tpu.memory_space<vmem>>, vector<1x4x16xbf16>
    %19 = vector.shape_cast %18 : vector<1x4x16xbf16> to vector<4x16xbf16>
    %cst_17 = arith.constant dense<0.000000e+00> : vector<286x16xf32>
    %20 = tpu.matmul %17, %19, %cst_17 {dimension_numbers = #tpu.dot_dimension_numbers<[1], [0], [0], [1], [0, 0, 1, 1], [], []>} : vector<286x4xbf16>, vector<4x16xbf16>, vector<286x16xf32> -> vector<286x16xf32>
    %21 = arith.addf %14, %20 : vector<286x16xf32>
    %c0_18 = arith.constant 0 : index
    %c18 = arith.constant 18 : index
    %c0_19 = arith.constant 0 : index
    %22 = vector.load %arg1[%c0_18, %c18, %c0_19] : memref<1x324x4xf32, #tpu.memory_space<vmem>>, vector<1x286x4xf32>
    %23 = vector.shape_cast %22 : vector<1x286x4xf32> to vector<286x4xf32>
    %24 = arith.truncf %23 : vector<286x4xf32> to vector<286x4xbf16>
    %c3 = arith.constant 3 : index
    %c0_20 = arith.constant 0 : index
    %c0_21 = arith.constant 0 : index
    %25 = vector.load %arg2[%c3, %c0_20, %c0_21] : memref<9x4x16xbf16, #tpu.memory_space<vmem>>, vector<1x4x16xbf16>
    %26 = vector.shape_cast %25 : vector<1x4x16xbf16> to vector<4x16xbf16>
    %cst_22 = arith.constant dense<0.000000e+00> : vector<286x16xf32>
    %27 = tpu.matmul %24, %26, %cst_22 {dimension_numbers = #tpu.dot_dimension_numbers<[1], [0], [0], [1], [0, 0, 1, 1], [], []>} : vector<286x4xbf16>, vector<4x16xbf16>, vector<286x16xf32> -> vector<286x16xf32>
    %28 = arith.addf %21, %27 : vector<286x16xf32>
    %c0_23 = arith.constant 0 : index
    %c19 = arith.constant 19 : index
    %c0_24 = arith.constant 0 : index
    %29 = vector.load %arg1[%c0_23, %c19, %c0_24] : memref<1x324x4xf32, #tpu.memory_space<vmem>>, vector<1x286x4xf32>
    %30 = vector.shape_cast %29 : vector<1x286x4xf32> to vector<286x4xf32>
    %31 = arith.truncf %30 : vector<286x4xf32> to vector<286x4xbf16>
    %c4 = arith.constant 4 : index
    %c0_25 = arith.constant 0 : index
    %c0_26 = arith.constant 0 : index
    %32 = vector.load %arg2[%c4, %c0_25, %c0_26] : memref<9x4x16xbf16, #tpu.memory_space<vmem>>, vector<1x4x16xbf16>
    %33 = vector.shape_cast %32 : vector<1x4x16xbf16> to vector<4x16xbf16>
    %cst_27 = arith.constant dense<0.000000e+00> : vector<286x16xf32>
    %34 = tpu.matmul %31, %33, %cst_27 {dimension_numbers = #tpu.dot_dimension_numbers<[1], [0], [0], [1], [0, 0, 1, 1], [], []>} : vector<286x4xbf16>, vector<4x16xbf16>, vector<286x16xf32> -> vector<286x16xf32>
    %35 = arith.addf %28, %34 : vector<286x16xf32>
    %c0_28 = arith.constant 0 : index
    %c20 = arith.constant 20 : index
    %c0_29 = arith.constant 0 : index
    %36 = vector.load %arg1[%c0_28, %c20, %c0_29] : memref<1x324x4xf32, #tpu.memory_space<vmem>>, vector<1x286x4xf32>
    %37 = vector.shape_cast %36 : vector<1x286x4xf32> to vector<286x4xf32>
    %38 = arith.truncf %37 : vector<286x4xf32> to vector<286x4xbf16>
    %c5 = arith.constant 5 : index
    %c0_30 = arith.constant 0 : index
    %c0_31 = arith.constant 0 : index
    %39 = vector.load %arg2[%c5, %c0_30, %c0_31] : memref<9x4x16xbf16, #tpu.memory_space<vmem>>, vector<1x4x16xbf16>
    %40 = vector.shape_cast %39 : vector<1x4x16xbf16> to vector<4x16xbf16>
    %cst_32 = arith.constant dense<0.000000e+00> : vector<286x16xf32>
    %41 = tpu.matmul %38, %40, %cst_32 {dimension_numbers = #tpu.dot_dimension_numbers<[1], [0], [0], [1], [0, 0, 1, 1], [], []>} : vector<286x4xbf16>, vector<4x16xbf16>, vector<286x16xf32> -> vector<286x16xf32>
    %42 = arith.addf %35, %41 : vector<286x16xf32>
    %c0_33 = arith.constant 0 : index
    %c36 = arith.constant 36 : index
    %c0_34 = arith.constant 0 : index
    %43 = vector.load %arg1[%c0_33, %c36, %c0_34] : memref<1x324x4xf32, #tpu.memory_space<vmem>>, vector<1x286x4xf32>
    %44 = vector.shape_cast %43 : vector<1x286x4xf32> to vector<286x4xf32>
    %45 = arith.truncf %44 : vector<286x4xf32> to vector<286x4xbf16>
    %c6 = arith.constant 6 : index
    %c0_35 = arith.constant 0 : index
    %c0_36 = arith.constant 0 : index
    %46 = vector.load %arg2[%c6, %c0_35, %c0_36] : memref<9x4x16xbf16, #tpu.memory_space<vmem>>, vector<1x4x16xbf16>
    %47 = vector.shape_cast %46 : vector<1x4x16xbf16> to vector<4x16xbf16>
    %cst_37 = arith.constant dense<0.000000e+00> : vector<286x16xf32>
    %48 = tpu.matmul %45, %47, %cst_37 {dimension_numbers = #tpu.dot_dimension_numbers<[1], [0], [0], [1], [0, 0, 1, 1], [], []>} : vector<286x4xbf16>, vector<4x16xbf16>, vector<286x16xf32> -> vector<286x16xf32>
    %49 = arith.addf %42, %48 : vector<286x16xf32>
    %c0_38 = arith.constant 0 : index
    %c37 = arith.constant 37 : index
    %c0_39 = arith.constant 0 : index
    %50 = vector.load %arg1[%c0_38, %c37, %c0_39] : memref<1x324x4xf32, #tpu.memory_space<vmem>>, vector<1x286x4xf32>
    %51 = vector.shape_cast %50 : vector<1x286x4xf32> to vector<286x4xf32>
    %52 = arith.truncf %51 : vector<286x4xf32> to vector<286x4xbf16>
    %c7 = arith.constant 7 : index
    %c0_40 = arith.constant 0 : index
    %c0_41 = arith.constant 0 : index
    %53 = vector.load %arg2[%c7, %c0_40, %c0_41] : memref<9x4x16xbf16, #tpu.memory_space<vmem>>, vector<1x4x16xbf16>
    %54 = vector.shape_cast %53 : vector<1x4x16xbf16> to vector<4x16xbf16>
    %cst_42 = arith.constant dense<0.000000e+00> : vector<286x16xf32>
    %55 = tpu.matmul %52, %54, %cst_42 {dimension_numbers = #tpu.dot_dimension_numbers<[1], [0], [0], [1], [0, 0, 1, 1], [], []>} : vector<286x4xbf16>, vector<4x16xbf16>, vector<286x16xf32> -> vector<286x16xf32>
    %56 = arith.addf %49, %55 : vector<286x16xf32>
    %c0_43 = arith.constant 0 : index
    %c38 = arith.constant 38 : index
    %c0_44 = arith.constant 0 : index
    %57 = vector.load %arg1[%c0_43, %c38, %c0_44] : memref<1x324x4xf32, #tpu.memory_space<vmem>>, vector<1x286x4xf32>
    %58 = vector.shape_cast %57 : vector<1x286x4xf32> to vector<286x4xf32>
    %59 = arith.truncf %58 : vector<286x4xf32> to vector<286x4xbf16>
    %c8 = arith.constant 8 : index
    %c0_45 = arith.constant 0 : index
    %c0_46 = arith.constant 0 : index
    %60 = vector.load %arg2[%c8, %c0_45, %c0_46] : memref<9x4x16xbf16, #tpu.memory_space<vmem>>, vector<1x4x16xbf16>
    %61 = vector.shape_cast %60 : vector<1x4x16xbf16> to vector<4x16xbf16>
    %cst_47 = arith.constant dense<0.000000e+00> : vector<286x16xf32>
    %62 = tpu.matmul %59, %61, %cst_47 {dimension_numbers = #tpu.dot_dimension_numbers<[1], [0], [0], [1], [0, 0, 1, 1], [], []>} : vector<286x4xbf16>, vector<4x16xbf16>, vector<286x16xf32> -> vector<286x16xf32>
    %63 = arith.addf %56, %62 : vector<286x16xf32>
    %c0_48 = arith.constant 0 : index
    %c0_49 = arith.constant 0 : index
    %64 = vector.load %arg3[%c0_48, %c0_49] : memref<1x16xf32, #tpu.memory_space<vmem>>, vector<1x16xf32>
    %65 = vector.broadcast %64 : vector<1x16xf32> to vector<286x16xf32>
    %66 = arith.addf %63, %65 : vector<286x16xf32>
    %cst_50 = arith.constant 0.000000e+00 : f32
    %67 = vector.broadcast %cst_50 : f32 to vector<286x16xf32>
    %68 = arith.maximumf %66, %67 : vector<286x16xf32>
    %c0_51 = arith.constant 0 : index
    %c0_52 = arith.constant 0 : index
    %69 = vector.load %arg38[%c0_51, %c0_52] : memref<286x16xf32, #tpu.memory_space<vmem>>, vector<286x16xf32>
    tpu.vector_store %arg38[%c0_51, %c0_52], %68 {strides = array<i32>} : memref<286x16xf32, #tpu.memory_space<vmem>>, vector<286x16xf32>,
    %c0_53 = arith.constant 0 : index
    %c0_54 = arith.constant 0 : index
    %70 = vector.load %arg38[%c0_53, %c0_54] : memref<286x16xf32, #tpu.memory_space<vmem>>, vector<267x16xf32>
    %c1_55 = arith.constant 1 : index
    %c0_56 = arith.constant 0 : index
    %71 = vector.load %arg38[%c1_55, %c0_56] : memref<286x16xf32, #tpu.memory_space<vmem>>, vector<267x16xf32>
    %72 = arith.maximumf %70, %71 : vector<267x16xf32>
    %c18_57 = arith.constant 18 : index
    %c0_58 = arith.constant 0 : index
    %73 = vector.load %arg38[%c18_57, %c0_58] : memref<286x16xf32, #tpu.memory_space<vmem>>, vector<267x16xf32>
    %c19_59 = arith.constant 19 : index
    %c0_60 = arith.constant 0 : index
    %74 = vector.load %arg38[%c19_59, %c0_60] : memref<286x16xf32, #tpu.memory_space<vmem>>, vector<267x16xf32>
    %75 = arith.maximumf %73, %74 : vector<267x16xf32>
    %76 = arith.maximumf %72, %75 : vector<267x16xf32>
    %c0_61 = arith.constant 0 : index
    %c0_62 = arith.constant 0 : index
    %77 = vector.load %arg20[%c0_61, %c0_62] : memref<100x267xbf16, #tpu.memory_space<vmem>>, vector<100x267xbf16>
    %78 = arith.truncf %76 : vector<267x16xf32> to vector<267x16xbf16>
    %cst_63 = arith.constant dense<0.000000e+00> : vector<100x16xf32>
    %79 = tpu.matmul %77, %78, %cst_63 {dimension_numbers = #tpu.dot_dimension_numbers<[1], [0], [0], [1], [0, 0, 1, 1], [], []>} : vector<100x267xbf16>, vector<267x16xbf16>, vector<100x16xf32> -> vector<100x16xf32>
    %c0_64 = arith.constant 0 : index
    %c0_65 = arith.constant 0 : index
    %80 = vector.load %arg32[%c0_64, %c0_65] : memref<100x16xf32, #tpu.memory_space<vmem>>, vector<100x16xf32>
    tpu.vector_store %arg32[%c0_64, %c0_65], %79 {strides = array<i32>} : memref<100x16xf32, #tpu.memory_space<vmem>>, vector<100x16xf32>,
    %cst_66 = arith.constant 0.000000e+00 : f32
    %81 = vector.broadcast %cst_66 : f32 to vector<78x32xf32>
    %c0_67 = arith.constant 0 : index
    %c0_68 = arith.constant 0 : index
    %82 = vector.load %arg32[%c0_67, %c0_68] : memref<100x16xf32, #tpu.memory_space<vmem>>, vector<78x16xf32>
    %83 = arith.truncf %82 : vector<78x16xf32> to vector<78x16xbf16>
    %c0_69 = arith.constant 0 : index
    %c0_70 = arith.constant 0 : index
    %c0_71 = arith.constant 0 : index
    %84 = vector.load %arg4[%c0_69, %c0_70, %c0_71] : memref<9x16x32xbf16, #tpu.memory_space<vmem>>, vector<1x16x32xbf16>
    %85 = vector.shape_cast %84 : vector<1x16x32xbf16> to vector<16x32xbf16>
    %cst_72 = arith.constant dense<0.000000e+00> : vector<78x32xf32>
    %86 = tpu.matmul %83, %85, %cst_72 {dimension_numbers = #tpu.dot_dimension_numbers<[1], [0], [0], [1], [0, 0, 1, 1], [], []>} : vector<78x16xbf16>, vector<16x32xbf16>, vector<78x32xf32> -> vector<78x32xf32>
    %87 = arith.addf %81, %86 : vector<78x32xf32>
    %c1_73 = arith.constant 1 : index
    %c0_74 = arith.constant 0 : index
    %88 = vector.load %arg32[%c1_73, %c0_74] : memref<100x16xf32, #tpu.memory_space<vmem>>, vector<78x16xf32>
    %89 = arith.truncf %88 : vector<78x16xf32> to vector<78x16xbf16>
    %c1_75 = arith.constant 1 : index
    %c0_76 = arith.constant 0 : index
    %c0_77 = arith.constant 0 : index
    %90 = vector.load %arg4[%c1_75, %c0_76, %c0_77] : memref<9x16x32xbf16, #tpu.memory_space<vmem>>, vector<1x16x32xbf16>
    %91 = vector.shape_cast %90 : vector<1x16x32xbf16> to vector<16x32xbf16>
    %cst_78 = arith.constant dense<0.000000e+00> : vector<78x32xf32>
    %92 = tpu.matmul %89, %91, %cst_78 {dimension_numbers = #tpu.dot_dimension_numbers<[1], [0], [0], [1], [0, 0, 1, 1], [], []>} : vector<78x16xbf16>, vector<16x32xbf16>, vector<78x32xf32> -> vector<78x32xf32>
    %93 = arith.addf %87, %92 : vector<78x32xf32>
    %c2_79 = arith.constant 2 : index
    %c0_80 = arith.constant 0 : index
    %94 = vector.load %arg32[%c2_79, %c0_80] : memref<100x16xf32, #tpu.memory_space<vmem>>, vector<78x16xf32>
    %95 = arith.truncf %94 : vector<78x16xf32> to vector<78x16xbf16>
    %c2_81 = arith.constant 2 : index
    %c0_82 = arith.constant 0 : index
    %c0_83 = arith.constant 0 : index
    %96 = vector.load %arg4[%c2_81, %c0_82, %c0_83] : memref<9x16x32xbf16, #tpu.memory_space<vmem>>, vector<1x16x32xbf16>
    %97 = vector.shape_cast %96 : vector<1x16x32xbf16> to vector<16x32xbf16>
    %cst_84 = arith.constant dense<0.000000e+00> : vector<78x32xf32>
    %98 = tpu.matmul %95, %97, %cst_84 {dimension_numbers = #tpu.dot_dimension_numbers<[1], [0], [0], [1], [0, 0, 1, 1], [], []>} : vector<78x16xbf16>, vector<16x32xbf16>, vector<78x32xf32> -> vector<78x32xf32>
    %99 = arith.addf %93, %98 : vector<78x32xf32>
    %c10 = arith.constant 10 : index
    %c0_85 = arith.constant 0 : index
    %100 = vector.load %arg32[%c10, %c0_85] : memref<100x16xf32, #tpu.memory_space<vmem>>, vector<78x16xf32>
    %101 = arith.truncf %100 : vector<78x16xf32> to vector<78x16xbf16>
    %c3_86 = arith.constant 3 : index
    %c0_87 = arith.constant 0 : index
    %c0_88 = arith.constant 0 : index
    %102 = vector.load %arg4[%c3_86, %c0_87, %c0_88] : memref<9x16x32xbf16, #tpu.memory_space<vmem>>, vector<1x16x32xbf16>
    %103 = vector.shape_cast %102 : vector<1x16x32xbf16> to vector<16x32xbf16>
    %cst_89 = arith.constant dense<0.000000e+00> : vector<78x32xf32>
    %104 = tpu.matmul %101, %103, %cst_89 {dimension_numbers = #tpu.dot_dimension_numbers<[1], [0], [0], [1], [0, 0, 1, 1], [], []>} : vector<78x16xbf16>, vector<16x32xbf16>, vector<78x32xf32> -> vector<78x32xf32>
    %105 = arith.addf %99, %104 : vector<78x32xf32>
    %c11 = arith.constant 11 : index
    %c0_90 = arith.constant 0 : index
    %106 = vector.load %arg32[%c11, %c0_90] : memref<100x16xf32, #tpu.memory_space<vmem>>, vector<78x16xf32>
    %107 = arith.truncf %106 : vector<78x16xf32> to vector<78x16xbf16>
    %c4_91 = arith.constant 4 : index
    %c0_92 = arith.constant 0 : index
    %c0_93 = arith.constant 0 : index
    %108 = vector.load %arg4[%c4_91, %c0_92, %c0_93] : memref<9x16x32xbf16, #tpu.memory_space<vmem>>, vector<1x16x32xbf16>
    %109 = vector.shape_cast %108 : vector<1x16x32xbf16> to vector<16x32xbf16>
    %cst_94 = arith.constant dense<0.000000e+00> : vector<78x32xf32>
    %110 = tpu.matmul %107, %109, %cst_94 {dimension_numbers = #tpu.dot_dimension_numbers<[1], [0], [0], [1], [0, 0, 1, 1], [], []>} : vector<78x16xbf16>, vector<16x32xbf16>, vector<78x32xf32> -> vector<78x32xf32>
    %111 = arith.addf %105, %110 : vector<78x32xf32>
    %c12 = arith.constant 12 : index
    %c0_95 = arith.constant 0 : index
    %112 = vector.load %arg32[%c12, %c0_95] : memref<100x16xf32, #tpu.memory_space<vmem>>, vector<78x16xf32>
    %113 = arith.truncf %112 : vector<78x16xf32> to vector<78x16xbf16>
    %c5_96 = arith.constant 5 : index
    %c0_97 = arith.constant 0 : index
    %c0_98 = arith.constant 0 : index
    %114 = vector.load %arg4[%c5_96, %c0_97, %c0_98] : memref<9x16x32xbf16, #tpu.memory_space<vmem>>, vector<1x16x32xbf16>
    %115 = vector.shape_cast %114 : vector<1x16x32xbf16> to vector<16x32xbf16>
    %cst_99 = arith.constant dense<0.000000e+00> : vector<78x32xf32>
    %116 = tpu.matmul %113, %115, %cst_99 {dimension_numbers = #tpu.dot_dimension_numbers<[1], [0], [0], [1], [0, 0, 1, 1], [], []>} : vector<78x16xbf16>, vector<16x32xbf16>, vector<78x32xf32> -> vector<78x32xf32>
    %117 = arith.addf %111, %116 : vector<78x32xf32>
    %c20_100 = arith.constant 20 : index
    %c0_101 = arith.constant 0 : index
    %118 = vector.load %arg32[%c20_100, %c0_101] : memref<100x16xf32, #tpu.memory_space<vmem>>, vector<78x16xf32>
    %119 = arith.truncf %118 : vector<78x16xf32> to vector<78x16xbf16>
    %c6_102 = arith.constant 6 : index
    %c0_103 = arith.constant 0 : index
    %c0_104 = arith.constant 0 : index
    %120 = vector.load %arg4[%c6_102, %c0_103, %c0_104] : memref<9x16x32xbf16, #tpu.memory_space<vmem>>, vector<1x16x32xbf16>
    %121 = vector.shape_cast %120 : vector<1x16x32xbf16> to vector<16x32xbf16>
    %cst_105 = arith.constant dense<0.000000e+00> : vector<78x32xf32>
    %122 = tpu.matmul %119, %121, %cst_105 {dimension_numbers = #tpu.dot_dimension_numbers<[1], [0], [0], [1], [0, 0, 1, 1], [], []>} : vector<78x16xbf16>, vector<16x32xbf16>, vector<78x32xf32> -> vector<78x32xf32>
    %123 = arith.addf %117, %122 : vector<78x32xf32>
    %c21 = arith.constant 21 : index
    %c0_106 = arith.constant 0 : index
    %124 = vector.load %arg32[%c21, %c0_106] : memref<100x16xf32, #tpu.memory_space<vmem>>, vector<78x16xf32>
    %125 = arith.truncf %124 : vector<78x16xf32> to vector<78x16xbf16>
    %c7_107 = arith.constant 7 : index
    %c0_108 = arith.constant 0 : index
    %c0_109 = arith.constant 0 : index
    %126 = vector.load %arg4[%c7_107, %c0_108, %c0_109] : memref<9x16x32xbf16, #tpu.memory_space<vmem>>, vector<1x16x32xbf16>
    %127 = vector.shape_cast %126 : vector<1x16x32xbf16> to vector<16x32xbf16>
    %cst_110 = arith.constant dense<0.000000e+00> : vector<78x32xf32>
    %128 = tpu.matmul %125, %127, %cst_110 {dimension_numbers = #tpu.dot_dimension_numbers<[1], [0], [0], [1], [0, 0, 1, 1], [], []>} : vector<78x16xbf16>, vector<16x32xbf16>, vector<78x32xf32> -> vector<78x32xf32>
    %129 = arith.addf %123, %128 : vector<78x32xf32>
    %c22 = arith.constant 22 : index
    %c0_111 = arith.constant 0 : index
    %130 = vector.load %arg32[%c22, %c0_111] : memref<100x16xf32, #tpu.memory_space<vmem>>, vector<78x16xf32>
    %131 = arith.truncf %130 : vector<78x16xf32> to vector<78x16xbf16>
    %c8_112 = arith.constant 8 : index
    %c0_113 = arith.constant 0 : index
    %c0_114 = arith.constant 0 : index
    %132 = vector.load %arg4[%c8_112, %c0_113, %c0_114] : memref<9x16x32xbf16, #tpu.memory_space<vmem>>, vector<1x16x32xbf16>
    %133 = vector.shape_cast %132 : vector<1x16x32xbf16> to vector<16x32xbf16>
    %cst_115 = arith.constant dense<0.000000e+00> : vector<78x32xf32>
    %134 = tpu.matmul %131, %133, %cst_115 {dimension_numbers = #tpu.dot_dimension_numbers<[1], [0], [0], [1], [0, 0, 1, 1], [], []>} : vector<78x16xbf16>, vector<16x32xbf16>, vector<78x32xf32> -> vector<78x32xf32>
    %135 = arith.addf %129, %134 : vector<78x32xf32>
    %c0_116 = arith.constant 0 : index
    %c0_117 = arith.constant 0 : index
    %136 = vector.load %arg5[%c0_116, %c0_117] : memref<1x32xf32, #tpu.memory_space<vmem>>, vector<1x32xf32>
    %137 = vector.broadcast %136 : vector<1x32xf32> to vector<78x32xf32>
    %138 = arith.addf %135, %137 : vector<78x32xf32>
    %cst_118 = arith.constant 0.000000e+00 : f32
    %139 = vector.broadcast %cst_118 : f32 to vector<78x32xf32>
    %140 = arith.maximumf %138, %139 : vector<78x32xf32>
    %c0_119 = arith.constant 0 : index
    %c0_120 = arith.constant 0 : index
    %141 = vector.load %arg39[%c0_119, %c0_120] : memref<78x32xf32, #tpu.memory_space<vmem>>, vector<78x32xf32>
    tpu.vector_store %arg39[%c0_119, %c0_120], %140 {strides = array<i32>} : memref<78x32xf32, #tpu.memory_space<vmem>>, vector<78x32xf32>,
    %c0_121 = arith.constant 0 : index
    %c0_122 = arith.constant 0 : index
    %142 = vector.load %arg39[%c0_121, %c0_122] : memref<78x32xf32, #tpu.memory_space<vmem>>, vector<67x32xf32>
    %c1_123 = arith.constant 1 : index
    %c0_124 = arith.constant 0 : index
    %143 = vector.load %arg39[%c1_123, %c0_124] : memref<78x32xf32, #tpu.memory_space<vmem>>, vector<67x32xf32>
    %144 = arith.maximumf %142, %143 : vector<67x32xf32>
    %c10_125 = arith.constant 10 : index
    %c0_126 = arith.constant 0 : index
    %145 = vector.load %arg39[%c10_125, %c0_126] : memref<78x32xf32, #tpu.memory_space<vmem>>, vector<67x32xf32>
    %c11_127 = arith.constant 11 : index
    %c0_128 = arith.constant 0 : index
    %146 = vector.load %arg39[%c11_127, %c0_128] : memref<78x32xf32, #tpu.memory_space<vmem>>, vector<67x32xf32>
    %147 = arith.maximumf %145, %146 : vector<67x32xf32>
    %148 = arith.maximumf %144, %147 : vector<67x32xf32>
    %c0_129 = arith.constant 0 : index
    %c0_130 = arith.constant 0 : index
    %149 = vector.load %arg21[%c0_129, %c0_130] : memref<36x67xbf16, #tpu.memory_space<vmem>>, vector<36x67xbf16>
    %150 = arith.truncf %148 : vector<67x32xf32> to vector<67x32xbf16>
    %cst_131 = arith.constant dense<0.000000e+00> : vector<36x32xf32>
    %151 = tpu.matmul %149, %150, %cst_131 {dimension_numbers = #tpu.dot_dimension_numbers<[1], [0], [0], [1], [0, 0, 1, 1], [], []>} : vector<36x67xbf16>, vector<67x32xbf16>, vector<36x32xf32> -> vector<36x32xf32>
    %c0_132 = arith.constant 0 : index
    %c0_133 = arith.constant 0 : index
    %152 = vector.load %arg33[%c0_132, %c0_133] : memref<36x32xf32, #tpu.memory_space<vmem>>, vector<36x32xf32>
    tpu.vector_store %arg33[%c0_132, %c0_133], %151 {strides = array<i32>} : memref<36x32xf32, #tpu.memory_space<vmem>>, vector<36x32xf32>,
    %cst_134 = arith.constant 0.000000e+00 : f32
    %153 = vector.broadcast %cst_134 : f32 to vector<22x64xf32>
    %c0_135 = arith.constant 0 : index
    %c0_136 = arith.constant 0 : index
    %154 = vector.load %arg33[%c0_135, %c0_136] : memref<36x32xf32, #tpu.memory_space<vmem>>, vector<22x32xf32>
    %155 = arith.truncf %154 : vector<22x32xf32> to vector<22x32xbf16>
    %c0_137 = arith.constant 0 : index
    %c0_138 = arith.constant 0 : index
    %c0_139 = arith.constant 0 : index
    %156 = vector.load %arg6[%c0_137, %c0_138, %c0_139] : memref<9x32x64xbf16, #tpu.memory_space<vmem>>, vector<1x32x64xbf16>
    %157 = vector.shape_cast %156 : vector<1x32x64xbf16> to vector<32x64xbf16>
    %cst_140 = arith.constant dense<0.000000e+00> : vector<22x64xf32>
    %158 = tpu.matmul %155, %157, %cst_140 {dimension_numbers = #tpu.dot_dimension_numbers<[1], [0], [0], [1], [0, 0, 1, 1], [], []>} : vector<22x32xbf16>, vector<32x64xbf16>, vector<22x64xf32> -> vector<22x64xf32>
    %159 = arith.addf %153, %158 : vector<22x64xf32>
    %c1_141 = arith.constant 1 : index
    %c0_142 = arith.constant 0 : index
    %160 = vector.load %arg33[%c1_141, %c0_142] : memref<36x32xf32, #tpu.memory_space<vmem>>, vector<22x32xf32>
    %161 = arith.truncf %160 : vector<22x32xf32> to vector<22x32xbf16>
    %c1_143 = arith.constant 1 : index
    %c0_144 = arith.constant 0 : index
    %c0_145 = arith.constant 0 : index
    %162 = vector.load %arg6[%c1_143, %c0_144, %c0_145] : memref<9x32x64xbf16, #tpu.memory_space<vmem>>, vector<1x32x64xbf16>
    %163 = vector.shape_cast %162 : vector<1x32x64xbf16> to vector<32x64xbf16>
    %cst_146 = arith.constant dense<0.000000e+00> : vector<22x64xf32>
    %164 = tpu.matmul %161, %163, %cst_146 {dimension_numbers = #tpu.dot_dimension_numbers<[1], [0], [0], [1], [0, 0, 1, 1], [], []>} : vector<22x32xbf16>, vector<32x64xbf16>, vector<22x64xf32> -> vector<22x64xf32>
    %165 = arith.addf %159, %164 : vector<22x64xf32>
    %c2_147 = arith.constant 2 : index
    %c0_148 = arith.constant 0 : index
    %166 = vector.load %arg33[%c2_147, %c0_148] : memref<36x32xf32, #tpu.memory_space<vmem>>, vector<22x32xf32>
    %167 = arith.truncf %166 : vector<22x32xf32> to vector<22x32xbf16>
    %c2_149 = arith.constant 2 : index
    %c0_150 = arith.constant 0 : index
    %c0_151 = arith.constant 0 : index
    %168 = vector.load %arg6[%c2_149, %c0_150, %c0_151] : memref<9x32x64xbf16, #tpu.memory_space<vmem>>, vector<1x32x64xbf16>
    %169 = vector.shape_cast %168 : vector<1x32x64xbf16> to vector<32x64xbf16>
    %cst_152 = arith.constant dense<0.000000e+00> : vector<22x64xf32>
    %170 = tpu.matmul %167, %169, %cst_152 {dimension_numbers = #tpu.dot_dimension_numbers<[1], [0], [0], [1], [0, 0, 1, 1], [], []>} : vector<22x32xbf16>, vector<32x64xbf16>, vector<22x64xf32> -> vector<22x64xf32>
    %171 = arith.addf %165, %170 : vector<22x64xf32>
    %c6_153 = arith.constant 6 : index
    %c0_154 = arith.constant 0 : index
    %172 = vector.load %arg33[%c6_153, %c0_154] : memref<36x32xf32, #tpu.memory_space<vmem>>, vector<22x32xf32>
    %173 = arith.truncf %172 : vector<22x32xf32> to vector<22x32xbf16>
    %c3_155 = arith.constant 3 : index
    %c0_156 = arith.constant 0 : index
    %c0_157 = arith.constant 0 : index
    %174 = vector.load %arg6[%c3_155, %c0_156, %c0_157] : memref<9x32x64xbf16, #tpu.memory_space<vmem>>, vector<1x32x64xbf16>
    %175 = vector.shape_cast %174 : vector<1x32x64xbf16> to vector<32x64xbf16>
    %cst_158 = arith.constant dense<0.000000e+00> : vector<22x64xf32>
    %176 = tpu.matmul %173, %175, %cst_158 {dimension_numbers = #tpu.dot_dimension_numbers<[1], [0], [0], [1], [0, 0, 1, 1], [], []>} : vector<22x32xbf16>, vector<32x64xbf16>, vector<22x64xf32> -> vector<22x64xf32>
    %177 = arith.addf %171, %176 : vector<22x64xf32>
    %c7_159 = arith.constant 7 : index
    %c0_160 = arith.constant 0 : index
    %178 = vector.load %arg33[%c7_159, %c0_160] : memref<36x32xf32, #tpu.memory_space<vmem>>, vector<22x32xf32>
    %179 = arith.truncf %178 : vector<22x32xf32> to vector<22x32xbf16>
    %c4_161 = arith.constant 4 : index
    %c0_162 = arith.constant 0 : index
    %c0_163 = arith.constant 0 : index
    %180 = vector.load %arg6[%c4_161, %c0_162, %c0_163] : memref<9x32x64xbf16, #tpu.memory_space<vmem>>, vector<1x32x64xbf16>
    %181 = vector.shape_cast %180 : vector<1x32x64xbf16> to vector<32x64xbf16>
    %cst_164 = arith.constant dense<0.000000e+00> : vector<22x64xf32>
    %182 = tpu.matmul %179, %181, %cst_164 {dimension_numbers = #tpu.dot_dimension_numbers<[1], [0], [0], [1], [0, 0, 1, 1], [], []>} : vector<22x32xbf16>, vector<32x64xbf16>, vector<22x64xf32> -> vector<22x64xf32>
    %183 = arith.addf %177, %182 : vector<22x64xf32>
    %c8_165 = arith.constant 8 : index
    %c0_166 = arith.constant 0 : index
    %184 = vector.load %arg33[%c8_165, %c0_166] : memref<36x32xf32, #tpu.memory_space<vmem>>, vector<22x32xf32>
    %185 = arith.truncf %184 : vector<22x32xf32> to vector<22x32xbf16>
    %c5_167 = arith.constant 5 : index
    %c0_168 = arith.constant 0 : index
    %c0_169 = arith.constant 0 : index
    %186 = vector.load %arg6[%c5_167, %c0_168, %c0_169] : memref<9x32x64xbf16, #tpu.memory_space<vmem>>, vector<1x32x64xbf16>
    %187 = vector.shape_cast %186 : vector<1x32x64xbf16> to vector<32x64xbf16>
    %cst_170 = arith.constant dense<0.000000e+00> : vector<22x64xf32>
    %188 = tpu.matmul %185, %187, %cst_170 {dimension_numbers = #tpu.dot_dimension_numbers<[1], [0], [0], [1], [0, 0, 1, 1], [], []>} : vector<22x32xbf16>, vector<32x64xbf16>, vector<22x64xf32> -> vector<22x64xf32>
    %189 = arith.addf %183, %188 : vector<22x64xf32>
    %c12_171 = arith.constant 12 : index
    %c0_172 = arith.constant 0 : index
    %190 = vector.load %arg33[%c12_171, %c0_172] : memref<36x32xf32, #tpu.memory_space<vmem>>, vector<22x32xf32>
    %191 = arith.truncf %190 : vector<22x32xf32> to vector<22x32xbf16>
    %c6_173 = arith.constant 6 : index
    %c0_174 = arith.constant 0 : index
    %c0_175 = arith.constant 0 : index
    %192 = vector.load %arg6[%c6_173, %c0_174, %c0_175] : memref<9x32x64xbf16, #tpu.memory_space<vmem>>, vector<1x32x64xbf16>
    %193 = vector.shape_cast %192 : vector<1x32x64xbf16> to vector<32x64xbf16>
    %cst_176 = arith.constant dense<0.000000e+00> : vector<22x64xf32>
    %194 = tpu.matmul %191, %193, %cst_176 {dimension_numbers = #tpu.dot_dimension_numbers<[1], [0], [0], [1], [0, 0, 1, 1], [], []>} : vector<22x32xbf16>, vector<32x64xbf16>, vector<22x64xf32> -> vector<22x64xf32>
    %195 = arith.addf %189, %194 : vector<22x64xf32>
    %c13 = arith.constant 13 : index
    %c0_177 = arith.constant 0 : index
    %196 = vector.load %arg33[%c13, %c0_177] : memref<36x32xf32, #tpu.memory_space<vmem>>, vector<22x32xf32>
    %197 = arith.truncf %196 : vector<22x32xf32> to vector<22x32xbf16>
    %c7_178 = arith.constant 7 : index
    %c0_179 = arith.constant 0 : index
    %c0_180 = arith.constant 0 : index
    %198 = vector.load %arg6[%c7_178, %c0_179, %c0_180] : memref<9x32x64xbf16, #tpu.memory_space<vmem>>, vector<1x32x64xbf16>
    %199 = vector.shape_cast %198 : vector<1x32x64xbf16> to vector<32x64xbf16>
    %cst_181 = arith.constant dense<0.000000e+00> : vector<22x64xf32>
    %200 = tpu.matmul %197, %199, %cst_181 {dimension_numbers = #tpu.dot_dimension_numbers<[1], [0], [0], [1], [0, 0, 1, 1], [], []>} : vector<22x32xbf16>, vector<32x64xbf16>, vector<22x64xf32> -> vector<22x64xf32>
    %201 = arith.addf %195, %200 : vector<22x64xf32>
    %c14 = arith.constant 14 : index
    %c0_182 = arith.constant 0 : index
    %202 = vector.load %arg33[%c14, %c0_182] : memref<36x32xf32, #tpu.memory_space<vmem>>, vector<22x32xf32>
    %203 = arith.truncf %202 : vector<22x32xf32> to vector<22x32xbf16>
    %c8_183 = arith.constant 8 : index
    %c0_184 = arith.constant 0 : index
    %c0_185 = arith.constant 0 : index
    %204 = vector.load %arg6[%c8_183, %c0_184, %c0_185] : memref<9x32x64xbf16, #tpu.memory_space<vmem>>, vector<1x32x64xbf16>
    %205 = vector.shape_cast %204 : vector<1x32x64xbf16> to vector<32x64xbf16>
    %cst_186 = arith.constant dense<0.000000e+00> : vector<22x64xf32>
    %206 = tpu.matmul %203, %205, %cst_186 {dimension_numbers = #tpu.dot_dimension_numbers<[1], [0], [0], [1], [0, 0, 1, 1], [], []>} : vector<22x32xbf16>, vector<32x64xbf16>, vector<22x64xf32> -> vector<22x64xf32>
    %207 = arith.addf %201, %206 : vector<22x64xf32>
    %c0_187 = arith.constant 0 : index
    %c0_188 = arith.constant 0 : index
    %208 = vector.load %arg7[%c0_187, %c0_188] : memref<1x64xf32, #tpu.memory_space<vmem>>, vector<1x64xf32>
    %209 = vector.broadcast %208 : vector<1x64xf32> to vector<22x64xf32>
    %210 = arith.addf %207, %209 : vector<22x64xf32>
    %cst_189 = arith.constant 0.000000e+00 : f32
    %211 = vector.broadcast %cst_189 : f32 to vector<22x64xf32>
    %212 = arith.maximumf %210, %211 : vector<22x64xf32>
    %c0_190 = arith.constant 0 : index
    %c0_191 = arith.constant 0 : index
    %213 = vector.load %arg40[%c0_190, %c0_191] : memref<22x64xf32, #tpu.memory_space<vmem>>, vector<22x64xf32>
    tpu.vector_store %arg40[%c0_190, %c0_191], %212 {strides = array<i32>} : memref<22x64xf32, #tpu.memory_space<vmem>>, vector<22x64xf32>,
    %c0_192 = arith.constant 0 : index
    %c0_193 = arith.constant 0 : index
    %214 = vector.load %arg40[%c0_192, %c0_193] : memref<22x64xf32, #tpu.memory_space<vmem>>, vector<15x64xf32>
    %c1_194 = arith.constant 1 : index
    %c0_195 = arith.constant 0 : index
    %215 = vector.load %arg40[%c1_194, %c0_195] : memref<22x64xf32, #tpu.memory_space<vmem>>, vector<15x64xf32>
    %216 = arith.maximumf %214, %215 : vector<15x64xf32>
    %c6_196 = arith.constant 6 : index
    %c0_197 = arith.constant 0 : index
    %217 = vector.load %arg40[%c6_196, %c0_197] : memref<22x64xf32, #tpu.memory_space<vmem>>, vector<15x64xf32>
    %c7_198 = arith.constant 7 : index
    %c0_199 = arith.constant 0 : index
    %218 = vector.load %arg40[%c7_198, %c0_199] : memref<22x64xf32, #tpu.memory_space<vmem>>, vector<15x64xf32>
    %219 = arith.maximumf %217, %218 : vector<15x64xf32>
    %220 = arith.maximumf %216, %219 : vector<15x64xf32>
    %c0_200 = arith.constant 0 : index
    %c0_201 = arith.constant 0 : index
    %221 = vector.load %arg22[%c0_200, %c0_201] : memref<16x15xbf16, #tpu.memory_space<vmem>>, vector<16x15xbf16>
    %222 = arith.truncf %220 : vector<15x64xf32> to vector<15x64xbf16>
    %cst_202 = arith.constant dense<0.000000e+00> : vector<16x64xf32>
    %223 = tpu.matmul %221, %222, %cst_202 {dimension_numbers = #tpu.dot_dimension_numbers<[1], [0], [0], [1], [0, 0, 1, 1], [], []>} : vector<16x15xbf16>, vector<15x64xbf16>, vector<16x64xf32> -> vector<16x64xf32>
    %c0_203 = arith.constant 0 : index
    %c0_204 = arith.constant 0 : index
    %224 = vector.load %arg34[%c0_203, %c0_204] : memref<16x64xf32, #tpu.memory_space<vmem>>, vector<16x64xf32>
    tpu.vector_store %arg34[%c0_203, %c0_204], %223 {strides = array<i32>} : memref<16x64xf32, #tpu.memory_space<vmem>>, vector<16x64xf32>,
    %c0_205 = arith.constant 0 : index
    %c0_206 = arith.constant 0 : index
    %225 = vector.load %arg34[%c0_205, %c0_206] : memref<16x64xf32, #tpu.memory_space<vmem>>, vector<16x64xf32>
    %226 = arith.truncf %225 : vector<16x64xf32> to vector<16x64xbf16>
    %c0_207 = arith.constant 0 : index
    %c0_208 = arith.constant 0 : index
    %227 = vector.load %arg12[%c0_207, %c0_208] : memref<64x32xbf16, #tpu.memory_space<vmem>>, vector<64x32xbf16>
    %cst_209 = arith.constant dense<0.000000e+00> : vector<16x32xf32>
    %228 = tpu.matmul %226, %227, %cst_209 {dimension_numbers = #tpu.dot_dimension_numbers<[1], [0], [0], [1], [0, 0, 1, 1], [], []>} : vector<16x64xbf16>, vector<64x32xbf16>, vector<16x32xf32> -> vector<16x32xf32>
    %c0_210 = arith.constant 0 : index
    %c0_211 = arith.constant 0 : index
    %229 = vector.load %arg13[%c0_210, %c0_211] : memref<1x32xf32, #tpu.memory_space<vmem>>, vector<1x32xf32>
    %230 = vector.broadcast %229 : vector<1x32xf32> to vector<16x32xf32>
    %231 = arith.addf %228, %230 : vector<16x32xf32>
    %c0_212 = arith.constant 0 : index
    %c0_213 = arith.constant 0 : index
    %232 = vector.load %arg27[%c0_212, %c0_213] : memref<16x1xf32, #tpu.memory_space<vmem>>, vector<16x1xf32>
    %233 = vector.broadcast %232 : vector<16x1xf32> to vector<16x32xf32>
    %234 = arith.mulf %231, %233 : vector<16x32xf32>
    %c0_214 = arith.constant 0 : index
    %c0_215 = arith.constant 0 : index
    %235 = vector.load %arg37[%c0_214, %c0_215] : memref<16x32xf32, #tpu.memory_space<vmem>>, vector<16x32xf32>
    tpu.vector_store %arg37[%c0_214, %c0_215], %234 {strides = array<i32>} : memref<16x32xf32, #tpu.memory_space<vmem>>, vector<16x32xf32>,
    %cst_216 = arith.constant 0.000000e+00 : f32
    %236 = vector.broadcast %cst_216 : f32 to vector<6x32xf32>
    %c0_217 = arith.constant 0 : index
    %c0_218 = arith.constant 0 : index
    %237 = vector.load %arg37[%c0_217, %c0_218] : memref<16x32xf32, #tpu.memory_space<vmem>>, vector<6x32xf32>
    %238 = arith.truncf %237 : vector<6x32xf32> to vector<6x32xbf16>
    %c0_219 = arith.constant 0 : index
    %c0_220 = arith.constant 0 : index
    %c0_221 = arith.constant 0 : index
    %239 = vector.load %arg18[%c0_219, %c0_220, %c0_221] : memref<9x32x32xbf16, #tpu.memory_space<vmem>>, vector<1x32x32xbf16>
    %240 = vector.shape_cast %239 : vector<1x32x32xbf16> to vector<32x32xbf16>
    %cst_222 = arith.constant dense<0.000000e+00> : vector<6x32xf32>
    %241 = tpu.matmul %238, %240, %cst_222 {dimension_numbers = #tpu.dot_dimension_numbers<[1], [0], [0], [1], [0, 0, 1, 1], [], []>} : vector<6x32xbf16>, vector<32x32xbf16>, vector<6x32xf32> -> vector<6x32xf32>
    %242 = arith.addf %236, %241 : vector<6x32xf32>
    %c1_223 = arith.constant 1 : index
    %c0_224 = arith.constant 0 : index
    %243 = vector.load %arg37[%c1_223, %c0_224] : memref<16x32xf32, #tpu.memory_space<vmem>>, vector<6x32xf32>
    %244 = arith.truncf %243 : vector<6x32xf32> to vector<6x32xbf16>
    %c1_225 = arith.constant 1 : index
    %c0_226 = arith.constant 0 : index
    %c0_227 = arith.constant 0 : index
    %245 = vector.load %arg18[%c1_225, %c0_226, %c0_227] : memref<9x32x32xbf16, #tpu.memory_space<vmem>>, vector<1x32x32xbf16>
    %246 = vector.shape_cast %245 : vector<1x32x32xbf16> to vector<32x32xbf16>
    %cst_228 = arith.constant dense<0.000000e+00> : vector<6x32xf32>
    %247 = tpu.matmul %244, %246, %cst_228 {dimension_numbers = #tpu.dot_dimension_numbers<[1], [0], [0], [1], [0, 0, 1, 1], [], []>} : vector<6x32xbf16>, vector<32x32xbf16>, vector<6x32xf32> -> vector<6x32xf32>
    %248 = arith.addf %242, %247 : vector<6x32xf32>
    %c2_229 = arith.constant 2 : index
    %c0_230 = arith.constant 0 : index
    %249 = vector.load %arg37[%c2_229, %c0_230] : memref<16x32xf32, #tpu.memory_space<vmem>>, vector<6x32xf32>
    %250 = arith.truncf %249 : vector<6x32xf32> to vector<6x32xbf16>
    %c2_231 = arith.constant 2 : index
    %c0_232 = arith.constant 0 : index
    %c0_233 = arith.constant 0 : index
    %251 = vector.load %arg18[%c2_231, %c0_232, %c0_233] : memref<9x32x32xbf16, #tpu.memory_space<vmem>>, vector<1x32x32xbf16>
    %252 = vector.shape_cast %251 : vector<1x32x32xbf16> to vector<32x32xbf16>
    %cst_234 = arith.constant dense<0.000000e+00> : vector<6x32xf32>
    %253 = tpu.matmul %250, %252, %cst_234 {dimension_numbers = #tpu.dot_dimension_numbers<[1], [0], [0], [1], [0, 0, 1, 1], [], []>} : vector<6x32xbf16>, vector<32x32xbf16>, vector<6x32xf32> -> vector<6x32xf32>
    %254 = arith.addf %248, %253 : vector<6x32xf32>
    %c4_235 = arith.constant 4 : index
    %c0_236 = arith.constant 0 : index
    %255 = vector.load %arg37[%c4_235, %c0_236] : memref<16x32xf32, #tpu.memory_space<vmem>>, vector<6x32xf32>
    %256 = arith.truncf %255 : vector<6x32xf32> to vector<6x32xbf16>
    %c3_237 = arith.constant 3 : index
    %c0_238 = arith.constant 0 : index
    %c0_239 = arith.constant 0 : index
    %257 = vector.load %arg18[%c3_237, %c0_238, %c0_239] : memref<9x32x32xbf16, #tpu.memory_space<vmem>>, vector<1x32x32xbf16>
    %258 = vector.shape_cast %257 : vector<1x32x32xbf16> to vector<32x32xbf16>
    %cst_240 = arith.constant dense<0.000000e+00> : vector<6x32xf32>
    %259 = tpu.matmul %256, %258, %cst_240 {dimension_numbers = #tpu.dot_dimension_numbers<[1], [0], [0], [1], [0, 0, 1, 1], [], []>} : vector<6x32xbf16>, vector<32x32xbf16>, vector<6x32xf32> -> vector<6x32xf32>
    %260 = arith.addf %254, %259 : vector<6x32xf32>
    %c5_241 = arith.constant 5 : index
    %c0_242 = arith.constant 0 : index
    %261 = vector.load %arg37[%c5_241, %c0_242] : memref<16x32xf32, #tpu.memory_space<vmem>>, vector<6x32xf32>
    %262 = arith.truncf %261 : vector<6x32xf32> to vector<6x32xbf16>
    %c4_243 = arith.constant 4 : index
    %c0_244 = arith.constant 0 : index
    %c0_245 = arith.constant 0 : index
    %263 = vector.load %arg18[%c4_243, %c0_244, %c0_245] : memref<9x32x32xbf16, #tpu.memory_space<vmem>>, vector<1x32x32xbf16>
    %264 = vector.shape_cast %263 : vector<1x32x32xbf16> to vector<32x32xbf16>
    %cst_246 = arith.constant dense<0.000000e+00> : vector<6x32xf32>
    %265 = tpu.matmul %262, %264, %cst_246 {dimension_numbers = #tpu.dot_dimension_numbers<[1], [0], [0], [1], [0, 0, 1, 1], [], []>} : vector<6x32xbf16>, vector<32x32xbf16>, vector<6x32xf32> -> vector<6x32xf32>
    %266 = arith.addf %260, %265 : vector<6x32xf32>
    %c6_247 = arith.constant 6 : index
    %c0_248 = arith.constant 0 : index
    %267 = vector.load %arg37[%c6_247, %c0_248] : memref<16x32xf32, #tpu.memory_space<vmem>>, vector<6x32xf32>
    %268 = arith.truncf %267 : vector<6x32xf32> to vector<6x32xbf16>
    %c5_249 = arith.constant 5 : index
    %c0_250 = arith.constant 0 : index
    %c0_251 = arith.constant 0 : index
    %269 = vector.load %arg18[%c5_249, %c0_250, %c0_251] : memref<9x32x32xbf16, #tpu.memory_space<vmem>>, vector<1x32x32xbf16>
    %270 = vector.shape_cast %269 : vector<1x32x32xbf16> to vector<32x32xbf16>
    %cst_252 = arith.constant dense<0.000000e+00> : vector<6x32xf32>
    %271 = tpu.matmul %268, %270, %cst_252 {dimension_numbers = #tpu.dot_dimension_numbers<[1], [0], [0], [1], [0, 0, 1, 1], [], []>} : vector<6x32xbf16>, vector<32x32xbf16>, vector<6x32xf32> -> vector<6x32xf32>
    %272 = arith.addf %266, %271 : vector<6x32xf32>
    %c8_253 = arith.constant 8 : index
    %c0_254 = arith.constant 0 : index
    %273 = vector.load %arg37[%c8_253, %c0_254] : memref<16x32xf32, #tpu.memory_space<vmem>>, vector<6x32xf32>
    %274 = arith.truncf %273 : vector<6x32xf32> to vector<6x32xbf16>
    %c6_255 = arith.constant 6 : index
    %c0_256 = arith.constant 0 : index
    %c0_257 = arith.constant 0 : index
    %275 = vector.load %arg18[%c6_255, %c0_256, %c0_257] : memref<9x32x32xbf16, #tpu.memory_space<vmem>>, vector<1x32x32xbf16>
    %276 = vector.shape_cast %275 : vector<1x32x32xbf16> to vector<32x32xbf16>
    %cst_258 = arith.constant dense<0.000000e+00> : vector<6x32xf32>
    %277 = tpu.matmul %274, %276, %cst_258 {dimension_numbers = #tpu.dot_dimension_numbers<[1], [0], [0], [1], [0, 0, 1, 1], [], []>} : vector<6x32xbf16>, vector<32x32xbf16>, vector<6x32xf32> -> vector<6x32xf32>
    %278 = arith.addf %272, %277 : vector<6x32xf32>
    %c9 = arith.constant 9 : index
    %c0_259 = arith.constant 0 : index
    %279 = vector.load %arg37[%c9, %c0_259] : memref<16x32xf32, #tpu.memory_space<vmem>>, vector<6x32xf32>
    %280 = arith.truncf %279 : vector<6x32xf32> to vector<6x32xbf16>
    %c7_260 = arith.constant 7 : index
    %c0_261 = arith.constant 0 : index
    %c0_262 = arith.constant 0 : index
    %281 = vector.load %arg18[%c7_260, %c0_261, %c0_262] : memref<9x32x32xbf16, #tpu.memory_space<vmem>>, vector<1x32x32xbf16>
    %282 = vector.shape_cast %281 : vector<1x32x32xbf16> to vector<32x32xbf16>
    %cst_263 = arith.constant dense<0.000000e+00> : vector<6x32xf32>
    %283 = tpu.matmul %280, %282, %cst_263 {dimension_numbers = #tpu.dot_dimension_numbers<[1], [0], [0], [1], [0, 0, 1, 1], [], []>} : vector<6x32xbf16>, vector<32x32xbf16>, vector<6x32xf32> -> vector<6x32xf32>
    %284 = arith.addf %278, %283 : vector<6x32xf32>
    %c10_264 = arith.constant 10 : index
    %c0_265 = arith.constant 0 : index
    %285 = vector.load %arg37[%c10_264, %c0_265] : memref<16x32xf32, #tpu.memory_space<vmem>>, vector<6x32xf32>
    %286 = arith.truncf %285 : vector<6x32xf32> to vector<6x32xbf16>
    %c8_266 = arith.constant 8 : index
    %c0_267 = arith.constant 0 : index
    %c0_268 = arith.constant 0 : index
    %287 = vector.load %arg18[%c8_266, %c0_267, %c0_268] : memref<9x32x32xbf16, #tpu.memory_space<vmem>>, vector<1x32x32xbf16>
    %288 = vector.shape_cast %287 : vector<1x32x32xbf16> to vector<32x32xbf16>
    %cst_269 = arith.constant dense<0.000000e+00> : vector<6x32xf32>
    %289 = tpu.matmul %286, %288, %cst_269 {dimension_numbers = #tpu.dot_dimension_numbers<[1], [0], [0], [1], [0, 0, 1, 1], [], []>} : vector<6x32xbf16>, vector<32x32xbf16>, vector<6x32xf32> -> vector<6x32xf32>
    %290 = arith.addf %284, %289 : vector<6x32xf32>
    %c0_270 = arith.constant 0 : index
    %c0_271 = arith.constant 0 : index
    %291 = vector.load %arg19[%c0_270, %c0_271] : memref<1x32xf32, #tpu.memory_space<vmem>>, vector<1x32xf32>
    %292 = vector.broadcast %291 : vector<1x32xf32> to vector<6x32xf32>
    %293 = arith.addf %290, %292 : vector<6x32xf32>
    %c0_272 = arith.constant 0 : index
    %c0_273 = arith.constant 0 : index
    %c0_274 = arith.constant 0 : index
    %294 = vector.load %arg30[%c0_272, %c0_273, %c0_274] : memref<1x6x32xf32, #tpu.memory_space<vmem>>, vector<1x6x32xf32>
    %295 = vector.shape_cast %294 : vector<1x6x32xf32> to vector<6x32xf32>
    %296 = vector.shape_cast %293 : vector<6x32xf32> to vector<1x6x32xf32>
    tpu.vector_store %arg30[%c0_272, %c0_273, %c0_274], %296 {strides = array<i32>} : memref<1x6x32xf32, #tpu.memory_space<vmem>>, vector<1x6x32xf32>,
    %297 = vector.extract_strided_slice %293 {offsets = [0, 0], sizes = [1, 32], strides = [1, 1]} : vector<6x32xf32> to vector<1x32xf32>
    %c0_275 = arith.constant 0 : index
    %c0_276 = arith.constant 0 : index
    %c0_277 = arith.constant 0 : index
    %298 = vector.load %arg31[%c0_275, %c0_276, %c0_277] : memref<1x1x32xf32, #tpu.memory_space<vmem>>, vector<1x1x32xf32>
    %299 = vector.shape_cast %298 : vector<1x1x32xf32> to vector<1x32xf32>
    %300 = vector.shape_cast %297 : vector<1x32xf32> to vector<1x1x32xf32>
    tpu.vector_store %arg31[%c0_275, %c0_276, %c0_277], %300 {strides = array<i32>} : memref<1x1x32xf32, #tpu.memory_space<vmem>>, vector<1x1x32xf32>,
    %c0_278 = arith.constant 0 : index
    %c0_279 = arith.constant 0 : index
    %301 = vector.load %arg33[%c0_278, %c0_279] : memref<36x32xf32, #tpu.memory_space<vmem>>, vector<36x32xf32>
    %302 = arith.truncf %301 : vector<36x32xf32> to vector<36x32xbf16>
    %c0_280 = arith.constant 0 : index
    %c0_281 = arith.constant 0 : index
    %303 = vector.load %arg10[%c0_280, %c0_281] : memref<32x32xbf16, #tpu.memory_space<vmem>>, vector<32x32xbf16>
    %cst_282 = arith.constant dense<0.000000e+00> : vector<36x32xf32>
    %304 = tpu.matmul %302, %303, %cst_282 {dimension_numbers = #tpu.dot_dimension_numbers<[1], [0], [0], [1], [0, 0, 1, 1], [], []>} : vector<36x32xbf16>, vector<32x32xbf16>, vector<36x32xf32> -> vector<36x32xf32>
    %c0_283 = arith.constant 0 : index
    %c0_284 = arith.constant 0 : index
    %305 = vector.load %arg11[%c0_283, %c0_284] : memref<1x32xf32, #tpu.memory_space<vmem>>, vector<1x32xf32>
    %306 = vector.broadcast %305 : vector<1x32xf32> to vector<36x32xf32>
    %307 = arith.addf %304, %306 : vector<36x32xf32>
    %c0_285 = arith.constant 0 : index
    %c0_286 = arith.constant 0 : index
    %308 = vector.load %arg26[%c0_285, %c0_286] : memref<36x1xf32, #tpu.memory_space<vmem>>, vector<36x1xf32>
    %309 = vector.broadcast %308 : vector<36x1xf32> to vector<36x32xf32>
    %310 = arith.mulf %307, %309 : vector<36x32xf32>
    %c0_287 = arith.constant 0 : index
    %c0_288 = arith.constant 0 : index
    %311 = vector.load %arg24[%c0_287, %c0_288] : memref<36x16xbf16, #tpu.memory_space<vmem>>, vector<36x16xbf16>
    %312 = arith.truncf %234 : vector<16x32xf32> to vector<16x32xbf16>
    %cst_289 = arith.constant dense<0.000000e+00> : vector<36x32xf32>
    %313 = tpu.matmul %311, %312, %cst_289 {dimension_numbers = #tpu.dot_dimension_numbers<[1], [0], [0], [1], [0, 0, 1, 1], [], []>} : vector<36x16xbf16>, vector<16x32xbf16>, vector<36x32xf32> -> vector<36x32xf32>
    %314 = arith.addf %310, %313 : vector<36x32xf32>
    %c0_290 = arith.constant 0 : index
    %c0_291 = arith.constant 0 : index
    %315 = vector.load %arg36[%c0_290, %c0_291] : memref<36x32xf32, #tpu.memory_space<vmem>>, vector<36x32xf32>
    tpu.vector_store %arg36[%c0_290, %c0_291], %314 {strides = array<i32>} : memref<36x32xf32, #tpu.memory_space<vmem>>, vector<36x32xf32>,
    %cst_292 = arith.constant 0.000000e+00 : f32
    %316 = vector.broadcast %cst_292 : f32 to vector<22x32xf32>
    %c0_293 = arith.constant 0 : index
    %c0_294 = arith.constant 0 : index
    %317 = vector.load %arg36[%c0_293, %c0_294] : memref<36x32xf32, #tpu.memory_space<vmem>>, vector<22x32xf32>
    %318 = arith.truncf %317 : vector<22x32xf32> to vector<22x32xbf16>
    %c0_295 = arith.constant 0 : index
    %c0_296 = arith.constant 0 : index
    %c0_297 = arith.constant 0 : index
    %319 = vector.load %arg16[%c0_295, %c0_296, %c0_297] : memref<9x32x32xbf16, #tpu.memory_space<vmem>>, vector<1x32x32xbf16>
    %320 = vector.shape_cast %319 : vector<1x32x32xbf16> to vector<32x32xbf16>
    %cst_298 = arith.constant dense<0.000000e+00> : vector<22x32xf32>
    %321 = tpu.matmul %318, %320, %cst_298 {dimension_numbers = #tpu.dot_dimension_numbers<[1], [0], [0], [1], [0, 0, 1, 1], [], []>} : vector<22x32xbf16>, vector<32x32xbf16>, vector<22x32xf32> -> vector<22x32xf32>
    %322 = arith.addf %316, %321 : vector<22x32xf32>
    %c1_299 = arith.constant 1 : index
    %c0_300 = arith.constant 0 : index
    %323 = vector.load %arg36[%c1_299, %c0_300] : memref<36x32xf32, #tpu.memory_space<vmem>>, vector<22x32xf32>
    %324 = arith.truncf %323 : vector<22x32xf32> to vector<22x32xbf16>
    %c1_301 = arith.constant 1 : index
    %c0_302 = arith.constant 0 : index
    %c0_303 = arith.constant 0 : index
    %325 = vector.load %arg16[%c1_301, %c0_302, %c0_303] : memref<9x32x32xbf16, #tpu.memory_space<vmem>>, vector<1x32x32xbf16>
    %326 = vector.shape_cast %325 : vector<1x32x32xbf16> to vector<32x32xbf16>
    %cst_304 = arith.constant dense<0.000000e+00> : vector<22x32xf32>
    %327 = tpu.matmul %324, %326, %cst_304 {dimension_numbers = #tpu.dot_dimension_numbers<[1], [0], [0], [1], [0, 0, 1, 1], [], []>} : vector<22x32xbf16>, vector<32x32xbf16>, vector<22x32xf32> -> vector<22x32xf32>
    %328 = arith.addf %322, %327 : vector<22x32xf32>
    %c2_305 = arith.constant 2 : index
    %c0_306 = arith.constant 0 : index
    %329 = vector.load %arg36[%c2_305, %c0_306] : memref<36x32xf32, #tpu.memory_space<vmem>>, vector<22x32xf32>
    %330 = arith.truncf %329 : vector<22x32xf32> to vector<22x32xbf16>
    %c2_307 = arith.constant 2 : index
    %c0_308 = arith.constant 0 : index
    %c0_309 = arith.constant 0 : index
    %331 = vector.load %arg16[%c2_307, %c0_308, %c0_309] : memref<9x32x32xbf16, #tpu.memory_space<vmem>>, vector<1x32x32xbf16>
    %332 = vector.shape_cast %331 : vector<1x32x32xbf16> to vector<32x32xbf16>
    %cst_310 = arith.constant dense<0.000000e+00> : vector<22x32xf32>
    %333 = tpu.matmul %330, %332, %cst_310 {dimension_numbers = #tpu.dot_dimension_numbers<[1], [0], [0], [1], [0, 0, 1, 1], [], []>} : vector<22x32xbf16>, vector<32x32xbf16>, vector<22x32xf32> -> vector<22x32xf32>
    %334 = arith.addf %328, %333 : vector<22x32xf32>
    %c6_311 = arith.constant 6 : index
    %c0_312 = arith.constant 0 : index
    %335 = vector.load %arg36[%c6_311, %c0_312] : memref<36x32xf32, #tpu.memory_space<vmem>>, vector<22x32xf32>
    %336 = arith.truncf %335 : vector<22x32xf32> to vector<22x32xbf16>
    %c3_313 = arith.constant 3 : index
    %c0_314 = arith.constant 0 : index
    %c0_315 = arith.constant 0 : index
    %337 = vector.load %arg16[%c3_313, %c0_314, %c0_315] : memref<9x32x32xbf16, #tpu.memory_space<vmem>>, vector<1x32x32xbf16>
    %338 = vector.shape_cast %337 : vector<1x32x32xbf16> to vector<32x32xbf16>
    %cst_316 = arith.constant dense<0.000000e+00> : vector<22x32xf32>
    %339 = tpu.matmul %336, %338, %cst_316 {dimension_numbers = #tpu.dot_dimension_numbers<[1], [0], [0], [1], [0, 0, 1, 1], [], []>} : vector<22x32xbf16>, vector<32x32xbf16>, vector<22x32xf32> -> vector<22x32xf32>
    %340 = arith.addf %334, %339 : vector<22x32xf32>
    %c7_317 = arith.constant 7 : index
    %c0_318 = arith.constant 0 : index
    %341 = vector.load %arg36[%c7_317, %c0_318] : memref<36x32xf32, #tpu.memory_space<vmem>>, vector<22x32xf32>
    %342 = arith.truncf %341 : vector<22x32xf32> to vector<22x32xbf16>
    %c4_319 = arith.constant 4 : index
    %c0_320 = arith.constant 0 : index
    %c0_321 = arith.constant 0 : index
    %343 = vector.load %arg16[%c4_319, %c0_320, %c0_321] : memref<9x32x32xbf16, #tpu.memory_space<vmem>>, vector<1x32x32xbf16>
    %344 = vector.shape_cast %343 : vector<1x32x32xbf16> to vector<32x32xbf16>
    %cst_322 = arith.constant dense<0.000000e+00> : vector<22x32xf32>
    %345 = tpu.matmul %342, %344, %cst_322 {dimension_numbers = #tpu.dot_dimension_numbers<[1], [0], [0], [1], [0, 0, 1, 1], [], []>} : vector<22x32xbf16>, vector<32x32xbf16>, vector<22x32xf32> -> vector<22x32xf32>
    %346 = arith.addf %340, %345 : vector<22x32xf32>
    %c8_323 = arith.constant 8 : index
    %c0_324 = arith.constant 0 : index
    %347 = vector.load %arg36[%c8_323, %c0_324] : memref<36x32xf32, #tpu.memory_space<vmem>>, vector<22x32xf32>
    %348 = arith.truncf %347 : vector<22x32xf32> to vector<22x32xbf16>
    %c5_325 = arith.constant 5 : index
    %c0_326 = arith.constant 0 : index
    %c0_327 = arith.constant 0 : index
    %349 = vector.load %arg16[%c5_325, %c0_326, %c0_327] : memref<9x32x32xbf16, #tpu.memory_space<vmem>>, vector<1x32x32xbf16>
    %350 = vector.shape_cast %349 : vector<1x32x32xbf16> to vector<32x32xbf16>
    %cst_328 = arith.constant dense<0.000000e+00> : vector<22x32xf32>
    %351 = tpu.matmul %348, %350, %cst_328 {dimension_numbers = #tpu.dot_dimension_numbers<[1], [0], [0], [1], [0, 0, 1, 1], [], []>} : vector<22x32xbf16>, vector<32x32xbf16>, vector<22x32xf32> -> vector<22x32xf32>
    %352 = arith.addf %346, %351 : vector<22x32xf32>
    %c12_329 = arith.constant 12 : index
    %c0_330 = arith.constant 0 : index
    %353 = vector.load %arg36[%c12_329, %c0_330] : memref<36x32xf32, #tpu.memory_space<vmem>>, vector<22x32xf32>
    %354 = arith.truncf %353 : vector<22x32xf32> to vector<22x32xbf16>
    %c6_331 = arith.constant 6 : index
    %c0_332 = arith.constant 0 : index
    %c0_333 = arith.constant 0 : index
    %355 = vector.load %arg16[%c6_331, %c0_332, %c0_333] : memref<9x32x32xbf16, #tpu.memory_space<vmem>>, vector<1x32x32xbf16>
    %356 = vector.shape_cast %355 : vector<1x32x32xbf16> to vector<32x32xbf16>
    %cst_334 = arith.constant dense<0.000000e+00> : vector<22x32xf32>
    %357 = tpu.matmul %354, %356, %cst_334 {dimension_numbers = #tpu.dot_dimension_numbers<[1], [0], [0], [1], [0, 0, 1, 1], [], []>} : vector<22x32xbf16>, vector<32x32xbf16>, vector<22x32xf32> -> vector<22x32xf32>
    %358 = arith.addf %352, %357 : vector<22x32xf32>
    %c13_335 = arith.constant 13 : index
    %c0_336 = arith.constant 0 : index
    %359 = vector.load %arg36[%c13_335, %c0_336] : memref<36x32xf32, #tpu.memory_space<vmem>>, vector<22x32xf32>
    %360 = arith.truncf %359 : vector<22x32xf32> to vector<22x32xbf16>
    %c7_337 = arith.constant 7 : index
    %c0_338 = arith.constant 0 : index
    %c0_339 = arith.constant 0 : index
    %361 = vector.load %arg16[%c7_337, %c0_338, %c0_339] : memref<9x32x32xbf16, #tpu.memory_space<vmem>>, vector<1x32x32xbf16>
    %362 = vector.shape_cast %361 : vector<1x32x32xbf16> to vector<32x32xbf16>
    %cst_340 = arith.constant dense<0.000000e+00> : vector<22x32xf32>
    %363 = tpu.matmul %360, %362, %cst_340 {dimension_numbers = #tpu.dot_dimension_numbers<[1], [0], [0], [1], [0, 0, 1, 1], [], []>} : vector<22x32xbf16>, vector<32x32xbf16>, vector<22x32xf32> -> vector<22x32xf32>
    %364 = arith.addf %358, %363 : vector<22x32xf32>
    %c14_341 = arith.constant 14 : index
    %c0_342 = arith.constant 0 : index
    %365 = vector.load %arg36[%c14_341, %c0_342] : memref<36x32xf32, #tpu.memory_space<vmem>>, vector<22x32xf32>
    %366 = arith.truncf %365 : vector<22x32xf32> to vector<22x32xbf16>
    %c8_343 = arith.constant 8 : index
    %c0_344 = arith.constant 0 : index
    %c0_345 = arith.constant 0 : index
    %367 = vector.load %arg16[%c8_343, %c0_344, %c0_345] : memref<9x32x32xbf16, #tpu.memory_space<vmem>>, vector<1x32x32xbf16>
    %368 = vector.shape_cast %367 : vector<1x32x32xbf16> to vector<32x32xbf16>
    %cst_346 = arith.constant dense<0.000000e+00> : vector<22x32xf32>
    %369 = tpu.matmul %366, %368, %cst_346 {dimension_numbers = #tpu.dot_dimension_numbers<[1], [0], [0], [1], [0, 0, 1, 1], [], []>} : vector<22x32xbf16>, vector<32x32xbf16>, vector<22x32xf32> -> vector<22x32xf32>
    %370 = arith.addf %364, %369 : vector<22x32xf32>
    %c0_347 = arith.constant 0 : index
    %c0_348 = arith.constant 0 : index
    %371 = vector.load %arg17[%c0_347, %c0_348] : memref<1x32xf32, #tpu.memory_space<vmem>>, vector<1x32xf32>
    %372 = vector.broadcast %371 : vector<1x32xf32> to vector<22x32xf32>
    %373 = arith.addf %370, %372 : vector<22x32xf32>
    %c0_349 = arith.constant 0 : index
    %c0_350 = arith.constant 0 : index
    %c0_351 = arith.constant 0 : index
    %374 = vector.load %arg29[%c0_349, %c0_350, %c0_351] : memref<1x22x32xf32, #tpu.memory_space<vmem>>, vector<1x22x32xf32>
    %375 = vector.shape_cast %374 : vector<1x22x32xf32> to vector<22x32xf32>
    %376 = vector.shape_cast %373 : vector<22x32xf32> to vector<1x22x32xf32>
    tpu.vector_store %arg29[%c0_349, %c0_350, %c0_351], %376 {strides = array<i32>} : memref<1x22x32xf32, #tpu.memory_space<vmem>>, vector<1x22x32xf32>,
    %c0_352 = arith.constant 0 : index
    %c0_353 = arith.constant 0 : index
    %377 = vector.load %arg32[%c0_352, %c0_353] : memref<100x16xf32, #tpu.memory_space<vmem>>, vector<100x16xf32>
    %378 = arith.truncf %377 : vector<100x16xf32> to vector<100x16xbf16>
    %c0_354 = arith.constant 0 : index
    %c0_355 = arith.constant 0 : index
    %379 = vector.load %arg8[%c0_354, %c0_355] : memref<16x32xbf16, #tpu.memory_space<vmem>>, vector<16x32xbf16>
    %cst_356 = arith.constant dense<0.000000e+00> : vector<100x32xf32>
    %380 = tpu.matmul %378, %379, %cst_356 {dimension_numbers = #tpu.dot_dimension_numbers<[1], [0], [0], [1], [0, 0, 1, 1], [], []>} : vector<100x16xbf16>, vector<16x32xbf16>, vector<100x32xf32> -> vector<100x32xf32>
    %c0_357 = arith.constant 0 : index
    %c0_358 = arith.constant 0 : index
    %381 = vector.load %arg9[%c0_357, %c0_358] : memref<1x32xf32, #tpu.memory_space<vmem>>, vector<1x32xf32>
    %382 = vector.broadcast %381 : vector<1x32xf32> to vector<100x32xf32>
    %383 = arith.addf %380, %382 : vector<100x32xf32>
    %c0_359 = arith.constant 0 : index
    %c0_360 = arith.constant 0 : index
    %384 = vector.load %arg25[%c0_359, %c0_360] : memref<100x1xf32, #tpu.memory_space<vmem>>, vector<100x1xf32>
    %385 = vector.broadcast %384 : vector<100x1xf32> to vector<100x32xf32>
    %386 = arith.mulf %383, %385 : vector<100x32xf32>
    %c0_361 = arith.constant 0 : index
    %c0_362 = arith.constant 0 : index
    %387 = vector.load %arg23[%c0_361, %c0_362] : memref<100x36xbf16, #tpu.memory_space<vmem>>, vector<100x36xbf16>
    %388 = arith.truncf %314 : vector<36x32xf32> to vector<36x32xbf16>
    %cst_363 = arith.constant dense<0.000000e+00> : vector<100x32xf32>
    %389 = tpu.matmul %387, %388, %cst_363 {dimension_numbers = #tpu.dot_dimension_numbers<[1], [0], [0], [1], [0, 0, 1, 1], [], []>} : vector<100x36xbf16>, vector<36x32xbf16>, vector<100x32xf32> -> vector<100x32xf32>
    %390 = arith.addf %386, %389 : vector<100x32xf32>
    %c0_364 = arith.constant 0 : index
    %c0_365 = arith.constant 0 : index
    %391 = vector.load %arg35[%c0_364, %c0_365] : memref<100x32xf32, #tpu.memory_space<vmem>>, vector<100x32xf32>
    tpu.vector_store %arg35[%c0_364, %c0_365], %390 {strides = array<i32>} : memref<100x32xf32, #tpu.memory_space<vmem>>, vector<100x32xf32>,
    %cst_366 = arith.constant 0.000000e+00 : f32
    %392 = vector.broadcast %cst_366 : f32 to vector<78x32xf32>
    %c0_367 = arith.constant 0 : index
    %c0_368 = arith.constant 0 : index
    %393 = vector.load %arg35[%c0_367, %c0_368] : memref<100x32xf32, #tpu.memory_space<vmem>>, vector<78x32xf32>
    %394 = arith.truncf %393 : vector<78x32xf32> to vector<78x32xbf16>
    %c0_369 = arith.constant 0 : index
    %c0_370 = arith.constant 0 : index
    %c0_371 = arith.constant 0 : index
    %395 = vector.load %arg14[%c0_369, %c0_370, %c0_371] : memref<9x32x32xbf16, #tpu.memory_space<vmem>>, vector<1x32x32xbf16>
    %396 = vector.shape_cast %395 : vector<1x32x32xbf16> to vector<32x32xbf16>
    %cst_372 = arith.constant dense<0.000000e+00> : vector<78x32xf32>
    %397 = tpu.matmul %394, %396, %cst_372 {dimension_numbers = #tpu.dot_dimension_numbers<[1], [0], [0], [1], [0, 0, 1, 1], [], []>} : vector<78x32xbf16>, vector<32x32xbf16>, vector<78x32xf32> -> vector<78x32xf32>
    %398 = arith.addf %392, %397 : vector<78x32xf32>
    %c1_373 = arith.constant 1 : index
    %c0_374 = arith.constant 0 : index
    %399 = vector.load %arg35[%c1_373, %c0_374] : memref<100x32xf32, #tpu.memory_space<vmem>>, vector<78x32xf32>
    %400 = arith.truncf %399 : vector<78x32xf32> to vector<78x32xbf16>
    %c1_375 = arith.constant 1 : index
    %c0_376 = arith.constant 0 : index
    %c0_377 = arith.constant 0 : index
    %401 = vector.load %arg14[%c1_375, %c0_376, %c0_377] : memref<9x32x32xbf16, #tpu.memory_space<vmem>>, vector<1x32x32xbf16>
    %402 = vector.shape_cast %401 : vector<1x32x32xbf16> to vector<32x32xbf16>
    %cst_378 = arith.constant dense<0.000000e+00> : vector<78x32xf32>
    %403 = tpu.matmul %400, %402, %cst_378 {dimension_numbers = #tpu.dot_dimension_numbers<[1], [0], [0], [1], [0, 0, 1, 1], [], []>} : vector<78x32xbf16>, vector<32x32xbf16>, vector<78x32xf32> -> vector<78x32xf32>
    %404 = arith.addf %398, %403 : vector<78x32xf32>
    %c2_379 = arith.constant 2 : index
    %c0_380 = arith.constant 0 : index
    %405 = vector.load %arg35[%c2_379, %c0_380] : memref<100x32xf32, #tpu.memory_space<vmem>>, vector<78x32xf32>
    %406 = arith.truncf %405 : vector<78x32xf32> to vector<78x32xbf16>
    %c2_381 = arith.constant 2 : index
    %c0_382 = arith.constant 0 : index
    %c0_383 = arith.constant 0 : index
    %407 = vector.load %arg14[%c2_381, %c0_382, %c0_383] : memref<9x32x32xbf16, #tpu.memory_space<vmem>>, vector<1x32x32xbf16>
    %408 = vector.shape_cast %407 : vector<1x32x32xbf16> to vector<32x32xbf16>
    %cst_384 = arith.constant dense<0.000000e+00> : vector<78x32xf32>
    %409 = tpu.matmul %406, %408, %cst_384 {dimension_numbers = #tpu.dot_dimension_numbers<[1], [0], [0], [1], [0, 0, 1, 1], [], []>} : vector<78x32xbf16>, vector<32x32xbf16>, vector<78x32xf32> -> vector<78x32xf32>
    %410 = arith.addf %404, %409 : vector<78x32xf32>
    %c10_385 = arith.constant 10 : index
    %c0_386 = arith.constant 0 : index
    %411 = vector.load %arg35[%c10_385, %c0_386] : memref<100x32xf32, #tpu.memory_space<vmem>>, vector<78x32xf32>
    %412 = arith.truncf %411 : vector<78x32xf32> to vector<78x32xbf16>
    %c3_387 = arith.constant 3 : index
    %c0_388 = arith.constant 0 : index
    %c0_389 = arith.constant 0 : index
    %413 = vector.load %arg14[%c3_387, %c0_388, %c0_389] : memref<9x32x32xbf16, #tpu.memory_space<vmem>>, vector<1x32x32xbf16>
    %414 = vector.shape_cast %413 : vector<1x32x32xbf16> to vector<32x32xbf16>
    %cst_390 = arith.constant dense<0.000000e+00> : vector<78x32xf32>
    %415 = tpu.matmul %412, %414, %cst_390 {dimension_numbers = #tpu.dot_dimension_numbers<[1], [0], [0], [1], [0, 0, 1, 1], [], []>} : vector<78x32xbf16>, vector<32x32xbf16>, vector<78x32xf32> -> vector<78x32xf32>
    %416 = arith.addf %410, %415 : vector<78x32xf32>
    %c11_391 = arith.constant 11 : index
    %c0_392 = arith.constant 0 : index
    %417 = vector.load %arg35[%c11_391, %c0_392] : memref<100x32xf32, #tpu.memory_space<vmem>>, vector<78x32xf32>
    %418 = arith.truncf %417 : vector<78x32xf32> to vector<78x32xbf16>
    %c4_393 = arith.constant 4 : index
    %c0_394 = arith.constant 0 : index
    %c0_395 = arith.constant 0 : index
    %419 = vector.load %arg14[%c4_393, %c0_394, %c0_395] : memref<9x32x32xbf16, #tpu.memory_space<vmem>>, vector<1x32x32xbf16>
    %420 = vector.shape_cast %419 : vector<1x32x32xbf16> to vector<32x32xbf16>
    %cst_396 = arith.constant dense<0.000000e+00> : vector<78x32xf32>
    %421 = tpu.matmul %418, %420, %cst_396 {dimension_numbers = #tpu.dot_dimension_numbers<[1], [0], [0], [1], [0, 0, 1, 1], [], []>} : vector<78x32xbf16>, vector<32x32xbf16>, vector<78x32xf32> -> vector<78x32xf32>
    %422 = arith.addf %416, %421 : vector<78x32xf32>
    %c12_397 = arith.constant 12 : index
    %c0_398 = arith.constant 0 : index
    %423 = vector.load %arg35[%c12_397, %c0_398] : memref<100x32xf32, #tpu.memory_space<vmem>>, vector<78x32xf32>
    %424 = arith.truncf %423 : vector<78x32xf32> to vector<78x32xbf16>
    %c5_399 = arith.constant 5 : index
    %c0_400 = arith.constant 0 : index
    %c0_401 = arith.constant 0 : index
    %425 = vector.load %arg14[%c5_399, %c0_400, %c0_401] : memref<9x32x32xbf16, #tpu.memory_space<vmem>>, vector<1x32x32xbf16>
    %426 = vector.shape_cast %425 : vector<1x32x32xbf16> to vector<32x32xbf16>
    %cst_402 = arith.constant dense<0.000000e+00> : vector<78x32xf32>
    %427 = tpu.matmul %424, %426, %cst_402 {dimension_numbers = #tpu.dot_dimension_numbers<[1], [0], [0], [1], [0, 0, 1, 1], [], []>} : vector<78x32xbf16>, vector<32x32xbf16>, vector<78x32xf32> -> vector<78x32xf32>
    %428 = arith.addf %422, %427 : vector<78x32xf32>
    %c20_403 = arith.constant 20 : index
    %c0_404 = arith.constant 0 : index
    %429 = vector.load %arg35[%c20_403, %c0_404] : memref<100x32xf32, #tpu.memory_space<vmem>>, vector<78x32xf32>
    %430 = arith.truncf %429 : vector<78x32xf32> to vector<78x32xbf16>
    %c6_405 = arith.constant 6 : index
    %c0_406 = arith.constant 0 : index
    %c0_407 = arith.constant 0 : index
    %431 = vector.load %arg14[%c6_405, %c0_406, %c0_407] : memref<9x32x32xbf16, #tpu.memory_space<vmem>>, vector<1x32x32xbf16>
    %432 = vector.shape_cast %431 : vector<1x32x32xbf16> to vector<32x32xbf16>
    %cst_408 = arith.constant dense<0.000000e+00> : vector<78x32xf32>
    %433 = tpu.matmul %430, %432, %cst_408 {dimension_numbers = #tpu.dot_dimension_numbers<[1], [0], [0], [1], [0, 0, 1, 1], [], []>} : vector<78x32xbf16>, vector<32x32xbf16>, vector<78x32xf32> -> vector<78x32xf32>
    %434 = arith.addf %428, %433 : vector<78x32xf32>
    %c21_409 = arith.constant 21 : index
    %c0_410 = arith.constant 0 : index
    %435 = vector.load %arg35[%c21_409, %c0_410] : memref<100x32xf32, #tpu.memory_space<vmem>>, vector<78x32xf32>
    %436 = arith.truncf %435 : vector<78x32xf32> to vector<78x32xbf16>
    %c7_411 = arith.constant 7 : index
    %c0_412 = arith.constant 0 : index
    %c0_413 = arith.constant 0 : index
    %437 = vector.load %arg14[%c7_411, %c0_412, %c0_413] : memref<9x32x32xbf16, #tpu.memory_space<vmem>>, vector<1x32x32xbf16>
    %438 = vector.shape_cast %437 : vector<1x32x32xbf16> to vector<32x32xbf16>
    %cst_414 = arith.constant dense<0.000000e+00> : vector<78x32xf32>
    %439 = tpu.matmul %436, %438, %cst_414 {dimension_numbers = #tpu.dot_dimension_numbers<[1], [0], [0], [1], [0, 0, 1, 1], [], []>} : vector<78x32xbf16>, vector<32x32xbf16>, vector<78x32xf32> -> vector<78x32xf32>
    %440 = arith.addf %434, %439 : vector<78x32xf32>
    %c22_415 = arith.constant 22 : index
    %c0_416 = arith.constant 0 : index
    %441 = vector.load %arg35[%c22_415, %c0_416] : memref<100x32xf32, #tpu.memory_space<vmem>>, vector<78x32xf32>
    %442 = arith.truncf %441 : vector<78x32xf32> to vector<78x32xbf16>
    %c8_417 = arith.constant 8 : index
    %c0_418 = arith.constant 0 : index
    %c0_419 = arith.constant 0 : index
    %443 = vector.load %arg14[%c8_417, %c0_418, %c0_419] : memref<9x32x32xbf16, #tpu.memory_space<vmem>>, vector<1x32x32xbf16>
    %444 = vector.shape_cast %443 : vector<1x32x32xbf16> to vector<32x32xbf16>
    %cst_420 = arith.constant dense<0.000000e+00> : vector<78x32xf32>
    %445 = tpu.matmul %442, %444, %cst_420 {dimension_numbers = #tpu.dot_dimension_numbers<[1], [0], [0], [1], [0, 0, 1, 1], [], []>} : vector<78x32xbf16>, vector<32x32xbf16>, vector<78x32xf32> -> vector<78x32xf32>
    %446 = arith.addf %440, %445 : vector<78x32xf32>
    %c0_421 = arith.constant 0 : index
    %c0_422 = arith.constant 0 : index
    %447 = vector.load %arg15[%c0_421, %c0_422] : memref<1x32xf32, #tpu.memory_space<vmem>>, vector<1x32xf32>
    %448 = vector.broadcast %447 : vector<1x32xf32> to vector<78x32xf32>
    %449 = arith.addf %446, %448 : vector<78x32xf32>
    %c0_423 = arith.constant 0 : index
    %c0_424 = arith.constant 0 : index
    %c0_425 = arith.constant 0 : index
    %450 = vector.load %arg28[%c0_423, %c0_424, %c0_425] : memref<1x78x32xf32, #tpu.memory_space<vmem>>, vector<1x78x32xf32>
    %451 = vector.shape_cast %450 : vector<1x78x32xf32> to vector<78x32xf32>
    %452 = vector.shape_cast %449 : vector<78x32xf32> to vector<1x78x32xf32>
    tpu.vector_store %arg28[%c0_423, %c0_424, %c0_425], %452 {strides = array<i32>} : memref<1x78x32xf32, #tpu.memory_space<vmem>>, vector<1x78x32xf32>,
    return
  }
  func.func @transform_0(%arg0: i32) -> (i32, i32, i32) {
    %c0_i32 = arith.constant 0 : i32
    %c0_i32_0 = arith.constant 0 : i32
    %c0_i32_1 = arith.constant 0 : i32
    return %arg0, %c0_i32, %c0_i32_0 : i32, i32, i32
  }
  func.func @transform_1(%arg0: i32) -> (i32, i32, i32) {
    %c0_i32 = arith.constant 0 : i32
    %c0_i32_0 = arith.constant 0 : i32
    %c0_i32_1 = arith.constant 0 : i32
    %c0_i32_2 = arith.constant 0 : i32
    return %c0_i32, %c0_i32_0, %c0_i32_1 : i32, i32, i32
  }
  func.func @transform_2(%arg0: i32) -> (i32, i32) {
    %c0_i32 = arith.constant 0 : i32
    %c0_i32_0 = arith.constant 0 : i32
    %c0_i32_1 = arith.constant 0 : i32
    return %c0_i32, %c0_i32_0 : i32, i32
  }
  func.func @transform_3(%arg0: i32) -> (i32, i32, i32) {
    %c0_i32 = arith.constant 0 : i32
    %c0_i32_0 = arith.constant 0 : i32
    %c0_i32_1 = arith.constant 0 : i32
    %c0_i32_2 = arith.constant 0 : i32
    return %c0_i32, %c0_i32_0, %c0_i32_1 : i32, i32, i32
  }
  func.func @transform_4(%arg0: i32) -> (i32, i32) {
    %c0_i32 = arith.constant 0 : i32
    %c0_i32_0 = arith.constant 0 : i32
    %c0_i32_1 = arith.constant 0 : i32
    return %c0_i32, %c0_i32_0 : i32, i32
  }
  func.func @transform_5(%arg0: i32) -> (i32, i32, i32) {
    %c0_i32 = arith.constant 0 : i32
    %c0_i32_0 = arith.constant 0 : i32
    %c0_i32_1 = arith.constant 0 : i32
    %c0_i32_2 = arith.constant 0 : i32
    return %c0_i32, %c0_i32_0, %c0_i32_1 : i32, i32, i32
  }
  func.func @transform_6(%arg0: i32) -> (i32, i32) {
    %c0_i32 = arith.constant 0 : i32
    %c0_i32_0 = arith.constant 0 : i32
    %c0_i32_1 = arith.constant 0 : i32
    return %c0_i32, %c0_i32_0 : i32, i32
  }
  func.func @transform_7(%arg0: i32) -> (i32, i32) {
    %c0_i32 = arith.constant 0 : i32
    %c0_i32_0 = arith.constant 0 : i32
    %c0_i32_1 = arith.constant 0 : i32
    return %c0_i32, %c0_i32_0 : i32, i32
  }
  func.func @transform_8(%arg0: i32) -> (i32, i32) {
    %c0_i32 = arith.constant 0 : i32
    %c0_i32_0 = arith.constant 0 : i32
    %c0_i32_1 = arith.constant 0 : i32
    return %c0_i32, %c0_i32_0 : i32, i32
  }
  func.func @transform_9(%arg0: i32) -> (i32, i32) {
    %c0_i32 = arith.constant 0 : i32
    %c0_i32_0 = arith.constant 0 : i32
    %c0_i32_1 = arith.constant 0 : i32
    return %c0_i32, %c0_i32_0 : i32, i32
  }
  func.func @transform_10(%arg0: i32) -> (i32, i32) {
    %c0_i32 = arith.constant 0 : i32
    %c0_i32_0 = arith.constant 0 : i32
    %c0_i32_1 = arith.constant 0 : i32
    return %c0_i32, %c0_i32_0 : i32, i32
  }
  func.func @transform_11(%arg0: i32) -> (i32, i32) {
    %c0_i32 = arith.constant 0 : i32
    %c0_i32_0 = arith.constant 0 : i32
    %c0_i32_1 = arith.constant 0 : i32
    return %c0_i32, %c0_i32_0 : i32, i32
  }
  func.func @transform_12(%arg0: i32) -> (i32, i32) {
    %c0_i32 = arith.constant 0 : i32
    %c0_i32_0 = arith.constant 0 : i32
    %c0_i32_1 = arith.constant 0 : i32
    return %c0_i32, %c0_i32_0 : i32, i32
  }
  func.func @transform_13(%arg0: i32) -> (i32, i32, i32) {
    %c0_i32 = arith.constant 0 : i32
    %c0_i32_0 = arith.constant 0 : i32
    %c0_i32_1 = arith.constant 0 : i32
    %c0_i32_2 = arith.constant 0 : i32
    return %c0_i32, %c0_i32_0, %c0_i32_1 : i32, i32, i32
  }
  func.func @transform_14(%arg0: i32) -> (i32, i32) {
    %c0_i32 = arith.constant 0 : i32
    %c0_i32_0 = arith.constant 0 : i32
    %c0_i32_1 = arith.constant 0 : i32
    return %c0_i32, %c0_i32_0 : i32, i32
  }
  func.func @transform_15(%arg0: i32) -> (i32, i32, i32) {
    %c0_i32 = arith.constant 0 : i32
    %c0_i32_0 = arith.constant 0 : i32
    %c0_i32_1 = arith.constant 0 : i32
    %c0_i32_2 = arith.constant 0 : i32
    return %c0_i32, %c0_i32_0, %c0_i32_1 : i32, i32, i32
  }
  func.func @transform_16(%arg0: i32) -> (i32, i32) {
    %c0_i32 = arith.constant 0 : i32
    %c0_i32_0 = arith.constant 0 : i32
    %c0_i32_1 = arith.constant 0 : i32
    return %c0_i32, %c0_i32_0 : i32, i32
  }
  func.func @transform_17(%arg0: i32) -> (i32, i32, i32) {
    %c0_i32 = arith.constant 0 : i32
    %c0_i32_0 = arith.constant 0 : i32
    %c0_i32_1 = arith.constant 0 : i32
    %c0_i32_2 = arith.constant 0 : i32
    return %c0_i32, %c0_i32_0, %c0_i32_1 : i32, i32, i32
  }
  func.func @transform_18(%arg0: i32) -> (i32, i32) {
    %c0_i32 = arith.constant 0 : i32
    %c0_i32_0 = arith.constant 0 : i32
    %c0_i32_1 = arith.constant 0 : i32
    return %c0_i32, %c0_i32_0 : i32, i32
  }
  func.func @transform_19(%arg0: i32) -> (i32, i32) {
    %c0_i32 = arith.constant 0 : i32
    %c0_i32_0 = arith.constant 0 : i32
    %c0_i32_1 = arith.constant 0 : i32
    return %c0_i32, %c0_i32_0 : i32, i32
  }
  func.func @transform_20(%arg0: i32) -> (i32, i32) {
    %c0_i32 = arith.constant 0 : i32
    %c0_i32_0 = arith.constant 0 : i32
    %c0_i32_1 = arith.constant 0 : i32
    return %c0_i32, %c0_i32_0 : i32, i32
  }
  func.func @transform_21(%arg0: i32) -> (i32, i32) {
    %c0_i32 = arith.constant 0 : i32
    %c0_i32_0 = arith.constant 0 : i32
    %c0_i32_1 = arith.constant 0 : i32
    return %c0_i32, %c0_i32_0 : i32, i32
  }
  func.func @transform_22(%arg0: i32) -> (i32, i32) {
    %c0_i32 = arith.constant 0 : i32
    %c0_i32_0 = arith.constant 0 : i32
    %c0_i32_1 = arith.constant 0 : i32
    return %c0_i32, %c0_i32_0 : i32, i32
  }
  func.func @transform_23(%arg0: i32) -> (i32, i32) {
    %c0_i32 = arith.constant 0 : i32
    %c0_i32_0 = arith.constant 0 : i32
    %c0_i32_1 = arith.constant 0 : i32
    return %c0_i32, %c0_i32_0 : i32, i32
  }
  func.func @transform_24(%arg0: i32) -> (i32, i32) {
    %c0_i32 = arith.constant 0 : i32
    %c0_i32_0 = arith.constant 0 : i32
    %c0_i32_1 = arith.constant 0 : i32
    return %c0_i32, %c0_i32_0 : i32, i32
  }
  func.func @transform_25(%arg0: i32) -> (i32, i32) {
    %c0_i32 = arith.constant 0 : i32
    %c0_i32_0 = arith.constant 0 : i32
    %c0_i32_1 = arith.constant 0 : i32
    return %c0_i32, %c0_i32_0 : i32, i32
  }
  func.func @transform_26(%arg0: i32) -> (i32, i32) {
    %c0_i32 = arith.constant 0 : i32
    %c0_i32_0 = arith.constant 0 : i32
    %c0_i32_1 = arith.constant 0 : i32
    return %c0_i32, %c0_i32_0 : i32, i32
  }
  func.func @transform_27(%arg0: i32) -> (i32, i32, i32) {
    %c0_i32 = arith.constant 0 : i32
    %c0_i32_0 = arith.constant 0 : i32
    %c0_i32_1 = arith.constant 0 : i32
    return %arg0, %c0_i32, %c0_i32_0 : i32, i32, i32
  }
  func.func @transform_28(%arg0: i32) -> (i32, i32, i32) {
    %c0_i32 = arith.constant 0 : i32
    %c0_i32_0 = arith.constant 0 : i32
    %c0_i32_1 = arith.constant 0 : i32
    return %arg0, %c0_i32, %c0_i32_0 : i32, i32, i32
  }
  func.func @transform_29(%arg0: i32) -> (i32, i32, i32) {
    %c0_i32 = arith.constant 0 : i32
    %c0_i32_0 = arith.constant 0 : i32
    %c0_i32_1 = arith.constant 0 : i32
    return %arg0, %c0_i32, %c0_i32_0 : i32, i32, i32
  }
  func.func @transform_30(%arg0: i32) -> (i32, i32, i32) {
    %c0_i32 = arith.constant 0 : i32
    %c0_i32_0 = arith.constant 0 : i32
    %c0_i32_1 = arith.constant 0 : i32
    return %arg0, %c0_i32, %c0_i32_0 : i32, i32, i32
  }
}

</mosaic_0001>

<llo_original>
// kernel: backbone_with_fpn_forward.1
$region0: #{backbone_with_fpn_forward.1}
  #allocation0 [shape = 'u32[]', space=smem, size = 0x4, offset = 0x4, fixed_abs, tag = 'smem constant byte address 0x4 - core index']
  #allocation1 [shape = 'u32[72,128]{1,0:T(1,128)}', space=vmem, size = 0x9000, scoped, tag = 'internal scratch']
  #allocation2 [shape = 'f32[100,16]{1,0:T(8,128)}', space=vmem, size = 0xd000, scoped, tag = 'scratch operand']
  #allocation3 [shape = 'f32[36,32]{1,0:T(8,128)}', space=vmem, size = 0x5000, scoped, tag = 'scratch operand']
  #allocation4 [shape = 'f32[16,64]{1,0:T(8,128)}', space=vmem, size = 0x2000, scoped, tag = 'scratch operand']
  #allocation5 [shape = 'f32[100,32]{1,0:T(8,128)}', space=vmem, size = 0xd000, scoped, tag = 'scratch operand']
  #allocation6 [shape = 'f32[36,32]{1,0:T(8,128)}', space=vmem, size = 0x5000, scoped, tag = 'scratch operand']
  #allocation7 [shape = 'f32[16,32]{1,0:T(8,128)}', space=vmem, size = 0x2000, scoped, tag = 'scratch operand']
  #allocation8 [shape = 'f32[286,16]{1,0:T(8,128)}', space=vmem, size = 0x24000, scoped, tag = 'scratch operand']
  #allocation9 [shape = 'f32[78,32]{1,0:T(8,128)}', space=vmem, size = 0xa000, scoped, tag = 'scratch operand']
  #allocation10 [shape = 'f32[22,64]{1,0:T(8,128)}', space=vmem, size = 0x3000, scoped, tag = 'scratch operand']
  %s0 = inlined_call_operand.smem [shape: u32[31], index: -1, kind: input, shape index: {}]
  %s1 = sld [smem:[%s0]]
  %s2 = scalar_lea.smem %s0, 1
  %s3 = sld [smem:[%s2]]
  %s4 = scalar_lea.smem %s0, 2
  %s5 = sld [smem:[%s4]]
  %s6 = scalar_lea.smem %s0, 3
  %s7 = sld [smem:[%s6]]
  %s8 = scalar_lea.smem %s0, 4
  %s9 = sld [smem:[%s8]]
  %s10 = scalar_lea.smem %s0, 5
  %s11 = sld [smem:[%s10]]
  %s12 = scalar_lea.smem %s0, 6
  %s13 = sld [smem:[%s12]]
  %s14 = scalar_lea.smem %s0, 7
  %s15 = sld [smem:[%s14]]
  %s16 = scalar_lea.smem %s0, 8
  %s17 = sld [smem:[%s16]]
  %s18 = scalar_lea.smem %s0, 9
  %s19 = sld [smem:[%s18]]
  %s20 = scalar_lea.smem %s0, 10
  %s21 = sld [smem:[%s20]]
  %s22 = scalar_lea.smem %s0, 11
  %s23 = sld [smem:[%s22]]
  %s24 = scalar_lea.smem %s0, 12
  %s25 = sld [smem:[%s24]]
  %s26 = scalar_lea.smem %s0, 13
  %s27 = sld [smem:[%s26]]
  %s28 = scalar_lea.smem %s0, 14
  %s29 = sld [smem:[%s28]]
  %s30 = scalar_lea.smem %s0, 15
  %s31 = sld [smem:[%s30]]
  %s32 = scalar_lea.smem %s0, 16
  %s33 = sld [smem:[%s32]]
  %s34 = scalar_lea.smem %s0, 17
  %s35 = sld [smem:[%s34]]
  %s36 = scalar_lea.smem %s0, 18
  %s37 = sld [smem:[%s36]]
  %s38 = scalar_lea.smem %s0, 19
  %s39 = sld [smem:[%s38]]
  %s40 = scalar_lea.smem %s0, 20
  %s41 = sld [smem:[%s40]]
  %s42 = scalar_lea.smem %s0, 21
  %s43 = sld [smem:[%s42]]
  %s44 = scalar_lea.smem %s0, 22
  %s45 = sld [smem:[%s44]]
  %s46 = scalar_lea.smem %s0, 23
  %s47 = sld [smem:[%s46]]
  %s48 = scalar_lea.smem %s0, 24
  %s49 = sld [smem:[%s48]]
  %s50 = scalar_lea.smem %s0, 25
  %s51 = sld [smem:[%s50]]
  %s52 = scalar_lea.smem %s0, 26
  %s53 = sld [smem:[%s52]]
  %s54 = scalar_lea.smem %s0, 27
  %s55 = sld [smem:[%s54]]
  %s56 = scalar_lea.smem %s0, 28
  %s57 = sld [smem:[%s56]]
  %s58 = scalar_lea.smem %s0, 29
  %s59 = sld [smem:[%s58]]
  %s60 = scalar_lea.smem %s0, 30
  %s61 = sld [smem:[%s60]]
  %62 = xla_tuple %s55, %s57, %s59, %s61
  %s63 = sld [smem:[#allocation0]]
  $region165: #{backbone_with_fpn_forward.1} parent=0
    _
  %s65 = ssub.s32 1, %s63
  %s66 = scalar_select 0, %s65, %s63
  $region1: #{backbone_with_fpn_forward.1} parent=0
    #allocation11 [shape = 'u8[1024]{0}', space=vmem, size = 0x400, scoped, tag = 'output window, operand 3']
    #allocation12 [shape = 's32[2]{0}', space=sflag, size = 0x8, scoped, tag = 'scoped memory for backbone_with_fpn_forward.1']
    %67 = vsyncpa [#allocation12], 0
    %s68 = scalar_lea.sflag [#allocation12], 1
    %69 = vsyncpa %s68, 0
    loop: start=0, step=1, limit=4
    $region2: #{backbone_with_fpn_forward.1} parent=1 // loop_pre_header
      _
    $region3: #{backbone_with_fpn_forward.1} parent=1 // loop_header
      %s71 = sphi 0, %s75
      %p72 = scmp.ge.s32.totalorder %s71, 4
      %s81 = sphi 0, %s83
      %s84 = sphi 0, %s81
      %s85 = sphi 0, %s84
      %s101 = sphi 0, %s85
      %s105 = sphi 0, %s105
      %s107 = sphi 0, %s105
      %s108 = sphi 0, %s107
      %s122 = sphi 0, %s108
      %s126 = sphi 0, %s126
      %s128 = sphi 0, %s126
      %s129 = sphi 0, %s128
      %s143 = sphi 0, %s129
      %s147 = sphi 0, %s147
      %s149 = sphi 0, %s147
      %s150 = sphi 0, %s149
      %s164 = sphi 0, %s150
      %s168 = sphi 0, %s168
      %s170 = sphi 0, %s168
      %s171 = sphi 0, %s170
      %s185 = sphi 0, %s171
      %s189 = sphi 0, %s189
      %s191 = sphi 0, %s189
      %s192 = sphi 0, %s191
      %s206 = sphi 0, %s192
      %s210 = sphi 0, %s210
      %s212 = sphi 0, %s210
      %s213 = sphi 0, %s212
      %s227 = sphi 0, %s213
      %s231 = sphi 0, %s231
      %s233 = sphi 0, %s231
      %s234 = sphi 0, %s233
      %s248 = sphi 0, %s234
      %s252 = sphi 0, %s252
      %s254 = sphi 0, %s252
      %s255 = sphi 0, %s254
      %s269 = sphi 0, %s255
      %s273 = sphi 0, %s273
      %s275 = sphi 0, %s273
      %s276 = sphi 0, %s275
      %s290 = sphi 0, %s276
      %s294 = sphi 0, %s294
      %s296 = sphi 0, %s294
      %s297 = sphi 0, %s296
      %s311 = sphi 0, %s297
      %s315 = sphi 0, %s315
      %s317 = sphi 0, %s315
      %s318 = sphi 0, %s317
      %s332 = sphi 0, %s318
      %s336 = sphi 0, %s336
      %s338 = sphi 0, %s336
      %s339 = sphi 0, %s338
      %s353 = sphi 0, %s339
      %s357 = sphi 0, %s357
      %s359 = sphi 0, %s357
      %s360 = sphi 0, %s359
      %s374 = sphi 0, %s360
      %s378 = sphi 0, %s378
      %s380 = sphi 0, %s378
      %s381 = sphi 0, %s380
      %s395 = sphi 0, %s381
      %s399 = sphi 0, %s399
      %s401 = sphi 0, %s399
      %s402 = sphi 0, %s401
      %s416 = sphi 0, %s402
      %s420 = sphi 0, %s420
      %s422 = sphi 0, %s420
      %s423 = sphi 0, %s422
      %s437 = sphi 0, %s423
      %s441 = sphi 0, %s441
      %s443 = sphi 0, %s441
      %s444 = sphi 0, %s443
      %s458 = sphi 0, %s444
      %s462 = sphi 0, %s462
      %s464 = sphi 0, %s462
      %s465 = sphi 0, %s464
      %s479 = sphi 0, %s465
      %s483 = sphi 0, %s483
      %s485 = sphi 0, %s483
      %s486 = sphi 0, %s485
      %s500 = sphi 0, %s486
      %s504 = sphi 0, %s504
      %s506 = sphi 0, %s504
      %s507 = sphi 0, %s506
      %s521 = sphi 0, %s507
      %s525 = sphi 0, %s525
      %s527 = sphi 0, %s525
      %s528 = sphi 0, %s527
      %s542 = sphi 0, %s528
      %s546 = sphi 0, %s546
      %s548 = sphi 0, %s546
      %s549 = sphi 0, %s548
      %s563 = sphi 0, %s549
      %s567 = sphi 0, %s567
      %s569 = sphi 0, %s567
      %s570 = sphi 0, %s569
      %s584 = sphi 0, %s570
      %s588 = sphi 0, %s588
      %s590 = sphi 0, %s588
      %s591 = sphi 0, %s590
      %s605 = sphi 0, %s591
      %s609 = sphi 0, %s609
      %s611 = sphi 0, %s609
      %s612 = sphi 0, %s611
      %s626 = sphi 0, %s612
      %s630 = sphi 0, %s630
      %s632 = sphi 0, %s630
      %s633 = sphi 0, %s632
      %s647 = sphi 0, %s633
      %s653 = sphi 0, %s655
      %s656 = sphi 0, %s653
      %s657 = sphi 0, %s656
      %s673 = sphi 0, %s657
      %s679 = sphi 0, %s681
      %s682 = sphi 0, %s679
      %s683 = sphi 0, %s682
      %s699 = sphi 0, %s683
      %s705 = sphi 0, %s707
      %s708 = sphi 0, %s705
      %s709 = sphi 0, %s708
      %s725 = sphi 0, %s709
      %s731 = sphi 0, %s733
      %s734 = sphi 0, %s731
      %s735 = sphi 0, %s734
      %s751 = sphi 0, %s735
    $region4: #{backbone_with_fpn_forward.1} parent=1 // loop_header_branch
      %74 = sbr.rel (%p72) target = $region8
    $region5: #{backbone_with_fpn_forward.1} parent=1 // loop_body
      %s76 = ssub.s32 %s71, 1
      %s77 = ssub.s32 %s71, 2
      %s78 = sadd.s32 %s71, 1
      %s79 = ssub.s32 %s71, %s78
      %p80 = scmp.eq.s32.totalorder %s79, 0
      %s82 = sadd.s32 %s81, 1
      %s83 = scalar_select %p80, %s81, %s82
      %p86 = pneg %p80
      %p87 = scmp.eq.s32.totalorder %s71, 1
      %p88 = por %p86, %p87
      %p89 = scmp.ne.s32.totalorder %s81, %s84
      %p90 = scmp.eq.s32.totalorder %s71, 0
      %p91 = por %p89, %p90
      %p92 = scmp.ne.s32.totalorder %s81, %s84
      %p93 = scmp.eq.s32.totalorder %s76, 1
      %p94 = por %p92, %p93
      %p95 = scmp.ne.s32.totalorder %s84, %s85
      %p96 = scmp.eq.s32.totalorder %s76, 0
      %p97 = por %p95, %p96
      %p98 = scmp.ne.s32.totalorder %s84, %s85
      %p99 = scmp.eq.s32.totalorder %s77, 1
      %p100 = por %p98, %p99
      %p102 = scmp.ne.s32.totalorder %s85, %s101
      %p103 = scmp.eq.s32.totalorder %s77, 0
      %p104 = por %p102, %p103
      %s106 = sadd.s32 %s105, 1
      %p109 = scmp.eq.s32.totalorder %s71, 1
      %p110 = scmp.ne.s32.totalorder %s105, %s107
      %p111 = scmp.eq.s32.totalorder %s71, 0
      %p112 = por %p110, %p111
      %p113 = scmp.ne.s32.totalorder %s105, %s107
      %p114 = scmp.eq.s32.totalorder %s76, 1
      %p115 = por %p113, %p114
      %p116 = scmp.ne.s32.totalorder %s107, %s108
      %p117 = scmp.eq.s32.totalorder %s76, 0
      %p118 = por %p116, %p117
      %p119 = scmp.ne.s32.totalorder %s107, %s108
      %p120 = scmp.eq.s32.totalorder %s77, 1
      %p121 = por %p119, %p120
      %p123 = scmp.ne.s32.totalorder %s108, %s122
      %p124 = scmp.eq.s32.totalorder %s77, 0
      %p125 = por %p123, %p124
      %s127 = sadd.s32 %s126, 1
      %p130 = scmp.eq.s32.totalorder %s71, 1
      %p131 = scmp.ne.s32.totalorder %s126, %s128
      %p132 = scmp.eq.s32.totalorder %s71, 0
      %p133 = por %p131, %p132
      %p134 = scmp.ne.s32.totalorder %s126, %s128
      %p135 = scmp.eq.s32.totalorder %s76, 1
      %p136 = por %p134, %p135
      %p137 = scmp.ne.s32.totalorder %s128, %s129
      %p138 = scmp.eq.s32.totalorder %s76, 0
      %p139 = por %p137, %p138
      %p140 = scmp.ne.s32.totalorder %s128, %s129
      %p141 = scmp.eq.s32.totalorder %s77, 1
      %p142 = por %p140, %p141
      %p144 = scmp.ne.s32.totalorder %s129, %s143
      %p145 = scmp.eq.s32.totalorder %s77, 0
      %p146 = por %p144, %p145
      %s148 = sadd.s32 %s147, 1
      %p151 = scmp.eq.s32.totalorder %s71, 1
      %p152 = scmp.ne.s32.totalorder %s147, %s149
      %p153 = scmp.eq.s32.totalorder %s71, 0
      %p154 = por %p152, %p153
      %p155 = scmp.ne.s32.totalorder %s147, %s149
      %p156 = scmp.eq.s32.totalorder %s76, 1
      %p157 = por %p155, %p156
      %p158 = scmp.ne.s32.totalorder %s149, %s150
      %p159 = scmp.eq.s32.totalorder %s76, 0
      %p160 = por %p158, %p159
      %p161 = scmp.ne.s32.totalorder %s149, %s150
      %p162 = scmp.eq.s32.totalorder %s77, 1
      %p163 = por %p161, %p162
      %p165 = scmp.ne.s32.totalorder %s150, %s164
      %p166 = scmp.eq.s32.totalorder %s77, 0
      %p167 = por %p165, %p166
      %s169 = sadd.s32 %s168, 1
      %p172 = scmp.eq.s32.totalorder %s71, 1
      %p173 = scmp.ne.s32.totalorder %s168, %s170
      %p174 = scmp.eq.s32.totalorder %s71, 0
      %p175 = por %p173, %p174
      %p176 = scmp.ne.s32.totalorder %s168, %s170
      %p177 = scmp.eq.s32.totalorder %s76, 1
      %p178 = por %p176, %p177
      %p179 = scmp.ne.s32.totalorder %s170, %s171
      %p180 = scmp.eq.s32.totalorder %s76, 0
      %p181 = por %p179, %p180
      %p182 = scmp.ne.s32.totalorder %s170, %s171
      %p183 = scmp.eq.s32.totalorder %s77, 1
      %p184 = por %p182, %p183
      %p186 = scmp.ne.s32.totalorder %s171, %s185
      %p187 = scmp.eq.s32.totalorder %s77, 0
      %p188 = por %p186, %p187
      %s190 = sadd.s32 %s189, 1
      %p193 = scmp.eq.s32.totalorder %s71, 1
      %p194 = scmp.ne.s32.totalorder %s189, %s191
      %p195 = scmp.eq.s32.totalorder %s71, 0
      %p196 = por %p194, %p195
      %p197 = scmp.ne.s32.totalorder %s189, %s191
      %p198 = scmp.eq.s32.totalorder %s76, 1
      %p199 = por %p197, %p198
      %p200 = scmp.ne.s32.totalorder %s191, %s192
      %p201 = scmp.eq.s32.totalorder %s76, 0
      %p202 = por %p200, %p201
      %p203 = scmp.ne.s32.totalorder %s191, %s192
      %p204 = scmp.eq.s32.totalorder %s77, 1
      %p205 = por %p203, %p204
      %p207 = scmp.ne.s32.totalorder %s192, %s206
      %p208 = scmp.eq.s32.totalorder %s77, 0
      %p209 = por %p207, %p208
      %s211 = sadd.s32 %s210, 1
      %p214 = scmp.eq.s32.totalorder %s71, 1
      %p215 = scmp.ne.s32.totalorder %s210, %s212
      %p216 = scmp.eq.s32.totalorder %s71, 0
      %p217 = por %p215, %p216
      %p218 = scmp.ne.s32.totalorder %s210, %s212
      %p219 = scmp.eq.s32.totalorder %s76, 1
      %p220 = por %p218, %p219
      %p221 = scmp.ne.s32.totalorder %s212, %s213
      %p222 = scmp.eq.s32.totalorder %s76, 0
      %p223 = por %p221, %p222
      %p224 = scmp.ne.s32.totalorder %s212, %s213
      %p225 = scmp.eq.s32.totalorder %s77, 1
      %p226 = por %p224, %p225
      %p228 = scmp.ne.s32.totalorder %s213, %s227
      %p229 = scmp.eq.s32.totalorder %s77, 0
      %p230 = por %p228, %p229
      %s232 = sadd.s32 %s231, 1
      %p235 = scmp.eq.s32.totalorder %s71, 1
      %p236 = scmp.ne.s32.totalorder %s231, %s233
      %p237 = scmp.eq.s32.totalorder %s71, 0
      %p238 = por %p236, %p237
      %p239 = scmp.ne.s32.totalorder %s231, %s233
      %p240 = scmp.eq.s32.totalorder %s76, 1
      %p241 = por %p239, %p240
      %p242 = scmp.ne.s32.totalorder %s233, %s234
      %p243 = scmp.eq.s32.totalorder %s76, 0
      %p244 = por %p242, %p243
      %p245 = scmp.ne.s32.totalorder %s233, %s234
      %p246 = scmp.eq.s32.totalorder %s77, 1
      %p247 = por %p245, %p246
      %p249 = scmp.ne.s32.totalorder %s234, %s248
      %p250 = scmp.eq.s32.totalorder %s77, 0
      %p251 = por %p249, %p250
      %s253 = sadd.s32 %s252, 1
      %p256 = scmp.eq.s32.totalorder %s71, 1
      %p257 = scmp.ne.s32.totalorder %s252, %s254
      %p258 = scmp.eq.s32.totalorder %s71, 0
      %p259 = por %p257, %p258
      %p260 = scmp.ne.s32.totalorder %s252, %s254
      %p261 = scmp.eq.s32.totalorder %s76, 1
      %p262 = por %p260, %p261
      %p263 = scmp.ne.s32.totalorder %s254, %s255
      %p264 = scmp.eq.s32.totalorder %s76, 0
      %p265 = por %p263, %p264
      %p266 = scmp.ne.s32.totalorder %s254, %s255
      %p267 = scmp.eq.s32.totalorder %s77, 1
      %p268 = por %p266, %p267
      %p270 = scmp.ne.s32.totalorder %s255, %s269
      %p271 = scmp.eq.s32.totalorder %s77, 0
      %p272 = por %p270, %p271
      %s274 = sadd.s32 %s273, 1
      %p277 = scmp.eq.s32.totalorder %s71, 1
      %p278 = scmp.ne.s32.totalorder %s273, %s275
      %p279 = scmp.eq.s32.totalorder %s71, 0
      %p280 = por %p278, %p279
      %p281 = scmp.ne.s32.totalorder %s273, %s275
      %p282 = scmp.eq.s32.totalorder %s76, 1
      %p283 = por %p281, %p282
      %p284 = scmp.ne.s32.totalorder %s275, %s276
      %p285 = scmp.eq.s32.totalorder %s76, 0
      %p286 = por %p284, %p285
      %p287 = scmp.ne.s32.totalorder %s275, %s276
      %p288 = scmp.eq.s32.totalorder %s77, 1
      %p289 = por %p287, %p288
      %p291 = scmp.ne.s32.totalorder %s276, %s290
      %p292 = scmp.eq.s32.totalorder %s77, 0
      %p293 = por %p291, %p292
      %s295 = sadd.s32 %s294, 1
      %p298 = scmp.eq.s32.totalorder %s71, 1
      %p299 = scmp.ne.s32.totalorder %s294, %s296
      %p300 = scmp.eq.s32.totalorder %s71, 0
      %p301 = por %p299, %p300
      %p302 = scmp.ne.s32.totalorder %s294, %s296
      %p303 = scmp.eq.s32.totalorder %s76, 1
      %p304 = por %p302, %p303
      %p305 = scmp.ne.s32.totalorder %s296, %s297
      %p306 = scmp.eq.s32.totalorder %s76, 0
      %p307 = por %p305, %p306
      %p308 = scmp.ne.s32.totalorder %s296, %s297
      %p309 = scmp.eq.s32.totalorder %s77, 1
      %p310 = por %p308, %p309
      %p312 = scmp.ne.s32.totalorder %s297, %s311
      %p313 = scmp.eq.s32.totalorder %s77, 0
      %p314 = por %p312, %p313
      %s316 = sadd.s32 %s315, 1
      %p319 = scmp.eq.s32.totalorder %s71, 1
      %p320 = scmp.ne.s32.totalorder %s315, %s317
      %p321 = scmp.eq.s32.totalorder %s71, 0
      %p322 = por %p320, %p321
      %p323 = scmp.ne.s32.totalorder %s315, %s317
      %p324 = scmp.eq.s32.totalorder %s76, 1
      %p325 = por %p323, %p324
      %p326 = scmp.ne.s32.totalorder %s317, %s318
      %p327 = scmp.eq.s32.totalorder %s76, 0
      %p328 = por %p326, %p327
      %p329 = scmp.ne.s32.totalorder %s317, %s318
      %p330 = scmp.eq.s32.totalorder %s77, 1
      %p331 = por %p329, %p330
      %p333 = scmp.ne.s32.totalorder %s318, %s332
      %p334 = scmp.eq.s32.totalorder %s77, 0
      %p335 = por %p333, %p334
      %s337 = sadd.s32 %s336, 1
      %p340 = scmp.eq.s32.totalorder %s71, 1
      %p341 = scmp.ne.s32.totalorder %s336, %s338
      %p342 = scmp.eq.s32.totalorder %s71, 0
      %p343 = por %p341, %p342
      %p344 = scmp.ne.s32.totalorder %s336, %s338
      %p345 = scmp.eq.s32.totalorder %s76, 1
      %p346 = por %p344, %p345
      %p347 = scmp.ne.s32.totalorder %s338, %s339
      %p348 = scmp.eq.s32.totalorder %s76, 0
      %p349 = por %p347, %p348
      %p350 = scmp.ne.s32.totalorder %s338, %s339
      %p351 = scmp.eq.s32.totalorder %s77, 1
      %p352 = por %p350, %p351
      %p354 = scmp.ne.s32.totalorder %s339, %s353
      %p355 = scmp.eq.s32.totalorder %s77, 0
      %p356 = por %p354, %p355
      %s358 = sadd.s32 %s357, 1
      %p361 = scmp.eq.s32.totalorder %s71, 1
      %p362 = scmp.ne.s32.totalorder %s357, %s359
      %p363 = scmp.eq.s32.totalorder %s71, 0
      %p364 = por %p362, %p363
      %p365 = scmp.ne.s32.totalorder %s357, %s359
      %p366 = scmp.eq.s32.totalorder %s76, 1
      %p367 = por %p365, %p366
      %p368 = scmp.ne.s32.totalorder %s359, %s360
      %p369 = scmp.eq.s32.totalorder %s76, 0
      %p370 = por %p368, %p369
      %p371 = scmp.ne.s32.totalorder %s359, %s360
      %p372 = scmp.eq.s32.totalorder %s77, 1
      %p373 = por %p371, %p372
      %p375 = scmp.ne.s32.totalorder %s360, %s374
      %p376 = scmp.eq.s32.totalorder %s77, 0
      %p377 = por %p375, %p376
      %s379 = sadd.s32 %s378, 1
      %p382 = scmp.eq.s32.totalorder %s71, 1
      %p383 = scmp.ne.s32.totalorder %s378, %s380
      %p384 = scmp.eq.s32.totalorder %s71, 0
      %p385 = por %p383, %p384
      %p386 = scmp.ne.s32.totalorder %s378, %s380
      %p387 = scmp.eq.s32.totalorder %s76, 1
      %p388 = por %p386, %p387
      %p389 = scmp.ne.s32.totalorder %s380, %s381
      %p390 = scmp.eq.s32.totalorder %s76, 0
      %p391 = por %p389, %p390
      %p392 = scmp.ne.s32.totalorder %s380, %s381
      %p393 = scmp.eq.s32.totalorder %s77, 1
      %p394 = por %p392, %p393
      %p396 = scmp.ne.s32.totalorder %s381, %s395
      %p397 = scmp.eq.s32.totalorder %s77, 0
      %p398 = por %p396, %p397
      %s400 = sadd.s32 %s399, 1
      %p403 = scmp.eq.s32.totalorder %s71, 1
      %p404 = scmp.ne.s32.totalorder %s399, %s401
      %p405 = scmp.eq.s32.totalorder %s71, 0
      %p406 = por %p404, %p405
      %p407 = scmp.ne.s32.totalorder %s399, %s401
      %p408 = scmp.eq.s32.totalorder %s76, 1
      %p409 = por %p407, %p408
      %p410 = scmp.ne.s32.totalorder %s401, %s402
      %p411 = scmp.eq.s32.totalorder %s76, 0
      %p412 = por %p410, %p411
      %p413 = scmp.ne.s32.totalorder %s401, %s402
      %p414 = scmp.eq.s32.totalorder %s77, 1
      %p415 = por %p413, %p414
      %p417 = scmp.ne.s32.totalorder %s402, %s416
      %p418 = scmp.eq.s32.totalorder %s77, 0
      %p419 = por %p417, %p418
      %s421 = sadd.s32 %s420, 1
      %p424 = scmp.eq.s32.totalorder %s71, 1
      %p425 = scmp.ne.s32.totalorder %s420, %s422
      %p426 = scmp.eq.s32.totalorder %s71, 0
      %p427 = por %p425, %p426
      %p428 = scmp.ne.s32.totalorder %s420, %s422
      %p429 = scmp.eq.s32.totalorder %s76, 1
      %p430 = por %p428, %p429
      %p431 = scmp.ne.s32.totalorder %s422, %s423
      %p432 = scmp.eq.s32.totalorder %s76, 0
      %p433 = por %p431, %p432
      %p434 = scmp.ne.s32.totalorder %s422, %s423
      %p435 = scmp.eq.s32.totalorder %s77, 1
      %p436 = por %p434, %p435
      %p438 = scmp.ne.s32.totalorder %s423, %s437
      %p439 = scmp.eq.s32.totalorder %s77, 0
      %p440 = por %p438, %p439
      %s442 = sadd.s32 %s441, 1
      %p445 = scmp.eq.s32.totalorder %s71, 1
      %p446 = scmp.ne.s32.totalorder %s441, %s443
      %p447 = scmp.eq.s32.totalorder %s71, 0
      %p448 = por %p446, %p447
      %p449 = scmp.ne.s32.totalorder %s441, %s443
      %p450 = scmp.eq.s32.totalorder %s76, 1
      %p451 = por %p449, %p450
      %p452 = scmp.ne.s32.totalorder %s443, %s444
      %p453 = scmp.eq.s32.totalorder %s76, 0
      %p454 = por %p452, %p453
      %p455 = scmp.ne.s32.totalorder %s443, %s444
      %p456 = scmp.eq.s32.totalorder %s77, 1
      %p457 = por %p455, %p456
      %p459 = scmp.ne.s32.totalorder %s444, %s458
      %p460 = scmp.eq.s32.totalorder %s77, 0
      %p461 = por %p459, %p460
      %s463 = sadd.s32 %s462, 1
      %p466 = scmp.eq.s32.totalorder %s71, 1
      %p467 = scmp.ne.s32.totalorder %s462, %s464
      %p468 = scmp.eq.s32.totalorder %s71, 0
      %p469 = por %p467, %p468
      %p470 = scmp.ne.s32.totalorder %s462, %s464
      %p471 = scmp.eq.s32.totalorder %s76, 1
      %p472 = por %p470, %p471
      %p473 = scmp.ne.s32.totalorder %s464, %s465
      %p474 = scmp.eq.s32.totalorder %s76, 0
      %p475 = por %p473, %p474
      %p476 = scmp.ne.s32.totalorder %s464, %s465
      %p477 = scmp.eq.s32.totalorder %s77, 1
      %p478 = por %p476, %p477
      %p480 = scmp.ne.s32.totalorder %s465, %s479
      %p481 = scmp.eq.s32.totalorder %s77, 0
      %p482 = por %p480, %p481
      %s484 = sadd.s32 %s483, 1
      %p487 = scmp.eq.s32.totalorder %s71, 1
      %p488 = scmp.ne.s32.totalorder %s483, %s485
      %p489 = scmp.eq.s32.totalorder %s71, 0
      %p490 = por %p488, %p489
      %p491 = scmp.ne.s32.totalorder %s483, %s485
      %p492 = scmp.eq.s32.totalorder %s76, 1
      %p493 = por %p491, %p492
      %p494 = scmp.ne.s32.totalorder %s485, %s486
      %p495 = scmp.eq.s32.totalorder %s76, 0
      %p496 = por %p494, %p495
      %p497 = scmp.ne.s32.totalorder %s485, %s486
      %p498 = scmp.eq.s32.totalorder %s77, 1
      %p499 = por %p497, %p498
      %p501 = scmp.ne.s32.totalorder %s486, %s500
      %p502 = scmp.eq.s32.totalorder %s77, 0
      %p503 = por %p501, %p502
      %s505 = sadd.s32 %s504, 1
      %p508 = scmp.eq.s32.totalorder %s71, 1
      %p509 = scmp.ne.s32.totalorder %s504, %s506
      %p510 = scmp.eq.s32.totalorder %s71, 0
      %p511 = por %p509, %p510
      %p512 = scmp.ne.s32.totalorder %s504, %s506
      %p513 = scmp.eq.s32.totalorder %s76, 1
      %p514 = por %p512, %p513
      %p515 = scmp.ne.s32.totalorder %s506, %s507
      %p516 = scmp.eq.s32.totalorder %s76, 0
      %p517 = por %p515, %p516
      %p518 = scmp.ne.s32.totalorder %s506, %s507
      %p519 = scmp.eq.s32.totalorder %s77, 1
      %p520 = por %p518, %p519
      %p522 = scmp.ne.s32.totalorder %s507, %s521
      %p523 = scmp.eq.s32.totalorder %s77, 0
      %p524 = por %p522, %p523
      %s526 = sadd.s32 %s525, 1
      %p529 = scmp.eq.s32.totalorder %s71, 1
      %p530 = scmp.ne.s32.totalorder %s525, %s527
      %p531 = scmp.eq.s32.totalorder %s71, 0
      %p532 = por %p530, %p531
      %p533 = scmp.ne.s32.totalorder %s525, %s527
      %p534 = scmp.eq.s32.totalorder %s76, 1
      %p535 = por %p533, %p534
      %p536 = scmp.ne.s32.totalorder %s527, %s528
      %p537 = scmp.eq.s32.totalorder %s76, 0
      %p538 = por %p536, %p537
      %p539 = scmp.ne.s32.totalorder %s527, %s528
      %p540 = scmp.eq.s32.totalorder %s77, 1
      %p541 = por %p539, %p540
      %p543 = scmp.ne.s32.totalorder %s528, %s542
      %p544 = scmp.eq.s32.totalorder %s77, 0
      %p545 = por %p543, %p544
      %s547 = sadd.s32 %s546, 1
      %p550 = scmp.eq.s32.totalorder %s71, 1
      %p551 = scmp.ne.s32.totalorder %s546, %s548
      %p552 = scmp.eq.s32.totalorder %s71, 0
      %p553 = por %p551, %p552
      %p554 = scmp.ne.s32.totalorder %s546, %s548
      %p555 = scmp.eq.s32.totalorder %s76, 1
      %p556 = por %p554, %p555
      %p557 = scmp.ne.s32.totalorder %s548, %s549
      %p558 = scmp.eq.s32.totalorder %s76, 0
      %p559 = por %p557, %p558
      %p560 = scmp.ne.s32.totalorder %s548, %s549
      %p561 = scmp.eq.s32.totalorder %s77, 1
      %p562 = por %p560, %p561
      %p564 = scmp.ne.s32.totalorder %s549, %s563
      %p565 = scmp.eq.s32.totalorder %s77, 0
      %p566 = por %p564, %p565
      %s568 = sadd.s32 %s567, 1
      %p571 = scmp.eq.s32.totalorder %s71, 1
      %p572 = scmp.ne.s32.totalorder %s567, %s569
      %p573 = scmp.eq.s32.totalorder %s71, 0
      %p574 = por %p572, %p573
      %p575 = scmp.ne.s32.totalorder %s567, %s569
      %p576 = scmp.eq.s32.totalorder %s76, 1
      %p577 = por %p575, %p576
      %p578 = scmp.ne.s32.totalorder %s569, %s570
      %p579 = scmp.eq.s32.totalorder %s76, 0
      %p580 = por %p578, %p579
      %p581 = scmp.ne.s32.totalorder %s569, %s570
      %p582 = scmp.eq.s32.totalorder %s77, 1
      %p583 = por %p581, %p582
      %p585 = scmp.ne.s32.totalorder %s570, %s584
      %p586 = scmp.eq.s32.totalorder %s77, 0
      %p587 = por %p585, %p586
      %s589 = sadd.s32 %s588, 1
      %p592 = scmp.eq.s32.totalorder %s71, 1
      %p593 = scmp.ne.s32.totalorder %s588, %s590
      %p594 = scmp.eq.s32.totalorder %s71, 0
      %p595 = por %p593, %p594
      %p596 = scmp.ne.s32.totalorder %s588, %s590
      %p597 = scmp.eq.s32.totalorder %s76, 1
      %p598 = por %p596, %p597
      %p599 = scmp.ne.s32.totalorder %s590, %s591
      %p600 = scmp.eq.s32.totalorder %s76, 0
      %p601 = por %p599, %p600
      %p602 = scmp.ne.s32.totalorder %s590, %s591
      %p603 = scmp.eq.s32.totalorder %s77, 1
      %p604 = por %p602, %p603
      %p606 = scmp.ne.s32.totalorder %s591, %s605
      %p607 = scmp.eq.s32.totalorder %s77, 0
      %p608 = por %p606, %p607
      %s610 = sadd.s32 %s609, 1
      %p613 = scmp.eq.s32.totalorder %s71, 1
      %p614 = scmp.ne.s32.totalorder %s609, %s611
      %p615 = scmp.eq.s32.totalorder %s71, 0
      %p616 = por %p614, %p615
      %p617 = scmp.ne.s32.totalorder %s609, %s611
      %p618 = scmp.eq.s32.totalorder %s76, 1
      %p619 = por %p617, %p618
      %p620 = scmp.ne.s32.totalorder %s611, %s612
      %p621 = scmp.eq.s32.totalorder %s76, 0
      %p622 = por %p620, %p621
      %p623 = scmp.ne.s32.totalorder %s611, %s612
      %p624 = scmp.eq.s32.totalorder %s77, 1
      %p625 = por %p623, %p624
      %p627 = scmp.ne.s32.totalorder %s612, %s626
      %p628 = scmp.eq.s32.totalorder %s77, 0
      %p629 = por %p627, %p628
      %s631 = sadd.s32 %s630, 1
      %p634 = scmp.eq.s32.totalorder %s71, 1
      %p635 = scmp.ne.s32.totalorder %s630, %s632
      %p636 = scmp.eq.s32.totalorder %s71, 0
      %p637 = por %p635, %p636
      %p638 = scmp.ne.s32.totalorder %s630, %s632
      %p639 = scmp.eq.s32.totalorder %s76, 1
      %p640 = por %p638, %p639
      %p641 = scmp.ne.s32.totalorder %s632, %s633
      %p642 = scmp.eq.s32.totalorder %s76, 0
      %p643 = por %p641, %p642
      %p644 = scmp.ne.s32.totalorder %s632, %s633
      %p645 = scmp.eq.s32.totalorder %s77, 1
      %p646 = por %p644, %p645
      %p648 = scmp.ne.s32.totalorder %s633, %s647
      %p649 = scmp.eq.s32.totalorder %s77, 0
      %p650 = por %p648, %p649
      %s651 = ssub.s32 %s71, %s78
      %p652 = scmp.eq.s32.totalorder %s651, 0
      %s654 = sadd.s32 %s653, 1
      %s655 = scalar_select %p652, %s653, %s654
      %p658 = pneg %p652
      %p659 = scmp.eq.s32.totalorder %s71, 1
      %p660 = por %p658, %p659
      %p661 = scmp.ne.s32.totalorder %s653, %s656
      %p662 = scmp.eq.s32.totalorder %s71, 0
      %p663 = por %p661, %p662
      %p664 = scmp.ne.s32.totalorder %s653, %s656
      %p665 = scmp.eq.s32.totalorder %s76, 1
      %p666 = por %p664, %p665
      %p667 = scmp.ne.s32.totalorder %s656, %s657
      %p668 = scmp.eq.s32.totalorder %s76, 0
      %p669 = por %p667, %p668
      %p670 = scmp.ne.s32.totalorder %s656, %s657
      %p671 = scmp.eq.s32.totalorder %s77, 1
      %p672 = por %p670, %p671
      %p674 = scmp.ne.s32.totalorder %s657, %s673
      %p675 = scmp.eq.s32.totalorder %s77, 0
      %p676 = por %p674, %p675
      %s677 = ssub.s32 %s71, %s78
      %p678 = scmp.eq.s32.totalorder %s677, 0
      %s680 = sadd.s32 %s679, 1
      %s681 = scalar_select %p678, %s679, %s680
      %p684 = pneg %p678
      %p685 = scmp.eq.s32.totalorder %s71, 1
      %p686 = por %p684, %p685
      %p687 = scmp.ne.s32.totalorder %s679, %s682
      %p688 = scmp.eq.s32.totalorder %s71, 0
      %p689 = por %p687, %p688
      %p690 = scmp.ne.s32.totalorder %s679, %s682
      %p691 = scmp.eq.s32.totalorder %s76, 1
      %p692 = por %p690, %p691
      %p693 = scmp.ne.s32.totalorder %s682, %s683
      %p694 = scmp.eq.s32.totalorder %s76, 0
      %p695 = por %p693, %p694
      %p696 = scmp.ne.s32.totalorder %s682, %s683
      %p697 = scmp.eq.s32.totalorder %s77, 1
      %p698 = por %p696, %p697
      %p700 = scmp.ne.s32.totalorder %s683, %s699
      %p701 = scmp.eq.s32.totalorder %s77, 0
      %p702 = por %p700, %p701
      %s703 = ssub.s32 %s71, %s78
      %p704 = scmp.eq.s32.totalorder %s703, 0
      %s706 = sadd.s32 %s705, 1
      %s707 = scalar_select %p704, %s705, %s706
      %p710 = pneg %p704
      %p711 = scmp.eq.s32.totalorder %s71, 1
      %p712 = por %p710, %p711
      %p713 = scmp.ne.s32.totalorder %s705, %s708
      %p714 = scmp.eq.s32.totalorder %s71, 0
      %p715 = por %p713, %p714
      %p716 = scmp.ne.s32.totalorder %s705, %s708
      %p717 = scmp.eq.s32.totalorder %s76, 1
      %p718 = por %p716, %p717
      %p719 = scmp.ne.s32.totalorder %s708, %s709
      %p720 = scmp.eq.s32.totalorder %s76, 0
      %p721 = por %p719, %p720
      %p722 = scmp.ne.s32.totalorder %s708, %s709
      %p723 = scmp.eq.s32.totalorder %s77, 1
      %p724 = por %p722, %p723
      %p726 = scmp.ne.s32.totalorder %s709, %s725
      %p727 = scmp.eq.s32.totalorder %s77, 0
      %p728 = por %p726, %p727
      %s729 = ssub.s32 %s71, %s78
      %p730 = scmp.eq.s32.totalorder %s729, 0
      %s732 = sadd.s32 %s731, 1
      %s733 = scalar_select %p730, %s731, %s732
      %p736 = pneg %p730
      %p737 = scmp.eq.s32.totalorder %s71, 1
      %p738 = por %p736, %p737
      %p739 = scmp.ne.s32.totalorder %s731, %s734
      %p740 = scmp.eq.s32.totalorder %s71, 0
      %p741 = por %p739, %p740
      %p742 = scmp.ne.s32.totalorder %s731, %s734
      %p743 = scmp.eq.s32.totalorder %s76, 1
      %p744 = por %p742, %p743
      %p745 = scmp.ne.s32.totalorder %s734, %s735
      %p746 = scmp.eq.s32.totalorder %s76, 0
      %p747 = por %p745, %p746
      %p748 = scmp.ne.s32.totalorder %s734, %s735
      %p749 = scmp.eq.s32.totalorder %s77, 1
      %p750 = por %p748, %p749
      %p752 = scmp.ne.s32.totalorder %s735, %s751
      %p753 = scmp.eq.s32.totalorder %s77, 0
      %p754 = por %p752, %p753
      %p755 = scmp.le.s32.totalorder 1, %s71
      %p756 = scmp.lt.s32.totalorder %s71, 3
      %p757 = pnand %p755, %p756
      %p758 = pneg %p757
      // Predicated region
      $region9: #{backbone_with_fpn_forward.1} parent=5 // pred_check
        _
      $region10: #{backbone_with_fpn_forward.1} parent=5 // pred_check_branch
        %760 = sbr.rel (%p757) target = $region12
      $region11: #{backbone_with_fpn_forward.1} parent=5 // pred_region
        %s761 = ssub.s32 %s71, 1
        // Predicated region
        $region13: #{backbone_with_fpn_forward.1} parent=11 // pred_check
          %p762 = pneg %p118
        $region14: #{backbone_with_fpn_forward.1} parent=11 // pred_check_branch
          %764 = sbr.rel (%p762) target = $region16
        $region15: #{backbone_with_fpn_forward.1} parent=11 // pred_region
          _
        $region16: #{backbone_with_fpn_forward.1} parent=11 // pred_fallthru
          _
        // Predicated region
        $region17: #{backbone_with_fpn_forward.1} parent=11 // pred_check
          %p765 = pneg %p139
        $region18: #{backbone_with_fpn_forward.1} parent=11 // pred_check_branch
          %767 = sbr.rel (%p765) target = $region20
        $region19: #{backbone_with_fpn_forward.1} parent=11 // pred_region
          _
        $region20: #{backbone_with_fpn_forward.1} parent=11 // pred_fallthru
          _
        // Predicated region
        $region21: #{backbone_with_fpn_forward.1} parent=11 // pred_check
          %p768 = pneg %p160
        $region22: #{backbone_with_fpn_forward.1} parent=11 // pred_check_branch
          %770 = sbr.rel (%p768) target = $region24
        $region23: #{backbone_with_fpn_forward.1} parent=11 // pred_region
          _
        $region24: #{backbone_with_fpn_forward.1} parent=11 // pred_fallthru
          _
        // Predicated region
        $region25: #{backbone_with_fpn_forward.1} parent=11 // pred_check
          %p771 = pneg %p181
        $region26: #{backbone_with_fpn_forward.1} parent=11 // pred_check_branch
          %773 = sbr.rel (%p771) target = $region28
        $region27: #{backbone_with_fpn_forward.1} parent=11 // pred_region
          _
        $region28: #{backbone_with_fpn_forward.1} parent=11 // pred_fallthru
          _
        // Predicated region
        $region29: #{backbone_with_fpn_forward.1} parent=11 // pred_check
          %p774 = pneg %p202
        $region30: #{backbone_with_fpn_forward.1} parent=11 // pred_check_branch
          %776 = sbr.rel (%p774) target = $region32
        $region31: #{backbone_with_fpn_forward.1} parent=11 // pred_region
          _
        $region32: #{backbone_with_fpn_forward.1} parent=11 // pred_fallthru
          _
        // Predicated region
        $region33: #{backbone_with_fpn_forward.1} parent=11 // pred_check
          %p777 = pneg %p223
        $region34: #{backbone_with_fpn_forward.1} parent=11 // pred_check_branch
          %779 = sbr.rel (%p777) target = $region36
        $region35: #{backbone_with_fpn_forward.1} parent=11 // pred_region
          _
        $region36: #{backbone_with_fpn_forward.1} parent=11 // pred_fallthru
          _
        // Predicated region
        $region37: #{backbone_with_fpn_forward.1} parent=11 // pred_check
          %p780 = pneg %p244
        $region38: #{backbone_with_fpn_forward.1} parent=11 // pred_check_branch
          %782 = sbr.rel (%p780) target = $region40
        $region39: #{backbone_with_fpn_forward.1} parent=11 // pred_region
          _
        $region40: #{backbone_with_fpn_forward.1} parent=11 // pred_fallthru
          _
        // Predicated region
        $region41: #{backbone_with_fpn_forward.1} parent=11 // pred_check
          %p783 = pneg %p265
        $region42: #{backbone_with_fpn_forward.1} parent=11 // pred_check_branch
          %785 = sbr.rel (%p783) target = $region44
        $region43: #{backbone_with_fpn_forward.1} parent=11 // pred_region
          _
        $region44: #{backbone_with_fpn_forward.1} parent=11 // pred_fallthru
          _
        // Predicated region
        $region45: #{backbone_with_fpn_forward.1} parent=11 // pred_check
          %p786 = pneg %p286
        $region46: #{backbone_with_fpn_forward.1} parent=11 // pred_check_branch
          %788 = sbr.rel (%p786) target = $region48
        $region47: #{backbone_with_fpn_forward.1} parent=11 // pred_region
          _
        $region48: #{backbone_with_fpn_forward.1} parent=11 // pred_fallthru
          _
        // Predicated region
        $region49: #{backbone_with_fpn_forward.1} parent=11 // pred_check
          %p789 = pneg %p307
        $region50: #{backbone_with_fpn_forward.1} parent=11 // pred_check_branch
          %791 = sbr.rel (%p789) target = $region52
        $region51: #{backbone_with_fpn_forward.1} parent=11 // pred_region
          _
        $region52: #{backbone_with_fpn_forward.1} parent=11 // pred_fallthru
          _
        // Predicated region
        $region53: #{backbone_with_fpn_forward.1} parent=11 // pred_check
          %p792 = pneg %p328
        $region54: #{backbone_with_fpn_forward.1} parent=11 // pred_check_branch
          %794 = sbr.rel (%p792) target = $region56
        $region55: #{backbone_with_fpn_forward.1} parent=11 // pred_region
          _
        $region56: #{backbone_with_fpn_forward.1} parent=11 // pred_fallthru
          _
        // Predicated region
        $region57: #{backbone_with_fpn_forward.1} parent=11 // pred_check
          %p795 = pneg %p349
        $region58: #{backbone_with_fpn_forward.1} parent=11 // pred_check_branch
          %797 = sbr.rel (%p795) target = $region60
        $region59: #{backbone_with_fpn_forward.1} parent=11 // pred_region
          _
        $region60: #{backbone_with_fpn_forward.1} parent=11 // pred_fallthru
          _
        // Predicated region
        $region61: #{backbone_with_fpn_forward.1} parent=11 // pred_check
          %p798 = pneg %p370
        $region62: #{backbone_with_fpn_forward.1} parent=11 // pred_check_branch
          %800 = sbr.rel (%p798) target = $region64
        $region63: #{backbone_with_fpn_forward.1} parent=11 // pred_region
          _
        $region64: #{backbone_with_fpn_forward.1} parent=11 // pred_fallthru
          _
        // Predicated region
        $region65: #{backbone_with_fpn_forward.1} parent=11 // pred_check
          %p801 = pneg %p391
        $region66: #{backbone_with_fpn_forward.1} parent=11 // pred_check_branch
          %803 = sbr.rel (%p801) target = $region68
        $region67: #{backbone_with_fpn_forward.1} parent=11 // pred_region
          _
        $region68: #{backbone_with_fpn_forward.1} parent=11 // pred_fallthru
          _
        // Predicated region
        $region69: #{backbone_with_fpn_forward.1} parent=11 // pred_check
          %p804 = pneg %p412
        $region70: #{backbone_with_fpn_forward.1} parent=11 // pred_check_branch
          %806 = sbr.rel (%p804) target = $region72
        $region71: #{backbone_with_fpn_forward.1} parent=11 // pred_region
          _
        $region72: #{backbone_with_fpn_forward.1} parent=11 // pred_fallthru
          _
        // Predicated region
        $region73: #{backbone_with_fpn_forward.1} parent=11 // pred_check
          %p807 = pneg %p433
        $region74: #{backbone_with_fpn_forward.1} parent=11 // pred_check_branch
          %809 = sbr.rel (%p807) target = $region76
        $region75: #{backbone_with_fpn_forward.1} parent=11 // pred_region
          _
        $region76: #{backbone_with_fpn_forward.1} parent=11 // pred_fallthru
          _
        // Predicated region
        $region77: #{backbone_with_fpn_forward.1} parent=11 // pred_check
          %p810 = pneg %p454
        $region78: #{backbone_with_fpn_forward.1} parent=11 // pred_check_branch
          %812 = sbr.rel (%p810) target = $region80
        $region79: #{backbone_with_fpn_forward.1} parent=11 // pred_region
          _
        $region80: #{backbone_with_fpn_forward.1} parent=11 // pred_fallthru
          _
        // Predicated region
        $region81: #{backbone_with_fpn_forward.1} parent=11 // pred_check
          %p813 = pneg %p475
        $region82: #{backbone_with_fpn_forward.1} parent=11 // pred_check_branch
          %815 = sbr.rel (%p813) target = $region84
        $region83: #{backbone_with_fpn_forward.1} parent=11 // pred_region
          _
        $region84: #{backbone_with_fpn_forward.1} parent=11 // pred_fallthru
          _
        // Predicated region
        $region85: #{backbone_with_fpn_forward.1} parent=11 // pred_check
          %p816 = pneg %p496
        $region86: #{backbone_with_fpn_forward.1} parent=11 // pred_check_branch
          %818 = sbr.rel (%p816) target = $region88
        $region87: #{backbone_with_fpn_forward.1} parent=11 // pred_region
          _
        $region88: #{backbone_with_fpn_forward.1} parent=11 // pred_fallthru
          _
        // Predicated region
        $region89: #{backbone_with_fpn_forward.1} parent=11 // pred_check
          %p819 = pneg %p517
        $region90: #{backbone_with_fpn_forward.1} parent=11 // pred_check_branch
          %821 = sbr.rel (%p819) target = $region92
        $region91: #{backbone_with_fpn_forward.1} parent=11 // pred_region
          _
        $region92: #{backbone_with_fpn_forward.1} parent=11 // pred_fallthru
          _
        // Predicated region
        $region93: #{backbone_with_fpn_forward.1} parent=11 // pred_check
          %p822 = pneg %p538
        $region94: #{backbone_with_fpn_forward.1} parent=11 // pred_check_branch
          %824 = sbr.rel (%p822) target = $region96
        $region95: #{backbone_with_fpn_forward.1} parent=11 // pred_region
          _
        $region96: #{backbone_with_fpn_forward.1} parent=11 // pred_fallthru
          _
        // Predicated region
        $region97: #{backbone_with_fpn_forward.1} parent=11 // pred_check
          %p825 = pneg %p559
        $region98: #{backbone_with_fpn_forward.1} parent=11 // pred_check_branch
          %827 = sbr.rel (%p825) target = $region100
        $region99: #{backbone_with_fpn_forward.1} parent=11 // pred_region
          _
        $region100: #{backbone_with_fpn_forward.1} parent=11 // pred_fallthru
          _
        // Predicated region
        $region101: #{backbone_with_fpn_forward.1} parent=11 // pred_check
          %p828 = pneg %p580
        $region102: #{backbone_with_fpn_forward.1} parent=11 // pred_check_branch
          %830 = sbr.rel (%p828) target = $region104
        $region103: #{backbone_with_fpn_forward.1} parent=11 // pred_region
          _
        $region104: #{backbone_with_fpn_forward.1} parent=11 // pred_fallthru
          _
        // Predicated region
        $region105: #{backbone_with_fpn_forward.1} parent=11 // pred_check
          %p831 = pneg %p601
        $region106: #{backbone_with_fpn_forward.1} parent=11 // pred_check_branch
          %833 = sbr.rel (%p831) target = $region108
        $region107: #{backbone_with_fpn_forward.1} parent=11 // pred_region
          _
        $region108: #{backbone_with_fpn_forward.1} parent=11 // pred_fallthru
          _
        // Predicated region
        $region109: #{backbone_with_fpn_forward.1} parent=11 // pred_check
          %p834 = pneg %p622
        $region110: #{backbone_with_fpn_forward.1} parent=11 // pred_check_branch
          %836 = sbr.rel (%p834) target = $region112
        $region111: #{backbone_with_fpn_forward.1} parent=11 // pred_region
          _
        $region112: #{backbone_with_fpn_forward.1} parent=11 // pred_fallthru
          _
        // Predicated region
        $region113: #{backbone_with_fpn_forward.1} parent=11 // pred_check
          %p837 = pneg %p643
        $region114: #{backbone_with_fpn_forward.1} parent=11 // pred_check_branch
          %839 = sbr.rel (%p837) target = $region116
        $region115: #{backbone_with_fpn_forward.1} parent=11 // pred_region
          _
        $region116: #{backbone_with_fpn_forward.1} parent=11 // pred_fallthru
          _
      $region12: #{backbone_with_fpn_forward.1} parent=5 // pred_fallthru
        _
      %p840 = scmp.lt.s32.totalorder %s71, 2
      // Predicated region
      $region117: #{backbone_with_fpn_forward.1} parent=5 // pred_check
        %p841 = pneg %p840
      $region118: #{backbone_with_fpn_forward.1} parent=5 // pred_check_branch
        %843 = sbr.rel (%p841) target = $region120
      $region119: #{backbone_with_fpn_forward.1} parent=5 // pred_region
        // Predicated region
        $region121: #{backbone_with_fpn_forward.1} parent=119 // pred_check
          %p844 = pneg %p91
        $region122: #{backbone_with_fpn_forward.1} parent=119 // pred_check_branch
          %846 = sbr.rel (%p844) target = $region124
        $region123: #{backbone_with_fpn_forward.1} parent=119 // pred_region
          %p847 = scmp.lt.s32.totalorder %s71, 1
          %s848 = scalar_select %p847, %s71, 1
          %s849 = smul.addr %s848, 41
          %s850 = smul.addr %s849, 8
          %s851 = scalar_lea.vmem %s1, %s850
        $region124: #{backbone_with_fpn_forward.1} parent=119 // pred_fallthru
          _
      $region120: #{backbone_with_fpn_forward.1} parent=5 // pred_fallthru
        _
      %p852 = scmp.le.s32.totalorder 1, %s71
      %p853 = scmp.lt.s32.totalorder %s71, 3
      %p854 = pnand %p852, %p853
      %p855 = pneg %p854
      // Predicated region
      $region125: #{backbone_with_fpn_forward.1} parent=5 // pred_check
        _
      $region126: #{backbone_with_fpn_forward.1} parent=5 // pred_check_branch
        %857 = sbr.rel (%p854) target = $region128
      $region127: #{backbone_with_fpn_forward.1} parent=5 // pred_region
        %s858 = ssub.s32 %s71, 1
        %p859 = scmp.lt.s32.totalorder %s76, 1
        %s860 = scalar_select %p859, %s76, 1
        %s861 = smul.addr %s860, 41
        %s862 = smul.addr %s861, 8
        %s863 = scalar_lea.vmem %s1, %s862
        %p864 = pneg %p97
        %p865 = pneg %p94
        %p866 = pneg %p118
        %p867 = pneg %p115
        %p868 = pneg %p139
        %p869 = pneg %p136
        %p870 = pneg %p160
        %p871 = pneg %p157
        %p872 = pneg %p181
        %p873 = pneg %p178
        %p874 = pneg %p202
        %p875 = pneg %p199
        %p876 = pneg %p223
        %p877 = pneg %p220
        %p878 = pneg %p244
        %p879 = pneg %p241
        %p880 = pneg %p265
        %p881 = pneg %p262
        %p882 = pneg %p286
        %p883 = pneg %p283
        %p884 = pneg %p307
        %p885 = pneg %p304
        %p886 = pneg %p328
        %p887 = pneg %p325
        %p888 = pneg %p349
        %p889 = pneg %p346
        %p890 = pneg %p370
        %p891 = pneg %p367
        %p892 = pneg %p391
        %p893 = pneg %p388
        %p894 = pneg %p412
        %p895 = pneg %p409
        %p896 = pneg %p433
        %p897 = pneg %p430
        %p898 = pneg %p454
        %p899 = pneg %p451
        %p900 = pneg %p475
        %p901 = pneg %p472
        %p902 = pneg %p496
        %p903 = pneg %p493
        %p904 = pneg %p517
        %p905 = pneg %p514
        %p906 = pneg %p538
        %p907 = pneg %p535
        %p908 = pneg %p559
        %p909 = pneg %p556
        %p910 = pneg %p580
        %p911 = pneg %p577
        %p912 = pneg %p601
        %p913 = pneg %p598
        %p914 = pneg %p622
        %p915 = pneg %p619
        %p916 = pneg %p643
        %p917 = pneg %p640
        %p918 = pneg %p669
        %p919 = pneg %p666
        %p920 = scmp.lt.s32.totalorder %s76, 1
        %s921 = scalar_select %p920, %s76, 1
        %s922 = smul.addr %s921, 10
        %s923 = smul.addr %s922, 8
        %s924 = scalar_lea.vmem %s55, %s923
        %p925 = pneg %p695
        %p926 = pneg %p692
        %p927 = scmp.lt.s32.totalorder %s76, 1
        %s928 = scalar_select %p927, %s76, 1
        %s929 = smul.addr %s928, 3
        %s930 = smul.addr %s929, 8
        %s931 = scalar_lea.vmem %s57, %s930
        %p932 = pneg %p721
        %p933 = pneg %p718
        %p934 = scmp.lt.s32.totalorder %s76, 1
        %s935 = scalar_select %p934, %s76, 1
        %s936 = smul.addr %s935, 8
        %s937 = scalar_lea.vmem %s59, %s936
        %p938 = pneg %p747
        %p939 = pneg %p744
        %s940 = sand.u32 %s734, 1
        %s941 = scalar_lea.sflag [#allocation12], %s940
        %s942 = sand.u32 %s734, 1
        %s943 = scalar_lea.vmem [#allocation11], %s942
        %p944 = scmp.lt.s32.totalorder %s76, 1
        %s945 = scalar_select %p944, %s76, 1
        %s946 = smul.addr %s945, 41
        %s947 = smul.addr %s946, 8
        %s948 = scalar_lea.vmem %s1, %s947
        %p949 = scmp.lt.s32.totalorder %s76, 1
        %s950 = scalar_select %p949, %s76, 1
        %s951 = smul.addr %s950, 10
        %s952 = smul.addr %s951, 8
        %s953 = scalar_lea.vmem %s55, %s952
        %p954 = scmp.lt.s32.totalorder %s76, 1
        %s955 = scalar_select %p954, %s76, 1
        %s956 = smul.addr %s955, 3
        %s957 = smul.addr %s956, 8
        %s958 = scalar_lea.vmem %s57, %s957
        %p959 = scmp.lt.s32.totalorder %s76, 1
        %s960 = scalar_select %p959, %s76, 1
        %s961 = smul.addr %s960, 8
        %s962 = scalar_lea.vmem %s59, %s961
        %v964 = vld [vmem:[%s948] sm:$0xff]
        %v965 = vld [vmem:[%s948 + $0x8] sm:$0xff]
        %v966 = vld [vmem:[%s948 + $0x10] sm:$0xff]
        %v967 = vld [vmem:[%s948 + $0x18] sm:$0xff]
        %v968 = vld [vmem:[%s948 + $0x20] sm:$0xff]
        %v969 = vld [vmem:[%s948 + $0x28] sm:$0xff]
        %v970 = vld [vmem:[%s948 + $0x30] sm:$0xff]
        %v971 = vld [vmem:[%s948 + $0x38] sm:$0xff]
        %v972 = vld [vmem:[%s948 + $0x40] sm:$0xff]
        %v973 = vld [vmem:[%s948 + $0x48] sm:$0xff]
        %v974 = vld [vmem:[%s948 + $0x50] sm:$0xff]
        %v975 = vld [vmem:[%s948 + $0x58] sm:$0xff]
        %v976 = vld [vmem:[%s948 + $0x60] sm:$0xff]
        %v977 = vld [vmem:[%s948 + $0x68] sm:$0xff]
        %v978 = vld [vmem:[%s948 + $0x70] sm:$0xff]
        %v979 = vld [vmem:[%s948 + $0x78] sm:$0xff]
        %v980 = vld [vmem:[%s948 + $0x80] sm:$0xff]
        %v981 = vld [vmem:[%s948 + $0x88] sm:$0xff]
        %v982 = vld [vmem:[%s948 + $0x90] sm:$0xff]
        %v983 = vld [vmem:[%s948 + $0x98] sm:$0xff]
        %v984 = vld [vmem:[%s948 + $0xa0] sm:$0xff]
        %v985 = vld [vmem:[%s948 + $0xa8] sm:$0xff]
        %v986 = vld [vmem:[%s948 + $0xb0] sm:$0xff]
        %v987 = vld [vmem:[%s948 + $0xb8] sm:$0xff]
        %v988 = vld [vmem:[%s948 + $0xc0] sm:$0xff]
        %v989 = vld [vmem:[%s948 + $0xc8] sm:$0xff]
        %v990 = vld [vmem:[%s948 + $0xd0] sm:$0xff]
        %v991 = vld [vmem:[%s948 + $0xd8] sm:$0xff]
        %v992 = vld [vmem:[%s948 + $0xe0] sm:$0xff]
        %v993 = vld [vmem:[%s948 + $0xe8] sm:$0xff]
        %v994 = vld [vmem:[%s948 + $0xf0] sm:$0xff]
        %v995 = vld [vmem:[%s948 + $0xf8] sm:$0xff]
        %v996 = vld [vmem:[%s948 + $0x100] sm:$0xff]
        %v997 = vld [vmem:[%s948 + $0x108] sm:$0xff]
        %v998 = vld [vmem:[%s948 + $0x110] sm:$0xff]
        %v999 = vld [vmem:[%s948 + $0x118] sm:$0x3f]
        %v1000 = vpack.c.bf16 %v965, %v964
        %v1001 = vpack.c.bf16 %v967, %v966
        %v1002 = vpack.c.bf16 %v969, %v968
        %v1003 = vpack.c.bf16 %v971, %v970
        %v1004 = vpack.c.bf16 %v973, %v972
        %v1005 = vpack.c.bf16 %v975, %v974
        %v1006 = vpack.c.bf16 %v977, %v976
        %v1007 = vpack.c.bf16 %v979, %v978
        %v1008 = vpack.c.bf16 %v981, %v980
        %v1009 = vpack.c.bf16 %v983, %v982
        %v1010 = vpack.c.bf16 %v985, %v984
        %v1011 = vpack.c.bf16 %v987, %v986
        %v1012 = vpack.c.bf16 %v989, %v988
        %v1013 = vpack.c.bf16 %v991, %v990
        %v1014 = vpack.c.bf16 %v993, %v992
        %v1015 = vpack.c.bf16 %v995, %v994
        %v1016 = vpack.c.bf16 %v997, %v996
        %v1017 = vpack.c.bf16 %v999, %v998
        %v1018 = vld [vmem:[%s3] sm:$0x3]
        %v1019 = vld [vmem:[%s948 + $0x1] sm:$0xff]
        %v1020 = vld [vmem:[%s948 + $0x9] sm:$0xff]
        %v1021 = vld [vmem:[%s948 + $0x11] sm:$0xff]
        %v1022 = vld [vmem:[%s948 + $0x19] sm:$0xff]
        %v1023 = vld [vmem:[%s948 + $0x21] sm:$0xff]
        %v1024 = vld [vmem:[%s948 + $0x29] sm:$0xff]
        %v1025 = vld [vmem:[%s948 + $0x31] sm:$0xff]
        %v1026 = vld [vmem:[%s948 + $0x39] sm:$0xff]
        %v1027 = vld [vmem:[%s948 + $0x41] sm:$0xff]
        %v1028 = vld [vmem:[%s948 + $0x49] sm:$0xff]
        %v1029 = vld [vmem:[%s948 + $0x51] sm:$0xff]
        %v1030 = vld [vmem:[%s948 + $0x59] sm:$0xff]
        %v1031 = vld [vmem:[%s948 + $0x61] sm:$0xff]
        %v1032 = vld [vmem:[%s948 + $0x69] sm:$0xff]
        %v1033 = vld [vmem:[%s948 + $0x71] sm:$0xff]
        %v1034 = vld [vmem:[%s948 + $0x79] sm:$0xff]
        %v1035 = vld [vmem:[%s948 + $0x81] sm:$0xff]
        %v1036 = vld [vmem:[%s948 + $0x89] sm:$0xff]
        %v1037 = vld [vmem:[%s948 + $0x91] sm:$0xff]
        %v1038 = vld [vmem:[%s948 + $0x99] sm:$0xff]
        %v1039 = vld [vmem:[%s948 + $0xa1] sm:$0xff]
        %v1040 = vld [vmem:[%s948 + $0xa9] sm:$0xff]
        %v1041 = vld [vmem:[%s948 + $0xb1] sm:$0xff]
        %v1042 = vld [vmem:[%s948 + $0xb9] sm:$0xff]
        %v1043 = vld [vmem:[%s948 + $0xc1] sm:$0xff]
        %v1044 = vld [vmem:[%s948 + $0xc9] sm:$0xff]
        %v1045 = vld [vmem:[%s948 + $0xd1] sm:$0xff]
        %v1046 = vld [vmem:[%s948 + $0xd9] sm:$0xff]
        %v1047 = vld [vmem:[%s948 + $0xe1] sm:$0xff]
        %v1048 = vld [vmem:[%s948 + $0xe9] sm:$0xff]
        %v1049 = vld [vmem:[%s948 + $0xf1] sm:$0xff]
        %v1050 = vld [vmem:[%s948 + $0xf9] sm:$0xff]
        %v1051 = vld [vmem:[%s948 + $0x101] sm:$0xff]
        %v1052 = vld [vmem:[%s948 + $0x109] sm:$0xff]
        %v1053 = vld [vmem:[%s948 + $0x111] sm:$0xff]
        %v1054 = vld [vmem:[%s948 + $0x119] sm:$0x3f]
        %v1055 = vpack.c.bf16 %v1020, %v1019
        %v1056 = vpack.c.bf16 %v1022, %v1021
        %v1057 = vpack.c.bf16 %v1024, %v1023
        %v1058 = vpack.c.bf16 %v1026, %v1025
        %v1059 = vpack.c.bf16 %v1028, %v1027
        %v1060 = vpack.c.bf16 %v1030, %v1029
        %v1061 = vpack.c.bf16 %v1032, %v1031
        %v1062 = vpack.c.bf16 %v1034, %v1033
        %v1063 = vpack.c.bf16 %v1036, %v1035
        %v1064 = vpack.c.bf16 %v1038, %v1037
        %v1065 = vpack.c.bf16 %v1040, %v1039
        %v1066 = vpack.c.bf16 %v1042, %v1041
        %v1067 = vpack.c.bf16 %v1044, %v1043
        %v1068 = vpack.c.bf16 %v1046, %v1045
        %v1069 = vpack.c.bf16 %v1048, %v1047
        %v1070 = vpack.c.bf16 %v1050, %v1049
        %v1071 = vpack.c.bf16 %v1052, %v1051
        %v1072 = vpack.c.bf16 %v1054, %v1053
        %s1073 = scalar_lea.vmem %s3, 2
        %v1074 = vld [vmem:[%s1073] sm:$0x3]
        %vm1075 = vcmask 31744
        %v1077 = vsel %vm1075, %v1055, 0
        %v1080 = vsel %vm1075, %v1056, 0
        %v1083 = vsel %vm1075, %v1057, 0
        %v1086 = vsel %vm1075, %v1058, 0
        %v1089 = vsel %vm1075, %v1059, 0
        %v1092 = vsel %vm1075, %v1060, 0
        %v1095 = vsel %vm1075, %v1061, 0
        %v1098 = vsel %vm1075, %v1062, 0
        %v1101 = vsel %vm1075, %v1063, 0
        %v1104 = vsel %vm1075, %v1064, 0
        %v1107 = vsel %vm1075, %v1065, 0
        %v1110 = vsel %vm1075, %v1066, 0
        %v1113 = vsel %vm1075, %v1067, 0
        %v1116 = vsel %vm1075, %v1068, 0
        %v1119 = vsel %vm1075, %v1069, 0
        %v1122 = vsel %vm1075, %v1070, 0
        %v1125 = vsel %vm1075, %v1071, 0
        %v1128 = vsel %vm1075, %v1072, 0
        %vm1130 = vcmask 1041408
        %v1132 = vsel %vm1130, %v1074, 0
        %1134 = vmatpush.bf16.msra.mxu0 0
        %1135 = vmatpush.bf16.msra.mxu0 0
        %1136 = vmatpush.bf16.msra.mxu0 0
        %1137 = vmatpush.bf16.msra.mxu0 0
        %1138 = vmatpush.bf16.msra.mxu0 0
        %1139 = vmatpush.bf16.msra.mxu0 0
        %1140 = vmatpush.bf16.msra.mxu0 0
        %1141 = vmatpush.bf16.msra.mxu0 %v1132
        %1142 = vmatmul.bf16.gmra.mxu0 %v1077
        %v1143 = vpop.f32.mrf.mxu0
        %v1144 = vadd.f32 0.0, %v1143
        %v1145 = vpop.f32.mrf.mxu0
        %v1146 = vadd.f32 0.0, %v1145
        %1147 = vmatmul.bf16.gmra.mxu0 %v1080
        %v1148 = vpop.f32.mrf.mxu0
        %v1149 = vadd.f32 0.0, %v1148
        %v1150 = vpop.f32.mrf.mxu0
        %v1151 = vadd.f32 0.0, %v1150
        %1152 = vmatmul.bf16.gmra.mxu0 %v1083
        %v1153 = vpop.f32.mrf.mxu0
        %v1154 = vadd.f32 0.0, %v1153
        %v1155 = vpop.f32.mrf.mxu0
        %v1156 = vadd.f32 0.0, %v1155
        %1157 = vmatmul.bf16.gmra.mxu0 %v1086
        %v1158 = vpop.f32.mrf.mxu0
        %v1159 = vadd.f32 0.0, %v1158
        %v1160 = vpop.f32.mrf.mxu0
        %v1161 = vadd.f32 0.0, %v1160
        %1162 = vmatmul.bf16.gmra.mxu0 %v1089
        %v1163 = vpop.f32.mrf.mxu0
        %v1164 = vadd.f32 0.0, %v1163
        %v1165 = vpop.f32.mrf.mxu0
        %v1166 = vadd.f32 0.0, %v1165
        %1167 = vmatmul.bf16.gmra.mxu0 %v1092
        %v1168 = vpop.f32.mrf.mxu0
        %v1169 = vadd.f32 0.0, %v1168
        %v1170 = vpop.f32.mrf.mxu0
        %v1171 = vadd.f32 0.0, %v1170
        %1172 = vmatmul.bf16.gmra.mxu0 %v1095
        %v1173 = vpop.f32.mrf.mxu0
        %v1174 = vadd.f32 0.0, %v1173
        %v1175 = vpop.f32.mrf.mxu0
        %v1176 = vadd.f32 0.0, %v1175
        %1177 = vmatmul.bf16.gmra.mxu0 %v1098
        %v1178 = vpop.f32.mrf.mxu0
        %v1179 = vadd.f32 0.0, %v1178
        %v1180 = vpop.f32.mrf.mxu0
        %v1181 = vadd.f32 0.0, %v1180
        %1182 = vmatmul.bf16.gmra.mxu0 %v1101
        %v1183 = vpop.f32.mrf.mxu0
        %v1184 = vadd.f32 0.0, %v1183
        %v1185 = vpop.f32.mrf.mxu0
        %v1186 = vadd.f32 0.0, %v1185
        %1187 = vmatmul.bf16.gmra.mxu0 %v1104
        %v1188 = vpop.f32.mrf.mxu0
        %v1189 = vadd.f32 0.0, %v1188
        %v1190 = vpop.f32.mrf.mxu0
        %v1191 = vadd.f32 0.0, %v1190
        %1192 = vmatmul.bf16.gmra.mxu0 %v1107
        %v1193 = vpop.f32.mrf.mxu0
        %v1194 = vadd.f32 0.0, %v1193
        %v1195 = vpop.f32.mrf.mxu0
        %v1196 = vadd.f32 0.0, %v1195
        %1197 = vmatmul.bf16.gmra.mxu0 %v1110
        %v1198 = vpop.f32.mrf.mxu0
        %v1199 = vadd.f32 0.0, %v1198
        %v1200 = vpop.f32.mrf.mxu0
        %v1201 = vadd.f32 0.0, %v1200
        %1202 = vmatmul.bf16.gmra.mxu0 %v1113
        %v1203 = vpop.f32.mrf.mxu0
        %v1204 = vadd.f32 0.0, %v1203
        %v1205 = vpop.f32.mrf.mxu0
        %v1206 = vadd.f32 0.0, %v1205
        %1207 = vmatmul.bf16.gmra.mxu0 %v1116
        %v1208 = vpop.f32.mrf.mxu0
        %v1209 = vadd.f32 0.0, %v1208
        %v1210 = vpop.f32.mrf.mxu0
        %v1211 = vadd.f32 0.0, %v1210
        %1212 = vmatmul.bf16.gmra.mxu0 %v1119
        %v1213 = vpop.f32.mrf.mxu0
        %v1214 = vadd.f32 0.0, %v1213
        %v1215 = vpop.f32.mrf.mxu0
        %v1216 = vadd.f32 0.0, %v1215
        %1217 = vmatmul.bf16.gmra.mxu0 %v1122
        %v1218 = vpop.f32.mrf.mxu0
        %v1219 = vadd.f32 0.0, %v1218
        %v1220 = vpop.f32.mrf.mxu0
        %v1221 = vadd.f32 0.0, %v1220
        %1222 = vmatmul.bf16.gmra.mxu0 %v1125
        %v1223 = vpop.f32.mrf.mxu0
        %v1224 = vadd.f32 0.0, %v1223
        %v1225 = vpop.f32.mrf.mxu0
        %v1226 = vadd.f32 0.0, %v1225
        %1227 = vmatmul.bf16.gmra.mxu0 %v1128
        %v1228 = vpop.f32.mrf.mxu0
        %v1229 = vadd.f32 0.0, %v1228
        %v1230 = vpop.f32.mrf.mxu0
        %v1231 = vadd.f32 0.0, %v1230
        %1232 = vdwg.mxu0
        %v1234 = vsel %vm1075, %v1000, 0
        %v1237 = vsel %vm1075, %v1001, 0
        %v1240 = vsel %vm1075, %v1002, 0
        %v1243 = vsel %vm1075, %v1003, 0
        %v1246 = vsel %vm1075, %v1004, 0
        %v1249 = vsel %vm1075, %v1005, 0
        %v1252 = vsel %vm1075, %v1006, 0
        %v1255 = vsel %vm1075, %v1007, 0
        %v1258 = vsel %vm1075, %v1008, 0
        %v1261 = vsel %vm1075, %v1009, 0
        %v1264 = vsel %vm1075, %v1010, 0
        %v1267 = vsel %vm1075, %v1011, 0
        %v1270 = vsel %vm1075, %v1012, 0
        %v1273 = vsel %vm1075, %v1013, 0
        %v1276 = vsel %vm1075, %v1014, 0
        %v1279 = vsel %vm1075, %v1015, 0
        %v1282 = vsel %vm1075, %v1016, 0
        %v1285 = vsel %vm1075, %v1017, 0
        %v1288 = vsel %vm1130, %v1018, 0
        %1290 = vmatpush.bf16.msra.mxu0 0
        %1291 = vmatpush.bf16.msra.mxu0 0
        %1292 = vmatpush.bf16.msra.mxu0 0
        %1293 = vmatpush.bf16.msra.mxu0 0
        %1294 = vmatpush.bf16.msra.mxu0 0
        %1295 = vmatpush.bf16.msra.mxu0 0
        %1296 = vmatpush.bf16.msra.mxu0 0
        %1297 = vmatpush.bf16.msra.mxu0 %v1288
        %1298 = vmatmul.bf16.gmra.mxu0 %v1234
        %v1299 = vpop.f32.mrf.mxu0
        %v1300 = vadd.f32 %v1144, %v1299
        %v1301 = vpop.f32.mrf.mxu0
        %v1302 = vadd.f32 %v1146, %v1301
        %1303 = vmatmul.bf16.gmra.mxu0 %v1237
        %v1304 = vpop.f32.mrf.mxu0
        %v1305 = vadd.f32 %v1149, %v1304
        %v1306 = vpop.f32.mrf.mxu0
        %v1307 = vadd.f32 %v1151, %v1306
        %1308 = vmatmul.bf16.gmra.mxu0 %v1240
        %v1309 = vpop.f32.mrf.mxu0
        %v1310 = vadd.f32 %v1154, %v1309
        %v1311 = vpop.f32.mrf.mxu0
        %v1312 = vadd.f32 %v1156, %v1311
        %1313 = vmatmul.bf16.gmra.mxu0 %v1243
        %v1314 = vpop.f32.mrf.mxu0
        %v1315 = vadd.f32 %v1159, %v1314
        %v1316 = vpop.f32.mrf.mxu0
        %v1317 = vadd.f32 %v1161, %v1316
        %1318 = vmatmul.bf16.gmra.mxu0 %v1246
        %v1319 = vpop.f32.mrf.mxu0
        %v1320 = vadd.f32 %v1164, %v1319
        %v1321 = vpop.f32.mrf.mxu0
        %v1322 = vadd.f32 %v1166, %v1321
        %1323 = vmatmul.bf16.gmra.mxu0 %v1249
        %v1324 = vpop.f32.mrf.mxu0
        %v1325 = vadd.f32 %v1169, %v1324
        %v1326 = vpop.f32.mrf.mxu0
        %v1327 = vadd.f32 %v1171, %v1326
        %1328 = vmatmul.bf16.gmra.mxu0 %v1252
        %v1329 = vpop.f32.mrf.mxu0
        %v1330 = vadd.f32 %v1174, %v1329
        %v1331 = vpop.f32.mrf.mxu0
        %v1332 = vadd.f32 %v1176, %v1331
        %1333 = vmatmul.bf16.gmra.mxu0 %v1255
        %v1334 = vpop.f32.mrf.mxu0
        %v1335 = vadd.f32 %v1179, %v1334
        %v1336 = vpop.f32.mrf.mxu0
        %v1337 = vadd.f32 %v1181, %v1336
        %1338 = vmatmul.bf16.gmra.mxu0 %v1258
        %v1339 = vpop.f32.mrf.mxu0
        %v1340 = vadd.f32 %v1184, %v1339
        %v1341 = vpop.f32.mrf.mxu0
        %v1342 = vadd.f32 %v1186, %v1341
        %1343 = vmatmul.bf16.gmra.mxu0 %v1261
        %v1344 = vpop.f32.mrf.mxu0
        %v1345 = vadd.f32 %v1189, %v1344
        %v1346 = vpop.f32.mrf.mxu0
        %v1347 = vadd.f32 %v1191, %v1346
        %1348 = vmatmul.bf16.gmra.mxu0 %v1264
        %v1349 = vpop.f32.mrf.mxu0
        %v1350 = vadd.f32 %v1194, %v1349
        %v1351 = vpop.f32.mrf.mxu0
        %v1352 = vadd.f32 %v1196, %v1351
        %1353 = vmatmul.bf16.gmra.mxu0 %v1267
        %v1354 = vpop.f32.mrf.mxu0
        %v1355 = vadd.f32 %v1199, %v1354
        %v1356 = vpop.f32.mrf.mxu0
        %v1357 = vadd.f32 %v1201, %v1356
        %1358 = vmatmul.bf16.gmra.mxu0 %v1270
        %v1359 = vpop.f32.mrf.mxu0
        %v1360 = vadd.f32 %v1204, %v1359
        %v1361 = vpop.f32.mrf.mxu0
        %v1362 = vadd.f32 %v1206, %v1361
        %1363 = vmatmul.bf16.gmra.mxu0 %v1273
        %v1364 = vpop.f32.mrf.mxu0
        %v1365 = vadd.f32 %v1209, %v1364
        %v1366 = vpop.f32.mrf.mxu0
        %v1367 = vadd.f32 %v1211, %v1366
        %1368 = vmatmul.bf16.gmra.mxu0 %v1276
        %v1369 = vpop.f32.mrf.mxu0
        %v1370 = vadd.f32 %v1214, %v1369
        %v1371 = vpop.f32.mrf.mxu0
        %v1372 = vadd.f32 %v1216, %v1371
        %1373 = vmatmul.bf16.gmra.mxu0 %v1279
        %v1374 = vpop.f32.mrf.mxu0
        %v1375 = vadd.f32 %v1219, %v1374
        %v1376 = vpop.f32.mrf.mxu0
        %v1377 = vadd.f32 %v1221, %v1376
        %1378 = vmatmul.bf16.gmra.mxu0 %v1282
        %v1379 = vpop.f32.mrf.mxu0
        %v1380 = vadd.f32 %v1224, %v1379
        %v1381 = vpop.f32.mrf.mxu0
        %v1382 = vadd.f32 %v1226, %v1381
        %1383 = vmatmul.bf16.gmra.mxu0 %v1285
        %v1384 = vpop.f32.mrf.mxu0
        %v1385 = vadd.f32 %v1229, %v1384
        %v1386 = vpop.f32.mrf.mxu0
        %v1387 = vadd.f32 %v1231, %v1386
        %1388 = vdwg.mxu0
        %v1389 = vld [vmem:[%s948 + $0x2] sm:$0xff]
        %v1390 = vld [vmem:[%s948 + $0xa] sm:$0xff]
        %v1391 = vld [vmem:[%s948 + $0x12] sm:$0xff]
        %v1392 = vld [vmem:[%s948 + $0x1a] sm:$0xff]
        %v1393 = vld [vmem:[%s948 + $0x22] sm:$0xff]
        %v1394 = vld [vmem:[%s948 + $0x2a] sm:$0xff]
        %v1395 = vld [vmem:[%s948 + $0x32] sm:$0xff]
        %v1396 = vld [vmem:[%s948 + $0x3a] sm:$0xff]
        %v1397 = vld [vmem:[%s948 + $0x42] sm:$0xff]
        %v1398 = vld [vmem:[%s948 + $0x4a] sm:$0xff]
        %v1399 = vld [vmem:[%s948 + $0x52] sm:$0xff]
        %v1400 = vld [vmem:[%s948 + $0x5a] sm:$0xff]
        %v1401 = vld [vmem:[%s948 + $0x62] sm:$0xff]
        %v1402 = vld [vmem:[%s948 + $0x6a] sm:$0xff]
        %v1403 = vld [vmem:[%s948 + $0x72] sm:$0xff]
        %v1404 = vld [vmem:[%s948 + $0x7a] sm:$0xff]
        %v1405 = vld [vmem:[%s948 + $0x82] sm:$0xff]
        %v1406 = vld [vmem:[%s948 + $0x8a] sm:$0xff]
        %v1407 = vld [vmem:[%s948 + $0x92] sm:$0xff]
        %v1408 = vld [vmem:[%s948 + $0x9a] sm:$0xff]
        %v1409 = vld [vmem:[%s948 + $0xa2] sm:$0xff]
        %v1410 = vld [vmem:[%s948 + $0xaa] sm:$0xff]
        %v1411 = vld [vmem:[%s948 + $0xb2] sm:$0xff]
        %v1412 = vld [vmem:[%s948 + $0xba] sm:$0xff]
        %v1413 = vld [vmem:[%s948 + $0xc2] sm:$0xff]
        %v1414 = vld [vmem:[%s948 + $0xca] sm:$0xff]
        %v1415 = vld [vmem:[%s948 + $0xd2] sm:$0xff]
        %v1416 = vld [vmem:[%s948 + $0xda] sm:$0xff]
        %v1417 = vld [vmem:[%s948 + $0xe2] sm:$0xff]
        %v1418 = vld [vmem:[%s948 + $0xea] sm:$0xff]
        %v1419 = vld [vmem:[%s948 + $0xf2] sm:$0xff]
        %v1420 = vld [vmem:[%s948 + $0xfa] sm:$0xff]
        %v1421 = vld [vmem:[%s948 + $0x102] sm:$0xff]
        %v1422 = vld [vmem:[%s948 + $0x10a] sm:$0xff]
        %v1423 = vld [vmem:[%s948 + $0x112] sm:$0xff]
        %v1424 = vld [vmem:[%s948 + $0x11a] sm:$0x3f]
        %v1425 = vpack.c.bf16 %v1390, %v1389
        %v1426 = vpack.c.bf16 %v1392, %v1391
        %v1427 = vpack.c.bf16 %v1394, %v1393
        %v1428 = vpack.c.bf16 %v1396, %v1395
        %v1429 = vpack.c.bf16 %v1398, %v1397
        %v1430 = vpack.c.bf16 %v1400, %v1399
        %v1431 = vpack.c.bf16 %v1402, %v1401
        %v1432 = vpack.c.bf16 %v1404, %v1403
        %v1433 = vpack.c.bf16 %v1406, %v1405
        %v1434 = vpack.c.bf16 %v1408, %v1407
        %v1435 = vpack.c.bf16 %v1410, %v1409
        %v1436 = vpack.c.bf16 %v1412, %v1411
        %v1437 = vpack.c.bf16 %v1414, %v1413
        %v1438 = vpack.c.bf16 %v1416, %v1415
        %v1439 = vpack.c.bf16 %v1418, %v1417
        %v1440 = vpack.c.bf16 %v1420, %v1419
        %v1441 = vpack.c.bf16 %v1422, %v1421
        %v1442 = vpack.c.bf16 %v1424, %v1423
        %s1443 = scalar_lea.vmem %s3, 4
        %v1444 = vld [vmem:[%s1443] sm:$0x3]
        %v1446 = vsel %vm1075, %v1425, 0
        %v1449 = vsel %vm1075, %v1426, 0
        %v1452 = vsel %vm1075, %v1427, 0
        %v1455 = vsel %vm1075, %v1428, 0
        %v1458 = vsel %vm1075, %v1429, 0
        %v1461 = vsel %vm1075, %v1430, 0
        %v1464 = vsel %vm1075, %v1431, 0
        %v1467 = vsel %vm1075, %v1432, 0
        %v1470 = vsel %vm1075, %v1433, 0
        %v1473 = vsel %vm1075, %v1434, 0
        %v1476 = vsel %vm1075, %v1435, 0
        %v1479 = vsel %vm1075, %v1436, 0
        %v1482 = vsel %vm1075, %v1437, 0
        %v1485 = vsel %vm1075, %v1438, 0
        %v1488 = vsel %vm1075, %v1439, 0
        %v1491 = vsel %vm1075, %v1440, 0
        %v1494 = vsel %vm1075, %v1441, 0
        %v1497 = vsel %vm1075, %v1442, 0
        %v1500 = vsel %vm1130, %v1444, 0
        %1502 = vmatpush.bf16.msra.mxu0 0
        %1503 = vmatpush.bf16.msra.mxu0 0
        %1504 = vmatpush.bf16.msra.mxu0 0
        %1505 = vmatpush.bf16.msra.mxu0 0
        %1506 = vmatpush.bf16.msra.mxu0 0
        %1507 = vmatpush.bf16.msra.mxu0 0
        %1508 = vmatpush.bf16.msra.mxu0 0
        %1509 = vmatpush.bf16.msra.mxu0 %v1500
        %1510 = vmatmul.bf16.gmra.mxu0 %v1446
        %v1511 = vpop.f32.mrf.mxu0
        %v1512 = vadd.f32 0.0, %v1511
        %v1513 = vpop.f32.mrf.mxu0
        %v1514 = vadd.f32 0.0, %v1513
        %1515 = vmatmul.bf16.gmra.mxu0 %v1449
        %v1516 = vpop.f32.mrf.mxu0
        %v1517 = vadd.f32 0.0, %v1516
        %v1518 = vpop.f32.mrf.mxu0
        %v1519 = vadd.f32 0.0, %v1518
        %1520 = vmatmul.bf16.gmra.mxu0 %v1452
        %v1521 = vpop.f32.mrf.mxu0
        %v1522 = vadd.f32 0.0, %v1521
        %v1523 = vpop.f32.mrf.mxu0
        %v1524 = vadd.f32 0.0, %v1523
        %1525 = vmatmul.bf16.gmra.mxu0 %v1455
        %v1526 = vpop.f32.mrf.mxu0
        %v1527 = vadd.f32 0.0, %v1526
        %v1528 = vpop.f32.mrf.mxu0
        %v1529 = vadd.f32 0.0, %v1528
        %1530 = vmatmul.bf16.gmra.mxu0 %v1458
        %v1531 = vpop.f32.mrf.mxu0
        %v1532 = vadd.f32 0.0, %v1531
        %v1533 = vpop.f32.mrf.mxu0
        %v1534 = vadd.f32 0.0, %v1533
        %1535 = vmatmul.bf16.gmra.mxu0 %v1461
        %v1536 = vpop.f32.mrf.mxu0
        %v1537 = vadd.f32 0.0, %v1536
        %v1538 = vpop.f32.mrf.mxu0
        %v1539 = vadd.f32 0.0, %v1538
        %1540 = vmatmul.bf16.gmra.mxu0 %v1464
        %v1541 = vpop.f32.mrf.mxu0
        %v1542 = vadd.f32 0.0, %v1541
        %v1543 = vpop.f32.mrf.mxu0
        %v1544 = vadd.f32 0.0, %v1543
        %1545 = vmatmul.bf16.gmra.mxu0 %v1467
        %v1546 = vpop.f32.mrf.mxu0
        %v1547 = vadd.f32 0.0, %v1546
        %v1548 = vpop.f32.mrf.mxu0
        %v1549 = vadd.f32 0.0, %v1548
        %1550 = vmatmul.bf16.gmra.mxu0 %v1470
        %v1551 = vpop.f32.mrf.mxu0
        %v1552 = vadd.f32 0.0, %v1551
        %v1553 = vpop.f32.mrf.mxu0
        %v1554 = vadd.f32 0.0, %v1553
        %1555 = vmatmul.bf16.gmra.mxu0 %v1473
        %v1556 = vpop.f32.mrf.mxu0
        %v1557 = vadd.f32 0.0, %v1556
        %v1558 = vpop.f32.mrf.mxu0
        %v1559 = vadd.f32 0.0, %v1558
        %1560 = vmatmul.bf16.gmra.mxu0 %v1476
        %v1561 = vpop.f32.mrf.mxu0
        %v1562 = vadd.f32 0.0, %v1561
        %v1563 = vpop.f32.mrf.mxu0
        %v1564 = vadd.f32 0.0, %v1563
        %1565 = vmatmul.bf16.gmra.mxu0 %v1479
        %v1566 = vpop.f32.mrf.mxu0
        %v1567 = vadd.f32 0.0, %v1566
        %v1568 = vpop.f32.mrf.mxu0
        %v1569 = vadd.f32 0.0, %v1568
        %1570 = vmatmul.bf16.gmra.mxu0 %v1482
        %v1571 = vpop.f32.mrf.mxu0
        %v1572 = vadd.f32 0.0, %v1571
        %v1573 = vpop.f32.mrf.mxu0
        %v1574 = vadd.f32 0.0, %v1573
        %1575 = vmatmul.bf16.gmra.mxu0 %v1485
        %v1576 = vpop.f32.mrf.mxu0
        %v1577 = vadd.f32 0.0, %v1576
        %v1578 = vpop.f32.mrf.mxu0
        %v1579 = vadd.f32 0.0, %v1578
        %1580 = vmatmul.bf16.gmra.mxu0 %v1488
        %v1581 = vpop.f32.mrf.mxu0
        %v1582 = vadd.f32 0.0, %v1581
        %v1583 = vpop.f32.mrf.mxu0
        %v1584 = vadd.f32 0.0, %v1583
        %1585 = vmatmul.bf16.gmra.mxu0 %v1491
        %v1586 = vpop.f32.mrf.mxu0
        %v1587 = vadd.f32 0.0, %v1586
        %v1588 = vpop.f32.mrf.mxu0
        %v1589 = vadd.f32 0.0, %v1588
        %1590 = vmatmul.bf16.gmra.mxu0 %v1494
        %v1591 = vpop.f32.mrf.mxu0
        %v1592 = vadd.f32 0.0, %v1591
        %v1593 = vpop.f32.mrf.mxu0
        %v1594 = vadd.f32 0.0, %v1593
        %1595 = vmatmul.bf16.gmra.mxu0 %v1497
        %v1596 = vpop.f32.mrf.mxu0
        %v1597 = vadd.f32 0.0, %v1596
        %v1598 = vpop.f32.mrf.mxu0
        %v1599 = vadd.f32 0.0, %v1598
        %1600 = vdwg.mxu0
        %v1601 = vadd.f32 %v1300, %v1512
        %v1602 = vadd.f32 %v1302, %v1514
        %v1603 = vadd.f32 %v1305, %v1517
        %v1604 = vadd.f32 %v1307, %v1519
        %v1605 = vadd.f32 %v1310, %v1522
        %v1606 = vadd.f32 %v1312, %v1524
        %v1607 = vadd.f32 %v1315, %v1527
        %v1608 = vadd.f32 %v1317, %v1529
        %v1609 = vadd.f32 %v1320, %v1532
        %v1610 = vadd.f32 %v1322, %v1534
        %v1611 = vadd.f32 %v1325, %v1537
        %v1612 = vadd.f32 %v1327, %v1539
        %v1613 = vadd.f32 %v1330, %v1542
        %v1614 = vadd.f32 %v1332, %v1544
        %v1615 = vadd.f32 %v1335, %v1547
        %v1616 = vadd.f32 %v1337, %v1549
        %v1617 = vadd.f32 %v1340, %v1552
        %v1618 = vadd.f32 %v1342, %v1554
        %v1619 = vadd.f32 %v1345, %v1557
        %v1620 = vadd.f32 %v1347, %v1559
        %v1621 = vadd.f32 %v1350, %v1562
        %v1622 = vadd.f32 %v1352, %v1564
        %v1623 = vadd.f32 %v1355, %v1567
        %v1624 = vadd.f32 %v1357, %v1569
        %v1625 = vadd.f32 %v1360, %v1572
        %v1626 = vadd.f32 %v1362, %v1574
        %v1627 = vadd.f32 %v1365, %v1577
        %v1628 = vadd.f32 %v1367, %v1579
        %v1629 = vadd.f32 %v1370, %v1582
        %v1630 = vadd.f32 %v1372, %v1584
        %v1631 = vadd.f32 %v1375, %v1587
        %v1632 = vadd.f32 %v1377, %v1589
        %v1633 = vadd.f32 %v1380, %v1592
        %v1634 = vadd.f32 %v1382, %v1594
        %v1635 = vadd.f32 %v1385, %v1597
        %v1636 = vadd.f32 %v1387, %v1599
        %v1637 = vld [vmem:[%s948 + $0x12] sm:$0xff]
        %v1638 = vld [vmem:[%s948 + $0x1a] sm:$0xff]
        %v1639 = vld [vmem:[%s948 + $0x22] sm:$0xff]
        %v1640 = vld [vmem:[%s948 + $0x2a] sm:$0xff]
        %v1641 = vld [vmem:[%s948 + $0x32] sm:$0xff]
        %v1642 = vld [vmem:[%s948 + $0x3a] sm:$0xff]
        %v1643 = vld [vmem:[%s948 + $0x42] sm:$0xff]
        %v1644 = vld [vmem:[%s948 + $0x4a] sm:$0xff]
        %v1645 = vld [vmem:[%s948 + $0x52] sm:$0xff]
        %v1646 = vld [vmem:[%s948 + $0x5a] sm:$0xff]
        %v1647 = vld [vmem:[%s948 + $0x62] sm:$0xff]
        %v1648 = vld [vmem:[%s948 + $0x6a] sm:$0xff]
        %v1649 = vld [vmem:[%s948 + $0x72] sm:$0xff]
        %v1650 = vld [vmem:[%s948 + $0x7a] sm:$0xff]
        %v1651 = vld [vmem:[%s948 + $0x82] sm:$0xff]
        %v1652 = vld [vmem:[%s948 + $0x8a] sm:$0xff]
        %v1653 = vld [vmem:[%s948 + $0x92] sm:$0xff]
        %v1654 = vld [vmem:[%s948 + $0x9a] sm:$0xff]
        %v1655 = vld [vmem:[%s948 + $0xa2] sm:$0xff]
        %v1656 = vld [vmem:[%s948 + $0xaa] sm:$0xff]
        %v1657 = vld [vmem:[%s948 + $0xb2] sm:$0xff]
        %v1658 = vld [vmem:[%s948 + $0xba] sm:$0xff]
        %v1659 = vld [vmem:[%s948 + $0xc2] sm:$0xff]
        %v1660 = vld [vmem:[%s948 + $0xca] sm:$0xff]
        %v1661 = vld [vmem:[%s948 + $0xd2] sm:$0xff]
        %v1662 = vld [vmem:[%s948 + $0xda] sm:$0xff]
        %v1663 = vld [vmem:[%s948 + $0xe2] sm:$0xff]
        %v1664 = vld [vmem:[%s948 + $0xea] sm:$0xff]
        %v1665 = vld [vmem:[%s948 + $0xf2] sm:$0xff]
        %v1666 = vld [vmem:[%s948 + $0xfa] sm:$0xff]
        %v1667 = vld [vmem:[%s948 + $0x102] sm:$0xff]
        %v1668 = vld [vmem:[%s948 + $0x10a] sm:$0xff]
        %v1669 = vld [vmem:[%s948 + $0x112] sm:$0xff]
        %v1670 = vld [vmem:[%s948 + $0x11a] sm:$0xff]
        %v1671 = vld [vmem:[%s948 + $0x122] sm:$0xff]
        %v1672 = vld [vmem:[%s948 + $0x12a] sm:$0x3f]
        %v1673 = vpack.c.bf16 %v1638, %v1637
        %v1674 = vpack.c.bf16 %v1640, %v1639
        %v1675 = vpack.c.bf16 %v1642, %v1641
        %v1676 = vpack.c.bf16 %v1644, %v1643
        %v1677 = vpack.c.bf16 %v1646, %v1645
        %v1678 = vpack.c.bf16 %v1648, %v1647
        %v1679 = vpack.c.bf16 %v1650, %v1649
        %v1680 = vpack.c.bf16 %v1652, %v1651
        %v1681 = vpack.c.bf16 %v1654, %v1653
        %v1682 = vpack.c.bf16 %v1656, %v1655
        %v1683 = vpack.c.bf16 %v1658, %v1657
        %v1684 = vpack.c.bf16 %v1660, %v1659
        %v1685 = vpack.c.bf16 %v1662, %v1661
        %v1686 = vpack.c.bf16 %v1664, %v1663
        %v1687 = vpack.c.bf16 %v1666, %v1665
        %v1688 = vpack.c.bf16 %v1668, %v1667
        %v1689 = vpack.c.bf16 %v1670, %v1669
        %v1690 = vpack.c.bf16 %v1672, %v1671
        %s1691 = scalar_lea.vmem %s3, 6
        %v1692 = vld [vmem:[%s1691] sm:$0x3]
        %v1694 = vsel %vm1075, %v1673, 0
        %v1697 = vsel %vm1075, %v1674, 0
        %v1700 = vsel %vm1075, %v1675, 0
        %v1703 = vsel %vm1075, %v1676, 0
        %v1706 = vsel %vm1075, %v1677, 0
        %v1709 = vsel %vm1075, %v1678, 0
        %v1712 = vsel %vm1075, %v1679, 0
        %v1715 = vsel %vm1075, %v1680, 0
        %v1718 = vsel %vm1075, %v1681, 0
        %v1721 = vsel %vm1075, %v1682, 0
        %v1724 = vsel %vm1075, %v1683, 0
        %v1727 = vsel %vm1075, %v1684, 0
        %v1730 = vsel %vm1075, %v1685, 0
        %v1733 = vsel %vm1075, %v1686, 0
        %v1736 = vsel %vm1075, %v1687, 0
        %v1739 = vsel %vm1075, %v1688, 0
        %v1742 = vsel %vm1075, %v1689, 0
        %v1745 = vsel %vm1075, %v1690, 0
        %v1748 = vsel %vm1130, %v1692, 0
        %1750 = vmatpush.bf16.msra.mxu0 0
        %1751 = vmatpush.bf16.msra.mxu0 0
        %1752 = vmatpush.bf16.msra.mxu0 0
        %1753 = vmatpush.bf16.msra.mxu0 0
        %1754 = vmatpush.bf16.msra.mxu0 0
        %1755 = vmatpush.bf16.msra.mxu0 0
        %1756 = vmatpush.bf16.msra.mxu0 0
        %1757 = vmatpush.bf16.msra.mxu0 %v1748
        %1758 = vmatmul.bf16.gmra.mxu0 %v1694
        %v1759 = vpop.f32.mrf.mxu0
        %v1760 = vadd.f32 0.0, %v1759
        %v1761 = vpop.f32.mrf.mxu0
        %v1762 = vadd.f32 0.0, %v1761
        %1763 = vmatmul.bf16.gmra.mxu0 %v1697
        %v1764 = vpop.f32.mrf.mxu0
        %v1765 = vadd.f32 0.0, %v1764
        %v1766 = vpop.f32.mrf.mxu0
        %v1767 = vadd.f32 0.0, %v1766
        %1768 = vmatmul.bf16.gmra.mxu0 %v1700
        %v1769 = vpop.f32.mrf.mxu0
        %v1770 = vadd.f32 0.0, %v1769
        %v1771 = vpop.f32.mrf.mxu0
        %v1772 = vadd.f32 0.0, %v1771
        %1773 = vmatmul.bf16.gmra.mxu0 %v1703
        %v1774 = vpop.f32.mrf.mxu0
        %v1775 = vadd.f32 0.0, %v1774
        %v1776 = vpop.f32.mrf.mxu0
        %v1777 = vadd.f32 0.0, %v1776
        %1778 = vmatmul.bf16.gmra.mxu0 %v1706
        %v1779 = vpop.f32.mrf.mxu0
        %v1780 = vadd.f32 0.0, %v1779
        %v1781 = vpop.f32.mrf.mxu0
        %v1782 = vadd.f32 0.0, %v1781
        %1783 = vmatmul.bf16.gmra.mxu0 %v1709
        %v1784 = vpop.f32.mrf.mxu0
        %v1785 = vadd.f32 0.0, %v1784
        %v1786 = vpop.f32.mrf.mxu0
        %v1787 = vadd.f32 0.0, %v1786
        %1788 = vmatmul.bf16.gmra.mxu0 %v1712
        %v1789 = vpop.f32.mrf.mxu0
        %v1790 = vadd.f32 0.0, %v1789
        %v1791 = vpop.f32.mrf.mxu0
        %v1792 = vadd.f32 0.0, %v1791
        %1793 = vmatmul.bf16.gmra.mxu0 %v1715
        %v1794 = vpop.f32.mrf.mxu0
        %v1795 = vadd.f32 0.0, %v1794
        %v1796 = vpop.f32.mrf.mxu0
        %v1797 = vadd.f32 0.0, %v1796
        %1798 = vmatmul.bf16.gmra.mxu0 %v1718
        %v1799 = vpop.f32.mrf.mxu0
        %v1800 = vadd.f32 0.0, %v1799
        %v1801 = vpop.f32.mrf.mxu0
        %v1802 = vadd.f32 0.0, %v1801
        %1803 = vmatmul.bf16.gmra.mxu0 %v1721
        %v1804 = vpop.f32.mrf.mxu0
        %v1805 = vadd.f32 0.0, %v1804
        %v1806 = vpop.f32.mrf.mxu0
        %v1807 = vadd.f32 0.0, %v1806
        %1808 = vmatmul.bf16.gmra.mxu0 %v1724
        %v1809 = vpop.f32.mrf.mxu0
        %v1810 = vadd.f32 0.0, %v1809
        %v1811 = vpop.f32.mrf.mxu0
        %v1812 = vadd.f32 0.0, %v1811
        %1813 = vmatmul.bf16.gmra.mxu0 %v1727
        %v1814 = vpop.f32.mrf.mxu0
        %v1815 = vadd.f32 0.0, %v1814
        %v1816 = vpop.f32.mrf.mxu0
        %v1817 = vadd.f32 0.0, %v1816
        %1818 = vmatmul.bf16.gmra.mxu0 %v1730
        %v1819 = vpop.f32.mrf.mxu0
        %v1820 = vadd.f32 0.0, %v1819
        %v1821 = vpop.f32.mrf.mxu0
        %v1822 = vadd.f32 0.0, %v1821
        %1823 = vmatmul.bf16.gmra.mxu0 %v1733
        %v1824 = vpop.f32.mrf.mxu0
        %v1825 = vadd.f32 0.0, %v1824
        %v1826 = vpop.f32.mrf.mxu0
        %v1827 = vadd.f32 0.0, %v1826
        %1828 = vmatmul.bf16.gmra.mxu0 %v1736
        %v1829 = vpop.f32.mrf.mxu0
        %v1830 = vadd.f32 0.0, %v1829
        %v1831 = vpop.f32.mrf.mxu0
        %v1832 = vadd.f32 0.0, %v1831
        %1833 = vmatmul.bf16.gmra.mxu0 %v1739
        %v1834 = vpop.f32.mrf.mxu0
        %v1835 = vadd.f32 0.0, %v1834
        %v1836 = vpop.f32.mrf.mxu0
        %v1837 = vadd.f32 0.0, %v1836
        %1838 = vmatmul.bf16.gmra.mxu0 %v1742
        %v1839 = vpop.f32.mrf.mxu0
        %v1840 = vadd.f32 0.0, %v1839
        %v1841 = vpop.f32.mrf.mxu0
        %v1842 = vadd.f32 0.0, %v1841
        %1843 = vmatmul.bf16.gmra.mxu0 %v1745
        %v1844 = vpop.f32.mrf.mxu0
        %v1845 = vadd.f32 0.0, %v1844
        %v1846 = vpop.f32.mrf.mxu0
        %v1847 = vadd.f32 0.0, %v1846
        %1848 = vdwg.mxu0
        %v1849 = vadd.f32 %v1601, %v1760
        %v1850 = vadd.f32 %v1602, %v1762
        %v1851 = vadd.f32 %v1603, %v1765
        %v1852 = vadd.f32 %v1604, %v1767
        %v1853 = vadd.f32 %v1605, %v1770
        %v1854 = vadd.f32 %v1606, %v1772
        %v1855 = vadd.f32 %v1607, %v1775
        %v1856 = vadd.f32 %v1608, %v1777
        %v1857 = vadd.f32 %v1609, %v1780
        %v1858 = vadd.f32 %v1610, %v1782
        %v1859 = vadd.f32 %v1611, %v1785
        %v1860 = vadd.f32 %v1612, %v1787
        %v1861 = vadd.f32 %v1613, %v1790
        %v1862 = vadd.f32 %v1614, %v1792
        %v1863 = vadd.f32 %v1615, %v1795
        %v1864 = vadd.f32 %v1616, %v1797
        %v1865 = vadd.f32 %v1617, %v1800
        %v1866 = vadd.f32 %v1618, %v1802
        %v1867 = vadd.f32 %v1619, %v1805
        %v1868 = vadd.f32 %v1620, %v1807
        %v1869 = vadd.f32 %v1621, %v1810
        %v1870 = vadd.f32 %v1622, %v1812
        %v1871 = vadd.f32 %v1623, %v1815
        %v1872 = vadd.f32 %v1624, %v1817
        %v1873 = vadd.f32 %v1625, %v1820
        %v1874 = vadd.f32 %v1626, %v1822
        %v1875 = vadd.f32 %v1627, %v1825
        %v1876 = vadd.f32 %v1628, %v1827
        %v1877 = vadd.f32 %v1629, %v1830
        %v1878 = vadd.f32 %v1630, %v1832
        %v1879 = vadd.f32 %v1631, %v1835
        %v1880 = vadd.f32 %v1632, %v1837
        %v1881 = vadd.f32 %v1633, %v1840
        %v1882 = vadd.f32 %v1634, %v1842
        %v1883 = vadd.f32 %v1635, %v1845
        %v1884 = vadd.f32 %v1636, %v1847
        %v1885 = vld [vmem:[%s948 + $0x13] sm:$0xff]
        %v1886 = vld [vmem:[%s948 + $0x1b] sm:$0xff]
        %v1887 = vld [vmem:[%s948 + $0x23] sm:$0xff]
        %v1888 = vld [vmem:[%s948 + $0x2b] sm:$0xff]
        %v1889 = vld [vmem:[%s948 + $0x33] sm:$0xff]
        %v1890 = vld [vmem:[%s948 + $0x3b] sm:$0xff]
        %v1891 = vld [vmem:[%s948 + $0x43] sm:$0xff]
        %v1892 = vld [vmem:[%s948 + $0x4b] sm:$0xff]
        %v1893 = vld [vmem:[%s948 + $0x53] sm:$0xff]
        %v1894 = vld [vmem:[%s948 + $0x5b] sm:$0xff]
        %v1895 = vld [vmem:[%s948 + $0x63] sm:$0xff]
        %v1896 = vld [vmem:[%s948 + $0x6b] sm:$0xff]
        %v1897 = vld [vmem:[%s948 + $0x73] sm:$0xff]
        %v1898 = vld [vmem:[%s948 + $0x7b] sm:$0xff]
        %v1899 = vld [vmem:[%s948 + $0x83] sm:$0xff]
        %v1900 = vld [vmem:[%s948 + $0x8b] sm:$0xff]
        %v1901 = vld [vmem:[%s948 + $0x93] sm:$0xff]
        %v1902 = vld [vmem:[%s948 + $0x9b] sm:$0xff]
        %v1903 = vld [vmem:[%s948 + $0xa3] sm:$0xff]
        %v1904 = vld [vmem:[%s948 + $0xab] sm:$0xff]
        %v1905 = vld [vmem:[%s948 + $0xb3] sm:$0xff]
        %v1906 = vld [vmem:[%s948 + $0xbb] sm:$0xff]
        %v1907 = vld [vmem:[%s948 + $0xc3] sm:$0xff]
        %v1908 = vld [vmem:[%s948 + $0xcb] sm:$0xff]
        %v1909 = vld [vmem:[%s948 + $0xd3] sm:$0xff]
        %v1910 = vld [vmem:[%s948 + $0xdb] sm:$0xff]
        %v1911 = vld [vmem:[%s948 + $0xe3] sm:$0xff]
        %v1912 = vld [vmem:[%s948 + $0xeb] sm:$0xff]
        %v1913 = vld [vmem:[%s948 + $0xf3] sm:$0xff]
        %v1914 = vld [vmem:[%s948 + $0xfb] sm:$0xff]
        %v1915 = vld [vmem:[%s948 + $0x103] sm:$0xff]
        %v1916 = vld [vmem:[%s948 + $0x10b] sm:$0xff]
        %v1917 = vld [vmem:[%s948 + $0x113] sm:$0xff]
        %v1918 = vld [vmem:[%s948 + $0x11b] sm:$0xff]
        %v1919 = vld [vmem:[%s948 + $0x123] sm:$0xff]
        %v1920 = vld [vmem:[%s948 + $0x12b] sm:$0x3f]
        %v1921 = vpack.c.bf16 %v1886, %v1885
        %v1922 = vpack.c.bf16 %v1888, %v1887
        %v1923 = vpack.c.bf16 %v1890, %v1889
        %v1924 = vpack.c.bf16 %v1892, %v1891
        %v1925 = vpack.c.bf16 %v1894, %v1893
        %v1926 = vpack.c.bf16 %v1896, %v1895
        %v1927 = vpack.c.bf16 %v1898, %v1897
        %v1928 = vpack.c.bf16 %v1900, %v1899
        %v1929 = vpack.c.bf16 %v1902, %v1901
        %v1930 = vpack.c.bf16 %v1904, %v1903
        %v1931 = vpack.c.bf16 %v1906, %v1905
        %v1932 = vpack.c.bf16 %v1908, %v1907
        %v1933 = vpack.c.bf16 %v1910, %v1909
        %v1934 = vpack.c.bf16 %v1912, %v1911
        %v1935 = vpack.c.bf16 %v1914, %v1913
        %v1936 = vpack.c.bf16 %v1916, %v1915
        %v1937 = vpack.c.bf16 %v1918, %v1917
        %v1938 = vpack.c.bf16 %v1920, %v1919
        %s1939 = scalar_lea.vmem %s3, 8
        %v1940 = vld [vmem:[%s1939] sm:$0x3]
        %v1942 = vsel %vm1075, %v1921, 0
        %v1945 = vsel %vm1075, %v1922, 0
        %v1948 = vsel %vm1075, %v1923, 0
        %v1951 = vsel %vm1075, %v1924, 0
        %v1954 = vsel %vm1075, %v1925, 0
        %v1957 = vsel %vm1075, %v1926, 0
        %v1960 = vsel %vm1075, %v1927, 0
        %v1963 = vsel %vm1075, %v1928, 0
        %v1966 = vsel %vm1075, %v1929, 0
        %v1969 = vsel %vm1075, %v1930, 0
        %v1972 = vsel %vm1075, %v1931, 0
        %v1975 = vsel %vm1075, %v1932, 0
        %v1978 = vsel %vm1075, %v1933, 0
        %v1981 = vsel %vm1075, %v1934, 0
        %v1984 = vsel %vm1075, %v1935, 0
        %v1987 = vsel %vm1075, %v1936, 0
        %v1990 = vsel %vm1075, %v1937, 0
        %v1993 = vsel %vm1075, %v1938, 0
        %v1996 = vsel %vm1130, %v1940, 0
        %1998 = vmatpush.bf16.msra.mxu0 0
        %1999 = vmatpush.bf16.msra.mxu0 0
        %2000 = vmatpush.bf16.msra.mxu0 0
        %2001 = vmatpush.bf16.msra.mxu0 0
        %2002 = vmatpush.bf16.msra.mxu0 0
        %2003 = vmatpush.bf16.msra.mxu0 0
        %2004 = vmatpush.bf16.msra.mxu0 0
        %2005 = vmatpush.bf16.msra.mxu0 %v1996
        %2006 = vmatmul.bf16.gmra.mxu0 %v1942
        %v2007 = vpop.f32.mrf.mxu0
        %v2008 = vadd.f32 0.0, %v2007
        %v2009 = vpop.f32.mrf.mxu0
        %v2010 = vadd.f32 0.0, %v2009
        %2011 = vmatmul.bf16.gmra.mxu0 %v1945
        %v2012 = vpop.f32.mrf.mxu0
        %v2013 = vadd.f32 0.0, %v2012
        %v2014 = vpop.f32.mrf.mxu0
        %v2015 = vadd.f32 0.0, %v2014
        %2016 = vmatmul.bf16.gmra.mxu0 %v1948
        %v2017 = vpop.f32.mrf.mxu0
        %v2018 = vadd.f32 0.0, %v2017
        %v2019 = vpop.f32.mrf.mxu0
        %v2020 = vadd.f32 0.0, %v2019
        %2021 = vmatmul.bf16.gmra.mxu0 %v1951
        %v2022 = vpop.f32.mrf.mxu0
        %v2023 = vadd.f32 0.0, %v2022
        %v2024 = vpop.f32.mrf.mxu0
        %v2025 = vadd.f32 0.0, %v2024
        %2026 = vmatmul.bf16.gmra.mxu0 %v1954
        %v2027 = vpop.f32.mrf.mxu0
        %v2028 = vadd.f32 0.0, %v2027
        %v2029 = vpop.f32.mrf.mxu0
        %v2030 = vadd.f32 0.0, %v2029
        %2031 = vmatmul.bf16.gmra.mxu0 %v1957
        %v2032 = vpop.f32.mrf.mxu0
        %v2033 = vadd.f32 0.0, %v2032
        %v2034 = vpop.f32.mrf.mxu0
        %v2035 = vadd.f32 0.0, %v2034
        %2036 = vmatmul.bf16.gmra.mxu0 %v1960
        %v2037 = vpop.f32.mrf.mxu0
        %v2038 = vadd.f32 0.0, %v2037
        %v2039 = vpop.f32.mrf.mxu0
        %v2040 = vadd.f32 0.0, %v2039
        %2041 = vmatmul.bf16.gmra.mxu0 %v1963
        %v2042 = vpop.f32.mrf.mxu0
        %v2043 = vadd.f32 0.0, %v2042
        %v2044 = vpop.f32.mrf.mxu0
        %v2045 = vadd.f32 0.0, %v2044
        %2046 = vmatmul.bf16.gmra.mxu0 %v1966
        %v2047 = vpop.f32.mrf.mxu0
        %v2048 = vadd.f32 0.0, %v2047
        %v2049 = vpop.f32.mrf.mxu0
        %v2050 = vadd.f32 0.0, %v2049
        %2051 = vmatmul.bf16.gmra.mxu0 %v1969
        %v2052 = vpop.f32.mrf.mxu0
        %v2053 = vadd.f32 0.0, %v2052
        %v2054 = vpop.f32.mrf.mxu0
        %v2055 = vadd.f32 0.0, %v2054
        %2056 = vmatmul.bf16.gmra.mxu0 %v1972
        %v2057 = vpop.f32.mrf.mxu0
        %v2058 = vadd.f32 0.0, %v2057
        %v2059 = vpop.f32.mrf.mxu0
        %v2060 = vadd.f32 0.0, %v2059
        %2061 = vmatmul.bf16.gmra.mxu0 %v1975
        %v2062 = vpop.f32.mrf.mxu0
        %v2063 = vadd.f32 0.0, %v2062
        %v2064 = vpop.f32.mrf.mxu0
        %v2065 = vadd.f32 0.0, %v2064
        %2066 = vmatmul.bf16.gmra.mxu0 %v1978
        %v2067 = vpop.f32.mrf.mxu0
        %v2068 = vadd.f32 0.0, %v2067
        %v2069 = vpop.f32.mrf.mxu0
        %v2070 = vadd.f32 0.0, %v2069
        %2071 = vmatmul.bf16.gmra.mxu0 %v1981
        %v2072 = vpop.f32.mrf.mxu0
        %v2073 = vadd.f32 0.0, %v2072
        %v2074 = vpop.f32.mrf.mxu0
        %v2075 = vadd.f32 0.0, %v2074
        %2076 = vmatmul.bf16.gmra.mxu0 %v1984
        %v2077 = vpop.f32.mrf.mxu0
        %v2078 = vadd.f32 0.0, %v2077
        %v2079 = vpop.f32.mrf.mxu0
        %v2080 = vadd.f32 0.0, %v2079
        %2081 = vmatmul.bf16.gmra.mxu0 %v1987
        %v2082 = vpop.f32.mrf.mxu0
        %v2083 = vadd.f32 0.0, %v2082
        %v2084 = vpop.f32.mrf.mxu0
        %v2085 = vadd.f32 0.0, %v2084
        %2086 = vmatmul.bf16.gmra.mxu0 %v1990
        %v2087 = vpop.f32.mrf.mxu0
        %v2088 = vadd.f32 0.0, %v2087
        %v2089 = vpop.f32.mrf.mxu0
        %v2090 = vadd.f32 0.0, %v2089
        %2091 = vmatmul.bf16.gmra.mxu0 %v1993
        %v2092 = vpop.f32.mrf.mxu0
        %v2093 = vadd.f32 0.0, %v2092
        %v2094 = vpop.f32.mrf.mxu0
        %v2095 = vadd.f32 0.0, %v2094
        %2096 = vdwg.mxu0
        %v2097 = vadd.f32 %v1849, %v2008
        %v2098 = vadd.f32 %v1850, %v2010
        %v2099 = vadd.f32 %v1851, %v2013
        %v2100 = vadd.f32 %v1852, %v2015
        %v2101 = vadd.f32 %v1853, %v2018
        %v2102 = vadd.f32 %v1854, %v2020
        %v2103 = vadd.f32 %v1855, %v2023
        %v2104 = vadd.f32 %v1856, %v2025
        %v2105 = vadd.f32 %v1857, %v2028
        %v2106 = vadd.f32 %v1858, %v2030
        %v2107 = vadd.f32 %v1859, %v2033
        %v2108 = vadd.f32 %v1860, %v2035
        %v2109 = vadd.f32 %v1861, %v2038
        %v2110 = vadd.f32 %v1862, %v2040
        %v2111 = vadd.f32 %v1863, %v2043
        %v2112 = vadd.f32 %v1864, %v2045
        %v2113 = vadd.f32 %v1865, %v2048
        %v2114 = vadd.f32 %v1866, %v2050
        %v2115 = vadd.f32 %v1867, %v2053
        %v2116 = vadd.f32 %v1868, %v2055
        %v2117 = vadd.f32 %v1869, %v2058
        %v2118 = vadd.f32 %v1870, %v2060
        %v2119 = vadd.f32 %v1871, %v2063
        %v2120 = vadd.f32 %v1872, %v2065
        %v2121 = vadd.f32 %v1873, %v2068
        %v2122 = vadd.f32 %v1874, %v2070
        %v2123 = vadd.f32 %v1875, %v2073
        %v2124 = vadd.f32 %v1876, %v2075
        %v2125 = vadd.f32 %v1877, %v2078
        %v2126 = vadd.f32 %v1878, %v2080
        %v2127 = vadd.f32 %v1879, %v2083
        %v2128 = vadd.f32 %v1880, %v2085
        %v2129 = vadd.f32 %v1881, %v2088
        %v2130 = vadd.f32 %v1882, %v2090
        %v2131 = vadd.f32 %v1883, %v2093
        %v2132 = vadd.f32 %v1884, %v2095
        %v2133 = vld [vmem:[%s948 + $0x14] sm:$0xff]
        %v2134 = vld [vmem:[%s948 + $0x1c] sm:$0xff]
        %v2135 = vld [vmem:[%s948 + $0x24] sm:$0xff]
        %v2136 = vld [vmem:[%s948 + $0x2c] sm:$0xff]
        %v2137 = vld [vmem:[%s948 + $0x34] sm:$0xff]
        %v2138 = vld [vmem:[%s948 + $0x3c] sm:$0xff]
        %v2139 = vld [vmem:[%s948 + $0x44] sm:$0xff]
        %v2140 = vld [vmem:[%s948 + $0x4c] sm:$0xff]
        %v2141 = vld [vmem:[%s948 + $0x54] sm:$0xff]
        %v2142 = vld [vmem:[%s948 + $0x5c] sm:$0xff]
        %v2143 = vld [vmem:[%s948 + $0x64] sm:$0xff]
        %v2144 = vld [vmem:[%s948 + $0x6c] sm:$0xff]
        %v2145 = vld [vmem:[%s948 + $0x74] sm:$0xff]
        %v2146 = vld [vmem:[%s948 + $0x7c] sm:$0xff]
        %v2147 = vld [vmem:[%s948 + $0x84] sm:$0xff]
        %v2148 = vld [vmem:[%s948 + $0x8c] sm:$0xff]
        %v2149 = vld [vmem:[%s948 + $0x94] sm:$0xff]
        %v2150 = vld [vmem:[%s948 + $0x9c] sm:$0xff]
        %v2151 = vld [vmem:[%s948 + $0xa4] sm:$0xff]
        %v2152 = vld [vmem:[%s948 + $0xac] sm:$0xff]
        %v2153 = vld [vmem:[%s948 + $0xb4] sm:$0xff]
        %v2154 = vld [vmem:[%s948 + $0xbc] sm:$0xff]
        %v2155 = vld [vmem:[%s948 + $0xc4] sm:$0xff]
        %v2156 = vld [vmem:[%s948 + $0xcc] sm:$0xff]
        %v2157 = vld [vmem:[%s948 + $0xd4] sm:$0xff]
        %v2158 = vld [vmem:[%s948 + $0xdc] sm:$0xff]
        %v2159 = vld [vmem:[%s948 + $0xe4] sm:$0xff]
        %v2160 = vld [vmem:[%s948 + $0xec] sm:$0xff]
        %v2161 = vld [vmem:[%s948 + $0xf4] sm:$0xff]
        %v2162 = vld [vmem:[%s948 + $0xfc] sm:$0xff]
        %v2163 = vld [vmem:[%s948 + $0x104] sm:$0xff]
        %v2164 = vld [vmem:[%s948 + $0x10c] sm:$0xff]
        %v2165 = vld [vmem:[%s948 + $0x114] sm:$0xff]
        %v2166 = vld [vmem:[%s948 + $0x11c] sm:$0xff]
        %v2167 = vld [vmem:[%s948 + $0x124] sm:$0xff]
        %v2168 = vld [vmem:[%s948 + $0x12c] sm:$0x3f]
        %v2169 = vpack.c.bf16 %v2134, %v2133
        %v2170 = vpack.c.bf16 %v2136, %v2135
        %v2171 = vpack.c.bf16 %v2138, %v2137
        %v2172 = vpack.c.bf16 %v2140, %v2139
        %v2173 = vpack.c.bf16 %v2142, %v2141
        %v2174 = vpack.c.bf16 %v2144, %v2143
        %v2175 = vpack.c.bf16 %v2146, %v2145
        %v2176 = vpack.c.bf16 %v2148, %v2147
        %v2177 = vpack.c.bf16 %v2150, %v2149
        %v2178 = vpack.c.bf16 %v2152, %v2151
        %v2179 = vpack.c.bf16 %v2154, %v2153
        %v2180 = vpack.c.bf16 %v2156, %v2155
        %v2181 = vpack.c.bf16 %v2158, %v2157
        %v2182 = vpack.c.bf16 %v2160, %v2159
        %v2183 = vpack.c.bf16 %v2162, %v2161
        %v2184 = vpack.c.bf16 %v2164, %v2163
        %v2185 = vpack.c.bf16 %v2166, %v2165
        %v2186 = vpack.c.bf16 %v2168, %v2167
        %s2187 = scalar_lea.vmem %s3, 10
        %v2188 = vld [vmem:[%s2187] sm:$0x3]
        %v2190 = vsel %vm1075, %v2169, 0
        %v2193 = vsel %vm1075, %v2170, 0
        %v2196 = vsel %vm1075, %v2171, 0
        %v2199 = vsel %vm1075, %v2172, 0
        %v2202 = vsel %vm1075, %v2173, 0
        %v2205 = vsel %vm1075, %v2174, 0
        %v2208 = vsel %vm1075, %v2175, 0
        %v2211 = vsel %vm1075, %v2176, 0
        %v2214 = vsel %vm1075, %v2177, 0
        %v2217 = vsel %vm1075, %v2178, 0
        %v2220 = vsel %vm1075, %v2179, 0
        %v2223 = vsel %vm1075, %v2180, 0
        %v2226 = vsel %vm1075, %v2181, 0
        %v2229 = vsel %vm1075, %v2182, 0
        %v2232 = vsel %vm1075, %v2183, 0
        %v2235 = vsel %vm1075, %v2184, 0
        %v2238 = vsel %vm1075, %v2185, 0
        %v2241 = vsel %vm1075, %v2186, 0
        %v2244 = vsel %vm1130, %v2188, 0
        %2246 = vmatpush.bf16.msra.mxu0 0
        %2247 = vmatpush.bf16.msra.mxu0 0
        %2248 = vmatpush.bf16.msra.mxu0 0
        %2249 = vmatpush.bf16.msra.mxu0 0
        %2250 = vmatpush.bf16.msra.mxu0 0
        %2251 = vmatpush.bf16.msra.mxu0 0
        %2252 = vmatpush.bf16.msra.mxu0 0
        %2253 = vmatpush.bf16.msra.mxu0 %v2244
        %2254 = vmatmul.bf16.gmra.mxu0 %v2190
        %v2255 = vpop.f32.mrf.mxu0
        %v2256 = vadd.f32 0.0, %v2255
        %v2257 = vpop.f32.mrf.mxu0
        %v2258 = vadd.f32 0.0, %v2257
        %2259 = vmatmul.bf16.gmra.mxu0 %v2193
        %v2260 = vpop.f32.mrf.mxu0
        %v2261 = vadd.f32 0.0, %v2260
        %v2262 = vpop.f32.mrf.mxu0
        %v2263 = vadd.f32 0.0, %v2262
        %2264 = vmatmul.bf16.gmra.mxu0 %v2196
        %v2265 = vpop.f32.mrf.mxu0
        %v2266 = vadd.f32 0.0, %v2265
        %v2267 = vpop.f32.mrf.mxu0
        %v2268 = vadd.f32 0.0, %v2267
        %2269 = vmatmul.bf16.gmra.mxu0 %v2199
        %v2270 = vpop.f32.mrf.mxu0
        %v2271 = vadd.f32 0.0, %v2270
        %v2272 = vpop.f32.mrf.mxu0
        %v2273 = vadd.f32 0.0, %v2272
        %2274 = vmatmul.bf16.gmra.mxu0 %v2202
        %v2275 = vpop.f32.mrf.mxu0
        %v2276 = vadd.f32 0.0, %v2275
        %v2277 = vpop.f32.mrf.mxu0
        %v2278 = vadd.f32 0.0, %v2277
        %2279 = vmatmul.bf16.gmra.mxu0 %v2205
        %v2280 = vpop.f32.mrf.mxu0
        %v2281 = vadd.f32 0.0, %v2280
        %v2282 = vpop.f32.mrf.mxu0
        %v2283 = vadd.f32 0.0, %v2282
        %2284 = vmatmul.bf16.gmra.mxu0 %v2208
        %v2285 = vpop.f32.mrf.mxu0
        %v2286 = vadd.f32 0.0, %v2285
        %v2287 = vpop.f32.mrf.mxu0
        %v2288 = vadd.f32 0.0, %v2287
        %2289 = vmatmul.bf16.gmra.mxu0 %v2211
        %v2290 = vpop.f32.mrf.mxu0
        %v2291 = vadd.f32 0.0, %v2290
        %v2292 = vpop.f32.mrf.mxu0
        %v2293 = vadd.f32 0.0, %v2292
        %2294 = vmatmul.bf16.gmra.mxu0 %v2214
        %v2295 = vpop.f32.mrf.mxu0
        %v2296 = vadd.f32 0.0, %v2295
        %v2297 = vpop.f32.mrf.mxu0
        %v2298 = vadd.f32 0.0, %v2297
        %2299 = vmatmul.bf16.gmra.mxu0 %v2217
        %v2300 = vpop.f32.mrf.mxu0
        %v2301 = vadd.f32 0.0, %v2300
        %v2302 = vpop.f32.mrf.mxu0
        %v2303 = vadd.f32 0.0, %v2302
        %2304 = vmatmul.bf16.gmra.mxu0 %v2220
        %v2305 = vpop.f32.mrf.mxu0
        %v2306 = vadd.f32 0.0, %v2305
        %v2307 = vpop.f32.mrf.mxu0
        %v2308 = vadd.f32 0.0, %v2307
        %2309 = vmatmul.bf16.gmra.mxu0 %v2223
        %v2310 = vpop.f32.mrf.mxu0
        %v2311 = vadd.f32 0.0, %v2310
        %v2312 = vpop.f32.mrf.mxu0
        %v2313 = vadd.f32 0.0, %v2312
        %2314 = vmatmul.bf16.gmra.mxu0 %v2226
        %v2315 = vpop.f32.mrf.mxu0
        %v2316 = vadd.f32 0.0, %v2315
        %v2317 = vpop.f32.mrf.mxu0
        %v2318 = vadd.f32 0.0, %v2317
        %2319 = vmatmul.bf16.gmra.mxu0 %v2229
        %v2320 = vpop.f32.mrf.mxu0
        %v2321 = vadd.f32 0.0, %v2320
        %v2322 = vpop.f32.mrf.mxu0
        %v2323 = vadd.f32 0.0, %v2322
        %2324 = vmatmul.bf16.gmra.mxu0 %v2232
        %v2325 = vpop.f32.mrf.mxu0
        %v2326 = vadd.f32 0.0, %v2325
        %v2327 = vpop.f32.mrf.mxu0
        %v2328 = vadd.f32 0.0, %v2327
        %2329 = vmatmul.bf16.gmra.mxu0 %v2235
        %v2330 = vpop.f32.mrf.mxu0
        %v2331 = vadd.f32 0.0, %v2330
        %v2332 = vpop.f32.mrf.mxu0
        %v2333 = vadd.f32 0.0, %v2332
        %2334 = vmatmul.bf16.gmra.mxu0 %v2238
        %v2335 = vpop.f32.mrf.mxu0
        %v2336 = vadd.f32 0.0, %v2335
        %v2337 = vpop.f32.mrf.mxu0
        %v2338 = vadd.f32 0.0, %v2337
        %2339 = vmatmul.bf16.gmra.mxu0 %v2241
        %v2340 = vpop.f32.mrf.mxu0
        %v2341 = vadd.f32 0.0, %v2340
        %v2342 = vpop.f32.mrf.mxu0
        %v2343 = vadd.f32 0.0, %v2342
        %2344 = vdwg.mxu0
        %v2345 = vadd.f32 %v2097, %v2256
        %v2346 = vadd.f32 %v2098, %v2258
        %v2347 = vadd.f32 %v2099, %v2261
        %v2348 = vadd.f32 %v2100, %v2263
        %v2349 = vadd.f32 %v2101, %v2266
        %v2350 = vadd.f32 %v2102, %v2268
        %v2351 = vadd.f32 %v2103, %v2271
        %v2352 = vadd.f32 %v2104, %v2273
        %v2353 = vadd.f32 %v2105, %v2276
        %v2354 = vadd.f32 %v2106, %v2278
        %v2355 = vadd.f32 %v2107, %v2281
        %v2356 = vadd.f32 %v2108, %v2283
        %v2357 = vadd.f32 %v2109, %v2286
        %v2358 = vadd.f32 %v2110, %v2288
        %v2359 = vadd.f32 %v2111, %v2291
        %v2360 = vadd.f32 %v2112, %v2293
        %v2361 = vadd.f32 %v2113, %v2296
        %v2362 = vadd.f32 %v2114, %v2298
        %v2363 = vadd.f32 %v2115, %v2301
        %v2364 = vadd.f32 %v2116, %v2303
        %v2365 = vadd.f32 %v2117, %v2306
        %v2366 = vadd.f32 %v2118, %v2308
        %v2367 = vadd.f32 %v2119, %v2311
        %v2368 = vadd.f32 %v2120, %v2313
        %v2369 = vadd.f32 %v2121, %v2316
        %v2370 = vadd.f32 %v2122, %v2318
        %v2371 = vadd.f32 %v2123, %v2321
        %v2372 = vadd.f32 %v2124, %v2323
        %v2373 = vadd.f32 %v2125, %v2326
        %v2374 = vadd.f32 %v2126, %v2328
        %v2375 = vadd.f32 %v2127, %v2331
        %v2376 = vadd.f32 %v2128, %v2333
        %v2377 = vadd.f32 %v2129, %v2336
        %v2378 = vadd.f32 %v2130, %v2338
        %v2379 = vadd.f32 %v2131, %v2341
        %v2380 = vadd.f32 %v2132, %v2343
        %v2381 = vld [vmem:[%s948 + $0x24] sm:$0xff]
        %v2382 = vld [vmem:[%s948 + $0x2c] sm:$0xff]
        %v2383 = vld [vmem:[%s948 + $0x34] sm:$0xff]
        %v2384 = vld [vmem:[%s948 + $0x3c] sm:$0xff]
        %v2385 = vld [vmem:[%s948 + $0x44] sm:$0xff]
        %v2386 = vld [vmem:[%s948 + $0x4c] sm:$0xff]
        %v2387 = vld [vmem:[%s948 + $0x54] sm:$0xff]
        %v2388 = vld [vmem:[%s948 + $0x5c] sm:$0xff]
        %v2389 = vld [vmem:[%s948 + $0x64] sm:$0xff]
        %v2390 = vld [vmem:[%s948 + $0x6c] sm:$0xff]
        %v2391 = vld [vmem:[%s948 + $0x74] sm:$0xff]
        %v2392 = vld [vmem:[%s948 + $0x7c] sm:$0xff]
        %v2393 = vld [vmem:[%s948 + $0x84] sm:$0xff]
        %v2394 = vld [vmem:[%s948 + $0x8c] sm:$0xff]
        %v2395 = vld [vmem:[%s948 + $0x94] sm:$0xff]
        %v2396 = vld [vmem:[%s948 + $0x9c] sm:$0xff]
        %v2397 = vld [vmem:[%s948 + $0xa4] sm:$0xff]
        %v2398 = vld [vmem:[%s948 + $0xac] sm:$0xff]
        %v2399 = vld [vmem:[%s948 + $0xb4] sm:$0xff]
        %v2400 = vld [vmem:[%s948 + $0xbc] sm:$0xff]
        %v2401 = vld [vmem:[%s948 + $0xc4] sm:$0xff]
        %v2402 = vld [vmem:[%s948 + $0xcc] sm:$0xff]
        %v2403 = vld [vmem:[%s948 + $0xd4] sm:$0xff]
        %v2404 = vld [vmem:[%s948 + $0xdc] sm:$0xff]
        %v2405 = vld [vmem:[%s948 + $0xe4] sm:$0xff]
        %v2406 = vld [vmem:[%s948 + $0xec] sm:$0xff]
        %v2407 = vld [vmem:[%s948 + $0xf4] sm:$0xff]
        %v2408 = vld [vmem:[%s948 + $0xfc] sm:$0xff]
        %v2409 = vld [vmem:[%s948 + $0x104] sm:$0xff]
        %v2410 = vld [vmem:[%s948 + $0x10c] sm:$0xff]
        %v2411 = vld [vmem:[%s948 + $0x114] sm:$0xff]
        %v2412 = vld [vmem:[%s948 + $0x11c] sm:$0xff]
        %v2413 = vld [vmem:[%s948 + $0x124] sm:$0xff]
        %v2414 = vld [vmem:[%s948 + $0x12c] sm:$0xff]
        %v2415 = vld [vmem:[%s948 + $0x134] sm:$0xff]
        %v2416 = vld [vmem:[%s948 + $0x13c] sm:$0x3f]
        %v2417 = vpack.c.bf16 %v2382, %v2381
        %v2418 = vpack.c.bf16 %v2384, %v2383
        %v2419 = vpack.c.bf16 %v2386, %v2385
        %v2420 = vpack.c.bf16 %v2388, %v2387
        %v2421 = vpack.c.bf16 %v2390, %v2389
        %v2422 = vpack.c.bf16 %v2392, %v2391
        %v2423 = vpack.c.bf16 %v2394, %v2393
        %v2424 = vpack.c.bf16 %v2396, %v2395
        %v2425 = vpack.c.bf16 %v2398, %v2397
        %v2426 = vpack.c.bf16 %v2400, %v2399
        %v2427 = vpack.c.bf16 %v2402, %v2401
        %v2428 = vpack.c.bf16 %v2404, %v2403
        %v2429 = vpack.c.bf16 %v2406, %v2405
        %v2430 = vpack.c.bf16 %v2408, %v2407
        %v2431 = vpack.c.bf16 %v2410, %v2409
        %v2432 = vpack.c.bf16 %v2412, %v2411
        %v2433 = vpack.c.bf16 %v2414, %v2413
        %v2434 = vpack.c.bf16 %v2416, %v2415
        %s2435 = scalar_lea.vmem %s3, 12
        %v2436 = vld [vmem:[%s2435] sm:$0x3]
        %v2438 = vsel %vm1075, %v2417, 0
        %v2441 = vsel %vm1075, %v2418, 0
        %v2444 = vsel %vm1075, %v2419, 0
        %v2447 = vsel %vm1075, %v2420, 0
        %v2450 = vsel %vm1075, %v2421, 0
        %v2453 = vsel %vm1075, %v2422, 0
        %v2456 = vsel %vm1075, %v2423, 0
        %v2459 = vsel %vm1075, %v2424, 0
        %v2462 = vsel %vm1075, %v2425, 0
        %v2465 = vsel %vm1075, %v2426, 0
        %v2468 = vsel %vm1075, %v2427, 0
        %v2471 = vsel %vm1075, %v2428, 0
        %v2474 = vsel %vm1075, %v2429, 0
        %v2477 = vsel %vm1075, %v2430, 0
        %v2480 = vsel %vm1075, %v2431, 0
        %v2483 = vsel %vm1075, %v2432, 0
        %v2486 = vsel %vm1075, %v2433, 0
        %v2489 = vsel %vm1075, %v2434, 0
        %v2492 = vsel %vm1130, %v2436, 0
        %2494 = vmatpush.bf16.msra.mxu0 0
        %2495 = vmatpush.bf16.msra.mxu0 0
        %2496 = vmatpush.bf16.msra.mxu0 0
        %2497 = vmatpush.bf16.msra.mxu0 0
        %2498 = vmatpush.bf16.msra.mxu0 0
        %2499 = vmatpush.bf16.msra.mxu0 0
        %2500 = vmatpush.bf16.msra.mxu0 0
        %2501 = vmatpush.bf16.msra.mxu0 %v2492
        %2502 = vmatmul.bf16.gmra.mxu0 %v2438
        %v2503 = vpop.f32.mrf.mxu0
        %v2504 = vadd.f32 0.0, %v2503
        %v2505 = vpop.f32.mrf.mxu0
        %v2506 = vadd.f32 0.0, %v2505
        %2507 = vmatmul.bf16.gmra.mxu0 %v2441
        %v2508 = vpop.f32.mrf.mxu0
        %v2509 = vadd.f32 0.0, %v2508
        %v2510 = vpop.f32.mrf.mxu0
        %v2511 = vadd.f32 0.0, %v2510
        %2512 = vmatmul.bf16.gmra.mxu0 %v2444
        %v2513 = vpop.f32.mrf.mxu0
        %v2514 = vadd.f32 0.0, %v2513
        %v2515 = vpop.f32.mrf.mxu0
        %v2516 = vadd.f32 0.0, %v2515
        %2517 = vmatmul.bf16.gmra.mxu0 %v2447
        %v2518 = vpop.f32.mrf.mxu0
        %v2519 = vadd.f32 0.0, %v2518
        %v2520 = vpop.f32.mrf.mxu0
        %v2521 = vadd.f32 0.0, %v2520
        %2522 = vmatmul.bf16.gmra.mxu0 %v2450
        %v2523 = vpop.f32.mrf.mxu0
        %v2524 = vadd.f32 0.0, %v2523
        %v2525 = vpop.f32.mrf.mxu0
        %v2526 = vadd.f32 0.0, %v2525
        %2527 = vmatmul.bf16.gmra.mxu0 %v2453
        %v2528 = vpop.f32.mrf.mxu0
        %v2529 = vadd.f32 0.0, %v2528
        %v2530 = vpop.f32.mrf.mxu0
        %v2531 = vadd.f32 0.0, %v2530
        %2532 = vmatmul.bf16.gmra.mxu0 %v2456
        %v2533 = vpop.f32.mrf.mxu0
        %v2534 = vadd.f32 0.0, %v2533
        %v2535 = vpop.f32.mrf.mxu0
        %v2536 = vadd.f32 0.0, %v2535
        %2537 = vmatmul.bf16.gmra.mxu0 %v2459
        %v2538 = vpop.f32.mrf.mxu0
        %v2539 = vadd.f32 0.0, %v2538
        %v2540 = vpop.f32.mrf.mxu0
        %v2541 = vadd.f32 0.0, %v2540
        %2542 = vmatmul.bf16.gmra.mxu0 %v2462
        %v2543 = vpop.f32.mrf.mxu0
        %v2544 = vadd.f32 0.0, %v2543
        %v2545 = vpop.f32.mrf.mxu0
        %v2546 = vadd.f32 0.0, %v2545
        %2547 = vmatmul.bf16.gmra.mxu0 %v2465
        %v2548 = vpop.f32.mrf.mxu0
        %v2549 = vadd.f32 0.0, %v2548
        %v2550 = vpop.f32.mrf.mxu0
        %v2551 = vadd.f32 0.0, %v2550
        %2552 = vmatmul.bf16.gmra.mxu0 %v2468
        %v2553 = vpop.f32.mrf.mxu0
        %v2554 = vadd.f32 0.0, %v2553
        %v2555 = vpop.f32.mrf.mxu0
        %v2556 = vadd.f32 0.0, %v2555
        %2557 = vmatmul.bf16.gmra.mxu0 %v2471
        %v2558 = vpop.f32.mrf.mxu0
        %v2559 = vadd.f32 0.0, %v2558
        %v2560 = vpop.f32.mrf.mxu0
        %v2561 = vadd.f32 0.0, %v2560
        %2562 = vmatmul.bf16.gmra.mxu0 %v2474
        %v2563 = vpop.f32.mrf.mxu0
        %v2564 = vadd.f32 0.0, %v2563
        %v2565 = vpop.f32.mrf.mxu0
        %v2566 = vadd.f32 0.0, %v2565
        %2567 = vmatmul.bf16.gmra.mxu0 %v2477
        %v2568 = vpop.f32.mrf.mxu0
        %v2569 = vadd.f32 0.0, %v2568
        %v2570 = vpop.f32.mrf.mxu0
        %v2571 = vadd.f32 0.0, %v2570
        %2572 = vmatmul.bf16.gmra.mxu0 %v2480
        %v2573 = vpop.f32.mrf.mxu0
        %v2574 = vadd.f32 0.0, %v2573
        %v2575 = vpop.f32.mrf.mxu0
        %v2576 = vadd.f32 0.0, %v2575
        %2577 = vmatmul.bf16.gmra.mxu0 %v2483
        %v2578 = vpop.f32.mrf.mxu0
        %v2579 = vadd.f32 0.0, %v2578
        %v2580 = vpop.f32.mrf.mxu0
        %v2581 = vadd.f32 0.0, %v2580
        %2582 = vmatmul.bf16.gmra.mxu0 %v2486
        %v2583 = vpop.f32.mrf.mxu0
        %v2584 = vadd.f32 0.0, %v2583
        %v2585 = vpop.f32.mrf.mxu0
        %v2586 = vadd.f32 0.0, %v2585
        %2587 = vmatmul.bf16.gmra.mxu0 %v2489
        %v2588 = vpop.f32.mrf.mxu0
        %v2589 = vadd.f32 0.0, %v2588
        %v2590 = vpop.f32.mrf.mxu0
        %v2591 = vadd.f32 0.0, %v2590
        %2592 = vdwg.mxu0
        %v2593 = vadd.f32 %v2345, %v2504
        %v2594 = vadd.f32 %v2346, %v2506
        %v2595 = vadd.f32 %v2347, %v2509
        %v2596 = vadd.f32 %v2348, %v2511
        %v2597 = vadd.f32 %v2349, %v2514
        %v2598 = vadd.f32 %v2350, %v2516
        %v2599 = vadd.f32 %v2351, %v2519
        %v2600 = vadd.f32 %v2352, %v2521
        %v2601 = vadd.f32 %v2353, %v2524
        %v2602 = vadd.f32 %v2354, %v2526
        %v2603 = vadd.f32 %v2355, %v2529
        %v2604 = vadd.f32 %v2356, %v2531
        %v2605 = vadd.f32 %v2357, %v2534
        %v2606 = vadd.f32 %v2358, %v2536
        %v2607 = vadd.f32 %v2359, %v2539
        %v2608 = vadd.f32 %v2360, %v2541
        %v2609 = vadd.f32 %v2361, %v2544
        %v2610 = vadd.f32 %v2362, %v2546
        %v2611 = vadd.f32 %v2363, %v2549
        %v2612 = vadd.f32 %v2364, %v2551
        %v2613 = vadd.f32 %v2365, %v2554
        %v2614 = vadd.f32 %v2366, %v2556
        %v2615 = vadd.f32 %v2367, %v2559
        %v2616 = vadd.f32 %v2368, %v2561
        %v2617 = vadd.f32 %v2369, %v2564
        %v2618 = vadd.f32 %v2370, %v2566
        %v2619 = vadd.f32 %v2371, %v2569
        %v2620 = vadd.f32 %v2372, %v2571
        %v2621 = vadd.f32 %v2373, %v2574
        %v2622 = vadd.f32 %v2374, %v2576
        %v2623 = vadd.f32 %v2375, %v2579
        %v2624 = vadd.f32 %v2376, %v2581
        %v2625 = vadd.f32 %v2377, %v2584
        %v2626 = vadd.f32 %v2378, %v2586
        %v2627 = vadd.f32 %v2379, %v2589
        %v2628 = vadd.f32 %v2380, %v2591
        %v2629 = vld [vmem:[%s948 + $0x25] sm:$0xff]
        %v2630 = vld [vmem:[%s948 + $0x2d] sm:$0xff]
        %v2631 = vld [vmem:[%s948 + $0x35] sm:$0xff]
        %v2632 = vld [vmem:[%s948 + $0x3d] sm:$0xff]
        %v2633 = vld [vmem:[%s948 + $0x45] sm:$0xff]
        %v2634 = vld [vmem:[%s948 + $0x4d] sm:$0xff]
        %v2635 = vld [vmem:[%s948 + $0x55] sm:$0xff]
        %v2636 = vld [vmem:[%s948 + $0x5d] sm:$0xff]
        %v2637 = vld [vmem:[%s948 + $0x65] sm:$0xff]
        %v2638 = vld [vmem:[%s948 + $0x6d] sm:$0xff]
        %v2639 = vld [vmem:[%s948 + $0x75] sm:$0xff]
        %v2640 = vld [vmem:[%s948 + $0x7d] sm:$0xff]
        %v2641 = vld [vmem:[%s948 + $0x85] sm:$0xff]
        %v2642 = vld [vmem:[%s948 + $0x8d] sm:$0xff]
        %v2643 = vld [vmem:[%s948 + $0x95] sm:$0xff]
        %v2644 = vld [vmem:[%s948 + $0x9d] sm:$0xff]
        %v2645 = vld [vmem:[%s948 + $0xa5] sm:$0xff]
        %v2646 = vld [vmem:[%s948 + $0xad] sm:$0xff]
        %v2647 = vld [vmem:[%s948 + $0xb5] sm:$0xff]
        %v2648 = vld [vmem:[%s948 + $0xbd] sm:$0xff]
        %v2649 = vld [vmem:[%s948 + $0xc5] sm:$0xff]
        %v2650 = vld [vmem:[%s948 + $0xcd] sm:$0xff]
        %v2651 = vld [vmem:[%s948 + $0xd5] sm:$0xff]
        %v2652 = vld [vmem:[%s948 + $0xdd] sm:$0xff]
        %v2653 = vld [vmem:[%s948 + $0xe5] sm:$0xff]
        %v2654 = vld [vmem:[%s948 + $0xed] sm:$0xff]
        %v2655 = vld [vmem:[%s948 + $0xf5] sm:$0xff]
        %v2656 = vld [vmem:[%s948 + $0xfd] sm:$0xff]
        %v2657 = vld [vmem:[%s948 + $0x105] sm:$0xff]
        %v2658 = vld [vmem:[%s948 + $0x10d] sm:$0xff]
        %v2659 = vld [vmem:[%s948 + $0x115] sm:$0xff]
        %v2660 = vld [vmem:[%s948 + $0x11d] sm:$0xff]
        %v2661 = vld [vmem:[%s948 + $0x125] sm:$0xff]
        %v2662 = vld [vmem:[%s948 + $0x12d] sm:$0xff]
        %v2663 = vld [vmem:[%s948 + $0x135] sm:$0xff]
        %v2664 = vld [vmem:[%s948 + $0x13d] sm:$0x3f]
        %v2665 = vpack.c.bf16 %v2630, %v2629
        %v2666 = vpack.c.bf16 %v2632, %v2631
        %v2667 = vpack.c.bf16 %v2634, %v2633
        %v2668 = vpack.c.bf16 %v2636, %v2635
        %v2669 = vpack.c.bf16 %v2638, %v2637
        %v2670 = vpack.c.bf16 %v2640, %v2639
        %v2671 = vpack.c.bf16 %v2642, %v2641
        %v2672 = vpack.c.bf16 %v2644, %v2643
        %v2673 = vpack.c.bf16 %v2646, %v2645
        %v2674 = vpack.c.bf16 %v2648, %v2647
        %v2675 = vpack.c.bf16 %v2650, %v2649
        %v2676 = vpack.c.bf16 %v2652, %v2651
        %v2677 = vpack.c.bf16 %v2654, %v2653
        %v2678 = vpack.c.bf16 %v2656, %v2655
        %v2679 = vpack.c.bf16 %v2658, %v2657
        %v2680 = vpack.c.bf16 %v2660, %v2659
        %v2681 = vpack.c.bf16 %v2662, %v2661
        %v2682 = vpack.c.bf16 %v2664, %v2663
        %s2683 = scalar_lea.vmem %s3, 14
        %v2684 = vld [vmem:[%s2683] sm:$0x3]
        %v2686 = vsel %vm1075, %v2665, 0
        %v2689 = vsel %vm1075, %v2666, 0
        %v2692 = vsel %vm1075, %v2667, 0
        %v2695 = vsel %vm1075, %v2668, 0
        %v2698 = vsel %vm1075, %v2669, 0
        %v2701 = vsel %vm1075, %v2670, 0
        %v2704 = vsel %vm1075, %v2671, 0
        %v2707 = vsel %vm1075, %v2672, 0
        %v2710 = vsel %vm1075, %v2673, 0
        %v2713 = vsel %vm1075, %v2674, 0
        %v2716 = vsel %vm1075, %v2675, 0
        %v2719 = vsel %vm1075, %v2676, 0
        %v2722 = vsel %vm1075, %v2677, 0
        %v2725 = vsel %vm1075, %v2678, 0
        %v2728 = vsel %vm1075, %v2679, 0
        %v2731 = vsel %vm1075, %v2680, 0
        %v2734 = vsel %vm1075, %v2681, 0
        %v2737 = vsel %vm1075, %v2682, 0
        %v2740 = vsel %vm1130, %v2684, 0
        %2742 = vmatpush.bf16.msra.mxu0 0
        %2743 = vmatpush.bf16.msra.mxu0 0
        %2744 = vmatpush.bf16.msra.mxu0 0
        %2745 = vmatpush.bf16.msra.mxu0 0
        %2746 = vmatpush.bf16.msra.mxu0 0
        %2747 = vmatpush.bf16.msra.mxu0 0
        %2748 = vmatpush.bf16.msra.mxu0 0
        %2749 = vmatpush.bf16.msra.mxu0 %v2740
        %2750 = vmatmul.bf16.gmra.mxu0 %v2686
        %v2751 = vpop.f32.mrf.mxu0
        %v2752 = vadd.f32 0.0, %v2751
        %v2753 = vpop.f32.mrf.mxu0
        %v2754 = vadd.f32 0.0, %v2753
        %2755 = vmatmul.bf16.gmra.mxu0 %v2689
        %v2756 = vpop.f32.mrf.mxu0
        %v2757 = vadd.f32 0.0, %v2756
        %v2758 = vpop.f32.mrf.mxu0
        %v2759 = vadd.f32 0.0, %v2758
        %2760 = vmatmul.bf16.gmra.mxu0 %v2692
        %v2761 = vpop.f32.mrf.mxu0
        %v2762 = vadd.f32 0.0, %v2761
        %v2763 = vpop.f32.mrf.mxu0
        %v2764 = vadd.f32 0.0, %v2763
        %2765 = vmatmul.bf16.gmra.mxu0 %v2695
        %v2766 = vpop.f32.mrf.mxu0
        %v2767 = vadd.f32 0.0, %v2766
        %v2768 = vpop.f32.mrf.mxu0
        %v2769 = vadd.f32 0.0, %v2768
        %2770 = vmatmul.bf16.gmra.mxu0 %v2698
        %v2771 = vpop.f32.mrf.mxu0
        %v2772 = vadd.f32 0.0, %v2771
        %v2773 = vpop.f32.mrf.mxu0
        %v2774 = vadd.f32 0.0, %v2773
        %2775 = vmatmul.bf16.gmra.mxu0 %v2701
        %v2776 = vpop.f32.mrf.mxu0
        %v2777 = vadd.f32 0.0, %v2776
        %v2778 = vpop.f32.mrf.mxu0
        %v2779 = vadd.f32 0.0, %v2778
        %2780 = vmatmul.bf16.gmra.mxu0 %v2704
        %v2781 = vpop.f32.mrf.mxu0
        %v2782 = vadd.f32 0.0, %v2781
        %v2783 = vpop.f32.mrf.mxu0
        %v2784 = vadd.f32 0.0, %v2783
        %2785 = vmatmul.bf16.gmra.mxu0 %v2707
        %v2786 = vpop.f32.mrf.mxu0
        %v2787 = vadd.f32 0.0, %v2786
        %v2788 = vpop.f32.mrf.mxu0
        %v2789 = vadd.f32 0.0, %v2788
        %2790 = vmatmul.bf16.gmra.mxu0 %v2710
        %v2791 = vpop.f32.mrf.mxu0
        %v2792 = vadd.f32 0.0, %v2791
        %v2793 = vpop.f32.mrf.mxu0
        %v2794 = vadd.f32 0.0, %v2793
        %2795 = vmatmul.bf16.gmra.mxu0 %v2713
        %v2796 = vpop.f32.mrf.mxu0
        %v2797 = vadd.f32 0.0, %v2796
        %v2798 = vpop.f32.mrf.mxu0
        %v2799 = vadd.f32 0.0, %v2798
        %2800 = vmatmul.bf16.gmra.mxu0 %v2716
        %v2801 = vpop.f32.mrf.mxu0
        %v2802 = vadd.f32 0.0, %v2801
        %v2803 = vpop.f32.mrf.mxu0
        %v2804 = vadd.f32 0.0, %v2803
        %2805 = vmatmul.bf16.gmra.mxu0 %v2719
        %v2806 = vpop.f32.mrf.mxu0
        %v2807 = vadd.f32 0.0, %v2806
        %v2808 = vpop.f32.mrf.mxu0
        %v2809 = vadd.f32 0.0, %v2808
        %2810 = vmatmul.bf16.gmra.mxu0 %v2722
        %v2811 = vpop.f32.mrf.mxu0
        %v2812 = vadd.f32 0.0, %v2811
        %v2813 = vpop.f32.mrf.mxu0
        %v2814 = vadd.f32 0.0, %v2813
        %2815 = vmatmul.bf16.gmra.mxu0 %v2725
        %v2816 = vpop.f32.mrf.mxu0
        %v2817 = vadd.f32 0.0, %v2816
        %v2818 = vpop.f32.mrf.mxu0
        %v2819 = vadd.f32 0.0, %v2818
        %2820 = vmatmul.bf16.gmra.mxu0 %v2728
        %v2821 = vpop.f32.mrf.mxu0
        %v2822 = vadd.f32 0.0, %v2821
        %v2823 = vpop.f32.mrf.mxu0
        %v2824 = vadd.f32 0.0, %v2823
        %2825 = vmatmul.bf16.gmra.mxu0 %v2731
        %v2826 = vpop.f32.mrf.mxu0
        %v2827 = vadd.f32 0.0, %v2826
        %v2828 = vpop.f32.mrf.mxu0
        %v2829 = vadd.f32 0.0, %v2828
        %2830 = vmatmul.bf16.gmra.mxu0 %v2734
        %v2831 = vpop.f32.mrf.mxu0
        %v2832 = vadd.f32 0.0, %v2831
        %v2833 = vpop.f32.mrf.mxu0
        %v2834 = vadd.f32 0.0, %v2833
        %2835 = vmatmul.bf16.gmra.mxu0 %v2737
        %v2836 = vpop.f32.mrf.mxu0
        %v2837 = vadd.f32 0.0, %v2836
        %v2838 = vpop.f32.mrf.mxu0
        %v2839 = vadd.f32 0.0, %v2838
        %2840 = vdwg.mxu0
        %v2841 = vadd.f32 %v2593, %v2752
        %v2842 = vadd.f32 %v2594, %v2754
        %v2843 = vadd.f32 %v2595, %v2757
        %v2844 = vadd.f32 %v2596, %v2759
        %v2845 = vadd.f32 %v2597, %v2762
        %v2846 = vadd.f32 %v2598, %v2764
        %v2847 = vadd.f32 %v2599, %v2767
        %v2848 = vadd.f32 %v2600, %v2769
        %v2849 = vadd.f32 %v2601, %v2772
        %v2850 = vadd.f32 %v2602, %v2774
        %v2851 = vadd.f32 %v2603, %v2777
        %v2852 = vadd.f32 %v2604, %v2779
        %v2853 = vadd.f32 %v2605, %v2782
        %v2854 = vadd.f32 %v2606, %v2784
        %v2855 = vadd.f32 %v2607, %v2787
        %v2856 = vadd.f32 %v2608, %v2789
        %v2857 = vadd.f32 %v2609, %v2792
        %v2858 = vadd.f32 %v2610, %v2794
        %v2859 = vadd.f32 %v2611, %v2797
        %v2860 = vadd.f32 %v2612, %v2799
        %v2861 = vadd.f32 %v2613, %v2802
        %v2862 = vadd.f32 %v2614, %v2804
        %v2863 = vadd.f32 %v2615, %v2807
        %v2864 = vadd.f32 %v2616, %v2809
        %v2865 = vadd.f32 %v2617, %v2812
        %v2866 = vadd.f32 %v2618, %v2814
        %v2867 = vadd.f32 %v2619, %v2817
        %v2868 = vadd.f32 %v2620, %v2819
        %v2869 = vadd.f32 %v2621, %v2822
        %v2870 = vadd.f32 %v2622, %v2824
        %v2871 = vadd.f32 %v2623, %v2827
        %v2872 = vadd.f32 %v2624, %v2829
        %v2873 = vadd.f32 %v2625, %v2832
        %v2874 = vadd.f32 %v2626, %v2834
        %v2875 = vadd.f32 %v2627, %v2837
        %v2876 = vadd.f32 %v2628, %v2839
        %v2877 = vld [vmem:[%s948 + $0x26] sm:$0xff]
        %v2878 = vld [vmem:[%s948 + $0x2e] sm:$0xff]
        %v2879 = vld [vmem:[%s948 + $0x36] sm:$0xff]
        %v2880 = vld [vmem:[%s948 + $0x3e] sm:$0xff]
        %v2881 = vld [vmem:[%s948 + $0x46] sm:$0xff]
        %v2882 = vld [vmem:[%s948 + $0x4e] sm:$0xff]
        %v2883 = vld [vmem:[%s948 + $0x56] sm:$0xff]
        %v2884 = vld [vmem:[%s948 + $0x5e] sm:$0xff]
        %v2885 = vld [vmem:[%s948 + $0x66] sm:$0xff]
        %v2886 = vld [vmem:[%s948 + $0x6e] sm:$0xff]
        %v2887 = vld [vmem:[%s948 + $0x76] sm:$0xff]
        %v2888 = vld [vmem:[%s948 + $0x7e] sm:$0xff]
        %v2889 = vld [vmem:[%s948 + $0x86] sm:$0xff]
        %v2890 = vld [vmem:[%s948 + $0x8e] sm:$0xff]
        %v2891 = vld [vmem:[%s948 + $0x96] sm:$0xff]
        %v2892 = vld [vmem:[%s948 + $0x9e] sm:$0xff]
        %v2893 = vld [vmem:[%s948 + $0xa6] sm:$0xff]
        %v2894 = vld [vmem:[%s948 + $0xae] sm:$0xff]
        %v2895 = vld [vmem:[%s948 + $0xb6] sm:$0xff]
        %v2896 = vld [vmem:[%s948 + $0xbe] sm:$0xff]
        %v2897 = vld [vmem:[%s948 + $0xc6] sm:$0xff]
        %v2898 = vld [vmem:[%s948 + $0xce] sm:$0xff]
        %v2899 = vld [vmem:[%s948 + $0xd6] sm:$0xff]
        %v2900 = vld [vmem:[%s948 + $0xde] sm:$0xff]
        %v2901 = vld [vmem:[%s948 + $0xe6] sm:$0xff]
        %v2902 = vld [vmem:[%s948 + $0xee] sm:$0xff]
        %v2903 = vld [vmem:[%s948 + $0xf6] sm:$0xff]
        %v2904 = vld [vmem:[%s948 + $0xfe] sm:$0xff]
        %v2905 = vld [vmem:[%s948 + $0x106] sm:$0xff]
        %v2906 = vld [vmem:[%s948 + $0x10e] sm:$0xff]
        %v2907 = vld [vmem:[%s948 + $0x116] sm:$0xff]
        %v2908 = vld [vmem:[%s948 + $0x11e] sm:$0xff]
        %v2909 = vld [vmem:[%s948 + $0x126] sm:$0xff]
        %v2910 = vld [vmem:[%s948 + $0x12e] sm:$0xff]
        %v2911 = vld [vmem:[%s948 + $0x136] sm:$0xff]
        %v2912 = vld [vmem:[%s948 + $0x13e] sm:$0x3f]
        %v2913 = vpack.c.bf16 %v2878, %v2877
        %v2914 = vpack.c.bf16 %v2880, %v2879
        %v2915 = vpack.c.bf16 %v2882, %v2881
        %v2916 = vpack.c.bf16 %v2884, %v2883
        %v2917 = vpack.c.bf16 %v2886, %v2885
        %v2918 = vpack.c.bf16 %v2888, %v2887
        %v2919 = vpack.c.bf16 %v2890, %v2889
        %v2920 = vpack.c.bf16 %v2892, %v2891
        %v2921 = vpack.c.bf16 %v2894, %v2893
        %v2922 = vpack.c.bf16 %v2896, %v2895
        %v2923 = vpack.c.bf16 %v2898, %v2897
        %v2924 = vpack.c.bf16 %v2900, %v2899
        %v2925 = vpack.c.bf16 %v2902, %v2901
        %v2926 = vpack.c.bf16 %v2904, %v2903
        %v2927 = vpack.c.bf16 %v2906, %v2905
        %v2928 = vpack.c.bf16 %v2908, %v2907
        %v2929 = vpack.c.bf16 %v2910, %v2909
        %v2930 = vpack.c.bf16 %v2912, %v2911
        %s2931 = scalar_lea.vmem %s3, 16
        %v2932 = vld [vmem:[%s2931] sm:$0x3]
        %v2934 = vsel %vm1075, %v2913, 0
        %v2937 = vsel %vm1075, %v2914, 0
        %v2940 = vsel %vm1075, %v2915, 0
        %v2943 = vsel %vm1075, %v2916, 0
        %v2946 = vsel %vm1075, %v2917, 0
        %v2949 = vsel %vm1075, %v2918, 0
        %v2952 = vsel %vm1075, %v2919, 0
        %v2955 = vsel %vm1075, %v2920, 0
        %v2958 = vsel %vm1075, %v2921, 0
        %v2961 = vsel %vm1075, %v2922, 0
        %v2964 = vsel %vm1075, %v2923, 0
        %v2967 = vsel %vm1075, %v2924, 0
        %v2970 = vsel %vm1075, %v2925, 0
        %v2973 = vsel %vm1075, %v2926, 0
        %v2976 = vsel %vm1075, %v2927, 0
        %v2979 = vsel %vm1075, %v2928, 0
        %v2982 = vsel %vm1075, %v2929, 0
        %v2985 = vsel %vm1075, %v2930, 0
        %v2988 = vsel %vm1130, %v2932, 0
        %2990 = vmatpush.bf16.msra.mxu0 0
        %2991 = vmatpush.bf16.msra.mxu0 0
        %2992 = vmatpush.bf16.msra.mxu0 0
        %2993 = vmatpush.bf16.msra.mxu0 0
        %2994 = vmatpush.bf16.msra.mxu0 0
        %2995 = vmatpush.bf16.msra.mxu0 0
        %2996 = vmatpush.bf16.msra.mxu0 0
        %2997 = vmatpush.bf16.msra.mxu0 %v2988
        %2998 = vmatmul.bf16.gmra.mxu0 %v2934
        %v2999 = vpop.f32.mrf.mxu0
        %v3000 = vadd.f32 0.0, %v2999
        %v3001 = vpop.f32.mrf.mxu0
        %v3002 = vadd.f32 0.0, %v3001
        %3003 = vmatmul.bf16.gmra.mxu0 %v2937
        %v3004 = vpop.f32.mrf.mxu0
        %v3005 = vadd.f32 0.0, %v3004
        %v3006 = vpop.f32.mrf.mxu0
        %v3007 = vadd.f32 0.0, %v3006
        %3008 = vmatmul.bf16.gmra.mxu0 %v2940
        %v3009 = vpop.f32.mrf.mxu0
        %v3010 = vadd.f32 0.0, %v3009
        %v3011 = vpop.f32.mrf.mxu0
        %v3012 = vadd.f32 0.0, %v3011
        %3013 = vmatmul.bf16.gmra.mxu0 %v2943
        %v3014 = vpop.f32.mrf.mxu0
        %v3015 = vadd.f32 0.0, %v3014
        %v3016 = vpop.f32.mrf.mxu0
        %v3017 = vadd.f32 0.0, %v3016
        %3018 = vmatmul.bf16.gmra.mxu0 %v2946
        %v3019 = vpop.f32.mrf.mxu0
        %v3020 = vadd.f32 0.0, %v3019
        %v3021 = vpop.f32.mrf.mxu0
        %v3022 = vadd.f32 0.0, %v3021
        %3023 = vmatmul.bf16.gmra.mxu0 %v2949
        %v3024 = vpop.f32.mrf.mxu0
        %v3025 = vadd.f32 0.0, %v3024
        %v3026 = vpop.f32.mrf.mxu0
        %v3027 = vadd.f32 0.0, %v3026
        %3028 = vmatmul.bf16.gmra.mxu0 %v2952
        %v3029 = vpop.f32.mrf.mxu0
        %v3030 = vadd.f32 0.0, %v3029
        %v3031 = vpop.f32.mrf.mxu0
        %v3032 = vadd.f32 0.0, %v3031
        %3033 = vmatmul.bf16.gmra.mxu0 %v2955
        %v3034 = vpop.f32.mrf.mxu0
        %v3035 = vadd.f32 0.0, %v3034
        %v3036 = vpop.f32.mrf.mxu0
        %v3037 = vadd.f32 0.0, %v3036
        %3038 = vmatmul.bf16.gmra.mxu0 %v2958
        %v3039 = vpop.f32.mrf.mxu0
        %v3040 = vadd.f32 0.0, %v3039
        %v3041 = vpop.f32.mrf.mxu0
        %v3042 = vadd.f32 0.0, %v3041
        %3043 = vmatmul.bf16.gmra.mxu0 %v2961
        %v3044 = vpop.f32.mrf.mxu0
        %v3045 = vadd.f32 0.0, %v3044
        %v3046 = vpop.f32.mrf.mxu0
        %v3047 = vadd.f32 0.0, %v3046
        %3048 = vmatmul.bf16.gmra.mxu0 %v2964
        %v3049 = vpop.f32.mrf.mxu0
        %v3050 = vadd.f32 0.0, %v3049
        %v3051 = vpop.f32.mrf.mxu0
        %v3052 = vadd.f32 0.0, %v3051
        %3053 = vmatmul.bf16.gmra.mxu0 %v2967
        %v3054 = vpop.f32.mrf.mxu0
        %v3055 = vadd.f32 0.0, %v3054
        %v3056 = vpop.f32.mrf.mxu0
        %v3057 = vadd.f32 0.0, %v3056
        %3058 = vmatmul.bf16.gmra.mxu0 %v2970
        %v3059 = vpop.f32.mrf.mxu0
        %v3060 = vadd.f32 0.0, %v3059
        %v3061 = vpop.f32.mrf.mxu0
        %v3062 = vadd.f32 0.0, %v3061
        %3063 = vmatmul.bf16.gmra.mxu0 %v2973
        %v3064 = vpop.f32.mrf.mxu0
        %v3065 = vadd.f32 0.0, %v3064
        %v3066 = vpop.f32.mrf.mxu0
        %v3067 = vadd.f32 0.0, %v3066
        %3068 = vmatmul.bf16.gmra.mxu0 %v2976
        %v3069 = vpop.f32.mrf.mxu0
        %v3070 = vadd.f32 0.0, %v3069
        %v3071 = vpop.f32.mrf.mxu0
        %v3072 = vadd.f32 0.0, %v3071
        %3073 = vmatmul.bf16.gmra.mxu0 %v2979
        %v3074 = vpop.f32.mrf.mxu0
        %v3075 = vadd.f32 0.0, %v3074
        %v3076 = vpop.f32.mrf.mxu0
        %v3077 = vadd.f32 0.0, %v3076
        %3078 = vmatmul.bf16.gmra.mxu0 %v2982
        %v3079 = vpop.f32.mrf.mxu0
        %v3080 = vadd.f32 0.0, %v3079
        %v3081 = vpop.f32.mrf.mxu0
        %v3082 = vadd.f32 0.0, %v3081
        %3083 = vmatmul.bf16.gmra.mxu0 %v2985
        %v3084 = vpop.f32.mrf.mxu0
        %v3085 = vadd.f32 0.0, %v3084
        %v3086 = vpop.f32.mrf.mxu0
        %v3087 = vadd.f32 0.0, %v3086
        %3088 = vdwg.mxu0
        %v3089 = vadd.f32 %v2841, %v3000
        %v3090 = vadd.f32 %v2842, %v3002
        %v3091 = vadd.f32 %v2843, %v3005
        %v3092 = vadd.f32 %v2844, %v3007
        %v3093 = vadd.f32 %v2845, %v3010
        %v3094 = vadd.f32 %v2846, %v3012
        %v3095 = vadd.f32 %v2847, %v3015
        %v3096 = vadd.f32 %v2848, %v3017
        %v3097 = vadd.f32 %v2849, %v3020
        %v3098 = vadd.f32 %v2850, %v3022
        %v3099 = vadd.f32 %v2851, %v3025
        %v3100 = vadd.f32 %v2852, %v3027
        %v3101 = vadd.f32 %v2853, %v3030
        %v3102 = vadd.f32 %v2854, %v3032
        %v3103 = vadd.f32 %v2855, %v3035
        %v3104 = vadd.f32 %v2856, %v3037
        %v3105 = vadd.f32 %v2857, %v3040
        %v3106 = vadd.f32 %v2858, %v3042
        %v3107 = vadd.f32 %v2859, %v3045
        %v3108 = vadd.f32 %v2860, %v3047
        %v3109 = vadd.f32 %v2861, %v3050
        %v3110 = vadd.f32 %v2862, %v3052
        %v3111 = vadd.f32 %v2863, %v3055
        %v3112 = vadd.f32 %v2864, %v3057
        %v3113 = vadd.f32 %v2865, %v3060
        %v3114 = vadd.f32 %v2866, %v3062
        %v3115 = vadd.f32 %v2867, %v3065
        %v3116 = vadd.f32 %v2868, %v3067
        %v3117 = vadd.f32 %v2869, %v3070
        %v3118 = vadd.f32 %v2870, %v3072
        %v3119 = vadd.f32 %v2871, %v3075
        %v3120 = vadd.f32 %v2872, %v3077
        %v3121 = vadd.f32 %v2873, %v3080
        %v3122 = vadd.f32 %v2874, %v3082
        %v3123 = vadd.f32 %v2875, %v3085
        %v3124 = vadd.f32 %v2876, %v3087
        %v3125 = vld [vmem:[%s5] sm:$0x1]
        %v3127 = vperm.slane %v3125, 0
        %v3129 = vadd.f32 %v3089, %v3127
        %v3130 = vadd.f32 %v3090, %v3127
        %v3131 = vadd.f32 %v3091, %v3127
        %v3132 = vadd.f32 %v3092, %v3127
        %v3133 = vadd.f32 %v3093, %v3127
        %v3134 = vadd.f32 %v3094, %v3127
        %v3135 = vadd.f32 %v3095, %v3127
        %v3136 = vadd.f32 %v3096, %v3127
        %v3137 = vadd.f32 %v3097, %v3127
        %v3138 = vadd.f32 %v3098, %v3127
        %v3139 = vadd.f32 %v3099, %v3127
        %v3140 = vadd.f32 %v3100, %v3127
        %v3141 = vadd.f32 %v3101, %v3127
        %v3142 = vadd.f32 %v3102, %v3127
        %v3143 = vadd.f32 %v3103, %v3127
        %v3144 = vadd.f32 %v3104, %v3127
        %v3145 = vadd.f32 %v3105, %v3127
        %v3146 = vadd.f32 %v3106, %v3127
        %v3147 = vadd.f32 %v3107, %v3127
        %v3148 = vadd.f32 %v3108, %v3127
        %v3149 = vadd.f32 %v3109, %v3127
        %v3150 = vadd.f32 %v3110, %v3127
        %v3151 = vadd.f32 %v3111, %v3127
        %v3152 = vadd.f32 %v3112, %v3127
        %v3153 = vadd.f32 %v3113, %v3127
        %v3154 = vadd.f32 %v3114, %v3127
        %v3155 = vadd.f32 %v3115, %v3127
        %v3156 = vadd.f32 %v3116, %v3127
        %v3157 = vadd.f32 %v3117, %v3127
        %v3158 = vadd.f32 %v3118, %v3127
        %v3159 = vadd.f32 %v3119, %v3127
        %v3160 = vadd.f32 %v3120, %v3127
        %v3161 = vadd.f32 %v3121, %v3127
        %v3162 = vadd.f32 %v3122, %v3127
        %v3163 = vadd.f32 %v3123, %v3127
        %v3164 = vadd.f32 %v3124, %v3127
        %v3165 = vmax.f32 %v3129, 0.0
        %v3166 = vmax.f32 %v3130, 0.0
        %v3167 = vmax.f32 %v3131, 0.0
        %v3168 = vmax.f32 %v3132, 0.0
        %v3169 = vmax.f32 %v3133, 0.0
        %v3170 = vmax.f32 %v3134, 0.0
        %v3171 = vmax.f32 %v3135, 0.0
        %v3172 = vmax.f32 %v3136, 0.0
        %v3173 = vmax.f32 %v3137, 0.0
        %v3174 = vmax.f32 %v3138, 0.0
        %v3175 = vmax.f32 %v3139, 0.0
        %v3176 = vmax.f32 %v3140, 0.0
        %v3177 = vmax.f32 %v3141, 0.0
        %v3178 = vmax.f32 %v3142, 0.0
        %v3179 = vmax.f32 %v3143, 0.0
        %v3180 = vmax.f32 %v3144, 0.0
        %v3181 = vmax.f32 %v3145, 0.0
        %v3182 = vmax.f32 %v3146, 0.0
        %v3183 = vmax.f32 %v3147, 0.0
        %v3184 = vmax.f32 %v3148, 0.0
        %v3185 = vmax.f32 %v3149, 0.0
        %v3186 = vmax.f32 %v3150, 0.0
        %v3187 = vmax.f32 %v3151, 0.0
        %v3188 = vmax.f32 %v3152, 0.0
        %v3189 = vmax.f32 %v3153, 0.0
        %v3190 = vmax.f32 %v3154, 0.0
        %v3191 = vmax.f32 %v3155, 0.0
        %v3192 = vmax.f32 %v3156, 0.0
        %v3193 = vmax.f32 %v3157, 0.0
        %v3194 = vmax.f32 %v3158, 0.0
        %v3195 = vmax.f32 %v3159, 0.0
        %v3196 = vmax.f32 %v3160, 0.0
        %v3197 = vmax.f32 %v3161, 0.0
        %v3198 = vmax.f32 %v3162, 0.0
        %v3199 = vmax.f32 %v3163, 0.0
        %v3200 = vmax.f32 %v3164, 0.0
        %vm3201 = vcmask 130048
        %3202 = vst.msk [vmem:[#allocation8] sm:$0xff] %vm3201, %v3165
        %3203 = vst.msk [vmem:[#allocation8 + $0x8] sm:$0xff] %vm3201, %v3166
        %3204 = vst.msk [vmem:[#allocation8 + $0x10] sm:$0xff] %vm3201, %v3167
        %3205 = vst.msk [vmem:[#allocation8 + $0x18] sm:$0xff] %vm3201, %v3168
        %3206 = vst.msk [vmem:[#allocation8 + $0x20] sm:$0xff] %vm3201, %v3169
        %3207 = vst.msk [vmem:[#allocation8 + $0x28] sm:$0xff] %vm3201, %v3170
        %3208 = vst.msk [vmem:[#allocation8 + $0x30] sm:$0xff] %vm3201, %v3171
        %3209 = vst.msk [vmem:[#allocation8 + $0x38] sm:$0xff] %vm3201, %v3172
        %3210 = vst.msk [vmem:[#allocation8 + $0x40] sm:$0xff] %vm3201, %v3173
        %3211 = vst.msk [vmem:[#allocation8 + $0x48] sm:$0xff] %vm3201, %v3174
        %3212 = vst.msk [vmem:[#allocation8 + $0x50] sm:$0xff] %vm3201, %v3175
        %3213 = vst.msk [vmem:[#allocation8 + $0x58] sm:$0xff] %vm3201, %v3176
        %3214 = vst.msk [vmem:[#allocation8 + $0x60] sm:$0xff] %vm3201, %v3177
        %3215 = vst.msk [vmem:[#allocation8 + $0x68] sm:$0xff] %vm3201, %v3178
        %3216 = vst.msk [vmem:[#allocation8 + $0x70] sm:$0xff] %vm3201, %v3179
        %3217 = vst.msk [vmem:[#allocation8 + $0x78] sm:$0xff] %vm3201, %v3180
        %3218 = vst.msk [vmem:[#allocation8 + $0x80] sm:$0xff] %vm3201, %v3181
        %3219 = vst.msk [vmem:[#allocation8 + $0x88] sm:$0xff] %vm3201, %v3182
        %3220 = vst.msk [vmem:[#allocation8 + $0x90] sm:$0xff] %vm3201, %v3183
        %3221 = vst.msk [vmem:[#allocation8 + $0x98] sm:$0xff] %vm3201, %v3184
        %3222 = vst.msk [vmem:[#allocation8 + $0xa0] sm:$0xff] %vm3201, %v3185
        %3223 = vst.msk [vmem:[#allocation8 + $0xa8] sm:$0xff] %vm3201, %v3186
        %3224 = vst.msk [vmem:[#allocation8 + $0xb0] sm:$0xff] %vm3201, %v3187
        %3225 = vst.msk [vmem:[#allocation8 + $0xb8] sm:$0xff] %vm3201, %v3188
        %3226 = vst.msk [vmem:[#allocation8 + $0xc0] sm:$0xff] %vm3201, %v3189
        %3227 = vst.msk [vmem:[#allocation8 + $0xc8] sm:$0xff] %vm3201, %v3190
        %3228 = vst.msk [vmem:[#allocation8 + $0xd0] sm:$0xff] %vm3201, %v3191
        %3229 = vst.msk [vmem:[#allocation8 + $0xd8] sm:$0xff] %vm3201, %v3192
        %3230 = vst.msk [vmem:[#allocation8 + $0xe0] sm:$0xff] %vm3201, %v3193
        %3231 = vst.msk [vmem:[#allocation8 + $0xe8] sm:$0xff] %vm3201, %v3194
        %3232 = vst.msk [vmem:[#allocation8 + $0xf0] sm:$0xff] %vm3201, %v3195
        %3233 = vst.msk [vmem:[#allocation8 + $0xf8] sm:$0xff] %vm3201, %v3196
        %3234 = vst.msk [vmem:[#allocation8 + $0x100] sm:$0xff] %vm3201, %v3197
        %3235 = vst.msk [vmem:[#allocation8 + $0x108] sm:$0xff] %vm3201, %v3198
        %3236 = vst.msk [vmem:[#allocation8 + $0x110] sm:$0xff] %vm3201, %v3199
        %vm3237 = vcmask 128000
        %3238 = vst.msk [vmem:[#allocation8 + $0x118] sm:$0x3f] %vm3237, %v3200
        %v3239 = vld [vmem:[#allocation8] sm:$0xff]
        %v3240 = vld [vmem:[#allocation8 + $0x8] sm:$0xff]
        %v3241 = vld [vmem:[#allocation8 + $0x10] sm:$0xff]
        %v3242 = vld [vmem:[#allocation8 + $0x18] sm:$0xff]
        %v3243 = vld [vmem:[#allocation8 + $0x20] sm:$0xff]
        %v3244 = vld [vmem:[#allocation8 + $0x28] sm:$0xff]
        %v3245 = vld [vmem:[#allocation8 + $0x30] sm:$0xff]
        %v3246 = vld [vmem:[#allocation8 + $0x38] sm:$0xff]
        %v3247 = vld [vmem:[#allocation8 + $0x40] sm:$0xff]
        %v3248 = vld [vmem:[#allocation8 + $0x48] sm:$0xff]
        %v3249 = vld [vmem:[#allocation8 + $0x50] sm:$0xff]
        %v3250 = vld [vmem:[#allocation8 + $0x58] sm:$0xff]
        %v3251 = vld [vmem:[#allocation8 + $0x60] sm:$0xff]
        %v3252 = vld [vmem:[#allocation8 + $0x68] sm:$0xff]
        %v3253 = vld [vmem:[#allocation8 + $0x70] sm:$0xff]
        %v3254 = vld [vmem:[#allocation8 + $0x78] sm:$0xff]
        %v3255 = vld [vmem:[#allocation8 + $0x80] sm:$0xff]
        %v3256 = vld [vmem:[#allocation8 + $0x88] sm:$0xff]
        %v3257 = vld [vmem:[#allocation8 + $0x90] sm:$0xff]
        %v3258 = vld [vmem:[#allocation8 + $0x98] sm:$0xff]
        %v3259 = vld [vmem:[#allocation8 + $0xa0] sm:$0xff]
        %v3260 = vld [vmem:[#allocation8 + $0xa8] sm:$0xff]
        %v3261 = vld [vmem:[#allocation8 + $0xb0] sm:$0xff]
        %v3262 = vld [vmem:[#allocation8 + $0xb8] sm:$0xff]
        %v3263 = vld [vmem:[#allocation8 + $0xc0] sm:$0xff]
        %v3264 = vld [vmem:[#allocation8 + $0xc8] sm:$0xff]
        %v3265 = vld [vmem:[#allocation8 + $0xd0] sm:$0xff]
        %v3266 = vld [vmem:[#allocation8 + $0xd8] sm:$0xff]
        %v3267 = vld [vmem:[#allocation8 + $0xe0] sm:$0xff]
        %v3268 = vld [vmem:[#allocation8 + $0xe8] sm:$0xff]
        %v3269 = vld [vmem:[#allocation8 + $0xf0] sm:$0xff]
        %v3270 = vld [vmem:[#allocation8 + $0xf8] sm:$0xff]
        %v3271 = vld [vmem:[#allocation8 + $0x100] sm:$0xff]
        %v3272 = vld [vmem:[#allocation8 + $0x108] sm:$0x7]
        %v3273 = vld [vmem:[#allocation8 + $0x1] sm:$0xff]
        %v3274 = vld [vmem:[#allocation8 + $0x9] sm:$0xff]
        %v3275 = vld [vmem:[#allocation8 + $0x11] sm:$0xff]
        %v3276 = vld [vmem:[#allocation8 + $0x19] sm:$0xff]
        %v3277 = vld [vmem:[#allocation8 + $0x21] sm:$0xff]
        %v3278 = vld [vmem:[#allocation8 + $0x29] sm:$0xff]
        %v3279 = vld [vmem:[#allocation8 + $0x31] sm:$0xff]
        %v3280 = vld [vmem:[#allocation8 + $0x39] sm:$0xff]
        %v3281 = vld [vmem:[#allocation8 + $0x41] sm:$0xff]
        %v3282 = vld [vmem:[#allocation8 + $0x49] sm:$0xff]
        %v3283 = vld [vmem:[#allocation8 + $0x51] sm:$0xff]
        %v3284 = vld [vmem:[#allocation8 + $0x59] sm:$0xff]
        %v3285 = vld [vmem:[#allocation8 + $0x61] sm:$0xff]
        %v3286 = vld [vmem:[#allocation8 + $0x69] sm:$0xff]
        %v3287 = vld [vmem:[#allocation8 + $0x71] sm:$0xff]
        %v3288 = vld [vmem:[#allocation8 + $0x79] sm:$0xff]
        %v3289 = vld [vmem:[#allocation8 + $0x81] sm:$0xff]
        %v3290 = vld [vmem:[#allocation8 + $0x89] sm:$0xff]
        %v3291 = vld [vmem:[#allocation8 + $0x91] sm:$0xff]
        %v3292 = vld [vmem:[#allocation8 + $0x99] sm:$0xff]
        %v3293 = vld [vmem:[#allocation8 + $0xa1] sm:$0xff]
        %v3294 = vld [vmem:[#allocation8 + $0xa9] sm:$0xff]
        %v3295 = vld [vmem:[#allocation8 + $0xb1] sm:$0xff]
        %v3296 = vld [vmem:[#allocation8 + $0xb9] sm:$0xff]
        %v3297 = vld [vmem:[#allocation8 + $0xc1] sm:$0xff]
        %v3298 = vld [vmem:[#allocation8 + $0xc9] sm:$0xff]
        %v3299 = vld [vmem:[#allocation8 + $0xd1] sm:$0xff]
        %v3300 = vld [vmem:[#allocation8 + $0xd9] sm:$0xff]
        %v3301 = vld [vmem:[#allocation8 + $0xe1] sm:$0xff]
        %v3302 = vld [vmem:[#allocation8 + $0xe9] sm:$0xff]
        %v3303 = vld [vmem:[#allocation8 + $0xf1] sm:$0xff]
        %v3304 = vld [vmem:[#allocation8 + $0xf9] sm:$0xff]
        %v3305 = vld [vmem:[#allocation8 + $0x101] sm:$0xff]
        %v3306 = vld [vmem:[#allocation8 + $0x109] sm:$0x7]
        %v3307 = vmax.f32 %v3239, %v3273
        %v3308 = vmax.f32 %v3240, %v3274
        %v3309 = vmax.f32 %v3241, %v3275
        %v3310 = vmax.f32 %v3242, %v3276
        %v3311 = vmax.f32 %v3243, %v3277
        %v3312 = vmax.f32 %v3244, %v3278
        %v3313 = vmax.f32 %v3245, %v3279
        %v3314 = vmax.f32 %v3246, %v3280
        %v3315 = vmax.f32 %v3247, %v3281
        %v3316 = vmax.f32 %v3248, %v3282
        %v3317 = vmax.f32 %v3249, %v3283
        %v3318 = vmax.f32 %v3250, %v3284
        %v3319 = vmax.f32 %v3251, %v3285
        %v3320 = vmax.f32 %v3252, %v3286
        %v3321 = vmax.f32 %v3253, %v3287
        %v3322 = vmax.f32 %v3254, %v3288
        %v3323 = vmax.f32 %v3255, %v3289
        %v3324 = vmax.f32 %v3256, %v3290
        %v3325 = vmax.f32 %v3257, %v3291
        %v3326 = vmax.f32 %v3258, %v3292
        %v3327 = vmax.f32 %v3259, %v3293
        %v3328 = vmax.f32 %v3260, %v3294
        %v3329 = vmax.f32 %v3261, %v3295
        %v3330 = vmax.f32 %v3262, %v3296
        %v3331 = vmax.f32 %v3263, %v3297
        %v3332 = vmax.f32 %v3264, %v3298
        %v3333 = vmax.f32 %v3265, %v3299
        %v3334 = vmax.f32 %v3266, %v3300
        %v3335 = vmax.f32 %v3267, %v3301
        %v3336 = vmax.f32 %v3268, %v3302
        %v3337 = vmax.f32 %v3269, %v3303
        %v3338 = vmax.f32 %v3270, %v3304
        %v3339 = vmax.f32 %v3271, %v3305
        %v3340 = vmax.f32 %v3272, %v3306
        %v3341 = vld [vmem:[#allocation8 + $0x12] sm:$0xff]
        %v3342 = vld [vmem:[#allocation8 + $0x1a] sm:$0xff]
        %v3343 = vld [vmem:[#allocation8 + $0x22] sm:$0xff]
        %v3344 = vld [vmem:[#allocation8 + $0x2a] sm:$0xff]
        %v3345 = vld [vmem:[#allocation8 + $0x32] sm:$0xff]
        %v3346 = vld [vmem:[#allocation8 + $0x3a] sm:$0xff]
        %v3347 = vld [vmem:[#allocation8 + $0x42] sm:$0xff]
        %v3348 = vld [vmem:[#allocation8 + $0x4a] sm:$0xff]
        %v3349 = vld [vmem:[#allocation8 + $0x52] sm:$0xff]
        %v3350 = vld [vmem:[#allocation8 + $0x5a] sm:$0xff]
        %v3351 = vld [vmem:[#allocation8 + $0x62] sm:$0xff]
        %v3352 = vld [vmem:[#allocation8 + $0x6a] sm:$0xff]
        %v3353 = vld [vmem:[#allocation8 + $0x72] sm:$0xff]
        %v3354 = vld [vmem:[#allocation8 + $0x7a] sm:$0xff]
        %v3355 = vld [vmem:[#allocation8 + $0x82] sm:$0xff]
        %v3356 = vld [vmem:[#allocation8 + $0x8a] sm:$0xff]
        %v3357 = vld [vmem:[#allocation8 + $0x92] sm:$0xff]
        %v3358 = vld [vmem:[#allocation8 + $0x9a] sm:$0xff]
        %v3359 = vld [vmem:[#allocation8 + $0xa2] sm:$0xff]
        %v3360 = vld [vmem:[#allocation8 + $0xaa] sm:$0xff]
        %v3361 = vld [vmem:[#allocation8 + $0xb2] sm:$0xff]
        %v3362 = vld [vmem:[#allocation8 + $0xba] sm:$0xff]
        %v3363 = vld [vmem:[#allocation8 + $0xc2] sm:$0xff]
        %v3364 = vld [vmem:[#allocation8 + $0xca] sm:$0xff]
        %v3365 = vld [vmem:[#allocation8 + $0xd2] sm:$0xff]
        %v3366 = vld [vmem:[#allocation8 + $0xda] sm:$0xff]
        %v3367 = vld [vmem:[#allocation8 + $0xe2] sm:$0xff]
        %v3368 = vld [vmem:[#allocation8 + $0xea] sm:$0xff]
        %v3369 = vld [vmem:[#allocation8 + $0xf2] sm:$0xff]
        %v3370 = vld [vmem:[#allocation8 + $0xfa] sm:$0xff]
        %v3371 = vld [vmem:[#allocation8 + $0x102] sm:$0xff]
        %v3372 = vld [vmem:[#allocation8 + $0x10a] sm:$0xff]
        %v3373 = vld [vmem:[#allocation8 + $0x112] sm:$0xff]
        %v3374 = vld [vmem:[#allocation8 + $0x11a] sm:$0x7]
        %v3375 = vld [vmem:[#allocation8 + $0x13] sm:$0xff]
        %v3376 = vld [vmem:[#allocation8 + $0x1b] sm:$0xff]
        %v3377 = vld [vmem:[#allocation8 + $0x23] sm:$0xff]
        %v3378 = vld [vmem:[#allocation8 + $0x2b] sm:$0xff]
        %v3379 = vld [vmem:[#allocation8 + $0x33] sm:$0xff]
        %v3380 = vld [vmem:[#allocation8 + $0x3b] sm:$0xff]
        %v3381 = vld [vmem:[#allocation8 + $0x43] sm:$0xff]
        %v3382 = vld [vmem:[#allocation8 + $0x4b] sm:$0xff]
        %v3383 = vld [vmem:[#allocation8 + $0x53] sm:$0xff]
        %v3384 = vld [vmem:[#allocation8 + $0x5b] sm:$0xff]
        %v3385 = vld [vmem:[#allocation8 + $0x63] sm:$0xff]
        %v3386 = vld [vmem:[#allocation8 + $0x6b] sm:$0xff]
        %v3387 = vld [vmem:[#allocation8 + $0x73] sm:$0xff]
        %v3388 = vld [vmem:[#allocation8 + $0x7b] sm:$0xff]
        %v3389 = vld [vmem:[#allocation8 + $0x83] sm:$0xff]
        %v3390 = vld [vmem:[#allocation8 + $0x8b] sm:$0xff]
        %v3391 = vld [vmem:[#allocation8 + $0x93] sm:$0xff]
        %v3392 = vld [vmem:[#allocation8 + $0x9b] sm:$0xff]
        %v3393 = vld [vmem:[#allocation8 + $0xa3] sm:$0xff]
        %v3394 = vld [vmem:[#allocation8 + $0xab] sm:$0xff]
        %v3395 = vld [vmem:[#allocation8 + $0xb3] sm:$0xff]
        %v3396 = vld [vmem:[#allocation8 + $0xbb] sm:$0xff]
        %v3397 = vld [vmem:[#allocation8 + $0xc3] sm:$0xff]
        %v3398 = vld [vmem:[#allocation8 + $0xcb] sm:$0xff]
        %v3399 = vld [vmem:[#allocation8 + $0xd3] sm:$0xff]
        %v3400 = vld [vmem:[#allocation8 + $0xdb] sm:$0xff]
        %v3401 = vld [vmem:[#allocation8 + $0xe3] sm:$0xff]
        %v3402 = vld [vmem:[#allocation8 + $0xeb] sm:$0xff]
        %v3403 = vld [vmem:[#allocation8 + $0xf3] sm:$0xff]
        %v3404 = vld [vmem:[#allocation8 + $0xfb] sm:$0xff]
        %v3405 = vld [vmem:[#allocation8 + $0x103] sm:$0xff]
        %v3406 = vld [vmem:[#allocation8 + $0x10b] sm:$0xff]
        %v3407 = vld [vmem:[#allocation8 + $0x113] sm:$0xff]
        %v3408 = vld [vmem:[#allocation8 + $0x11b] sm:$0x7]
        %v3409 = vmax.f32 %v3341, %v3375
        %v3410 = vmax.f32 %v3342, %v3376
        %v3411 = vmax.f32 %v3343, %v3377
        %v3412 = vmax.f32 %v3344, %v3378
        %v3413 = vmax.f32 %v3345, %v3379
        %v3414 = vmax.f32 %v3346, %v3380
        %v3415 = vmax.f32 %v3347, %v3381
        %v3416 = vmax.f32 %v3348, %v3382
        %v3417 = vmax.f32 %v3349, %v3383
        %v3418 = vmax.f32 %v3350, %v3384
        %v3419 = vmax.f32 %v3351, %v3385
        %v3420 = vmax.f32 %v3352, %v3386
        %v3421 = vmax.f32 %v3353, %v3387
        %v3422 = vmax.f32 %v3354, %v3388
        %v3423 = vmax.f32 %v3355, %v3389
        %v3424 = vmax.f32 %v3356, %v3390
        %v3425 = vmax.f32 %v3357, %v3391
        %v3426 = vmax.f32 %v3358, %v3392
        %v3427 = vmax.f32 %v3359, %v3393
        %v3428 = vmax.f32 %v3360, %v3394
        %v3429 = vmax.f32 %v3361, %v3395
        %v3430 = vmax.f32 %v3362, %v3396
        %v3431 = vmax.f32 %v3363, %v3397
        %v3432 = vmax.f32 %v3364, %v3398
        %v3433 = vmax.f32 %v3365, %v3399
        %v3434 = vmax.f32 %v3366, %v3400
        %v3435 = vmax.f32 %v3367, %v3401
        %v3436 = vmax.f32 %v3368, %v3402
        %v3437 = vmax.f32 %v3369, %v3403
        %v3438 = vmax.f32 %v3370, %v3404
        %v3439 = vmax.f32 %v3371, %v3405
        %v3440 = vmax.f32 %v3372, %v3406
        %v3441 = vmax.f32 %v3373, %v3407
        %v3442 = vmax.f32 %v3374, %v3408
        %v3443 = vmax.f32 %v3307, %v3409
        %v3444 = vmax.f32 %v3308, %v3410
        %v3445 = vmax.f32 %v3309, %v3411
        %v3446 = vmax.f32 %v3310, %v3412
        %v3447 = vmax.f32 %v3311, %v3413
        %v3448 = vmax.f32 %v3312, %v3414
        %v3449 = vmax.f32 %v3313, %v3415
        %v3450 = vmax.f32 %v3314, %v3416
        %v3451 = vmax.f32 %v3315, %v3417
        %v3452 = vmax.f32 %v3316, %v3418
        %v3453 = vmax.f32 %v3317, %v3419
        %v3454 = vmax.f32 %v3318, %v3420
        %v3455 = vmax.f32 %v3319, %v3421
        %v3456 = vmax.f32 %v3320, %v3422
        %v3457 = vmax.f32 %v3321, %v3423
        %v3458 = vmax.f32 %v3322, %v3424
        %v3459 = vmax.f32 %v3323, %v3425
        %v3460 = vmax.f32 %v3324, %v3426
        %v3461 = vmax.f32 %v3325, %v3427
        %v3462 = vmax.f32 %v3326, %v3428
        %v3463 = vmax.f32 %v3327, %v3429
        %v3464 = vmax.f32 %v3328, %v3430
        %v3465 = vmax.f32 %v3329, %v3431
        %v3466 = vmax.f32 %v3330, %v3432
        %v3467 = vmax.f32 %v3331, %v3433
        %v3468 = vmax.f32 %v3332, %v3434
        %v3469 = vmax.f32 %v3333, %v3435
        %v3470 = vmax.f32 %v3334, %v3436
        %v3471 = vmax.f32 %v3335, %v3437
        %v3472 = vmax.f32 %v3336, %v3438
        %v3473 = vmax.f32 %v3337, %v3439
        %v3474 = vmax.f32 %v3338, %v3440
        %v3475 = vmax.f32 %v3339, %v3441
        %v3476 = vmax.f32 %v3340, %v3442
        %v3477 = vld [vmem:[%s39] sm:$0xff]
        %v3478 = vld [vmem:[%s39 + $0x8] sm:$0xf]
        %v3479 = vld [vmem:[%s39 + $0xc] sm:$0xff]
        %v3480 = vld [vmem:[%s39 + $0x14] sm:$0xf]
        %v3481 = vld [vmem:[%s39 + $0x18] sm:$0xff]
        %v3482 = vld [vmem:[%s39 + $0x20] sm:$0xf]
        %v3483 = vld [vmem:[%s39 + $0x24] sm:$0xff]
        %v3484 = vld [vmem:[%s39 + $0x2c] sm:$0xf]
        %v3485 = vld [vmem:[%s39 + $0x30] sm:$0xff]
        %v3486 = vld [vmem:[%s39 + $0x38] sm:$0xf]
        %v3487 = vld [vmem:[%s39 + $0x3c] sm:$0xff]
        %v3488 = vld [vmem:[%s39 + $0x44] sm:$0xf]
        %v3489 = vld [vmem:[%s39 + $0x48] sm:$0xff]
        %v3490 = vld [vmem:[%s39 + $0x50] sm:$0xf]
        %v3491 = vld [vmem:[%s39 + $0x54] sm:$0xff]
        %v3492 = vld [vmem:[%s39 + $0x5c] sm:$0xf]
        %v3493 = vld [vmem:[%s39 + $0x60] sm:$0xff]
        %v3494 = vld [vmem:[%s39 + $0x68] sm:$0xf]
        %v3495 = vld [vmem:[%s39 + $0x6c] sm:$0xff]
        %v3496 = vld [vmem:[%s39 + $0x74] sm:$0xf]
        %v3497 = vld [vmem:[%s39 + $0x78] sm:$0xff]
        %v3498 = vld [vmem:[%s39 + $0x80] sm:$0xf]
        %v3499 = vld [vmem:[%s39 + $0x84] sm:$0xff]
        %v3500 = vld [vmem:[%s39 + $0x8c] sm:$0xf]
        %v3501 = vld [vmem:[%s39 + $0x90] sm:$0x33]
        %v3502 = vld [vmem:[%s39 + $0x98] sm:$0x3]
        %v3503 = vpack.c.bf16 %v3444, %v3443
        %v3504 = vpack.c.bf16 %v3446, %v3445
        %v3505 = vpack.c.bf16 %v3448, %v3447
        %v3506 = vpack.c.bf16 %v3450, %v3449
        %v3507 = vpack.c.bf16 %v3452, %v3451
        %v3508 = vpack.c.bf16 %v3454, %v3453
        %v3509 = vpack.c.bf16 %v3456, %v3455
        %v3510 = vpack.c.bf16 %v3458, %v3457
        %v3511 = vpack.c.bf16 %v3460, %v3459
        %v3512 = vpack.c.bf16 %v3462, %v3461
        %v3513 = vpack.c.bf16 %v3464, %v3463
        %v3514 = vpack.c.bf16 %v3466, %v3465
        %v3515 = vpack.c.bf16 %v3468, %v3467
        %v3516 = vpack.c.bf16 %v3470, %v3469
        %v3517 = vpack.c.bf16 %v3472, %v3471
        %v3518 = vpack.c.bf16 %v3474, %v3473
        %v3519 = vpack.c.bf16 %v3476, %v3475
        %v3546 = vunpack.c.l.b16 %v3477
        %v3547 = vunpack.c.h.b16 %v3477
        %v3548 = vunpack.c.l.b16 %v3478
        %v3549 = vunpack.c.l.b16 %v3479
        %v3550 = vunpack.c.h.b16 %v3479
        %v3551 = vunpack.c.l.b16 %v3480
        %v3552 = vunpack.c.l.b16 %v3481
        %v3553 = vunpack.c.h.b16 %v3481
        %v3554 = vunpack.c.l.b16 %v3482
        %v3555 = vunpack.c.l.b16 %v3483
        %v3556 = vunpack.c.h.b16 %v3483
        %v3557 = vunpack.c.l.b16 %v3484
        %v3558 = vunpack.c.l.b16 %v3485
        %v3559 = vunpack.c.h.b16 %v3485
        %v3560 = vunpack.c.l.b16 %v3486
        %v3561 = vunpack.c.l.b16 %v3487
        %v3562 = vunpack.c.h.b16 %v3487
        %v3563 = vunpack.c.l.b16 %v3488
        %v3564 = vunpack.c.l.b16 %v3489
        %v3565 = vunpack.c.h.b16 %v3489
        %v3566 = vunpack.c.l.b16 %v3490
        %v3567 = vunpack.c.l.b16 %v3491
        %v3568 = vunpack.c.h.b16 %v3491
        %v3569 = vunpack.c.l.b16 %v3492
        %v3570 = vunpack.c.l.b16 %v3493
        %v3571 = vunpack.c.h.b16 %v3493
        %v3572 = vunpack.c.l.b16 %v3494
        %v3573 = vunpack.c.l.b16 %v3495
        %v3574 = vunpack.c.h.b16 %v3495
        %v3575 = vunpack.c.l.b16 %v3496
        %v3576 = vunpack.c.l.b16 %v3497
        %v3577 = vunpack.c.h.b16 %v3497
        %v3578 = vunpack.c.l.b16 %v3498
        %v3579 = vunpack.c.l.b16 %v3499
        %v3580 = vunpack.c.h.b16 %v3499
        %v3581 = vunpack.c.l.b16 %v3500
        %v3582 = vunpack.c.l.b16 %v3501
        %v3583 = vunpack.c.h.b16 %v3501
        %v3584 = vunpack.c.l.b16 %v3502
        %v3585 = vpack.c.b16 %v3549, %v3546
        %v3586 = vpack.c.b16 %v3550, %v3547
        %v3587 = vpack.c.b16 %v3551, %v3548
        %v3588 = vpack.c.b16 %v3555, %v3552
        %v3589 = vpack.c.b16 %v3556, %v3553
        %v3590 = vpack.c.b16 %v3557, %v3554
        %v3591 = vpack.c.b16 %v3561, %v3558
        %v3592 = vpack.c.b16 %v3562, %v3559
        %v3593 = vpack.c.b16 %v3563, %v3560
        %v3594 = vpack.c.b16 %v3567, %v3564
        %v3595 = vpack.c.b16 %v3568, %v3565
        %v3596 = vpack.c.b16 %v3569, %v3566
        %v3597 = vpack.c.b16 %v3573, %v3570
        %v3598 = vpack.c.b16 %v3574, %v3571
        %v3599 = vpack.c.b16 %v3575, %v3572
        %v3600 = vpack.c.b16 %v3579, %v3576
        %v3601 = vpack.c.b16 %v3580, %v3577
        %v3602 = vpack.c.b16 %v3581, %v3578
        %v3603 = vpack.c.b16 %v3582, %v3582
        %v3604 = vpack.c.b16 %v3583, %v3583
        %v3605 = vpack.c.b16 %v3584, %v3584
        %vm3620 = vcmask 89088
        %v3622 = vsel %vm3620, %v3587, 0
        %v3625 = vsel %vm3620, %v3590, 0
        %v3628 = vsel %vm3620, %v3593, 0
        %v3631 = vsel %vm3620, %v3596, 0
        %v3634 = vsel %vm3620, %v3599, 0
        %v3637 = vsel %vm3620, %v3602, 0
        %v3640 = vsel %vm3620, %v3605, 0
        %vm3642 = vcmask 1044480
        %vm3643 = vcmask 1045504
        %v3644 = vsel %vm3642, 4294967295, 65535
        %v3645 = vsel %vm3643, %v3644, 0
        %v3647 = vand.u32 %v3519, %v3645
        %3649 = vmatpush.bf16.msra.mxu0 %v3510
        %3650 = vmatpush.bf16.msra.mxu0 %v3509
        %3651 = vmatpush.bf16.msra.mxu0 %v3508
        %3652 = vmatpush.bf16.msra.mxu0 %v3507
        %3653 = vmatpush.bf16.msra.mxu0 %v3506
        %3654 = vmatpush.bf16.msra.mxu0 %v3505
        %3655 = vmatpush.bf16.msra.mxu0 %v3504
        %3656 = vmatpush.bf16.msra.mxu0 %v3503
        %3657 = vmatmul.bf16.gmra.mxu0 %v3585
        %v3658 = vpop.f32.mrf.mxu0
        %v3659 = vadd.f32 0.0, %v3658
        %v3660 = vpop.f32.mrf.mxu0
        %v3661 = vadd.f32 0.0, %v3660
        %3662 = vmatmul.bf16.gmra.mxu0 %v3588
        %v3663 = vpop.f32.mrf.mxu0
        %v3664 = vadd.f32 0.0, %v3663
        %v3665 = vpop.f32.mrf.mxu0
        %v3666 = vadd.f32 0.0, %v3665
        %3667 = vmatmul.bf16.gmra.mxu0 %v3591
        %v3668 = vpop.f32.mrf.mxu0
        %v3669 = vadd.f32 0.0, %v3668
        %v3670 = vpop.f32.mrf.mxu0
        %v3671 = vadd.f32 0.0, %v3670
        %3672 = vmatmul.bf16.gmra.mxu0 %v3594
        %v3673 = vpop.f32.mrf.mxu0
        %v3674 = vadd.f32 0.0, %v3673
        %v3675 = vpop.f32.mrf.mxu0
        %v3676 = vadd.f32 0.0, %v3675
        %3677 = vmatmul.bf16.gmra.mxu0 %v3597
        %v3678 = vpop.f32.mrf.mxu0
        %v3679 = vadd.f32 0.0, %v3678
        %v3680 = vpop.f32.mrf.mxu0
        %v3681 = vadd.f32 0.0, %v3680
        %3682 = vmatmul.bf16.gmra.mxu0 %v3600
        %v3683 = vpop.f32.mrf.mxu0
        %v3684 = vadd.f32 0.0, %v3683
        %v3685 = vpop.f32.mrf.mxu0
        %v3686 = vadd.f32 0.0, %v3685
        %3687 = vmatmul.bf16.gmra.mxu0 %v3603
        %v3688 = vpop.f32.mrf.mxu0
        %v3689 = vadd.f32 0.0, %v3688
        %v3690 = vpop.f32.mrf.mxu0
        %3691 = vdwg.mxu0
        %3692 = vmatpush.bf16.msra.mxu0 %v3518
        %3693 = vmatpush.bf16.msra.mxu0 %v3517
        %3694 = vmatpush.bf16.msra.mxu0 %v3516
        %3695 = vmatpush.bf16.msra.mxu0 %v3515
        %3696 = vmatpush.bf16.msra.mxu0 %v3514
        %3697 = vmatpush.bf16.msra.mxu0 %v3513
        %3698 = vmatpush.bf16.msra.mxu0 %v3512
        %3699 = vmatpush.bf16.msra.mxu0 %v3511
        %3700 = vmatmul.bf16.gmra.mxu0 %v3586
        %v3701 = vpop.f32.mrf.mxu0
        %v3702 = vadd.f32 %v3659, %v3701
        %v3703 = vpop.f32.mrf.mxu0
        %v3704 = vadd.f32 %v3661, %v3703
        %3705 = vmatmul.bf16.gmra.mxu0 %v3589
        %v3706 = vpop.f32.mrf.mxu0
        %v3707 = vadd.f32 %v3664, %v3706
        %v3708 = vpop.f32.mrf.mxu0
        %v3709 = vadd.f32 %v3666, %v3708
        %3710 = vmatmul.bf16.gmra.mxu0 %v3592
        %v3711 = vpop.f32.mrf.mxu0
        %v3712 = vadd.f32 %v3669, %v3711
        %v3713 = vpop.f32.mrf.mxu0
        %v3714 = vadd.f32 %v3671, %v3713
        %3715 = vmatmul.bf16.gmra.mxu0 %v3595
        %v3716 = vpop.f32.mrf.mxu0
        %v3717 = vadd.f32 %v3674, %v3716
        %v3718 = vpop.f32.mrf.mxu0
        %v3719 = vadd.f32 %v3676, %v3718
        %3720 = vmatmul.bf16.gmra.mxu0 %v3598
        %v3721 = vpop.f32.mrf.mxu0
        %v3722 = vadd.f32 %v3679, %v3721
        %v3723 = vpop.f32.mrf.mxu0
        %v3724 = vadd.f32 %v3681, %v3723
        %3725 = vmatmul.bf16.gmra.mxu0 %v3601
        %v3726 = vpop.f32.mrf.mxu0
        %v3727 = vadd.f32 %v3684, %v3726
        %v3728 = vpop.f32.mrf.mxu0
        %v3729 = vadd.f32 %v3686, %v3728
        %3730 = vmatmul.bf16.gmra.mxu0 %v3604
        %v3731 = vpop.f32.mrf.mxu0
        %v3732 = vadd.f32 %v3689, %v3731
        %v3733 = vpop.f32.mrf.mxu0
        %3734 = vdwg.mxu0
        %3735 = vmatpush.bf16.msra.mxu0 0
        %3736 = vmatpush.bf16.msra.mxu0 0
        %3737 = vmatpush.bf16.msra.mxu0 0
        %3738 = vmatpush.bf16.msra.mxu0 0
        %3739 = vmatpush.bf16.msra.mxu0 0
        %3740 = vmatpush.bf16.msra.mxu0 0
        %3741 = vmatpush.bf16.msra.mxu0 0
        %3742 = vmatpush.bf16.msra.mxu0 %v3647
        %3743 = vmatmul.bf16.gmra.mxu0 %v3622
        %v3744 = vpop.f32.mrf.mxu0
        %v3745 = vadd.f32 %v3702, %v3744
        %v3746 = vpop.f32.mrf.mxu0
        %v3747 = vadd.f32 %v3704, %v3746
        %3748 = vmatmul.bf16.gmra.mxu0 %v3625
        %v3749 = vpop.f32.mrf.mxu0
        %v3750 = vadd.f32 %v3707, %v3749
        %v3751 = vpop.f32.mrf.mxu0
        %v3752 = vadd.f32 %v3709, %v3751
        %3753 = vmatmul.bf16.gmra.mxu0 %v3628
        %v3754 = vpop.f32.mrf.mxu0
        %v3755 = vadd.f32 %v3712, %v3754
        %v3756 = vpop.f32.mrf.mxu0
        %v3757 = vadd.f32 %v3714, %v3756
        %3758 = vmatmul.bf16.gmra.mxu0 %v3631
        %v3759 = vpop.f32.mrf.mxu0
        %v3760 = vadd.f32 %v3717, %v3759
        %v3761 = vpop.f32.mrf.mxu0
        %v3762 = vadd.f32 %v3719, %v3761
        %3763 = vmatmul.bf16.gmra.mxu0 %v3634
        %v3764 = vpop.f32.mrf.mxu0
        %v3765 = vadd.f32 %v3722, %v3764
        %v3766 = vpop.f32.mrf.mxu0
        %v3767 = vadd.f32 %v3724, %v3766
        %3768 = vmatmul.bf16.gmra.mxu0 %v3637
        %v3769 = vpop.f32.mrf.mxu0
        %v3770 = vadd.f32 %v3727, %v3769
        %v3771 = vpop.f32.mrf.mxu0
        %v3772 = vadd.f32 %v3729, %v3771
        %3773 = vmatmul.bf16.gmra.mxu0 %v3640
        %v3774 = vpop.f32.mrf.mxu0
        %v3775 = vadd.f32 %v3732, %v3774
        %v3776 = vpop.f32.mrf.mxu0
        %3777 = vdwg.mxu0
        %3778 = vst.msk [vmem:[#allocation2] sm:$0xff] %vm3201, %v3745
        %3779 = vst.msk [vmem:[#allocation2 + $0x8] sm:$0xff] %vm3201, %v3747
        %3780 = vst.msk [vmem:[#allocation2 + $0x10] sm:$0xff] %vm3201, %v3750
        %3781 = vst.msk [vmem:[#allocation2 + $0x18] sm:$0xff] %vm3201, %v3752
        %3782 = vst.msk [vmem:[#allocation2 + $0x20] sm:$0xff] %vm3201, %v3755
        %3783 = vst.msk [vmem:[#allocation2 + $0x28] sm:$0xff] %vm3201, %v3757
        %3784 = vst.msk [vmem:[#allocation2 + $0x30] sm:$0xff] %vm3201, %v3760
        %3785 = vst.msk [vmem:[#allocation2 + $0x38] sm:$0xff] %vm3201, %v3762
        %3786 = vst.msk [vmem:[#allocation2 + $0x40] sm:$0xff] %vm3201, %v3765
        %3787 = vst.msk [vmem:[#allocation2 + $0x48] sm:$0xff] %vm3201, %v3767
        %3788 = vst.msk [vmem:[#allocation2 + $0x50] sm:$0xff] %vm3201, %v3770
        %3789 = vst.msk [vmem:[#allocation2 + $0x58] sm:$0xff] %vm3201, %v3772
        %vm3790 = vcmask 125952
        %3791 = vst.msk [vmem:[#allocation2 + $0x60] sm:$0xf] %vm3790, %v3775
        %v3792 = vld [vmem:[#allocation2] sm:$0xff]
        %v3793 = vld [vmem:[#allocation2 + $0x8] sm:$0xff]
        %v3794 = vld [vmem:[#allocation2 + $0x10] sm:$0xff]
        %v3795 = vld [vmem:[#allocation2 + $0x18] sm:$0xff]
        %v3796 = vld [vmem:[#allocation2 + $0x20] sm:$0xff]
        %v3797 = vld [vmem:[#allocation2 + $0x28] sm:$0xff]
        %v3798 = vld [vmem:[#allocation2 + $0x30] sm:$0xff]
        %v3799 = vld [vmem:[#allocation2 + $0x38] sm:$0xff]
        %v3800 = vld [vmem:[#allocation2 + $0x40] sm:$0xff]
        %v3801 = vld [vmem:[#allocation2 + $0x48] sm:$0x3f]
        %v3802 = vpack.c.bf16 %v3793, %v3792
        %v3803 = vpack.c.bf16 %v3795, %v3794
        %v3804 = vpack.c.bf16 %v3797, %v3796
        %v3805 = vpack.c.bf16 %v3799, %v3798
        %v3806 = vpack.c.bf16 %v3801, %v3800
        %v3807 = vld [vmem:[%s7] sm:$0xf]
        %v3808 = vld [vmem:[%s7 + $0x4] sm:$0xf]
        %v3809 = vld [vmem:[#allocation2 + $0x1] sm:$0xff]
        %v3810 = vld [vmem:[#allocation2 + $0x9] sm:$0xff]
        %v3811 = vld [vmem:[#allocation2 + $0x11] sm:$0xff]
        %v3812 = vld [vmem:[#allocation2 + $0x19] sm:$0xff]
        %v3813 = vld [vmem:[#allocation2 + $0x21] sm:$0xff]
        %v3814 = vld [vmem:[#allocation2 + $0x29] sm:$0xff]
        %v3815 = vld [vmem:[#allocation2 + $0x31] sm:$0xff]
        %v3816 = vld [vmem:[#allocation2 + $0x39] sm:$0xff]
        %v3817 = vld [vmem:[#allocation2 + $0x41] sm:$0xff]
        %v3818 = vld [vmem:[#allocation2 + $0x49] sm:$0x3f]
        %v3819 = vpack.c.bf16 %v3810, %v3809
        %v3820 = vpack.c.bf16 %v3812, %v3811
        %v3821 = vpack.c.bf16 %v3814, %v3813
        %v3822 = vpack.c.bf16 %v3816, %v3815
        %v3823 = vpack.c.bf16 %v3818, %v3817
        %s3824 = scalar_lea.vmem %s7, 8
        %v3825 = vld [vmem:[%s3824] sm:$0xf]
        %v3826 = vld [vmem:[%s3824 + $0x4] sm:$0xf]
        %v3829 = vunpack.c.l.b16 %v3825
        %v3830 = vunpack.c.l.b16 %v3826
        %v3831 = vpack.c.b16 %v3830, %v3829
        %v3834 = vsel %vm3201, %v3819, 0
        %v3837 = vsel %vm3201, %v3820, 0
        %v3840 = vsel %vm3201, %v3821, 0
        %v3843 = vsel %vm3201, %v3822, 0
        %v3846 = vsel %vm3201, %v3823, 0
        %3848 = vmatpush.bf16.msra.mxu0 0
        %3849 = vmatpush.bf16.msra.mxu0 0
        %3850 = vmatpush.bf16.msra.mxu0 0
        %3851 = vmatpush.bf16.msra.mxu0 0
        %3852 = vmatpush.bf16.msra.mxu0 0
        %3853 = vmatpush.bf16.msra.mxu0 0
        %3854 = vmatpush.bf16.msra.mxu0 0
        %3855 = vmatpush.bf16.msra.mxu0 %v3831
        %3856 = vmatmul.bf16.gmra.mxu0 %v3834
        %v3857 = vpop.f32.mrf.mxu0
        %v3858 = vadd.f32 0.0, %v3857
        %v3859 = vpop.f32.mrf.mxu0
        %v3860 = vadd.f32 0.0, %v3859
        %3861 = vmatmul.bf16.gmra.mxu0 %v3837
        %v3862 = vpop.f32.mrf.mxu0
        %v3863 = vadd.f32 0.0, %v3862
        %v3864 = vpop.f32.mrf.mxu0
        %v3865 = vadd.f32 0.0, %v3864
        %3866 = vmatmul.bf16.gmra.mxu0 %v3840
        %v3867 = vpop.f32.mrf.mxu0
        %v3868 = vadd.f32 0.0, %v3867
        %v3869 = vpop.f32.mrf.mxu0
        %v3870 = vadd.f32 0.0, %v3869
        %3871 = vmatmul.bf16.gmra.mxu0 %v3843
        %v3872 = vpop.f32.mrf.mxu0
        %v3873 = vadd.f32 0.0, %v3872
        %v3874 = vpop.f32.mrf.mxu0
        %v3875 = vadd.f32 0.0, %v3874
        %3876 = vmatmul.bf16.gmra.mxu0 %v3846
        %v3877 = vpop.f32.mrf.mxu0
        %v3878 = vadd.f32 0.0, %v3877
        %v3879 = vpop.f32.mrf.mxu0
        %v3880 = vadd.f32 0.0, %v3879
        %3881 = vdwg.mxu0
        %v3884 = vunpack.c.l.b16 %v3807
        %v3885 = vunpack.c.l.b16 %v3808
        %v3886 = vpack.c.b16 %v3885, %v3884
        %v3889 = vsel %vm3201, %v3802, 0
        %v3892 = vsel %vm3201, %v3803, 0
        %v3895 = vsel %vm3201, %v3804, 0
        %v3898 = vsel %vm3201, %v3805, 0
        %v3901 = vsel %vm3201, %v3806, 0
        %3903 = vmatpush.bf16.msra.mxu0 0
        %3904 = vmatpush.bf16.msra.mxu0 0
        %3905 = vmatpush.bf16.msra.mxu0 0
        %3906 = vmatpush.bf16.msra.mxu0 0
        %3907 = vmatpush.bf16.msra.mxu0 0
        %3908 = vmatpush.bf16.msra.mxu0 0
        %3909 = vmatpush.bf16.msra.mxu0 0
        %3910 = vmatpush.bf16.msra.mxu0 %v3886
        %3911 = vmatmul.bf16.gmra.mxu0 %v3889
        %v3912 = vpop.f32.mrf.mxu0
        %v3913 = vadd.f32 %v3858, %v3912
        %v3914 = vpop.f32.mrf.mxu0
        %v3915 = vadd.f32 %v3860, %v3914
        %3916 = vmatmul.bf16.gmra.mxu0 %v3892
        %v3917 = vpop.f32.mrf.mxu0
        %v3918 = vadd.f32 %v3863, %v3917
        %v3919 = vpop.f32.mrf.mxu0
        %v3920 = vadd.f32 %v3865, %v3919
        %3921 = vmatmul.bf16.gmra.mxu0 %v3895
        %v3922 = vpop.f32.mrf.mxu0
        %v3923 = vadd.f32 %v3868, %v3922
        %v3924 = vpop.f32.mrf.mxu0
        %v3925 = vadd.f32 %v3870, %v3924
        %3926 = vmatmul.bf16.gmra.mxu0 %v3898
        %v3927 = vpop.f32.mrf.mxu0
        %v3928 = vadd.f32 %v3873, %v3927
        %v3929 = vpop.f32.mrf.mxu0
        %v3930 = vadd.f32 %v3875, %v3929
        %3931 = vmatmul.bf16.gmra.mxu0 %v3901
        %v3932 = vpop.f32.mrf.mxu0
        %v3933 = vadd.f32 %v3878, %v3932
        %v3934 = vpop.f32.mrf.mxu0
        %v3935 = vadd.f32 %v3880, %v3934
        %3936 = vdwg.mxu0
        %v3937 = vld [vmem:[#allocation2 + $0x2] sm:$0xff]
        %v3938 = vld [vmem:[#allocation2 + $0xa] sm:$0xff]
        %v3939 = vld [vmem:[#allocation2 + $0x12] sm:$0xff]
        %v3940 = vld [vmem:[#allocation2 + $0x1a] sm:$0xff]
        %v3941 = vld [vmem:[#allocation2 + $0x22] sm:$0xff]
        %v3942 = vld [vmem:[#allocation2 + $0x2a] sm:$0xff]
        %v3943 = vld [vmem:[#allocation2 + $0x32] sm:$0xff]
        %v3944 = vld [vmem:[#allocation2 + $0x3a] sm:$0xff]
        %v3945 = vld [vmem:[#allocation2 + $0x42] sm:$0xff]
        %v3946 = vld [vmem:[#allocation2 + $0x4a] sm:$0x3f]
        %v3947 = vpack.c.bf16 %v3938, %v3937
        %v3948 = vpack.c.bf16 %v3940, %v3939
        %v3949 = vpack.c.bf16 %v3942, %v3941
        %v3950 = vpack.c.bf16 %v3944, %v3943
        %v3951 = vpack.c.bf16 %v3946, %v3945
        %s3952 = scalar_lea.vmem %s7, 16
        %v3953 = vld [vmem:[%s3952] sm:$0xf]
        %v3954 = vld [vmem:[%s3952 + $0x4] sm:$0xf]
        %v3957 = vunpack.c.l.b16 %v3953
        %v3958 = vunpack.c.l.b16 %v3954
        %v3959 = vpack.c.b16 %v3958, %v3957
        %v3962 = vsel %vm3201, %v3947, 0
        %v3965 = vsel %vm3201, %v3948, 0
        %v3968 = vsel %vm3201, %v3949, 0
        %v3971 = vsel %vm3201, %v3950, 0
        %v3974 = vsel %vm3201, %v3951, 0
        %3976 = vmatpush.bf16.msra.mxu0 0
        %3977 = vmatpush.bf16.msra.mxu0 0
        %3978 = vmatpush.bf16.msra.mxu0 0
        %3979 = vmatpush.bf16.msra.mxu0 0
        %3980 = vmatpush.bf16.msra.mxu0 0
        %3981 = vmatpush.bf16.msra.mxu0 0
        %3982 = vmatpush.bf16.msra.mxu0 0
        %3983 = vmatpush.bf16.msra.mxu0 %v3959
        %3984 = vmatmul.bf16.gmra.mxu0 %v3962
        %v3985 = vpop.f32.mrf.mxu0
        %v3986 = vadd.f32 0.0, %v3985
        %v3987 = vpop.f32.mrf.mxu0
        %v3988 = vadd.f32 0.0, %v3987
        %3989 = vmatmul.bf16.gmra.mxu0 %v3965
        %v3990 = vpop.f32.mrf.mxu0
        %v3991 = vadd.f32 0.0, %v3990
        %v3992 = vpop.f32.mrf.mxu0
        %v3993 = vadd.f32 0.0, %v3992
        %3994 = vmatmul.bf16.gmra.mxu0 %v3968
        %v3995 = vpop.f32.mrf.mxu0
        %v3996 = vadd.f32 0.0, %v3995
        %v3997 = vpop.f32.mrf.mxu0
        %v3998 = vadd.f32 0.0, %v3997
        %3999 = vmatmul.bf16.gmra.mxu0 %v3971
        %v4000 = vpop.f32.mrf.mxu0
        %v4001 = vadd.f32 0.0, %v4000
        %v4002 = vpop.f32.mrf.mxu0
        %v4003 = vadd.f32 0.0, %v4002
        %4004 = vmatmul.bf16.gmra.mxu0 %v3974
        %v4005 = vpop.f32.mrf.mxu0
        %v4006 = vadd.f32 0.0, %v4005
        %v4007 = vpop.f32.mrf.mxu0
        %v4008 = vadd.f32 0.0, %v4007
        %4009 = vdwg.mxu0
        %v4010 = vadd.f32 %v3913, %v3986
        %v4011 = vadd.f32 %v3915, %v3988
        %v4012 = vadd.f32 %v3918, %v3991
        %v4013 = vadd.f32 %v3920, %v3993
        %v4014 = vadd.f32 %v3923, %v3996
        %v4015 = vadd.f32 %v3925, %v3998
        %v4016 = vadd.f32 %v3928, %v4001
        %v4017 = vadd.f32 %v3930, %v4003
        %v4018 = vadd.f32 %v3933, %v4006
        %v4019 = vadd.f32 %v3935, %v4008
        %v4020 = vld [vmem:[#allocation2 + $0xa] sm:$0xff]
        %v4021 = vld [vmem:[#allocation2 + $0x12] sm:$0xff]
        %v4022 = vld [vmem:[#allocation2 + $0x1a] sm:$0xff]
        %v4023 = vld [vmem:[#allocation2 + $0x22] sm:$0xff]
        %v4024 = vld [vmem:[#allocation2 + $0x2a] sm:$0xff]
        %v4025 = vld [vmem:[#allocation2 + $0x32] sm:$0xff]
        %v4026 = vld [vmem:[#allocation2 + $0x3a] sm:$0xff]
        %v4027 = vld [vmem:[#allocation2 + $0x42] sm:$0xff]
        %v4028 = vld [vmem:[#allocation2 + $0x4a] sm:$0xff]
        %v4029 = vld [vmem:[#allocation2 + $0x52] sm:$0x3f]
        %v4030 = vpack.c.bf16 %v4021, %v4020
        %v4031 = vpack.c.bf16 %v4023, %v4022
        %v4032 = vpack.c.bf16 %v4025, %v4024
        %v4033 = vpack.c.bf16 %v4027, %v4026
        %v4034 = vpack.c.bf16 %v4029, %v4028
        %s4035 = scalar_lea.vmem %s7, 24
        %v4036 = vld [vmem:[%s4035] sm:$0xf]
        %v4037 = vld [vmem:[%s4035 + $0x4] sm:$0xf]
        %v4040 = vunpack.c.l.b16 %v4036
        %v4041 = vunpack.c.l.b16 %v4037
        %v4042 = vpack.c.b16 %v4041, %v4040
        %v4045 = vsel %vm3201, %v4030, 0
        %v4048 = vsel %vm3201, %v4031, 0
        %v4051 = vsel %vm3201, %v4032, 0
        %v4054 = vsel %vm3201, %v4033, 0
        %v4057 = vsel %vm3201, %v4034, 0
        %4059 = vmatpush.bf16.msra.mxu0 0
        %4060 = vmatpush.bf16.msra.mxu0 0
        %4061 = vmatpush.bf16.msra.mxu0 0
        %4062 = vmatpush.bf16.msra.mxu0 0
        %4063 = vmatpush.bf16.msra.mxu0 0
        %4064 = vmatpush.bf16.msra.mxu0 0
        %4065 = vmatpush.bf16.msra.mxu0 0
        %4066 = vmatpush.bf16.msra.mxu0 %v4042
        %4067 = vmatmul.bf16.gmra.mxu0 %v4045
        %v4068 = vpop.f32.mrf.mxu0
        %v4069 = vadd.f32 0.0, %v4068
        %v4070 = vpop.f32.mrf.mxu0
        %v4071 = vadd.f32 0.0, %v4070
        %4072 = vmatmul.bf16.gmra.mxu0 %v4048
        %v4073 = vpop.f32.mrf.mxu0
        %v4074 = vadd.f32 0.0, %v4073
        %v4075 = vpop.f32.mrf.mxu0
        %v4076 = vadd.f32 0.0, %v4075
        %4077 = vmatmul.bf16.gmra.mxu0 %v4051
        %v4078 = vpop.f32.mrf.mxu0
        %v4079 = vadd.f32 0.0, %v4078
        %v4080 = vpop.f32.mrf.mxu0
        %v4081 = vadd.f32 0.0, %v4080
        %4082 = vmatmul.bf16.gmra.mxu0 %v4054
        %v4083 = vpop.f32.mrf.mxu0
        %v4084 = vadd.f32 0.0, %v4083
        %v4085 = vpop.f32.mrf.mxu0
        %v4086 = vadd.f32 0.0, %v4085
        %4087 = vmatmul.bf16.gmra.mxu0 %v4057
        %v4088 = vpop.f32.mrf.mxu0
        %v4089 = vadd.f32 0.0, %v4088
        %v4090 = vpop.f32.mrf.mxu0
        %v4091 = vadd.f32 0.0, %v4090
        %4092 = vdwg.mxu0
        %v4093 = vadd.f32 %v4010, %v4069
        %v4094 = vadd.f32 %v4011, %v4071
        %v4095 = vadd.f32 %v4012, %v4074
        %v4096 = vadd.f32 %v4013, %v4076
        %v4097 = vadd.f32 %v4014, %v4079
        %v4098 = vadd.f32 %v4015, %v4081
        %v4099 = vadd.f32 %v4016, %v4084
        %v4100 = vadd.f32 %v4017, %v4086
        %v4101 = vadd.f32 %v4018, %v4089
        %v4102 = vadd.f32 %v4019, %v4091
        %v4103 = vld [vmem:[#allocation2 + $0xb] sm:$0xff]
        %v4104 = vld [vmem:[#allocation2 + $0x13] sm:$0xff]
        %v4105 = vld [vmem:[#allocation2 + $0x1b] sm:$0xff]
        %v4106 = vld [vmem:[#allocation2 + $0x23] sm:$0xff]
        %v4107 = vld [vmem:[#allocation2 + $0x2b] sm:$0xff]
        %v4108 = vld [vmem:[#allocation2 + $0x33] sm:$0xff]
        %v4109 = vld [vmem:[#allocation2 + $0x3b] sm:$0xff]
        %v4110 = vld [vmem:[#allocation2 + $0x43] sm:$0xff]
        %v4111 = vld [vmem:[#allocation2 + $0x4b] sm:$0xff]
        %v4112 = vld [vmem:[#allocation2 + $0x53] sm:$0x3f]
        %v4113 = vpack.c.bf16 %v4104, %v4103
        %v4114 = vpack.c.bf16 %v4106, %v4105
        %v4115 = vpack.c.bf16 %v4108, %v4107
        %v4116 = vpack.c.bf16 %v4110, %v4109
        %v4117 = vpack.c.bf16 %v4112, %v4111
        %s4118 = scalar_lea.vmem %s7, 32
        %v4119 = vld [vmem:[%s4118] sm:$0xf]
        %v4120 = vld [vmem:[%s4118 + $0x4] sm:$0xf]
        %v4123 = vunpack.c.l.b16 %v4119
        %v4124 = vunpack.c.l.b16 %v4120
        %v4125 = vpack.c.b16 %v4124, %v4123
        %v4128 = vsel %vm3201, %v4113, 0
        %v4131 = vsel %vm3201, %v4114, 0
        %v4134 = vsel %vm3201, %v4115, 0
        %v4137 = vsel %vm3201, %v4116, 0
        %v4140 = vsel %vm3201, %v4117, 0
        %4142 = vmatpush.bf16.msra.mxu0 0
        %4143 = vmatpush.bf16.msra.mxu0 0
        %4144 = vmatpush.bf16.msra.mxu0 0
        %4145 = vmatpush.bf16.msra.mxu0 0
        %4146 = vmatpush.bf16.msra.mxu0 0
        %4147 = vmatpush.bf16.msra.mxu0 0
        %4148 = vmatpush.bf16.msra.mxu0 0
        %4149 = vmatpush.bf16.msra.mxu0 %v4125
        %4150 = vmatmul.bf16.gmra.mxu0 %v4128
        %v4151 = vpop.f32.mrf.mxu0
        %v4152 = vadd.f32 0.0, %v4151
        %v4153 = vpop.f32.mrf.mxu0
        %v4154 = vadd.f32 0.0, %v4153
        %4155 = vmatmul.bf16.gmra.mxu0 %v4131
        %v4156 = vpop.f32.mrf.mxu0
        %v4157 = vadd.f32 0.0, %v4156
        %v4158 = vpop.f32.mrf.mxu0
        %v4159 = vadd.f32 0.0, %v4158
        %4160 = vmatmul.bf16.gmra.mxu0 %v4134
        %v4161 = vpop.f32.mrf.mxu0
        %v4162 = vadd.f32 0.0, %v4161
        %v4163 = vpop.f32.mrf.mxu0
        %v4164 = vadd.f32 0.0, %v4163
        %4165 = vmatmul.bf16.gmra.mxu0 %v4137
        %v4166 = vpop.f32.mrf.mxu0
        %v4167 = vadd.f32 0.0, %v4166
        %v4168 = vpop.f32.mrf.mxu0
        %v4169 = vadd.f32 0.0, %v4168
        %4170 = vmatmul.bf16.gmra.mxu0 %v4140
        %v4171 = vpop.f32.mrf.mxu0
        %v4172 = vadd.f32 0.0, %v4171
        %v4173 = vpop.f32.mrf.mxu0
        %v4174 = vadd.f32 0.0, %v4173
        %4175 = vdwg.mxu0
        %v4176 = vadd.f32 %v4093, %v4152
        %v4177 = vadd.f32 %v4094, %v4154
        %v4178 = vadd.f32 %v4095, %v4157
        %v4179 = vadd.f32 %v4096, %v4159
        %v4180 = vadd.f32 %v4097, %v4162
        %v4181 = vadd.f32 %v4098, %v4164
        %v4182 = vadd.f32 %v4099, %v4167
        %v4183 = vadd.f32 %v4100, %v4169
        %v4184 = vadd.f32 %v4101, %v4172
        %v4185 = vadd.f32 %v4102, %v4174
        %v4186 = vld [vmem:[#allocation2 + $0xc] sm:$0xff]
        %v4187 = vld [vmem:[#allocation2 + $0x14] sm:$0xff]
        %v4188 = vld [vmem:[#allocation2 + $0x1c] sm:$0xff]
        %v4189 = vld [vmem:[#allocation2 + $0x24] sm:$0xff]
        %v4190 = vld [vmem:[#allocation2 + $0x2c] sm:$0xff]
        %v4191 = vld [vmem:[#allocation2 + $0x34] sm:$0xff]
        %v4192 = vld [vmem:[#allocation2 + $0x3c] sm:$0xff]
        %v4193 = vld [vmem:[#allocation2 + $0x44] sm:$0xff]
        %v4194 = vld [vmem:[#allocation2 + $0x4c] sm:$0xff]
        %v4195 = vld [vmem:[#allocation2 + $0x54] sm:$0x3f]
        %v4196 = vpack.c.bf16 %v4187, %v4186
        %v4197 = vpack.c.bf16 %v4189, %v4188
        %v4198 = vpack.c.bf16 %v4191, %v4190
        %v4199 = vpack.c.bf16 %v4193, %v4192
        %v4200 = vpack.c.bf16 %v4195, %v4194
        %s4201 = scalar_lea.vmem %s7, 40
        %v4202 = vld [vmem:[%s4201] sm:$0xf]
        %v4203 = vld [vmem:[%s4201 + $0x4] sm:$0xf]
        %v4206 = vunpack.c.l.b16 %v4202
        %v4207 = vunpack.c.l.b16 %v4203
        %v4208 = vpack.c.b16 %v4207, %v4206
        %v4211 = vsel %vm3201, %v4196, 0
        %v4214 = vsel %vm3201, %v4197, 0
        %v4217 = vsel %vm3201, %v4198, 0
        %v4220 = vsel %vm3201, %v4199, 0
        %v4223 = vsel %vm3201, %v4200, 0
        %4225 = vmatpush.bf16.msra.mxu0 0
        %4226 = vmatpush.bf16.msra.mxu0 0
        %4227 = vmatpush.bf16.msra.mxu0 0
        %4228 = vmatpush.bf16.msra.mxu0 0
        %4229 = vmatpush.bf16.msra.mxu0 0
        %4230 = vmatpush.bf16.msra.mxu0 0
        %4231 = vmatpush.bf16.msra.mxu0 0
        %4232 = vmatpush.bf16.msra.mxu0 %v4208
        %4233 = vmatmul.bf16.gmra.mxu0 %v4211
        %v4234 = vpop.f32.mrf.mxu0
        %v4235 = vadd.f32 0.0, %v4234
        %v4236 = vpop.f32.mrf.mxu0
        %v4237 = vadd.f32 0.0, %v4236
        %4238 = vmatmul.bf16.gmra.mxu0 %v4214
        %v4239 = vpop.f32.mrf.mxu0
        %v4240 = vadd.f32 0.0, %v4239
        %v4241 = vpop.f32.mrf.mxu0
        %v4242 = vadd.f32 0.0, %v4241
        %4243 = vmatmul.bf16.gmra.mxu0 %v4217
        %v4244 = vpop.f32.mrf.mxu0
        %v4245 = vadd.f32 0.0, %v4244
        %v4246 = vpop.f32.mrf.mxu0
        %v4247 = vadd.f32 0.0, %v4246
        %4248 = vmatmul.bf16.gmra.mxu0 %v4220
        %v4249 = vpop.f32.mrf.mxu0
        %v4250 = vadd.f32 0.0, %v4249
        %v4251 = vpop.f32.mrf.mxu0
        %v4252 = vadd.f32 0.0, %v4251
        %4253 = vmatmul.bf16.gmra.mxu0 %v4223
        %v4254 = vpop.f32.mrf.mxu0
        %v4255 = vadd.f32 0.0, %v4254
        %v4256 = vpop.f32.mrf.mxu0
        %v4257 = vadd.f32 0.0, %v4256
        %4258 = vdwg.mxu0
        %v4259 = vadd.f32 %v4176, %v4235
        %v4260 = vadd.f32 %v4177, %v4237
        %v4261 = vadd.f32 %v4178, %v4240
        %v4262 = vadd.f32 %v4179, %v4242
        %v4263 = vadd.f32 %v4180, %v4245
        %v4264 = vadd.f32 %v4181, %v4247
        %v4265 = vadd.f32 %v4182, %v4250
        %v4266 = vadd.f32 %v4183, %v4252
        %v4267 = vadd.f32 %v4184, %v4255
        %v4268 = vadd.f32 %v4185, %v4257
        %v4269 = vld [vmem:[#allocation2 + $0x14] sm:$0xff]
        %v4270 = vld [vmem:[#allocation2 + $0x1c] sm:$0xff]
        %v4271 = vld [vmem:[#allocation2 + $0x24] sm:$0xff]
        %v4272 = vld [vmem:[#allocation2 + $0x2c] sm:$0xff]
        %v4273 = vld [vmem:[#allocation2 + $0x34] sm:$0xff]
        %v4274 = vld [vmem:[#allocation2 + $0x3c] sm:$0xff]
        %v4275 = vld [vmem:[#allocation2 + $0x44] sm:$0xff]
        %v4276 = vld [vmem:[#allocation2 + $0x4c] sm:$0xff]
        %v4277 = vld [vmem:[#allocation2 + $0x54] sm:$0xff]
        %v4278 = vld [vmem:[#allocation2 + $0x5c] sm:$0x3f]
        %v4279 = vpack.c.bf16 %v4270, %v4269
        %v4280 = vpack.c.bf16 %v4272, %v4271
        %v4281 = vpack.c.bf16 %v4274, %v4273
        %v4282 = vpack.c.bf16 %v4276, %v4275
        %v4283 = vpack.c.bf16 %v4278, %v4277
        %s4284 = scalar_lea.vmem %s7, 48
        %v4285 = vld [vmem:[%s4284] sm:$0xf]
        %v4286 = vld [vmem:[%s4284 + $0x4] sm:$0xf]
        %v4289 = vunpack.c.l.b16 %v4285
        %v4290 = vunpack.c.l.b16 %v4286
        %v4291 = vpack.c.b16 %v4290, %v4289
        %v4294 = vsel %vm3201, %v4279, 0
        %v4297 = vsel %vm3201, %v4280, 0
        %v4300 = vsel %vm3201, %v4281, 0
        %v4303 = vsel %vm3201, %v4282, 0
        %v4306 = vsel %vm3201, %v4283, 0
        %4308 = vmatpush.bf16.msra.mxu0 0
        %4309 = vmatpush.bf16.msra.mxu0 0
        %4310 = vmatpush.bf16.msra.mxu0 0
        %4311 = vmatpush.bf16.msra.mxu0 0
        %4312 = vmatpush.bf16.msra.mxu0 0
        %4313 = vmatpush.bf16.msra.mxu0 0
        %4314 = vmatpush.bf16.msra.mxu0 0
        %4315 = vmatpush.bf16.msra.mxu0 %v4291
        %4316 = vmatmul.bf16.gmra.mxu0 %v4294
        %v4317 = vpop.f32.mrf.mxu0
        %v4318 = vadd.f32 0.0, %v4317
        %v4319 = vpop.f32.mrf.mxu0
        %v4320 = vadd.f32 0.0, %v4319
        %4321 = vmatmul.bf16.gmra.mxu0 %v4297
        %v4322 = vpop.f32.mrf.mxu0
        %v4323 = vadd.f32 0.0, %v4322
        %v4324 = vpop.f32.mrf.mxu0
        %v4325 = vadd.f32 0.0, %v4324
        %4326 = vmatmul.bf16.gmra.mxu0 %v4300
        %v4327 = vpop.f32.mrf.mxu0
        %v4328 = vadd.f32 0.0, %v4327
        %v4329 = vpop.f32.mrf.mxu0
        %v4330 = vadd.f32 0.0, %v4329
        %4331 = vmatmul.bf16.gmra.mxu0 %v4303
        %v4332 = vpop.f32.mrf.mxu0
        %v4333 = vadd.f32 0.0, %v4332
        %v4334 = vpop.f32.mrf.mxu0
        %v4335 = vadd.f32 0.0, %v4334
        %4336 = vmatmul.bf16.gmra.mxu0 %v4306
        %v4337 = vpop.f32.mrf.mxu0
        %v4338 = vadd.f32 0.0, %v4337
        %v4339 = vpop.f32.mrf.mxu0
        %v4340 = vadd.f32 0.0, %v4339
        %4341 = vdwg.mxu0
        %v4342 = vadd.f32 %v4259, %v4318
        %v4343 = vadd.f32 %v4260, %v4320
        %v4344 = vadd.f32 %v4261, %v4323
        %v4345 = vadd.f32 %v4262, %v4325
        %v4346 = vadd.f32 %v4263, %v4328
        %v4347 = vadd.f32 %v4264, %v4330
        %v4348 = vadd.f32 %v4265, %v4333
        %v4349 = vadd.f32 %v4266, %v4335
        %v4350 = vadd.f32 %v4267, %v4338
        %v4351 = vadd.f32 %v4268, %v4340
        %v4352 = vld [vmem:[#allocation2 + $0x15] sm:$0xff]
        %v4353 = vld [vmem:[#allocation2 + $0x1d] sm:$0xff]
        %v4354 = vld [vmem:[#allocation2 + $0x25] sm:$0xff]
        %v4355 = vld [vmem:[#allocation2 + $0x2d] sm:$0xff]
        %v4356 = vld [vmem:[#allocation2 + $0x35] sm:$0xff]
        %v4357 = vld [vmem:[#allocation2 + $0x3d] sm:$0xff]
        %v4358 = vld [vmem:[#allocation2 + $0x45] sm:$0xff]
        %v4359 = vld [vmem:[#allocation2 + $0x4d] sm:$0xff]
        %v4360 = vld [vmem:[#allocation2 + $0x55] sm:$0xff]
        %v4361 = vld [vmem:[#allocation2 + $0x5d] sm:$0x3f]
        %v4362 = vpack.c.bf16 %v4353, %v4352
        %v4363 = vpack.c.bf16 %v4355, %v4354
        %v4364 = vpack.c.bf16 %v4357, %v4356
        %v4365 = vpack.c.bf16 %v4359, %v4358
        %v4366 = vpack.c.bf16 %v4361, %v4360
        %s4367 = scalar_lea.vmem %s7, 56
        %v4368 = vld [vmem:[%s4367] sm:$0xf]
        %v4369 = vld [vmem:[%s4367 + $0x4] sm:$0xf]
        %v4372 = vunpack.c.l.b16 %v4368
        %v4373 = vunpack.c.l.b16 %v4369
        %v4374 = vpack.c.b16 %v4373, %v4372
        %v4377 = vsel %vm3201, %v4362, 0
        %v4380 = vsel %vm3201, %v4363, 0
        %v4383 = vsel %vm3201, %v4364, 0
        %v4386 = vsel %vm3201, %v4365, 0
        %v4389 = vsel %vm3201, %v4366, 0
        %4391 = vmatpush.bf16.msra.mxu0 0
        %4392 = vmatpush.bf16.msra.mxu0 0
        %4393 = vmatpush.bf16.msra.mxu0 0
        %4394 = vmatpush.bf16.msra.mxu0 0
        %4395 = vmatpush.bf16.msra.mxu0 0
        %4396 = vmatpush.bf16.msra.mxu0 0
        %4397 = vmatpush.bf16.msra.mxu0 0
        %4398 = vmatpush.bf16.msra.mxu0 %v4374
        %4399 = vmatmul.bf16.gmra.mxu0 %v4377
        %v4400 = vpop.f32.mrf.mxu0
        %v4401 = vadd.f32 0.0, %v4400
        %v4402 = vpop.f32.mrf.mxu0
        %v4403 = vadd.f32 0.0, %v4402
        %4404 = vmatmul.bf16.gmra.mxu0 %v4380
        %v4405 = vpop.f32.mrf.mxu0
        %v4406 = vadd.f32 0.0, %v4405
        %v4407 = vpop.f32.mrf.mxu0
        %v4408 = vadd.f32 0.0, %v4407
        %4409 = vmatmul.bf16.gmra.mxu0 %v4383
        %v4410 = vpop.f32.mrf.mxu0
        %v4411 = vadd.f32 0.0, %v4410
        %v4412 = vpop.f32.mrf.mxu0
        %v4413 = vadd.f32 0.0, %v4412
        %4414 = vmatmul.bf16.gmra.mxu0 %v4386
        %v4415 = vpop.f32.mrf.mxu0
        %v4416 = vadd.f32 0.0, %v4415
        %v4417 = vpop.f32.mrf.mxu0
        %v4418 = vadd.f32 0.0, %v4417
        %4419 = vmatmul.bf16.gmra.mxu0 %v4389
        %v4420 = vpop.f32.mrf.mxu0
        %v4421 = vadd.f32 0.0, %v4420
        %v4422 = vpop.f32.mrf.mxu0
        %v4423 = vadd.f32 0.0, %v4422
        %4424 = vdwg.mxu0
        %v4425 = vadd.f32 %v4342, %v4401
        %v4426 = vadd.f32 %v4343, %v4403
        %v4427 = vadd.f32 %v4344, %v4406
        %v4428 = vadd.f32 %v4345, %v4408
        %v4429 = vadd.f32 %v4346, %v4411
        %v4430 = vadd.f32 %v4347, %v4413
        %v4431 = vadd.f32 %v4348, %v4416
        %v4432 = vadd.f32 %v4349, %v4418
        %v4433 = vadd.f32 %v4350, %v4421
        %v4434 = vadd.f32 %v4351, %v4423
        %v4435 = vld [vmem:[#allocation2 + $0x16] sm:$0xff]
        %v4436 = vld [vmem:[#allocation2 + $0x1e] sm:$0xff]
        %v4437 = vld [vmem:[#allocation2 + $0x26] sm:$0xff]
        %v4438 = vld [vmem:[#allocation2 + $0x2e] sm:$0xff]
        %v4439 = vld [vmem:[#allocation2 + $0x36] sm:$0xff]
        %v4440 = vld [vmem:[#allocation2 + $0x3e] sm:$0xff]
        %v4441 = vld [vmem:[#allocation2 + $0x46] sm:$0xff]
        %v4442 = vld [vmem:[#allocation2 + $0x4e] sm:$0xff]
        %v4443 = vld [vmem:[#allocation2 + $0x56] sm:$0xff]
        %v4444 = vld [vmem:[#allocation2 + $0x5e] sm:$0x3f]
        %v4445 = vpack.c.bf16 %v4436, %v4435
        %v4446 = vpack.c.bf16 %v4438, %v4437
        %v4447 = vpack.c.bf16 %v4440, %v4439
        %v4448 = vpack.c.bf16 %v4442, %v4441
        %v4449 = vpack.c.bf16 %v4444, %v4443
        %s4450 = scalar_lea.vmem %s7, 64
        %v4451 = vld [vmem:[%s4450] sm:$0xf]
        %v4452 = vld [vmem:[%s4450 + $0x4] sm:$0xf]
        %v4455 = vunpack.c.l.b16 %v4451
        %v4456 = vunpack.c.l.b16 %v4452
        %v4457 = vpack.c.b16 %v4456, %v4455
        %v4460 = vsel %vm3201, %v4445, 0
        %v4463 = vsel %vm3201, %v4446, 0
        %v4466 = vsel %vm3201, %v4447, 0
        %v4469 = vsel %vm3201, %v4448, 0
        %v4472 = vsel %vm3201, %v4449, 0
        %4474 = vmatpush.bf16.msra.mxu0 0
        %4475 = vmatpush.bf16.msra.mxu0 0
        %4476 = vmatpush.bf16.msra.mxu0 0
        %4477 = vmatpush.bf16.msra.mxu0 0
        %4478 = vmatpush.bf16.msra.mxu0 0
        %4479 = vmatpush.bf16.msra.mxu0 0
        %4480 = vmatpush.bf16.msra.mxu0 0
        %4481 = vmatpush.bf16.msra.mxu0 %v4457
        %4482 = vmatmul.bf16.gmra.mxu0 %v4460
        %v4483 = vpop.f32.mrf.mxu0
        %v4484 = vadd.f32 0.0, %v4483
        %v4485 = vpop.f32.mrf.mxu0
        %v4486 = vadd.f32 0.0, %v4485
        %4487 = vmatmul.bf16.gmra.mxu0 %v4463
        %v4488 = vpop.f32.mrf.mxu0
        %v4489 = vadd.f32 0.0, %v4488
        %v4490 = vpop.f32.mrf.mxu0
        %v4491 = vadd.f32 0.0, %v4490
        %4492 = vmatmul.bf16.gmra.mxu0 %v4466
        %v4493 = vpop.f32.mrf.mxu0
        %v4494 = vadd.f32 0.0, %v4493
        %v4495 = vpop.f32.mrf.mxu0
        %v4496 = vadd.f32 0.0, %v4495
        %4497 = vmatmul.bf16.gmra.mxu0 %v4469
        %v4498 = vpop.f32.mrf.mxu0
        %v4499 = vadd.f32 0.0, %v4498
        %v4500 = vpop.f32.mrf.mxu0
        %v4501 = vadd.f32 0.0, %v4500
        %4502 = vmatmul.bf16.gmra.mxu0 %v4472
        %v4503 = vpop.f32.mrf.mxu0
        %v4504 = vadd.f32 0.0, %v4503
        %v4505 = vpop.f32.mrf.mxu0
        %v4506 = vadd.f32 0.0, %v4505
        %4507 = vdwg.mxu0
        %v4508 = vadd.f32 %v4425, %v4484
        %v4509 = vadd.f32 %v4426, %v4486
        %v4510 = vadd.f32 %v4427, %v4489
        %v4511 = vadd.f32 %v4428, %v4491
        %v4512 = vadd.f32 %v4429, %v4494
        %v4513 = vadd.f32 %v4430, %v4496
        %v4514 = vadd.f32 %v4431, %v4499
        %v4515 = vadd.f32 %v4432, %v4501
        %v4516 = vadd.f32 %v4433, %v4504
        %v4517 = vadd.f32 %v4434, %v4506
        %v4518 = vld [vmem:[%s9] sm:$0x1]
        %v4520 = vperm.slane %v4518, 0
        %v4522 = vadd.f32 %v4508, %v4520
        %v4523 = vadd.f32 %v4509, %v4520
        %v4524 = vadd.f32 %v4510, %v4520
        %v4525 = vadd.f32 %v4511, %v4520
        %v4526 = vadd.f32 %v4512, %v4520
        %v4527 = vadd.f32 %v4513, %v4520
        %v4528 = vadd.f32 %v4514, %v4520
        %v4529 = vadd.f32 %v4515, %v4520
        %v4530 = vadd.f32 %v4516, %v4520
        %v4531 = vadd.f32 %v4517, %v4520
        %v4532 = vmax.f32 %v4522, 0.0
        %v4533 = vmax.f32 %v4523, 0.0
        %v4534 = vmax.f32 %v4524, 0.0
        %v4535 = vmax.f32 %v4525, 0.0
        %v4536 = vmax.f32 %v4526, 0.0
        %v4537 = vmax.f32 %v4527, 0.0
        %v4538 = vmax.f32 %v4528, 0.0
        %v4539 = vmax.f32 %v4529, 0.0
        %v4540 = vmax.f32 %v4530, 0.0
        %v4541 = vmax.f32 %v4531, 0.0
        %vm4542 = vcmask 261120
        %4543 = vst.msk [vmem:[#allocation9] sm:$0xff] %vm4542, %v4532
        %4544 = vst.msk [vmem:[#allocation9 + $0x8] sm:$0xff] %vm4542, %v4533
        %4545 = vst.msk [vmem:[#allocation9 + $0x10] sm:$0xff] %vm4542, %v4534
        %4546 = vst.msk [vmem:[#allocation9 + $0x18] sm:$0xff] %vm4542, %v4535
        %4547 = vst.msk [vmem:[#allocation9 + $0x20] sm:$0xff] %vm4542, %v4536
        %4548 = vst.msk [vmem:[#allocation9 + $0x28] sm:$0xff] %vm4542, %v4537
        %4549 = vst.msk [vmem:[#allocation9 + $0x30] sm:$0xff] %vm4542, %v4538
        %4550 = vst.msk [vmem:[#allocation9 + $0x38] sm:$0xff] %vm4542, %v4539
        %4551 = vst.msk [vmem:[#allocation9 + $0x40] sm:$0xff] %vm4542, %v4540
        %vm4552 = vcmask 259072
        %4553 = vst.msk [vmem:[#allocation9 + $0x48] sm:$0x3f] %vm4552, %v4541
        %v4554 = vld [vmem:[#allocation9] sm:$0xff]
        %v4555 = vld [vmem:[#allocation9 + $0x8] sm:$0xff]
        %v4556 = vld [vmem:[#allocation9 + $0x10] sm:$0xff]
        %v4557 = vld [vmem:[#allocation9 + $0x18] sm:$0xff]
        %v4558 = vld [vmem:[#allocation9 + $0x20] sm:$0xff]
        %v4559 = vld [vmem:[#allocation9 + $0x28] sm:$0xff]
        %v4560 = vld [vmem:[#allocation9 + $0x30] sm:$0xff]
        %v4561 = vld [vmem:[#allocation9 + $0x38] sm:$0xff]
        %v4562 = vld [vmem:[#allocation9 + $0x40] sm:$0x7]
        %v4563 = vld [vmem:[#allocation9 + $0x1] sm:$0xff]
        %v4564 = vld [vmem:[#allocation9 + $0x9] sm:$0xff]
        %v4565 = vld [vmem:[#allocation9 + $0x11] sm:$0xff]
        %v4566 = vld [vmem:[#allocation9 + $0x19] sm:$0xff]
        %v4567 = vld [vmem:[#allocation9 + $0x21] sm:$0xff]
        %v4568 = vld [vmem:[#allocation9 + $0x29] sm:$0xff]
        %v4569 = vld [vmem:[#allocation9 + $0x31] sm:$0xff]
        %v4570 = vld [vmem:[#allocation9 + $0x39] sm:$0xff]
        %v4571 = vld [vmem:[#allocation9 + $0x41] sm:$0x7]
        %v4572 = vmax.f32 %v4554, %v4563
        %v4573 = vmax.f32 %v4555, %v4564
        %v4574 = vmax.f32 %v4556, %v4565
        %v4575 = vmax.f32 %v4557, %v4566
        %v4576 = vmax.f32 %v4558, %v4567
        %v4577 = vmax.f32 %v4559, %v4568
        %v4578 = vmax.f32 %v4560, %v4569
        %v4579 = vmax.f32 %v4561, %v4570
        %v4580 = vmax.f32 %v4562, %v4571
        %v4581 = vld [vmem:[#allocation9 + $0xa] sm:$0xff]
        %v4582 = vld [vmem:[#allocation9 + $0x12] sm:$0xff]
        %v4583 = vld [vmem:[#allocation9 + $0x1a] sm:$0xff]
        %v4584 = vld [vmem:[#allocation9 + $0x22] sm:$0xff]
        %v4585 = vld [vmem:[#allocation9 + $0x2a] sm:$0xff]
        %v4586 = vld [vmem:[#allocation9 + $0x32] sm:$0xff]
        %v4587 = vld [vmem:[#allocation9 + $0x3a] sm:$0xff]
        %v4588 = vld [vmem:[#allocation9 + $0x42] sm:$0xff]
        %v4589 = vld [vmem:[#allocation9 + $0x4a] sm:$0x7]
        %v4590 = vld [vmem:[#allocation9 + $0xb] sm:$0xff]
        %v4591 = vld [vmem:[#allocation9 + $0x13] sm:$0xff]
        %v4592 = vld [vmem:[#allocation9 + $0x1b] sm:$0xff]
        %v4593 = vld [vmem:[#allocation9 + $0x23] sm:$0xff]
        %v4594 = vld [vmem:[#allocation9 + $0x2b] sm:$0xff]
        %v4595 = vld [vmem:[#allocation9 + $0x33] sm:$0xff]
        %v4596 = vld [vmem:[#allocation9 + $0x3b] sm:$0xff]
        %v4597 = vld [vmem:[#allocation9 + $0x43] sm:$0xff]
        %v4598 = vld [vmem:[#allocation9 + $0x4b] sm:$0x7]
        %v4599 = vmax.f32 %v4581, %v4590
        %v4600 = vmax.f32 %v4582, %v4591
        %v4601 = vmax.f32 %v4583, %v4592
        %v4602 = vmax.f32 %v4584, %v4593
        %v4603 = vmax.f32 %v4585, %v4594
        %v4604 = vmax.f32 %v4586, %v4595
        %v4605 = vmax.f32 %v4587, %v4596
        %v4606 = vmax.f32 %v4588, %v4597
        %v4607 = vmax.f32 %v4589, %v4598
        %v4608 = vmax.f32 %v4572, %v4599
        %v4609 = vmax.f32 %v4573, %v4600
        %v4610 = vmax.f32 %v4574, %v4601
        %v4611 = vmax.f32 %v4575, %v4602
        %v4612 = vmax.f32 %v4576, %v4603
        %v4613 = vmax.f32 %v4577, %v4604
        %v4614 = vmax.f32 %v4578, %v4605
        %v4615 = vmax.f32 %v4579, %v4606
        %v4616 = vmax.f32 %v4580, %v4607
        %v4617 = vld [vmem:[%s41] sm:$0xf]
        %v4618 = vld [vmem:[%s41 + $0x4] sm:$0xf]
        %v4619 = vld [vmem:[%s41 + $0x8] sm:$0xf]
        %v4620 = vld [vmem:[%s41 + $0xc] sm:$0xf]
        %v4621 = vld [vmem:[%s41 + $0x10] sm:$0x3]
        %v4622 = vpack.c.bf16 %v4609, %v4608
        %v4623 = vpack.c.bf16 %v4611, %v4610
        %v4624 = vpack.c.bf16 %v4613, %v4612
        %v4625 = vpack.c.bf16 %v4615, %v4614
        %v4626 = vpack.c.bf16 %v4616, %v4616
        %v4632 = vunpack.c.l.b16 %v4617
        %v4633 = vunpack.c.l.b16 %v4618
        %v4634 = vunpack.c.l.b16 %v4619
        %v4635 = vunpack.c.l.b16 %v4620
        %v4636 = vunpack.c.l.b16 %v4621
        %v4637 = vpack.c.b16 %v4633, %v4632
        %v4638 = vpack.c.b16 %v4635, %v4634
        %v4639 = vpack.c.b16 %v4636, %v4636
        %vm4640 = vcmask 547840
        %v4642 = vsel %vm4640, %v4637, 0
        %v4645 = vsel %vm4640, %v4638, 0
        %v4648 = vsel %vm4640, %v4639, 0
        %vm4650 = vcmask 1040384
        %v4651 = vsel %vm4650, 4294967295, 65535
        %v4652 = vsel %vm1130, %v4651, 0
        %v4654 = vand.u32 %v4626, %v4652
        %4656 = vmatpush.bf16.msra.mxu0 0
        %4657 = vmatpush.bf16.msra.mxu0 0
        %4658 = vmatpush.bf16.msra.mxu0 0
        %4659 = vmatpush.bf16.msra.mxu0 %v4654
        %4660 = vmatpush.bf16.msra.mxu0 %v4625
        %4661 = vmatpush.bf16.msra.mxu0 %v4624
        %4662 = vmatpush.bf16.msra.mxu0 %v4623
        %4663 = vmatpush.bf16.msra.mxu0 %v4622
        %4664 = vmatmul.bf16.gmra.mxu0 %v4642
        %v4665 = vpop.f32.mrf.mxu0
        %v4666 = vadd.f32 0.0, %v4665
        %v4667 = vpop.f32.mrf.mxu0
        %v4668 = vadd.f32 0.0, %v4667
        %4669 = vmatmul.bf16.gmra.mxu0 %v4645
        %v4670 = vpop.f32.mrf.mxu0
        %v4671 = vadd.f32 0.0, %v4670
        %v4672 = vpop.f32.mrf.mxu0
        %v4673 = vadd.f32 0.0, %v4672
        %4674 = vmatmul.bf16.gmra.mxu0 %v4648
        %v4675 = vpop.f32.mrf.mxu0
        %v4676 = vadd.f32 0.0, %v4675
        %v4677 = vpop.f32.mrf.mxu0
        %4678 = vdwg.mxu0
        %4679 = vst.msk [vmem:[#allocation3] sm:$0xff] %vm4542, %v4666
        %4680 = vst.msk [vmem:[#allocation3 + $0x8] sm:$0xff] %vm4542, %v4668
        %4681 = vst.msk [vmem:[#allocation3 + $0x10] sm:$0xff] %vm4542, %v4671
        %4682 = vst.msk [vmem:[#allocation3 + $0x18] sm:$0xff] %vm4542, %v4673
        %vm4683 = vcmask 257024
        %4684 = vst.msk [vmem:[#allocation3 + $0x20] sm:$0xf] %vm4683, %v4676
        %v4685 = vld [vmem:[#allocation3] sm:$0xff]
        %v4686 = vld [vmem:[#allocation3 + $0x8] sm:$0xff]
        %v4687 = vld [vmem:[#allocation3 + $0x10] sm:$0x3f]
        %v4688 = vpack.c.bf16 %v4686, %v4685
        %v4689 = vpack.c.bf16 %v4687, %v4687
        %v4690 = vld [vmem:[%s11] sm:$0xf]
        %v4691 = vld [vmem:[%s11 + $0x4] sm:$0xf]
        %v4692 = vld [vmem:[%s11 + $0x8] sm:$0xf]
        %v4693 = vld [vmem:[%s11 + $0xc] sm:$0xf]
        %v4694 = vld [vmem:[#allocation3 + $0x1] sm:$0xff]
        %v4695 = vld [vmem:[#allocation3 + $0x9] sm:$0xff]
        %v4696 = vld [vmem:[#allocation3 + $0x11] sm:$0x3f]
        %v4697 = vpack.c.bf16 %v4695, %v4694
        %v4698 = vpack.c.bf16 %v4696, %v4696
        %s4699 = scalar_lea.vmem %s11, 16
        %v4700 = vld [vmem:[%s4699] sm:$0xf]
        %v4701 = vld [vmem:[%s4699 + $0x4] sm:$0xf]
        %v4702 = vld [vmem:[%s4699 + $0x8] sm:$0xf]
        %v4703 = vld [vmem:[%s4699 + $0xc] sm:$0xf]
        %v4708 = vunpack.c.l.b16 %v4700
        %v4709 = vunpack.c.l.b16 %v4701
        %v4710 = vunpack.c.l.b16 %v4702
        %v4711 = vunpack.c.l.b16 %v4703
        %v4712 = vpack.c.b16 %v4709, %v4708
        %v4713 = vpack.c.b16 %v4711, %v4710
        %v4717 = vsel %vm4542, %v4697, 0
        %v4720 = vsel %vm4542, %v4698, 0
        %4722 = vmatpush.bf16.msra.mxu0 0
        %4723 = vmatpush.bf16.msra.mxu0 0
        %4724 = vmatpush.bf16.msra.mxu0 0
        %4725 = vmatpush.bf16.msra.mxu0 0
        %4726 = vmatpush.bf16.msra.mxu0 0
        %4727 = vmatpush.bf16.msra.mxu0 0
        %4728 = vmatpush.bf16.msra.mxu0 %v4713
        %4729 = vmatpush.bf16.msra.mxu0 %v4712
        %4730 = vmatmul.bf16.gmra.mxu0 %v4717
        %v4731 = vpop.f32.mrf.mxu0
        %v4732 = vadd.f32 0.0, %v4731
        %v4733 = vpop.f32.mrf.mxu0
        %v4734 = vadd.f32 0.0, %v4733
        %4735 = vmatmul.bf16.gmra.mxu0 %v4720
        %v4736 = vpop.f32.mrf.mxu0
        %v4737 = vadd.f32 0.0, %v4736
        %v4738 = vpop.f32.mrf.mxu0
        %4739 = vdwg.mxu0
        %v4744 = vunpack.c.l.b16 %v4690
        %v4745 = vunpack.c.l.b16 %v4691
        %v4746 = vunpack.c.l.b16 %v4692
        %v4747 = vunpack.c.l.b16 %v4693
        %v4748 = vpack.c.b16 %v4745, %v4744
        %v4749 = vpack.c.b16 %v4747, %v4746
        %v4753 = vsel %vm4542, %v4688, 0
        %v4756 = vsel %vm4542, %v4689, 0
        %4758 = vmatpush.bf16.msra.mxu0 0
        %4759 = vmatpush.bf16.msra.mxu0 0
        %4760 = vmatpush.bf16.msra.mxu0 0
        %4761 = vmatpush.bf16.msra.mxu0 0
        %4762 = vmatpush.bf16.msra.mxu0 0
        %4763 = vmatpush.bf16.msra.mxu0 0
        %4764 = vmatpush.bf16.msra.mxu0 %v4749
        %4765 = vmatpush.bf16.msra.mxu0 %v4748
        %4766 = vmatmul.bf16.gmra.mxu0 %v4753
        %v4767 = vpop.f32.mrf.mxu0
        %v4768 = vadd.f32 %v4732, %v4767
        %v4769 = vpop.f32.mrf.mxu0
        %v4770 = vadd.f32 %v4734, %v4769
        %4771 = vmatmul.bf16.gmra.mxu0 %v4756
        %v4772 = vpop.f32.mrf.mxu0
        %v4773 = vadd.f32 %v4737, %v4772
        %v4774 = vpop.f32.mrf.mxu0
        %4775 = vdwg.mxu0
        %v4776 = vld [vmem:[#allocation3 + $0x2] sm:$0xff]
        %v4777 = vld [vmem:[#allocation3 + $0xa] sm:$0xff]
        %v4778 = vld [vmem:[#allocation3 + $0x12] sm:$0x3f]
        %v4779 = vpack.c.bf16 %v4777, %v4776
        %v4780 = vpack.c.bf16 %v4778, %v4778
        %s4781 = scalar_lea.vmem %s11, 32
        %v4782 = vld [vmem:[%s4781] sm:$0xf]
        %v4783 = vld [vmem:[%s4781 + $0x4] sm:$0xf]
        %v4784 = vld [vmem:[%s4781 + $0x8] sm:$0xf]
        %v4785 = vld [vmem:[%s4781 + $0xc] sm:$0xf]
        %v4790 = vunpack.c.l.b16 %v4782
        %v4791 = vunpack.c.l.b16 %v4783
        %v4792 = vunpack.c.l.b16 %v4784
        %v4793 = vunpack.c.l.b16 %v4785
        %v4794 = vpack.c.b16 %v4791, %v4790
        %v4795 = vpack.c.b16 %v4793, %v4792
        %v4799 = vsel %vm4542, %v4779, 0
        %v4802 = vsel %vm4542, %v4780, 0
        %4804 = vmatpush.bf16.msra.mxu0 0
        %4805 = vmatpush.bf16.msra.mxu0 0
        %4806 = vmatpush.bf16.msra.mxu0 0
        %4807 = vmatpush.bf16.msra.mxu0 0
        %4808 = vmatpush.bf16.msra.mxu0 0
        %4809 = vmatpush.bf16.msra.mxu0 0
        %4810 = vmatpush.bf16.msra.mxu0 %v4795
        %4811 = vmatpush.bf16.msra.mxu0 %v4794
        %4812 = vmatmul.bf16.gmra.mxu0 %v4799
        %v4813 = vpop.f32.mrf.mxu0
        %v4814 = vadd.f32 0.0, %v4813
        %v4815 = vpop.f32.mrf.mxu0
        %v4816 = vadd.f32 0.0, %v4815
        %4817 = vmatmul.bf16.gmra.mxu0 %v4802
        %v4818 = vpop.f32.mrf.mxu0
        %v4819 = vadd.f32 0.0, %v4818
        %v4820 = vpop.f32.mrf.mxu0
        %4821 = vdwg.mxu0
        %v4822 = vadd.f32 %v4768, %v4814
        %v4823 = vadd.f32 %v4770, %v4816
        %v4824 = vadd.f32 %v4773, %v4819
        %v4825 = vld [vmem:[#allocation3 + $0x6] sm:$0xff]
        %v4826 = vld [vmem:[#allocation3 + $0xe] sm:$0xff]
        %v4827 = vld [vmem:[#allocation3 + $0x16] sm:$0x3f]
        %v4828 = vpack.c.bf16 %v4826, %v4825
        %v4829 = vpack.c.bf16 %v4827, %v4827
        %s4830 = scalar_lea.vmem %s11, 48
        %v4831 = vld [vmem:[%s4830] sm:$0xf]
        %v4832 = vld [vmem:[%s4830 + $0x4] sm:$0xf]
        %v4833 = vld [vmem:[%s4830 + $0x8] sm:$0xf]
        %v4834 = vld [vmem:[%s4830 + $0xc] sm:$0xf]
        %v4839 = vunpack.c.l.b16 %v4831
        %v4840 = vunpack.c.l.b16 %v4832
        %v4841 = vunpack.c.l.b16 %v4833
        %v4842 = vunpack.c.l.b16 %v4834
        %v4843 = vpack.c.b16 %v4840, %v4839
        %v4844 = vpack.c.b16 %v4842, %v4841
        %v4848 = vsel %vm4542, %v4828, 0
        %v4851 = vsel %vm4542, %v4829, 0
        %4853 = vmatpush.bf16.msra.mxu0 0
        %4854 = vmatpush.bf16.msra.mxu0 0
        %4855 = vmatpush.bf16.msra.mxu0 0
        %4856 = vmatpush.bf16.msra.mxu0 0
        %4857 = vmatpush.bf16.msra.mxu0 0
        %4858 = vmatpush.bf16.msra.mxu0 0
        %4859 = vmatpush.bf16.msra.mxu0 %v4844
        %4860 = vmatpush.bf16.msra.mxu0 %v4843
        %4861 = vmatmul.bf16.gmra.mxu0 %v4848
        %v4862 = vpop.f32.mrf.mxu0
        %v4863 = vadd.f32 0.0, %v4862
        %v4864 = vpop.f32.mrf.mxu0
        %v4865 = vadd.f32 0.0, %v4864
        %4866 = vmatmul.bf16.gmra.mxu0 %v4851
        %v4867 = vpop.f32.mrf.mxu0
        %v4868 = vadd.f32 0.0, %v4867
        %v4869 = vpop.f32.mrf.mxu0
        %4870 = vdwg.mxu0
        %v4871 = vadd.f32 %v4822, %v4863
        %v4872 = vadd.f32 %v4823, %v4865
        %v4873 = vadd.f32 %v4824, %v4868
        %v4874 = vld [vmem:[#allocation3 + $0x7] sm:$0xff]
        %v4875 = vld [vmem:[#allocation3 + $0xf] sm:$0xff]
        %v4876 = vld [vmem:[#allocation3 + $0x17] sm:$0x3f]
        %v4877 = vpack.c.bf16 %v4875, %v4874
        %v4878 = vpack.c.bf16 %v4876, %v4876
        %s4879 = scalar_lea.vmem %s11, 64
        %v4880 = vld [vmem:[%s4879] sm:$0xf]
        %v4881 = vld [vmem:[%s4879 + $0x4] sm:$0xf]
        %v4882 = vld [vmem:[%s4879 + $0x8] sm:$0xf]
        %v4883 = vld [vmem:[%s4879 + $0xc] sm:$0xf]
        %v4888 = vunpack.c.l.b16 %v4880
        %v4889 = vunpack.c.l.b16 %v4881
        %v4890 = vunpack.c.l.b16 %v4882
        %v4891 = vunpack.c.l.b16 %v4883
        %v4892 = vpack.c.b16 %v4889, %v4888
        %v4893 = vpack.c.b16 %v4891, %v4890
        %v4897 = vsel %vm4542, %v4877, 0
        %v4900 = vsel %vm4542, %v4878, 0
        %4902 = vmatpush.bf16.msra.mxu0 0
        %4903 = vmatpush.bf16.msra.mxu0 0
        %4904 = vmatpush.bf16.msra.mxu0 0
        %4905 = vmatpush.bf16.msra.mxu0 0
        %4906 = vmatpush.bf16.msra.mxu0 0
        %4907 = vmatpush.bf16.msra.mxu0 0
        %4908 = vmatpush.bf16.msra.mxu0 %v4893
        %4909 = vmatpush.bf16.msra.mxu0 %v4892
        %4910 = vmatmul.bf16.gmra.mxu0 %v4897
        %v4911 = vpop.f32.mrf.mxu0
        %v4912 = vadd.f32 0.0, %v4911
        %v4913 = vpop.f32.mrf.mxu0
        %v4914 = vadd.f32 0.0, %v4913
        %4915 = vmatmul.bf16.gmra.mxu0 %v4900
        %v4916 = vpop.f32.mrf.mxu0
        %v4917 = vadd.f32 0.0, %v4916
        %v4918 = vpop.f32.mrf.mxu0
        %4919 = vdwg.mxu0
        %v4920 = vadd.f32 %v4871, %v4912
        %v4921 = vadd.f32 %v4872, %v4914
        %v4922 = vadd.f32 %v4873, %v4917
        %v4923 = vld [vmem:[#allocation3 + $0x8] sm:$0xff]
        %v4924 = vld [vmem:[#allocation3 + $0x10] sm:$0xff]
        %v4925 = vld [vmem:[#allocation3 + $0x18] sm:$0x3f]
        %v4926 = vpack.c.bf16 %v4924, %v4923
        %v4927 = vpack.c.bf16 %v4925, %v4925
        %s4928 = scalar_lea.vmem %s11, 80
        %v4929 = vld [vmem:[%s4928] sm:$0xf]
        %v4930 = vld [vmem:[%s4928 + $0x4] sm:$0xf]
        %v4931 = vld [vmem:[%s4928 + $0x8] sm:$0xf]
        %v4932 = vld [vmem:[%s4928 + $0xc] sm:$0xf]
        %v4937 = vunpack.c.l.b16 %v4929
        %v4938 = vunpack.c.l.b16 %v4930
        %v4939 = vunpack.c.l.b16 %v4931
        %v4940 = vunpack.c.l.b16 %v4932
        %v4941 = vpack.c.b16 %v4938, %v4937
        %v4942 = vpack.c.b16 %v4940, %v4939
        %v4946 = vsel %vm4542, %v4926, 0
        %v4949 = vsel %vm4542, %v4927, 0
        %4951 = vmatpush.bf16.msra.mxu0 0
        %4952 = vmatpush.bf16.msra.mxu0 0
        %4953 = vmatpush.bf16.msra.mxu0 0
        %4954 = vmatpush.bf16.msra.mxu0 0
        %4955 = vmatpush.bf16.msra.mxu0 0
        %4956 = vmatpush.bf16.msra.mxu0 0
        %4957 = vmatpush.bf16.msra.mxu0 %v4942
        %4958 = vmatpush.bf16.msra.mxu0 %v4941
        %4959 = vmatmul.bf16.gmra.mxu0 %v4946
        %v4960 = vpop.f32.mrf.mxu0
        %v4961 = vadd.f32 0.0, %v4960
        %v4962 = vpop.f32.mrf.mxu0
        %v4963 = vadd.f32 0.0, %v4962
        %4964 = vmatmul.bf16.gmra.mxu0 %v4949
        %v4965 = vpop.f32.mrf.mxu0
        %v4966 = vadd.f32 0.0, %v4965
        %v4967 = vpop.f32.mrf.mxu0
        %4968 = vdwg.mxu0
        %v4969 = vadd.f32 %v4920, %v4961
        %v4970 = vadd.f32 %v4921, %v4963
        %v4971 = vadd.f32 %v4922, %v4966
        %v4972 = vld [vmem:[#allocation3 + $0xc] sm:$0xff]
        %v4973 = vld [vmem:[#allocation3 + $0x14] sm:$0xff]
        %v4974 = vld [vmem:[#allocation3 + $0x1c] sm:$0x3f]
        %v4975 = vpack.c.bf16 %v4973, %v4972
        %v4976 = vpack.c.bf16 %v4974, %v4974
        %s4977 = scalar_lea.vmem %s11, 96
        %v4978 = vld [vmem:[%s4977] sm:$0xf]
        %v4979 = vld [vmem:[%s4977 + $0x4] sm:$0xf]
        %v4980 = vld [vmem:[%s4977 + $0x8] sm:$0xf]
        %v4981 = vld [vmem:[%s4977 + $0xc] sm:$0xf]
        %v4986 = vunpack.c.l.b16 %v4978
        %v4987 = vunpack.c.l.b16 %v4979
        %v4988 = vunpack.c.l.b16 %v4980
        %v4989 = vunpack.c.l.b16 %v4981
        %v4990 = vpack.c.b16 %v4987, %v4986
        %v4991 = vpack.c.b16 %v4989, %v4988
        %v4995 = vsel %vm4542, %v4975, 0
        %v4998 = vsel %vm4542, %v4976, 0
        %5000 = vmatpush.bf16.msra.mxu0 0
        %5001 = vmatpush.bf16.msra.mxu0 0
        %5002 = vmatpush.bf16.msra.mxu0 0
        %5003 = vmatpush.bf16.msra.mxu0 0
        %5004 = vmatpush.bf16.msra.mxu0 0
        %5005 = vmatpush.bf16.msra.mxu0 0
        %5006 = vmatpush.bf16.msra.mxu0 %v4991
        %5007 = vmatpush.bf16.msra.mxu0 %v4990
        %5008 = vmatmul.bf16.gmra.mxu0 %v4995
        %v5009 = vpop.f32.mrf.mxu0
        %v5010 = vadd.f32 0.0, %v5009
        %v5011 = vpop.f32.mrf.mxu0
        %v5012 = vadd.f32 0.0, %v5011
        %5013 = vmatmul.bf16.gmra.mxu0 %v4998
        %v5014 = vpop.f32.mrf.mxu0
        %v5015 = vadd.f32 0.0, %v5014
        %v5016 = vpop.f32.mrf.mxu0
        %5017 = vdwg.mxu0
        %v5018 = vadd.f32 %v4969, %v5010
        %v5019 = vadd.f32 %v4970, %v5012
        %v5020 = vadd.f32 %v4971, %v5015
        %v5021 = vld [vmem:[#allocation3 + $0xd] sm:$0xff]
        %v5022 = vld [vmem:[#allocation3 + $0x15] sm:$0xff]
        %v5023 = vld [vmem:[#allocation3 + $0x1d] sm:$0x3f]
        %v5024 = vpack.c.bf16 %v5022, %v5021
        %v5025 = vpack.c.bf16 %v5023, %v5023
        %s5026 = scalar_lea.vmem %s11, 112
        %v5027 = vld [vmem:[%s5026] sm:$0xf]
        %v5028 = vld [vmem:[%s5026 + $0x4] sm:$0xf]
        %v5029 = vld [vmem:[%s5026 + $0x8] sm:$0xf]
        %v5030 = vld [vmem:[%s5026 + $0xc] sm:$0xf]
        %v5035 = vunpack.c.l.b16 %v5027
        %v5036 = vunpack.c.l.b16 %v5028
        %v5037 = vunpack.c.l.b16 %v5029
        %v5038 = vunpack.c.l.b16 %v5030
        %v5039 = vpack.c.b16 %v5036, %v5035
        %v5040 = vpack.c.b16 %v5038, %v5037
        %v5044 = vsel %vm4542, %v5024, 0
        %v5047 = vsel %vm4542, %v5025, 0
        %5049 = vmatpush.bf16.msra.mxu0 0
        %5050 = vmatpush.bf16.msra.mxu0 0
        %5051 = vmatpush.bf16.msra.mxu0 0
        %5052 = vmatpush.bf16.msra.mxu0 0
        %5053 = vmatpush.bf16.msra.mxu0 0
        %5054 = vmatpush.bf16.msra.mxu0 0
        %5055 = vmatpush.bf16.msra.mxu0 %v5040
        %5056 = vmatpush.bf16.msra.mxu0 %v5039
        %5057 = vmatmul.bf16.gmra.mxu0 %v5044
        %v5058 = vpop.f32.mrf.mxu0
        %v5059 = vadd.f32 0.0, %v5058
        %v5060 = vpop.f32.mrf.mxu0
        %v5061 = vadd.f32 0.0, %v5060
        %5062 = vmatmul.bf16.gmra.mxu0 %v5047
        %v5063 = vpop.f32.mrf.mxu0
        %v5064 = vadd.f32 0.0, %v5063
        %v5065 = vpop.f32.mrf.mxu0
        %5066 = vdwg.mxu0
        %v5067 = vadd.f32 %v5018, %v5059
        %v5068 = vadd.f32 %v5019, %v5061
        %v5069 = vadd.f32 %v5020, %v5064
        %v5070 = vld [vmem:[#allocation3 + $0xe] sm:$0xff]
        %v5071 = vld [vmem:[#allocation3 + $0x16] sm:$0xff]
        %v5072 = vld [vmem:[#allocation3 + $0x1e] sm:$0x3f]
        %v5073 = vpack.c.bf16 %v5071, %v5070
        %v5074 = vpack.c.bf16 %v5072, %v5072
        %s5075 = scalar_lea.vmem %s11, 128
        %v5076 = vld [vmem:[%s5075] sm:$0xf]
        %v5077 = vld [vmem:[%s5075 + $0x4] sm:$0xf]
        %v5078 = vld [vmem:[%s5075 + $0x8] sm:$0xf]
        %v5079 = vld [vmem:[%s5075 + $0xc] sm:$0xf]
        %v5084 = vunpack.c.l.b16 %v5076
        %v5085 = vunpack.c.l.b16 %v5077
        %v5086 = vunpack.c.l.b16 %v5078
        %v5087 = vunpack.c.l.b16 %v5079
        %v5088 = vpack.c.b16 %v5085, %v5084
        %v5089 = vpack.c.b16 %v5087, %v5086
        %v5093 = vsel %vm4542, %v5073, 0
        %v5096 = vsel %vm4542, %v5074, 0
        %5098 = vmatpush.bf16.msra.mxu0 0
        %5099 = vmatpush.bf16.msra.mxu0 0
        %5100 = vmatpush.bf16.msra.mxu0 0
        %5101 = vmatpush.bf16.msra.mxu0 0
        %5102 = vmatpush.bf16.msra.mxu0 0
        %5103 = vmatpush.bf16.msra.mxu0 0
        %5104 = vmatpush.bf16.msra.mxu0 %v5089
        %5105 = vmatpush.bf16.msra.mxu0 %v5088
        %5106 = vmatmul.bf16.gmra.mxu0 %v5093
        %v5107 = vpop.f32.mrf.mxu0
        %v5108 = vadd.f32 0.0, %v5107
        %v5109 = vpop.f32.mrf.mxu0
        %v5110 = vadd.f32 0.0, %v5109
        %5111 = vmatmul.bf16.gmra.mxu0 %v5096
        %v5112 = vpop.f32.mrf.mxu0
        %v5113 = vadd.f32 0.0, %v5112
        %v5114 = vpop.f32.mrf.mxu0
        %5115 = vdwg.mxu0
        %v5116 = vadd.f32 %v5067, %v5108
        %v5117 = vadd.f32 %v5068, %v5110
        %v5118 = vadd.f32 %v5069, %v5113
        %v5119 = vld [vmem:[%s13] sm:$0x1]
        %v5121 = vperm.slane %v5119, 0
        %v5123 = vadd.f32 %v5116, %v5121
        %v5124 = vadd.f32 %v5117, %v5121
        %v5125 = vadd.f32 %v5118, %v5121
        %v5126 = vmax.f32 %v5123, 0.0
        %v5127 = vmax.f32 %v5124, 0.0
        %v5128 = vmax.f32 %v5125, 0.0
        %vm5129 = vcmask 523264
        %5130 = vst.msk [vmem:[#allocation10] sm:$0xff] %vm5129, %v5126
        %5131 = vst.msk [vmem:[#allocation10 + $0x8] sm:$0xff] %vm5129, %v5127
        %vm5132 = vcmask 521216
        %5133 = vst.msk [vmem:[#allocation10 + $0x10] sm:$0x3f] %vm5132, %v5128
        %v5134 = vld [vmem:[#allocation10] sm:$0xff]
        %v5135 = vld [vmem:[#allocation10 + $0x8] sm:$0x7f]
        %v5136 = vld [vmem:[#allocation10 + $0x1] sm:$0xff]
        %v5137 = vld [vmem:[#allocation10 + $0x9] sm:$0x7f]
        %v5138 = vmax.f32 %v5134, %v5136
        %v5139 = vmax.f32 %v5135, %v5137
        %v5140 = vld [vmem:[#allocation10 + $0x6] sm:$0xff]
        %v5141 = vld [vmem:[#allocation10 + $0xe] sm:$0x7f]
        %v5142 = vld [vmem:[#allocation10 + $0x7] sm:$0xff]
        %v5143 = vld [vmem:[#allocation10 + $0xf] sm:$0x7f]
        %v5144 = vmax.f32 %v5140, %v5142
        %v5145 = vmax.f32 %v5141, %v5143
        %v5146 = vmax.f32 %v5138, %v5144
        %v5147 = vmax.f32 %v5139, %v5145
        %v5148 = vld [vmem:[%s43] sm:$0xf]
        %v5149 = vld [vmem:[%s43 + $0x4] sm:$0xf]
        %v5150 = vpack.c.bf16 %v5147, %v5146
        %v5153 = vunpack.c.l.b16 %v5148
        %v5154 = vunpack.c.l.b16 %v5149
        %v5155 = vpack.c.b16 %v5154, %v5153
        %vm5156 = vcmask 121856
        %v5158 = vsel %vm5156, %v5155, 0
        %vm5160 = vcmask 1046528
        %vm5161 = vcmask 1047552
        %v5162 = vsel %vm5160, 4294967295, 65535
        %v5163 = vsel %vm5161, %v5162, 0
        %v5165 = vand.u32 %v5150, %v5163
        %5167 = vmatpush.bf16.msra.mxu0 0
        %5168 = vmatpush.bf16.msra.mxu0 0
        %5169 = vmatpush.bf16.msra.mxu0 0
        %5170 = vmatpush.bf16.msra.mxu0 0
        %5171 = vmatpush.bf16.msra.mxu0 0
        %5172 = vmatpush.bf16.msra.mxu0 0
        %5173 = vmatpush.bf16.msra.mxu0 0
        %5174 = vmatpush.bf16.msra.mxu0 %v5165
        %5175 = vmatmul.bf16.gmra.mxu0 %v5158
        %v5176 = vpop.f32.mrf.mxu0
        %v5177 = vadd.f32 0.0, %v5176
        %v5178 = vpop.f32.mrf.mxu0
        %v5179 = vadd.f32 0.0, %v5178
        %5180 = vdwg.mxu0
        %5181 = vst.msk [vmem:[#allocation4] sm:$0xff] %vm5129, %v5177
        %5182 = vst.msk [vmem:[#allocation4 + $0x8] sm:$0xff] %vm5129, %v5179
        %v5183 = vld [vmem:[#allocation4] sm:$0xff]
        %v5184 = vld [vmem:[#allocation4 + $0x8] sm:$0xff]
        %v5185 = vpack.c.bf16 %v5184, %v5183
        %v5186 = vld [vmem:[%s23] sm:$0xf]
        %v5187 = vld [vmem:[%s23 + $0x4] sm:$0xf]
        %v5188 = vld [vmem:[%s23 + $0x8] sm:$0xf]
        %v5189 = vld [vmem:[%s23 + $0xc] sm:$0xf]
        %v5190 = vld [vmem:[%s23 + $0x10] sm:$0xf]
        %v5191 = vld [vmem:[%s23 + $0x14] sm:$0xf]
        %v5192 = vld [vmem:[%s23 + $0x18] sm:$0xf]
        %v5193 = vld [vmem:[%s23 + $0x1c] sm:$0xf]
        %v5194 = vld [vmem:[%s25] sm:$0x1]
        %v5196 = vperm.slane %v5194, 0
        %v5206 = vunpack.c.l.b16 %v5186
        %v5207 = vunpack.c.l.b16 %v5187
        %v5208 = vunpack.c.l.b16 %v5188
        %v5209 = vunpack.c.l.b16 %v5189
        %v5210 = vunpack.c.l.b16 %v5190
        %v5211 = vunpack.c.l.b16 %v5191
        %v5212 = vunpack.c.l.b16 %v5192
        %v5213 = vunpack.c.l.b16 %v5193
        %v5214 = vpack.c.b16 %v5207, %v5206
        %v5215 = vpack.c.b16 %v5209, %v5208
        %v5216 = vpack.c.b16 %v5211, %v5210
        %v5217 = vpack.c.b16 %v5213, %v5212
        %v5223 = vsel %vm5129, %v5185, 0
        %5225 = vmatpush.bf16.msra.mxu0 0
        %5226 = vmatpush.bf16.msra.mxu0 0
        %5227 = vmatpush.bf16.msra.mxu0 0
        %5228 = vmatpush.bf16.msra.mxu0 0
        %5229 = vmatpush.bf16.msra.mxu0 %v5217
        %5230 = vmatpush.bf16.msra.mxu0 %v5216
        %5231 = vmatpush.bf16.msra.mxu0 %v5215
        %5232 = vmatpush.bf16.msra.mxu0 %v5214
        %5233 = vmatmul.bf16.gmra.mxu0 %v5223
        %v5234 = vpop.f32.mrf.mxu0
        %v5235 = vadd.f32 %v5196, %v5234
        %v5236 = vpop.f32.mrf.mxu0
        %v5237 = vadd.f32 %v5196, %v5236
        %5238 = vdwg.mxu0
        %v5239 = vld [vmem:[%s53] sm:$0xff]
        %v5240 = vld [vmem:[%s53 + $0x8] sm:$0xff]
        %5242 = vset.pattern.permute.xlu0 0
        %5243 = vperm.xlu0 %5242, %v5239
        %v5244 = vpop.permute.xlu0 %5243
        %5247 = vset.pattern.permute.xlu0 0
        %5248 = vperm.xlu0 %5247, %v5240
        %v5249 = vpop.permute.xlu0 %5248
        %v5251 = vmul.f32 %v5235, %v5244
        %v5252 = vmul.f32 %v5237, %v5249
        %5253 = vst.msk [vmem:[#allocation7] sm:$0xff] %vm4542, %v5251
        %5254 = vst.msk [vmem:[#allocation7 + $0x8] sm:$0xff] %vm4542, %v5252
        %v5255 = vld [vmem:[#allocation7] sm:$0x3f]
        %v5256 = vpack.c.bf16 %v5255, %v5255
        %v5257 = vld [vmem:[%s35] sm:$0xf]
        %v5258 = vld [vmem:[%s35 + $0x4] sm:$0xf]
        %v5259 = vld [vmem:[%s35 + $0x8] sm:$0xf]
        %v5260 = vld [vmem:[%s35 + $0xc] sm:$0xf]
        %v5261 = vld [vmem:[#allocation7 + $0x1] sm:$0x3f]
        %v5262 = vpack.c.bf16 %v5261, %v5261
        %s5263 = scalar_lea.vmem %s35, 16
        %v5264 = vld [vmem:[%s5263] sm:$0xf]
        %v5265 = vld [vmem:[%s5263 + $0x4] sm:$0xf]
        %v5266 = vld [vmem:[%s5263 + $0x8] sm:$0xf]
        %v5267 = vld [vmem:[%s5263 + $0xc] sm:$0xf]
        %v5272 = vunpack.c.l.b16 %v5264
        %v5273 = vunpack.c.l.b16 %v5265
        %v5274 = vunpack.c.l.b16 %v5266
        %v5275 = vunpack.c.l.b16 %v5267
        %v5276 = vpack.c.b16 %v5273, %v5272
        %v5277 = vpack.c.b16 %v5275, %v5274
        %v5281 = vsel %vm4542, %v5262, 0
        %5283 = vmatpush.bf16.msra.mxu0 0
        %5284 = vmatpush.bf16.msra.mxu0 0
        %5285 = vmatpush.bf16.msra.mxu0 0
        %5286 = vmatpush.bf16.msra.mxu0 0
        %5287 = vmatpush.bf16.msra.mxu0 0
        %5288 = vmatpush.bf16.msra.mxu0 0
        %5289 = vmatpush.bf16.msra.mxu0 %v5277
        %5290 = vmatpush.bf16.msra.mxu0 %v5276
        %5291 = vmatmul.bf16.gmra.mxu0 %v5281
        %v5292 = vpop.f32.mrf.mxu0
        %v5293 = vadd.f32 0.0, %v5292
        %v5294 = vpop.f32.mrf.mxu0
        %5295 = vdwg.mxu0
        %v5300 = vunpack.c.l.b16 %v5257
        %v5301 = vunpack.c.l.b16 %v5258
        %v5302 = vunpack.c.l.b16 %v5259
        %v5303 = vunpack.c.l.b16 %v5260
        %v5304 = vpack.c.b16 %v5301, %v5300
        %v5305 = vpack.c.b16 %v5303, %v5302
        %v5309 = vsel %vm4542, %v5256, 0
        %5311 = vmatpush.bf16.msra.mxu0 0
        %5312 = vmatpush.bf16.msra.mxu0 0
        %5313 = vmatpush.bf16.msra.mxu0 0
        %5314 = vmatpush.bf16.msra.mxu0 0
        %5315 = vmatpush.bf16.msra.mxu0 0
        %5316 = vmatpush.bf16.msra.mxu0 0
        %5317 = vmatpush.bf16.msra.mxu0 %v5305
        %5318 = vmatpush.bf16.msra.mxu0 %v5304
        %5319 = vmatmul.bf16.gmra.mxu0 %v5309
        %v5320 = vpop.f32.mrf.mxu0
        %v5321 = vadd.f32 %v5293, %v5320
        %v5322 = vpop.f32.mrf.mxu0
        %5323 = vdwg.mxu0
        %v5324 = vld [vmem:[#allocation7 + $0x2] sm:$0x3f]
        %v5325 = vpack.c.bf16 %v5324, %v5324
        %s5326 = scalar_lea.vmem %s35, 32
        %v5327 = vld [vmem:[%s5326] sm:$0xf]
        %v5328 = vld [vmem:[%s5326 + $0x4] sm:$0xf]
        %v5329 = vld [vmem:[%s5326 + $0x8] sm:$0xf]
        %v5330 = vld [vmem:[%s5326 + $0xc] sm:$0xf]
        %v5335 = vunpack.c.l.b16 %v5327
        %v5336 = vunpack.c.l.b16 %v5328
        %v5337 = vunpack.c.l.b16 %v5329
        %v5338 = vunpack.c.l.b16 %v5330
        %v5339 = vpack.c.b16 %v5336, %v5335
        %v5340 = vpack.c.b16 %v5338, %v5337
        %v5344 = vsel %vm4542, %v5325, 0
        %5346 = vmatpush.bf16.msra.mxu0 0
        %5347 = vmatpush.bf16.msra.mxu0 0
        %5348 = vmatpush.bf16.msra.mxu0 0
        %5349 = vmatpush.bf16.msra.mxu0 0
        %5350 = vmatpush.bf16.msra.mxu0 0
        %5351 = vmatpush.bf16.msra.mxu0 0
        %5352 = vmatpush.bf16.msra.mxu0 %v5340
        %5353 = vmatpush.bf16.msra.mxu0 %v5339
        %5354 = vmatmul.bf16.gmra.mxu0 %v5344
        %v5355 = vpop.f32.mrf.mxu0
        %v5356 = vadd.f32 0.0, %v5355
        %v5357 = vpop.f32.mrf.mxu0
        %5358 = vdwg.mxu0
        %v5359 = vadd.f32 %v5321, %v5356
        %v5360 = vld [vmem:[#allocation7 + $0x4] sm:$0x3f]
        %v5361 = vpack.c.bf16 %v5360, %v5360
        %s5362 = scalar_lea.vmem %s35, 48
        %v5363 = vld [vmem:[%s5362] sm:$0xf]
        %v5364 = vld [vmem:[%s5362 + $0x4] sm:$0xf]
        %v5365 = vld [vmem:[%s5362 + $0x8] sm:$0xf]
        %v5366 = vld [vmem:[%s5362 + $0xc] sm:$0xf]
        %v5371 = vunpack.c.l.b16 %v5363
        %v5372 = vunpack.c.l.b16 %v5364
        %v5373 = vunpack.c.l.b16 %v5365
        %v5374 = vunpack.c.l.b16 %v5366
        %v5375 = vpack.c.b16 %v5372, %v5371
        %v5376 = vpack.c.b16 %v5374, %v5373
        %v5380 = vsel %vm4542, %v5361, 0
        %5382 = vmatpush.bf16.msra.mxu0 0
        %5383 = vmatpush.bf16.msra.mxu0 0
        %5384 = vmatpush.bf16.msra.mxu0 0
        %5385 = vmatpush.bf16.msra.mxu0 0
        %5386 = vmatpush.bf16.msra.mxu0 0
        %5387 = vmatpush.bf16.msra.mxu0 0
        %5388 = vmatpush.bf16.msra.mxu0 %v5376
        %5389 = vmatpush.bf16.msra.mxu0 %v5375
        %5390 = vmatmul.bf16.gmra.mxu0 %v5380
        %v5391 = vpop.f32.mrf.mxu0
        %v5392 = vadd.f32 0.0, %v5391
        %v5393 = vpop.f32.mrf.mxu0
        %5394 = vdwg.mxu0
        %v5395 = vadd.f32 %v5359, %v5392
        %v5396 = vld [vmem:[#allocation7 + $0x5] sm:$0x3f]
        %v5397 = vpack.c.bf16 %v5396, %v5396
        %s5398 = scalar_lea.vmem %s35, 64
        %v5399 = vld [vmem:[%s5398] sm:$0xf]
        %v5400 = vld [vmem:[%s5398 + $0x4] sm:$0xf]
        %v5401 = vld [vmem:[%s5398 + $0x8] sm:$0xf]
        %v5402 = vld [vmem:[%s5398 + $0xc] sm:$0xf]
        %v5407 = vunpack.c.l.b16 %v5399
        %v5408 = vunpack.c.l.b16 %v5400
        %v5409 = vunpack.c.l.b16 %v5401
        %v5410 = vunpack.c.l.b16 %v5402
        %v5411 = vpack.c.b16 %v5408, %v5407
        %v5412 = vpack.c.b16 %v5410, %v5409
        %v5416 = vsel %vm4542, %v5397, 0
        %5418 = vmatpush.bf16.msra.mxu0 0
        %5419 = vmatpush.bf16.msra.mxu0 0
        %5420 = vmatpush.bf16.msra.mxu0 0
        %5421 = vmatpush.bf16.msra.mxu0 0
        %5422 = vmatpush.bf16.msra.mxu0 0
        %5423 = vmatpush.bf16.msra.mxu0 0
        %5424 = vmatpush.bf16.msra.mxu0 %v5412
        %5425 = vmatpush.bf16.msra.mxu0 %v5411
        %5426 = vmatmul.bf16.gmra.mxu0 %v5416
        %v5427 = vpop.f32.mrf.mxu0
        %v5428 = vadd.f32 0.0, %v5427
        %v5429 = vpop.f32.mrf.mxu0
        %5430 = vdwg.mxu0
        %v5431 = vadd.f32 %v5395, %v5428
        %v5432 = vld [vmem:[#allocation7 + $0x6] sm:$0x3f]
        %v5433 = vpack.c.bf16 %v5432, %v5432
        %s5434 = scalar_lea.vmem %s35, 80
        %v5435 = vld [vmem:[%s5434] sm:$0xf]
        %v5436 = vld [vmem:[%s5434 + $0x4] sm:$0xf]
        %v5437 = vld [vmem:[%s5434 + $0x8] sm:$0xf]
        %v5438 = vld [vmem:[%s5434 + $0xc] sm:$0xf]
        %v5443 = vunpack.c.l.b16 %v5435
        %v5444 = vunpack.c.l.b16 %v5436
        %v5445 = vunpack.c.l.b16 %v5437
        %v5446 = vunpack.c.l.b16 %v5438
        %v5447 = vpack.c.b16 %v5444, %v5443
        %v5448 = vpack.c.b16 %v5446, %v5445
        %v5452 = vsel %vm4542, %v5433, 0
        %5454 = vmatpush.bf16.msra.mxu0 0
        %5455 = vmatpush.bf16.msra.mxu0 0
        %5456 = vmatpush.bf16.msra.mxu0 0
        %5457 = vmatpush.bf16.msra.mxu0 0
        %5458 = vmatpush.bf16.msra.mxu0 0
        %5459 = vmatpush.bf16.msra.mxu0 0
        %5460 = vmatpush.bf16.msra.mxu0 %v5448
        %5461 = vmatpush.bf16.msra.mxu0 %v5447
        %5462 = vmatmul.bf16.gmra.mxu0 %v5452
        %v5463 = vpop.f32.mrf.mxu0
        %v5464 = vadd.f32 0.0, %v5463
        %v5465 = vpop.f32.mrf.mxu0
        %5466 = vdwg.mxu0
        %v5467 = vadd.f32 %v5431, %v5464
        %v5468 = vld [vmem:[#allocation7 + $0x8] sm:$0x3f]
        %v5469 = vpack.c.bf16 %v5468, %v5468
        %s5470 = scalar_lea.vmem %s35, 96
        %v5471 = vld [vmem:[%s5470] sm:$0xf]
        %v5472 = vld [vmem:[%s5470 + $0x4] sm:$0xf]
        %v5473 = vld [vmem:[%s5470 + $0x8] sm:$0xf]
        %v5474 = vld [vmem:[%s5470 + $0xc] sm:$0xf]
        %v5479 = vunpack.c.l.b16 %v5471
        %v5480 = vunpack.c.l.b16 %v5472
        %v5481 = vunpack.c.l.b16 %v5473
        %v5482 = vunpack.c.l.b16 %v5474
        %v5483 = vpack.c.b16 %v5480, %v5479
        %v5484 = vpack.c.b16 %v5482, %v5481
        %v5488 = vsel %vm4542, %v5469, 0
        %5490 = vmatpush.bf16.msra.mxu0 0
        %5491 = vmatpush.bf16.msra.mxu0 0
        %5492 = vmatpush.bf16.msra.mxu0 0
        %5493 = vmatpush.bf16.msra.mxu0 0
        %5494 = vmatpush.bf16.msra.mxu0 0
        %5495 = vmatpush.bf16.msra.mxu0 0
        %5496 = vmatpush.bf16.msra.mxu0 %v5484
        %5497 = vmatpush.bf16.msra.mxu0 %v5483
        %5498 = vmatmul.bf16.gmra.mxu0 %v5488
        %v5499 = vpop.f32.mrf.mxu0
        %v5500 = vadd.f32 0.0, %v5499
        %v5501 = vpop.f32.mrf.mxu0
        %5502 = vdwg.mxu0
        %v5503 = vadd.f32 %v5467, %v5500
        %v5504 = vld [vmem:[#allocation7 + $0x9] sm:$0x3f]
        %v5505 = vpack.c.bf16 %v5504, %v5504
        %s5506 = scalar_lea.vmem %s35, 112
        %v5507 = vld [vmem:[%s5506] sm:$0xf]
        %v5508 = vld [vmem:[%s5506 + $0x4] sm:$0xf]
        %v5509 = vld [vmem:[%s5506 + $0x8] sm:$0xf]
        %v5510 = vld [vmem:[%s5506 + $0xc] sm:$0xf]
        %v5515 = vunpack.c.l.b16 %v5507
        %v5516 = vunpack.c.l.b16 %v5508
        %v5517 = vunpack.c.l.b16 %v5509
        %v5518 = vunpack.c.l.b16 %v5510
        %v5519 = vpack.c.b16 %v5516, %v5515
        %v5520 = vpack.c.b16 %v5518, %v5517
        %v5524 = vsel %vm4542, %v5505, 0
        %5526 = vmatpush.bf16.msra.mxu0 0
        %5527 = vmatpush.bf16.msra.mxu0 0
        %5528 = vmatpush.bf16.msra.mxu0 0
        %5529 = vmatpush.bf16.msra.mxu0 0
        %5530 = vmatpush.bf16.msra.mxu0 0
        %5531 = vmatpush.bf16.msra.mxu0 0
        %5532 = vmatpush.bf16.msra.mxu0 %v5520
        %5533 = vmatpush.bf16.msra.mxu0 %v5519
        %5534 = vmatmul.bf16.gmra.mxu0 %v5524
        %v5535 = vpop.f32.mrf.mxu0
        %v5536 = vadd.f32 0.0, %v5535
        %v5537 = vpop.f32.mrf.mxu0
        %5538 = vdwg.mxu0
        %v5539 = vadd.f32 %v5503, %v5536
        %v5540 = vld [vmem:[#allocation7 + $0xa] sm:$0x3f]
        %v5541 = vpack.c.bf16 %v5540, %v5540
        %s5542 = scalar_lea.vmem %s35, 128
        %v5543 = vld [vmem:[%s5542] sm:$0xf]
        %v5544 = vld [vmem:[%s5542 + $0x4] sm:$0xf]
        %v5545 = vld [vmem:[%s5542 + $0x8] sm:$0xf]
        %v5546 = vld [vmem:[%s5542 + $0xc] sm:$0xf]
        %v5551 = vunpack.c.l.b16 %v5543
        %v5552 = vunpack.c.l.b16 %v5544
        %v5553 = vunpack.c.l.b16 %v5545
        %v5554 = vunpack.c.l.b16 %v5546
        %v5555 = vpack.c.b16 %v5552, %v5551
        %v5556 = vpack.c.b16 %v5554, %v5553
        %v5560 = vsel %vm4542, %v5541, 0
        %5562 = vmatpush.bf16.msra.mxu0 0
        %5563 = vmatpush.bf16.msra.mxu0 0
        %5564 = vmatpush.bf16.msra.mxu0 0
        %5565 = vmatpush.bf16.msra.mxu0 0
        %5566 = vmatpush.bf16.msra.mxu0 0
        %5567 = vmatpush.bf16.msra.mxu0 0
        %5568 = vmatpush.bf16.msra.mxu0 %v5556
        %5569 = vmatpush.bf16.msra.mxu0 %v5555
        %5570 = vmatmul.bf16.gmra.mxu0 %v5560
        %v5571 = vpop.f32.mrf.mxu0
        %v5572 = vadd.f32 0.0, %v5571
        %v5573 = vpop.f32.mrf.mxu0
        %5574 = vdwg.mxu0
        %v5575 = vadd.f32 %v5539, %v5572
        %v5576 = vld [vmem:[%s37] sm:$0x1]
        %v5578 = vperm.slane %v5576, 0
        %v5580 = vadd.f32 %v5575, %v5578
        %5581 = vst.msk [vmem:[%s962] sm:$0x3f] %vm4552, %v5580
        %vm5582 = vcmask 253952
        %5583 = vst.msk [vmem:[%s943] sm:$0x1] %vm5582, %v5580
        %v5584 = vld [vmem:[#allocation3] sm:$0xff]
        %v5585 = vld [vmem:[#allocation3 + $0x8] sm:$0xff]
        %v5586 = vld [vmem:[#allocation3 + $0x10] sm:$0xff]
        %v5587 = vld [vmem:[#allocation3 + $0x18] sm:$0xff]
        %v5588 = vld [vmem:[#allocation3 + $0x20] sm:$0xf]
        %v5589 = vpack.c.bf16 %v5585, %v5584
        %v5590 = vpack.c.bf16 %v5587, %v5586
        %v5591 = vpack.c.bf16 %v5588, %v5588
        %v5592 = vld [vmem:[%s19] sm:$0xf]
        %v5593 = vld [vmem:[%s19 + $0x4] sm:$0xf]
        %v5594 = vld [vmem:[%s19 + $0x8] sm:$0xf]
        %v5595 = vld [vmem:[%s19 + $0xc] sm:$0xf]
        %v5596 = vld [vmem:[%s21] sm:$0x1]
        %v5598 = vperm.slane %v5596, 0
        %v5604 = vunpack.c.l.b16 %v5592
        %v5605 = vunpack.c.l.b16 %v5593
        %v5606 = vunpack.c.l.b16 %v5594
        %v5607 = vunpack.c.l.b16 %v5595
        %v5608 = vpack.c.b16 %v5605, %v5604
        %v5609 = vpack.c.b16 %v5607, %v5606
        %v5613 = vsel %vm4542, %v5589, 0
        %v5616 = vsel %vm4542, %v5590, 0
        %v5619 = vsel %vm4542, %v5591, 0
        %5621 = vmatpush.bf16.msra.mxu0 0
        %5622 = vmatpush.bf16.msra.mxu0 0
        %5623 = vmatpush.bf16.msra.mxu0 0
        %5624 = vmatpush.bf16.msra.mxu0 0
        %5625 = vmatpush.bf16.msra.mxu0 0
        %5626 = vmatpush.bf16.msra.mxu0 0
        %5627 = vmatpush.bf16.msra.mxu0 %v5609
        %5628 = vmatpush.bf16.msra.mxu0 %v5608
        %5629 = vmatmul.bf16.gmra.mxu0 %v5613
        %v5630 = vpop.f32.mrf.mxu0
        %v5631 = vadd.f32 %v5598, %v5630
        %v5632 = vpop.f32.mrf.mxu0
        %v5633 = vadd.f32 %v5598, %v5632
        %5634 = vmatmul.bf16.gmra.mxu0 %v5616
        %v5635 = vpop.f32.mrf.mxu0
        %v5636 = vadd.f32 %v5598, %v5635
        %v5637 = vpop.f32.mrf.mxu0
        %v5638 = vadd.f32 %v5598, %v5637
        %5639 = vmatmul.bf16.gmra.mxu0 %v5619
        %v5640 = vpop.f32.mrf.mxu0
        %v5641 = vadd.f32 %v5598, %v5640
        %v5642 = vpop.f32.mrf.mxu0
        %5643 = vdwg.mxu0
        %v5644 = vld [vmem:[%s51] sm:$0xff]
        %v5645 = vld [vmem:[%s51 + $0x8] sm:$0xff]
        %v5646 = vld [vmem:[%s51 + $0x10] sm:$0xff]
        %v5647 = vld [vmem:[%s51 + $0x18] sm:$0xff]
        %v5648 = vld [vmem:[%s51 + $0x20] sm:$0xf]
        %5650 = vset.pattern.permute.xlu0 0
        %5651 = vperm.xlu0 %5650, %v5644
        %v5652 = vpop.permute.xlu0 %5651
        %5655 = vset.pattern.permute.xlu0 0
        %5656 = vperm.xlu0 %5655, %v5645
        %v5657 = vpop.permute.xlu0 %5656
        %5660 = vset.pattern.permute.xlu0 0
        %5661 = vperm.xlu0 %5660, %v5646
        %v5662 = vpop.permute.xlu0 %5661
        %5665 = vset.pattern.permute.xlu0 0
        %5666 = vperm.xlu0 %5665, %v5647
        %v5667 = vpop.permute.xlu0 %5666
        %5670 = vset.pattern.permute.xlu0 0
        %5671 = vperm.xlu0 %5670, %v5648
        %v5672 = vpop.permute.xlu0 %5671
        %v5674 = vmul.f32 %v5631, %v5652
        %v5675 = vmul.f32 %v5633, %v5657
        %v5676 = vmul.f32 %v5636, %v5662
        %v5677 = vmul.f32 %v5638, %v5667
        %v5678 = vmul.f32 %v5641, %v5672
        %v5679 = vld [vmem:[%s47] sm:$0xf]
        %v5680 = vld [vmem:[%s47 + $0x4] sm:$0xf]
        %v5681 = vld [vmem:[%s47 + $0x8] sm:$0xf]
        %v5682 = vld [vmem:[%s47 + $0xc] sm:$0xf]
        %v5683 = vld [vmem:[%s47 + $0x10] sm:$0x3]
        %v5684 = vpack.c.bf16 %v5252, %v5251
        %v5690 = vunpack.c.l.b16 %v5679
        %v5691 = vunpack.c.l.b16 %v5680
        %v5692 = vunpack.c.l.b16 %v5681
        %v5693 = vunpack.c.l.b16 %v5682
        %v5694 = vunpack.c.l.b16 %v5683
        %v5695 = vpack.c.b16 %v5691, %v5690
        %v5696 = vpack.c.b16 %v5693, %v5692
        %v5697 = vpack.c.b16 %v5694, %v5694
        %v5699 = vsel %vm3201, %v5695, 0
        %v5702 = vsel %vm3201, %v5696, 0
        %v5705 = vsel %vm3201, %v5697, 0
        %5707 = vmatpush.bf16.msra.mxu0 0
        %5708 = vmatpush.bf16.msra.mxu0 0
        %5709 = vmatpush.bf16.msra.mxu0 0
        %5710 = vmatpush.bf16.msra.mxu0 0
        %5711 = vmatpush.bf16.msra.mxu0 0
        %5712 = vmatpush.bf16.msra.mxu0 0
        %5713 = vmatpush.bf16.msra.mxu0 0
        %5714 = vmatpush.bf16.msra.mxu0 %v5684
        %5715 = vmatmul.bf16.gmra.mxu0 %v5699
        %v5716 = vpop.f32.mrf.mxu0
        %v5717 = vadd.f32 0.0, %v5716
        %v5718 = vpop.f32.mrf.mxu0
        %v5719 = vadd.f32 0.0, %v5718
        %5720 = vmatmul.bf16.gmra.mxu0 %v5702
        %v5721 = vpop.f32.mrf.mxu0
        %v5722 = vadd.f32 0.0, %v5721
        %v5723 = vpop.f32.mrf.mxu0
        %v5724 = vadd.f32 0.0, %v5723
        %5725 = vmatmul.bf16.gmra.mxu0 %v5705
        %v5726 = vpop.f32.mrf.mxu0
        %v5727 = vadd.f32 0.0, %v5726
        %v5728 = vpop.f32.mrf.mxu0
        %5729 = vdwg.mxu0
        %v5730 = vadd.f32 %v5674, %v5717
        %v5731 = vadd.f32 %v5675, %v5719
        %v5732 = vadd.f32 %v5676, %v5722
        %v5733 = vadd.f32 %v5677, %v5724
        %v5734 = vadd.f32 %v5678, %v5727
        %5735 = vst.msk [vmem:[#allocation6] sm:$0xff] %vm4542, %v5730
        %5736 = vst.msk [vmem:[#allocation6 + $0x8] sm:$0xff] %vm4542, %v5731
        %5737 = vst.msk [vmem:[#allocation6 + $0x10] sm:$0xff] %vm4542, %v5732
        %5738 = vst.msk [vmem:[#allocation6 + $0x18] sm:$0xff] %vm4542, %v5733
        %5739 = vst.msk [vmem:[#allocation6 + $0x20] sm:$0xf] %vm4683, %v5734
        %v5740 = vld [vmem:[#allocation6] sm:$0xff]
        %v5741 = vld [vmem:[#allocation6 + $0x8] sm:$0xff]
        %v5742 = vld [vmem:[#allocation6 + $0x10] sm:$0x3f]
        %v5743 = vpack.c.bf16 %v5741, %v5740
        %v5744 = vpack.c.bf16 %v5742, %v5742
        %v5745 = vld [vmem:[%s31] sm:$0xf]
        %v5746 = vld [vmem:[%s31 + $0x4] sm:$0xf]
        %v5747 = vld [vmem:[%s31 + $0x8] sm:$0xf]
        %v5748 = vld [vmem:[%s31 + $0xc] sm:$0xf]
        %v5749 = vld [vmem:[#allocation6 + $0x1] sm:$0xff]
        %v5750 = vld [vmem:[#allocation6 + $0x9] sm:$0xff]
        %v5751 = vld [vmem:[#allocation6 + $0x11] sm:$0x3f]
        %v5752 = vpack.c.bf16 %v5750, %v5749
        %v5753 = vpack.c.bf16 %v5751, %v5751
        %s5754 = scalar_lea.vmem %s31, 16
        %v5755 = vld [vmem:[%s5754] sm:$0xf]
        %v5756 = vld [vmem:[%s5754 + $0x4] sm:$0xf]
        %v5757 = vld [vmem:[%s5754 + $0x8] sm:$0xf]
        %v5758 = vld [vmem:[%s5754 + $0xc] sm:$0xf]
        %v5763 = vunpack.c.l.b16 %v5755
        %v5764 = vunpack.c.l.b16 %v5756
        %v5765 = vunpack.c.l.b16 %v5757
        %v5766 = vunpack.c.l.b16 %v5758
        %v5767 = vpack.c.b16 %v5764, %v5763
        %v5768 = vpack.c.b16 %v5766, %v5765
        %v5772 = vsel %vm4542, %v5752, 0
        %v5775 = vsel %vm4542, %v5753, 0
        %5777 = vmatpush.bf16.msra.mxu0 0
        %5778 = vmatpush.bf16.msra.mxu0 0
        %5779 = vmatpush.bf16.msra.mxu0 0
        %5780 = vmatpush.bf16.msra.mxu0 0
        %5781 = vmatpush.bf16.msra.mxu0 0
        %5782 = vmatpush.bf16.msra.mxu0 0
        %5783 = vmatpush.bf16.msra.mxu0 %v5768
        %5784 = vmatpush.bf16.msra.mxu0 %v5767
        %5785 = vmatmul.bf16.gmra.mxu0 %v5772
        %v5786 = vpop.f32.mrf.mxu0
        %v5787 = vadd.f32 0.0, %v5786
        %v5788 = vpop.f32.mrf.mxu0
        %v5789 = vadd.f32 0.0, %v5788
        %5790 = vmatmul.bf16.gmra.mxu0 %v5775
        %v5791 = vpop.f32.mrf.mxu0
        %v5792 = vadd.f32 0.0, %v5791
        %v5793 = vpop.f32.mrf.mxu0
        %5794 = vdwg.mxu0
        %v5799 = vunpack.c.l.b16 %v5745
        %v5800 = vunpack.c.l.b16 %v5746
        %v5801 = vunpack.c.l.b16 %v5747
        %v5802 = vunpack.c.l.b16 %v5748
        %v5803 = vpack.c.b16 %v5800, %v5799
        %v5804 = vpack.c.b16 %v5802, %v5801
        %v5808 = vsel %vm4542, %v5743, 0
        %v5811 = vsel %vm4542, %v5744, 0
        %5813 = vmatpush.bf16.msra.mxu0 0
        %5814 = vmatpush.bf16.msra.mxu0 0
        %5815 = vmatpush.bf16.msra.mxu0 0
        %5816 = vmatpush.bf16.msra.mxu0 0
        %5817 = vmatpush.bf16.msra.mxu0 0
        %5818 = vmatpush.bf16.msra.mxu0 0
        %5819 = vmatpush.bf16.msra.mxu0 %v5804
        %5820 = vmatpush.bf16.msra.mxu0 %v5803
        %5821 = vmatmul.bf16.gmra.mxu0 %v5808
        %v5822 = vpop.f32.mrf.mxu0
        %v5823 = vadd.f32 %v5787, %v5822
        %v5824 = vpop.f32.mrf.mxu0
        %v5825 = vadd.f32 %v5789, %v5824
        %5826 = vmatmul.bf16.gmra.mxu0 %v5811
        %v5827 = vpop.f32.mrf.mxu0
        %v5828 = vadd.f32 %v5792, %v5827
        %v5829 = vpop.f32.mrf.mxu0
        %5830 = vdwg.mxu0
        %v5831 = vld [vmem:[#allocation6 + $0x2] sm:$0xff]
        %v5832 = vld [vmem:[#allocation6 + $0xa] sm:$0xff]
        %v5833 = vld [vmem:[#allocation6 + $0x12] sm:$0x3f]
        %v5834 = vpack.c.bf16 %v5832, %v5831
        %v5835 = vpack.c.bf16 %v5833, %v5833
        %s5836 = scalar_lea.vmem %s31, 32
        %v5837 = vld [vmem:[%s5836] sm:$0xf]
        %v5838 = vld [vmem:[%s5836 + $0x4] sm:$0xf]
        %v5839 = vld [vmem:[%s5836 + $0x8] sm:$0xf]
        %v5840 = vld [vmem:[%s5836 + $0xc] sm:$0xf]
        %v5845 = vunpack.c.l.b16 %v5837
        %v5846 = vunpack.c.l.b16 %v5838
        %v5847 = vunpack.c.l.b16 %v5839
        %v5848 = vunpack.c.l.b16 %v5840
        %v5849 = vpack.c.b16 %v5846, %v5845
        %v5850 = vpack.c.b16 %v5848, %v5847
        %v5854 = vsel %vm4542, %v5834, 0
        %v5857 = vsel %vm4542, %v5835, 0
        %5859 = vmatpush.bf16.msra.mxu0 0
        %5860 = vmatpush.bf16.msra.mxu0 0
        %5861 = vmatpush.bf16.msra.mxu0 0
        %5862 = vmatpush.bf16.msra.mxu0 0
        %5863 = vmatpush.bf16.msra.mxu0 0
        %5864 = vmatpush.bf16.msra.mxu0 0
        %5865 = vmatpush.bf16.msra.mxu0 %v5850
        %5866 = vmatpush.bf16.msra.mxu0 %v5849
        %5867 = vmatmul.bf16.gmra.mxu0 %v5854
        %v5868 = vpop.f32.mrf.mxu0
        %v5869 = vadd.f32 0.0, %v5868
        %v5870 = vpop.f32.mrf.mxu0
        %v5871 = vadd.f32 0.0, %v5870
        %5872 = vmatmul.bf16.gmra.mxu0 %v5857
        %v5873 = vpop.f32.mrf.mxu0
        %v5874 = vadd.f32 0.0, %v5873
        %v5875 = vpop.f32.mrf.mxu0
        %5876 = vdwg.mxu0
        %v5877 = vadd.f32 %v5823, %v5869
        %v5878 = vadd.f32 %v5825, %v5871
        %v5879 = vadd.f32 %v5828, %v5874
        %v5880 = vld [vmem:[#allocation6 + $0x6] sm:$0xff]
        %v5881 = vld [vmem:[#allocation6 + $0xe] sm:$0xff]
        %v5882 = vld [vmem:[#allocation6 + $0x16] sm:$0x3f]
        %v5883 = vpack.c.bf16 %v5881, %v5880
        %v5884 = vpack.c.bf16 %v5882, %v5882
        %s5885 = scalar_lea.vmem %s31, 48
        %v5886 = vld [vmem:[%s5885] sm:$0xf]
        %v5887 = vld [vmem:[%s5885 + $0x4] sm:$0xf]
        %v5888 = vld [vmem:[%s5885 + $0x8] sm:$0xf]
        %v5889 = vld [vmem:[%s5885 + $0xc] sm:$0xf]
        %v5894 = vunpack.c.l.b16 %v5886
        %v5895 = vunpack.c.l.b16 %v5887
        %v5896 = vunpack.c.l.b16 %v5888
        %v5897 = vunpack.c.l.b16 %v5889
        %v5898 = vpack.c.b16 %v5895, %v5894
        %v5899 = vpack.c.b16 %v5897, %v5896
        %v5903 = vsel %vm4542, %v5883, 0
        %v5906 = vsel %vm4542, %v5884, 0
        %5908 = vmatpush.bf16.msra.mxu0 0
        %5909 = vmatpush.bf16.msra.mxu0 0
        %5910 = vmatpush.bf16.msra.mxu0 0
        %5911 = vmatpush.bf16.msra.mxu0 0
        %5912 = vmatpush.bf16.msra.mxu0 0
        %5913 = vmatpush.bf16.msra.mxu0 0
        %5914 = vmatpush.bf16.msra.mxu0 %v5899
        %5915 = vmatpush.bf16.msra.mxu0 %v5898
        %5916 = vmatmul.bf16.gmra.mxu0 %v5903
        %v5917 = vpop.f32.mrf.mxu0
        %v5918 = vadd.f32 0.0, %v5917
        %v5919 = vpop.f32.mrf.mxu0
        %v5920 = vadd.f32 0.0, %v5919
        %5921 = vmatmul.bf16.gmra.mxu0 %v5906
        %v5922 = vpop.f32.mrf.mxu0
        %v5923 = vadd.f32 0.0, %v5922
        %v5924 = vpop.f32.mrf.mxu0
        %5925 = vdwg.mxu0
        %v5926 = vadd.f32 %v5877, %v5918
        %v5927 = vadd.f32 %v5878, %v5920
        %v5928 = vadd.f32 %v5879, %v5923
        %v5929 = vld [vmem:[#allocation6 + $0x7] sm:$0xff]
        %v5930 = vld [vmem:[#allocation6 + $0xf] sm:$0xff]
        %v5931 = vld [vmem:[#allocation6 + $0x17] sm:$0x3f]
        %v5932 = vpack.c.bf16 %v5930, %v5929
        %v5933 = vpack.c.bf16 %v5931, %v5931
        %s5934 = scalar_lea.vmem %s31, 64
        %v5935 = vld [vmem:[%s5934] sm:$0xf]
        %v5936 = vld [vmem:[%s5934 + $0x4] sm:$0xf]
        %v5937 = vld [vmem:[%s5934 + $0x8] sm:$0xf]
        %v5938 = vld [vmem:[%s5934 + $0xc] sm:$0xf]
        %v5943 = vunpack.c.l.b16 %v5935
        %v5944 = vunpack.c.l.b16 %v5936
        %v5945 = vunpack.c.l.b16 %v5937
        %v5946 = vunpack.c.l.b16 %v5938
        %v5947 = vpack.c.b16 %v5944, %v5943
        %v5948 = vpack.c.b16 %v5946, %v5945
        %v5952 = vsel %vm4542, %v5932, 0
        %v5955 = vsel %vm4542, %v5933, 0
        %5957 = vmatpush.bf16.msra.mxu0 0
        %5958 = vmatpush.bf16.msra.mxu0 0
        %5959 = vmatpush.bf16.msra.mxu0 0
        %5960 = vmatpush.bf16.msra.mxu0 0
        %5961 = vmatpush.bf16.msra.mxu0 0
        %5962 = vmatpush.bf16.msra.mxu0 0
        %5963 = vmatpush.bf16.msra.mxu0 %v5948
        %5964 = vmatpush.bf16.msra.mxu0 %v5947
        %5965 = vmatmul.bf16.gmra.mxu0 %v5952
        %v5966 = vpop.f32.mrf.mxu0
        %v5967 = vadd.f32 0.0, %v5966
        %v5968 = vpop.f32.mrf.mxu0
        %v5969 = vadd.f32 0.0, %v5968
        %5970 = vmatmul.bf16.gmra.mxu0 %v5955
        %v5971 = vpop.f32.mrf.mxu0
        %v5972 = vadd.f32 0.0, %v5971
        %v5973 = vpop.f32.mrf.mxu0
        %5974 = vdwg.mxu0
        %v5975 = vadd.f32 %v5926, %v5967
        %v5976 = vadd.f32 %v5927, %v5969
        %v5977 = vadd.f32 %v5928, %v5972
        %v5978 = vld [vmem:[#allocation6 + $0x8] sm:$0xff]
        %v5979 = vld [vmem:[#allocation6 + $0x10] sm:$0xff]
        %v5980 = vld [vmem:[#allocation6 + $0x18] sm:$0x3f]
        %v5981 = vpack.c.bf16 %v5979, %v5978
        %v5982 = vpack.c.bf16 %v5980, %v5980
        %s5983 = scalar_lea.vmem %s31, 80
        %v5984 = vld [vmem:[%s5983] sm:$0xf]
        %v5985 = vld [vmem:[%s5983 + $0x4] sm:$0xf]
        %v5986 = vld [vmem:[%s5983 + $0x8] sm:$0xf]
        %v5987 = vld [vmem:[%s5983 + $0xc] sm:$0xf]
        %v5992 = vunpack.c.l.b16 %v5984
        %v5993 = vunpack.c.l.b16 %v5985
        %v5994 = vunpack.c.l.b16 %v5986
        %v5995 = vunpack.c.l.b16 %v5987
        %v5996 = vpack.c.b16 %v5993, %v5992
        %v5997 = vpack.c.b16 %v5995, %v5994
        %v6001 = vsel %vm4542, %v5981, 0
        %v6004 = vsel %vm4542, %v5982, 0
        %6006 = vmatpush.bf16.msra.mxu0 0
        %6007 = vmatpush.bf16.msra.mxu0 0
        %6008 = vmatpush.bf16.msra.mxu0 0
        %6009 = vmatpush.bf16.msra.mxu0 0
        %6010 = vmatpush.bf16.msra.mxu0 0
        %6011 = vmatpush.bf16.msra.mxu0 0
        %6012 = vmatpush.bf16.msra.mxu0 %v5997
        %6013 = vmatpush.bf16.msra.mxu0 %v5996
        %6014 = vmatmul.bf16.gmra.mxu0 %v6001
        %v6015 = vpop.f32.mrf.mxu0
        %v6016 = vadd.f32 0.0, %v6015
        %v6017 = vpop.f32.mrf.mxu0
        %v6018 = vadd.f32 0.0, %v6017
        %6019 = vmatmul.bf16.gmra.mxu0 %v6004
        %v6020 = vpop.f32.mrf.mxu0
        %v6021 = vadd.f32 0.0, %v6020
        %v6022 = vpop.f32.mrf.mxu0
        %6023 = vdwg.mxu0
        %v6024 = vadd.f32 %v5975, %v6016
        %v6025 = vadd.f32 %v5976, %v6018
        %v6026 = vadd.f32 %v5977, %v6021
        %v6027 = vld [vmem:[#allocation6 + $0xc] sm:$0xff]
        %v6028 = vld [vmem:[#allocation6 + $0x14] sm:$0xff]
        %v6029 = vld [vmem:[#allocation6 + $0x1c] sm:$0x3f]
        %v6030 = vpack.c.bf16 %v6028, %v6027
        %v6031 = vpack.c.bf16 %v6029, %v6029
        %s6032 = scalar_lea.vmem %s31, 96
        %v6033 = vld [vmem:[%s6032] sm:$0xf]
        %v6034 = vld [vmem:[%s6032 + $0x4] sm:$0xf]
        %v6035 = vld [vmem:[%s6032 + $0x8] sm:$0xf]
        %v6036 = vld [vmem:[%s6032 + $0xc] sm:$0xf]
        %v6041 = vunpack.c.l.b16 %v6033
        %v6042 = vunpack.c.l.b16 %v6034
        %v6043 = vunpack.c.l.b16 %v6035
        %v6044 = vunpack.c.l.b16 %v6036
        %v6045 = vpack.c.b16 %v6042, %v6041
        %v6046 = vpack.c.b16 %v6044, %v6043
        %v6050 = vsel %vm4542, %v6030, 0
        %v6053 = vsel %vm4542, %v6031, 0
        %6055 = vmatpush.bf16.msra.mxu0 0
        %6056 = vmatpush.bf16.msra.mxu0 0
        %6057 = vmatpush.bf16.msra.mxu0 0
        %6058 = vmatpush.bf16.msra.mxu0 0
        %6059 = vmatpush.bf16.msra.mxu0 0
        %6060 = vmatpush.bf16.msra.mxu0 0
        %6061 = vmatpush.bf16.msra.mxu0 %v6046
        %6062 = vmatpush.bf16.msra.mxu0 %v6045
        %6063 = vmatmul.bf16.gmra.mxu0 %v6050
        %v6064 = vpop.f32.mrf.mxu0
        %v6065 = vadd.f32 0.0, %v6064
        %v6066 = vpop.f32.mrf.mxu0
        %v6067 = vadd.f32 0.0, %v6066
        %6068 = vmatmul.bf16.gmra.mxu0 %v6053
        %v6069 = vpop.f32.mrf.mxu0
        %v6070 = vadd.f32 0.0, %v6069
        %v6071 = vpop.f32.mrf.mxu0
        %6072 = vdwg.mxu0
        %v6073 = vadd.f32 %v6024, %v6065
        %v6074 = vadd.f32 %v6025, %v6067
        %v6075 = vadd.f32 %v6026, %v6070
        %v6076 = vld [vmem:[#allocation6 + $0xd] sm:$0xff]
        %v6077 = vld [vmem:[#allocation6 + $0x15] sm:$0xff]
        %v6078 = vld [vmem:[#allocation6 + $0x1d] sm:$0x3f]
        %v6079 = vpack.c.bf16 %v6077, %v6076
        %v6080 = vpack.c.bf16 %v6078, %v6078
        %s6081 = scalar_lea.vmem %s31, 112
        %v6082 = vld [vmem:[%s6081] sm:$0xf]
        %v6083 = vld [vmem:[%s6081 + $0x4] sm:$0xf]
        %v6084 = vld [vmem:[%s6081 + $0x8] sm:$0xf]
        %v6085 = vld [vmem:[%s6081 + $0xc] sm:$0xf]
        %v6090 = vunpack.c.l.b16 %v6082
        %v6091 = vunpack.c.l.b16 %v6083
        %v6092 = vunpack.c.l.b16 %v6084
        %v6093 = vunpack.c.l.b16 %v6085
        %v6094 = vpack.c.b16 %v6091, %v6090
        %v6095 = vpack.c.b16 %v6093, %v6092
        %v6099 = vsel %vm4542, %v6079, 0
        %v6102 = vsel %vm4542, %v6080, 0
        %6104 = vmatpush.bf16.msra.mxu0 0
        %6105 = vmatpush.bf16.msra.mxu0 0
        %6106 = vmatpush.bf16.msra.mxu0 0
        %6107 = vmatpush.bf16.msra.mxu0 0
        %6108 = vmatpush.bf16.msra.mxu0 0
        %6109 = vmatpush.bf16.msra.mxu0 0
        %6110 = vmatpush.bf16.msra.mxu0 %v6095
        %6111 = vmatpush.bf16.msra.mxu0 %v6094
        %6112 = vmatmul.bf16.gmra.mxu0 %v6099
        %v6113 = vpop.f32.mrf.mxu0
        %v6114 = vadd.f32 0.0, %v6113
        %v6115 = vpop.f32.mrf.mxu0
        %v6116 = vadd.f32 0.0, %v6115
        %6117 = vmatmul.bf16.gmra.mxu0 %v6102
        %v6118 = vpop.f32.mrf.mxu0
        %v6119 = vadd.f32 0.0, %v6118
        %v6120 = vpop.f32.mrf.mxu0
        %6121 = vdwg.mxu0
        %v6122 = vadd.f32 %v6073, %v6114
        %v6123 = vadd.f32 %v6074, %v6116
        %v6124 = vadd.f32 %v6075, %v6119
        %v6125 = vld [vmem:[#allocation6 + $0xe] sm:$0xff]
        %v6126 = vld [vmem:[#allocation6 + $0x16] sm:$0xff]
        %v6127 = vld [vmem:[#allocation6 + $0x1e] sm:$0x3f]
        %v6128 = vpack.c.bf16 %v6126, %v6125
        %v6129 = vpack.c.bf16 %v6127, %v6127
        %s6130 = scalar_lea.vmem %s31, 128
        %v6131 = vld [vmem:[%s6130] sm:$0xf]
        %v6132 = vld [vmem:[%s6130 + $0x4] sm:$0xf]
        %v6133 = vld [vmem:[%s6130 + $0x8] sm:$0xf]
        %v6134 = vld [vmem:[%s6130 + $0xc] sm:$0xf]
        %v6139 = vunpack.c.l.b16 %v6131
        %v6140 = vunpack.c.l.b16 %v6132
        %v6141 = vunpack.c.l.b16 %v6133
        %v6142 = vunpack.c.l.b16 %v6134
        %v6143 = vpack.c.b16 %v6140, %v6139
        %v6144 = vpack.c.b16 %v6142, %v6141
        %v6148 = vsel %vm4542, %v6128, 0
        %v6151 = vsel %vm4542, %v6129, 0
        %6153 = vmatpush.bf16.msra.mxu0 0
        %6154 = vmatpush.bf16.msra.mxu0 0
        %6155 = vmatpush.bf16.msra.mxu0 0
        %6156 = vmatpush.bf16.msra.mxu0 0
        %6157 = vmatpush.bf16.msra.mxu0 0
        %6158 = vmatpush.bf16.msra.mxu0 0
        %6159 = vmatpush.bf16.msra.mxu0 %v6144
        %6160 = vmatpush.bf16.msra.mxu0 %v6143
        %6161 = vmatmul.bf16.gmra.mxu0 %v6148
        %v6162 = vpop.f32.mrf.mxu0
        %v6163 = vadd.f32 0.0, %v6162
        %v6164 = vpop.f32.mrf.mxu0
        %v6165 = vadd.f32 0.0, %v6164
        %6166 = vmatmul.bf16.gmra.mxu0 %v6151
        %v6167 = vpop.f32.mrf.mxu0
        %v6168 = vadd.f32 0.0, %v6167
        %v6169 = vpop.f32.mrf.mxu0
        %6170 = vdwg.mxu0
        %v6171 = vadd.f32 %v6122, %v6163
        %v6172 = vadd.f32 %v6123, %v6165
        %v6173 = vadd.f32 %v6124, %v6168
        %v6174 = vld [vmem:[%s33] sm:$0x1]
        %v6176 = vperm.slane %v6174, 0
        %v6178 = vadd.f32 %v6171, %v6176
        %v6179 = vadd.f32 %v6172, %v6176
        %v6180 = vadd.f32 %v6173, %v6176
        %6181 = vst.msk [vmem:[%s958] sm:$0xff] %vm4542, %v6178
        %6182 = vst.msk [vmem:[%s958 + $0x8] sm:$0xff] %vm4542, %v6179
        %6183 = vst.msk [vmem:[%s958 + $0x10] sm:$0x3f] %vm4552, %v6180
        %v6184 = vld [vmem:[#allocation2] sm:$0xff]
        %v6185 = vld [vmem:[#allocation2 + $0x8] sm:$0xff]
        %v6186 = vld [vmem:[#allocation2 + $0x10] sm:$0xff]
        %v6187 = vld [vmem:[#allocation2 + $0x18] sm:$0xff]
        %v6188 = vld [vmem:[#allocation2 + $0x20] sm:$0xff]
        %v6189 = vld [vmem:[#allocation2 + $0x28] sm:$0xff]
        %v6190 = vld [vmem:[#allocation2 + $0x30] sm:$0xff]
        %v6191 = vld [vmem:[#allocation2 + $0x38] sm:$0xff]
        %v6192 = vld [vmem:[#allocation2 + $0x40] sm:$0xff]
        %v6193 = vld [vmem:[#allocation2 + $0x48] sm:$0xff]
        %v6194 = vld [vmem:[#allocation2 + $0x50] sm:$0xff]
        %v6195 = vld [vmem:[#allocation2 + $0x58] sm:$0xff]
        %v6196 = vld [vmem:[#allocation2 + $0x60] sm:$0xf]
        %v6197 = vpack.c.bf16 %v6185, %v6184
        %v6198 = vpack.c.bf16 %v6187, %v6186
        %v6199 = vpack.c.bf16 %v6189, %v6188
        %v6200 = vpack.c.bf16 %v6191, %v6190
        %v6201 = vpack.c.bf16 %v6193, %v6192
        %v6202 = vpack.c.bf16 %v6195, %v6194
        %v6203 = vpack.c.bf16 %v6196, %v6196
        %v6204 = vld [vmem:[%s15] sm:$0xf]
        %v6205 = vld [vmem:[%s15 + $0x4] sm:$0xf]
        %v6206 = vld [vmem:[%s17] sm:$0x1]
        %v6208 = vperm.slane %v6206, 0
        %v6212 = vunpack.c.l.b16 %v6204
        %v6213 = vunpack.c.l.b16 %v6205
        %v6214 = vpack.c.b16 %v6213, %v6212
        %v6217 = vsel %vm3201, %v6197, 0
        %v6220 = vsel %vm3201, %v6198, 0
        %v6223 = vsel %vm3201, %v6199, 0
        %v6226 = vsel %vm3201, %v6200, 0
        %v6229 = vsel %vm3201, %v6201, 0
        %v6232 = vsel %vm3201, %v6202, 0
        %v6235 = vsel %vm3201, %v6203, 0
        %6237 = vmatpush.bf16.msra.mxu0 0
        %6238 = vmatpush.bf16.msra.mxu0 0
        %6239 = vmatpush.bf16.msra.mxu0 0
        %6240 = vmatpush.bf16.msra.mxu0 0
        %6241 = vmatpush.bf16.msra.mxu0 0
        %6242 = vmatpush.bf16.msra.mxu0 0
        %6243 = vmatpush.bf16.msra.mxu0 0
        %6244 = vmatpush.bf16.msra.mxu0 %v6214
        %6245 = vmatmul.bf16.gmra.mxu0 %v6217
        %v6246 = vpop.f32.mrf.mxu0
        %v6247 = vadd.f32 %v6208, %v6246
        %v6248 = vpop.f32.mrf.mxu0
        %v6249 = vadd.f32 %v6208, %v6248
        %6250 = vmatmul.bf16.gmra.mxu0 %v6220
        %v6251 = vpop.f32.mrf.mxu0
        %v6252 = vadd.f32 %v6208, %v6251
        %v6253 = vpop.f32.mrf.mxu0
        %v6254 = vadd.f32 %v6208, %v6253
        %6255 = vmatmul.bf16.gmra.mxu0 %v6223
        %v6256 = vpop.f32.mrf.mxu0
        %v6257 = vadd.f32 %v6208, %v6256
        %v6258 = vpop.f32.mrf.mxu0
        %v6259 = vadd.f32 %v6208, %v6258
        %6260 = vmatmul.bf16.gmra.mxu0 %v6226
        %v6261 = vpop.f32.mrf.mxu0
        %v6262 = vadd.f32 %v6208, %v6261
        %v6263 = vpop.f32.mrf.mxu0
        %v6264 = vadd.f32 %v6208, %v6263
        %6265 = vmatmul.bf16.gmra.mxu0 %v6229
        %v6266 = vpop.f32.mrf.mxu0
        %v6267 = vadd.f32 %v6208, %v6266
        %v6268 = vpop.f32.mrf.mxu0
        %v6269 = vadd.f32 %v6208, %v6268
        %6270 = vmatmul.bf16.gmra.mxu0 %v6232
        %v6271 = vpop.f32.mrf.mxu0
        %v6272 = vadd.f32 %v6208, %v6271
        %v6273 = vpop.f32.mrf.mxu0
        %v6274 = vadd.f32 %v6208, %v6273
        %6275 = vmatmul.bf16.gmra.mxu0 %v6235
        %v6276 = vpop.f32.mrf.mxu0
        %v6277 = vadd.f32 %v6208, %v6276
        %v6278 = vpop.f32.mrf.mxu0
        %6279 = vdwg.mxu0
        %v6280 = vld [vmem:[%s49] sm:$0xff]
        %v6281 = vld [vmem:[%s49 + $0x8] sm:$0xff]
        %v6282 = vld [vmem:[%s49 + $0x10] sm:$0xff]
        %v6283 = vld [vmem:[%s49 + $0x18] sm:$0xff]
        %v6284 = vld [vmem:[%s49 + $0x20] sm:$0xff]
        %v6285 = vld [vmem:[%s49 + $0x28] sm:$0xff]
        %v6286 = vld [vmem:[%s49 + $0x30] sm:$0xff]
        %v6287 = vld [vmem:[%s49 + $0x38] sm:$0xff]
        %v6288 = vld [vmem:[%s49 + $0x40] sm:$0xff]
        %v6289 = vld [vmem:[%s49 + $0x48] sm:$0xff]
        %v6290 = vld [vmem:[%s49 + $0x50] sm:$0xff]
        %v6291 = vld [vmem:[%s49 + $0x58] sm:$0xff]
        %v6292 = vld [vmem:[%s49 + $0x60] sm:$0xf]
        %6294 = vset.pattern.permute.xlu0 0
        %6295 = vperm.xlu0 %6294, %v6280
        %v6296 = vpop.permute.xlu0 %6295
        %6299 = vset.pattern.permute.xlu0 0
        %6300 = vperm.xlu0 %6299, %v6281
        %v6301 = vpop.permute.xlu0 %6300
        %6304 = vset.pattern.permute.xlu0 0
        %6305 = vperm.xlu0 %6304, %v6282
        %v6306 = vpop.permute.xlu0 %6305
        %6309 = vset.pattern.permute.xlu0 0
        %6310 = vperm.xlu0 %6309, %v6283
        %v6311 = vpop.permute.xlu0 %6310
        %6314 = vset.pattern.permute.xlu0 0
        %6315 = vperm.xlu0 %6314, %v6284
        %v6316 = vpop.permute.xlu0 %6315
        %6319 = vset.pattern.permute.xlu0 0
        %6320 = vperm.xlu0 %6319, %v6285
        %v6321 = vpop.permute.xlu0 %6320
        %6324 = vset.pattern.permute.xlu0 0
        %6325 = vperm.xlu0 %6324, %v6286
        %v6326 = vpop.permute.xlu0 %6325
        %6329 = vset.pattern.permute.xlu0 0
        %6330 = vperm.xlu0 %6329, %v6287
        %v6331 = vpop.permute.xlu0 %6330
        %6334 = vset.pattern.permute.xlu0 0
        %6335 = vperm.xlu0 %6334, %v6288
        %v6336 = vpop.permute.xlu0 %6335
        %6339 = vset.pattern.permute.xlu0 0
        %6340 = vperm.xlu0 %6339, %v6289
        %v6341 = vpop.permute.xlu0 %6340
        %6344 = vset.pattern.permute.xlu0 0
        %6345 = vperm.xlu0 %6344, %v6290
        %v6346 = vpop.permute.xlu0 %6345
        %6349 = vset.pattern.permute.xlu0 0
        %6350 = vperm.xlu0 %6349, %v6291
        %v6351 = vpop.permute.xlu0 %6350
        %6354 = vset.pattern.permute.xlu0 0
        %6355 = vperm.xlu0 %6354, %v6292
        %v6356 = vpop.permute.xlu0 %6355
        %v6358 = vmul.f32 %v6247, %v6296
        %v6359 = vmul.f32 %v6249, %v6301
        %v6360 = vmul.f32 %v6252, %v6306
        %v6361 = vmul.f32 %v6254, %v6311
        %v6362 = vmul.f32 %v6257, %v6316
        %v6363 = vmul.f32 %v6259, %v6321
        %v6364 = vmul.f32 %v6262, %v6326
        %v6365 = vmul.f32 %v6264, %v6331
        %v6366 = vmul.f32 %v6267, %v6336
        %v6367 = vmul.f32 %v6269, %v6341
        %v6368 = vmul.f32 %v6272, %v6346
        %v6369 = vmul.f32 %v6274, %v6351
        %v6370 = vmul.f32 %v6277, %v6356
        %v6371 = vld [vmem:[%s45] sm:$0xf]
        %v6372 = vld [vmem:[%s45 + $0x4] sm:$0xf]
        %v6373 = vld [vmem:[%s45 + $0x8] sm:$0xf]
        %v6374 = vld [vmem:[%s45 + $0xc] sm:$0xf]
        %v6375 = vld [vmem:[%s45 + $0x10] sm:$0xf]
        %v6376 = vld [vmem:[%s45 + $0x14] sm:$0xf]
        %v6377 = vld [vmem:[%s45 + $0x18] sm:$0xf]
        %v6378 = vld [vmem:[%s45 + $0x1c] sm:$0xf]
        %v6379 = vld [vmem:[%s45 + $0x20] sm:$0xf]
        %v6380 = vld [vmem:[%s45 + $0x24] sm:$0xf]
        %v6381 = vld [vmem:[%s45 + $0x28] sm:$0xf]
        %v6382 = vld [vmem:[%s45 + $0x2c] sm:$0xf]
        %v6383 = vld [vmem:[%s45 + $0x30] sm:$0x3]
        %v6384 = vpack.c.bf16 %v5731, %v5730
        %v6385 = vpack.c.bf16 %v5733, %v5732
        %v6386 = vpack.c.bf16 %v5734, %v5734
        %v6400 = vunpack.c.l.b16 %v6371
        %v6401 = vunpack.c.l.b16 %v6372
        %v6402 = vunpack.c.l.b16 %v6373
        %v6403 = vunpack.c.l.b16 %v6374
        %v6404 = vunpack.c.l.b16 %v6375
        %v6405 = vunpack.c.l.b16 %v6376
        %v6406 = vunpack.c.l.b16 %v6377
        %v6407 = vunpack.c.l.b16 %v6378
        %v6408 = vunpack.c.l.b16 %v6379
        %v6409 = vunpack.c.l.b16 %v6380
        %v6410 = vunpack.c.l.b16 %v6381
        %v6411 = vunpack.c.l.b16 %v6382
        %v6412 = vunpack.c.l.b16 %v6383
        %v6413 = vpack.c.b16 %v6401, %v6400
        %v6414 = vpack.c.b16 %v6403, %v6402
        %v6415 = vpack.c.b16 %v6405, %v6404
        %v6416 = vpack.c.b16 %v6407, %v6406
        %v6417 = vpack.c.b16 %v6409, %v6408
        %v6418 = vpack.c.b16 %v6411, %v6410
        %v6419 = vpack.c.b16 %v6412, %v6412
        %vm6420 = vcmask 293888
        %v6422 = vsel %vm6420, %v6413, 0
        %v6425 = vsel %vm6420, %v6414, 0
        %v6428 = vsel %vm6420, %v6415, 0
        %v6431 = vsel %vm6420, %v6416, 0
        %v6434 = vsel %vm6420, %v6417, 0
        %v6437 = vsel %vm6420, %v6418, 0
        %v6440 = vsel %vm6420, %v6419, 0
        %v6443 = vsel %vm1130, %v6386, 0
        %6445 = vmatpush.bf16.msra.mxu0 0
        %6446 = vmatpush.bf16.msra.mxu0 0
        %6447 = vmatpush.bf16.msra.mxu0 0
        %6448 = vmatpush.bf16.msra.mxu0 0
        %6449 = vmatpush.bf16.msra.mxu0 0
        %6450 = vmatpush.bf16.msra.mxu0 %v6443
        %6451 = vmatpush.bf16.msra.mxu0 %v6385
        %6452 = vmatpush.bf16.msra.mxu0 %v6384
        %6453 = vmatmul.bf16.gmra.mxu0 %v6422
        %v6454 = vpop.f32.mrf.mxu0
        %v6455 = vadd.f32 0.0, %v6454
        %v6456 = vpop.f32.mrf.mxu0
        %v6457 = vadd.f32 0.0, %v6456
        %6458 = vmatmul.bf16.gmra.mxu0 %v6425
        %v6459 = vpop.f32.mrf.mxu0
        %v6460 = vadd.f32 0.0, %v6459
        %v6461 = vpop.f32.mrf.mxu0
        %v6462 = vadd.f32 0.0, %v6461
        %6463 = vmatmul.bf16.gmra.mxu0 %v6428
        %v6464 = vpop.f32.mrf.mxu0
        %v6465 = vadd.f32 0.0, %v6464
        %v6466 = vpop.f32.mrf.mxu0
        %v6467 = vadd.f32 0.0, %v6466
        %6468 = vmatmul.bf16.gmra.mxu0 %v6431
        %v6469 = vpop.f32.mrf.mxu0
        %v6470 = vadd.f32 0.0, %v6469
        %v6471 = vpop.f32.mrf.mxu0
        %v6472 = vadd.f32 0.0, %v6471
        %6473 = vmatmul.bf16.gmra.mxu0 %v6434
        %v6474 = vpop.f32.mrf.mxu0
        %v6475 = vadd.f32 0.0, %v6474
        %v6476 = vpop.f32.mrf.mxu0
        %v6477 = vadd.f32 0.0, %v6476
        %6478 = vmatmul.bf16.gmra.mxu0 %v6437
        %v6479 = vpop.f32.mrf.mxu0
        %v6480 = vadd.f32 0.0, %v6479
        %v6481 = vpop.f32.mrf.mxu0
        %v6482 = vadd.f32 0.0, %v6481
        %6483 = vmatmul.bf16.gmra.mxu0 %v6440
        %v6484 = vpop.f32.mrf.mxu0
        %v6485 = vadd.f32 0.0, %v6484
        %v6486 = vpop.f32.mrf.mxu0
        %6487 = vdwg.mxu0
        %v6488 = vadd.f32 %v6358, %v6455
        %v6489 = vadd.f32 %v6359, %v6457
        %v6490 = vadd.f32 %v6360, %v6460
        %v6491 = vadd.f32 %v6361, %v6462
        %v6492 = vadd.f32 %v6362, %v6465
        %v6493 = vadd.f32 %v6363, %v6467
        %v6494 = vadd.f32 %v6364, %v6470
        %v6495 = vadd.f32 %v6365, %v6472
        %v6496 = vadd.f32 %v6366, %v6475
        %v6497 = vadd.f32 %v6367, %v6477
        %v6498 = vadd.f32 %v6368, %v6480
        %v6499 = vadd.f32 %v6369, %v6482
        %v6500 = vadd.f32 %v6370, %v6485
        %6501 = vst.msk [vmem:[#allocation5] sm:$0xff] %vm4542, %v6488
        %6502 = vst.msk [vmem:[#allocation5 + $0x8] sm:$0xff] %vm4542, %v6489
        %6503 = vst.msk [vmem:[#allocation5 + $0x10] sm:$0xff] %vm4542, %v6490
        %6504 = vst.msk [vmem:[#allocation5 + $0x18] sm:$0xff] %vm4542, %v6491
        %6505 = vst.msk [vmem:[#allocation5 + $0x20] sm:$0xff] %vm4542, %v6492
        %6506 = vst.msk [vmem:[#allocation5 + $0x28] sm:$0xff] %vm4542, %v6493
        %6507 = vst.msk [vmem:[#allocation5 + $0x30] sm:$0xff] %vm4542, %v6494
        %6508 = vst.msk [vmem:[#allocation5 + $0x38] sm:$0xff] %vm4542, %v6495
        %6509 = vst.msk [vmem:[#allocation5 + $0x40] sm:$0xff] %vm4542, %v6496
        %6510 = vst.msk [vmem:[#allocation5 + $0x48] sm:$0xff] %vm4542, %v6497
        %6511 = vst.msk [vmem:[#allocation5 + $0x50] sm:$0xff] %vm4542, %v6498
        %6512 = vst.msk [vmem:[#allocation5 + $0x58] sm:$0xff] %vm4542, %v6499
        %6513 = vst.msk [vmem:[#allocation5 + $0x60] sm:$0xf] %vm4683, %v6500
        %v6514 = vld [vmem:[#allocation5] sm:$0xff]
        %v6515 = vld [vmem:[#allocation5 + $0x8] sm:$0xff]
        %v6516 = vld [vmem:[#allocation5 + $0x10] sm:$0xff]
        %v6517 = vld [vmem:[#allocation5 + $0x18] sm:$0xff]
        %v6518 = vld [vmem:[#allocation5 + $0x20] sm:$0xff]
        %v6519 = vld [vmem:[#allocation5 + $0x28] sm:$0xff]
        %v6520 = vld [vmem:[#allocation5 + $0x30] sm:$0xff]
        %v6521 = vld [vmem:[#allocation5 + $0x38] sm:$0xff]
        %v6522 = vld [vmem:[#allocation5 + $0x40] sm:$0xff]
        %v6523 = vld [vmem:[#allocation5 + $0x48] sm:$0x3f]
        %v6524 = vpack.c.bf16 %v6515, %v6514
        %v6525 = vpack.c.bf16 %v6517, %v6516
        %v6526 = vpack.c.bf16 %v6519, %v6518
        %v6527 = vpack.c.bf16 %v6521, %v6520
        %v6528 = vpack.c.bf16 %v6523, %v6522
        %v6529 = vld [vmem:[%s27] sm:$0xf]
        %v6530 = vld [vmem:[%s27 + $0x4] sm:$0xf]
        %v6531 = vld [vmem:[%s27 + $0x8] sm:$0xf]
        %v6532 = vld [vmem:[%s27 + $0xc] sm:$0xf]
        %v6533 = vld [vmem:[#allocation5 + $0x1] sm:$0xff]
        %v6534 = vld [vmem:[#allocation5 + $0x9] sm:$0xff]
        %v6535 = vld [vmem:[#allocation5 + $0x11] sm:$0xff]
        %v6536 = vld [vmem:[#allocation5 + $0x19] sm:$0xff]
        %v6537 = vld [vmem:[#allocation5 + $0x21] sm:$0xff]
        %v6538 = vld [vmem:[#allocation5 + $0x29] sm:$0xff]
        %v6539 = vld [vmem:[#allocation5 + $0x31] sm:$0xff]
        %v6540 = vld [vmem:[#allocation5 + $0x39] sm:$0xff]
        %v6541 = vld [vmem:[#allocation5 + $0x41] sm:$0xff]
        %v6542 = vld [vmem:[#allocation5 + $0x49] sm:$0x3f]
        %v6543 = vpack.c.bf16 %v6534, %v6533
        %v6544 = vpack.c.bf16 %v6536, %v6535
        %v6545 = vpack.c.bf16 %v6538, %v6537
        %v6546 = vpack.c.bf16 %v6540, %v6539
        %v6547 = vpack.c.bf16 %v6542, %v6541
        %s6548 = scalar_lea.vmem %s27, 16
        %v6549 = vld [vmem:[%s6548] sm:$0xf]
        %v6550 = vld [vmem:[%s6548 + $0x4] sm:$0xf]
        %v6551 = vld [vmem:[%s6548 + $0x8] sm:$0xf]
        %v6552 = vld [vmem:[%s6548 + $0xc] sm:$0xf]
        %v6557 = vunpack.c.l.b16 %v6549
        %v6558 = vunpack.c.l.b16 %v6550
        %v6559 = vunpack.c.l.b16 %v6551
        %v6560 = vunpack.c.l.b16 %v6552
        %v6561 = vpack.c.b16 %v6558, %v6557
        %v6562 = vpack.c.b16 %v6560, %v6559
        %v6566 = vsel %vm4542, %v6543, 0
        %v6569 = vsel %vm4542, %v6544, 0
        %v6572 = vsel %vm4542, %v6545, 0
        %v6575 = vsel %vm4542, %v6546, 0
        %v6578 = vsel %vm4542, %v6547, 0
        %6580 = vmatpush.bf16.msra.mxu0 0
        %6581 = vmatpush.bf16.msra.mxu0 0
        %6582 = vmatpush.bf16.msra.mxu0 0
        %6583 = vmatpush.bf16.msra.mxu0 0
        %6584 = vmatpush.bf16.msra.mxu0 0
        %6585 = vmatpush.bf16.msra.mxu0 0
        %6586 = vmatpush.bf16.msra.mxu0 %v6562
        %6587 = vmatpush.bf16.msra.mxu0 %v6561
        %6588 = vmatmul.bf16.gmra.mxu0 %v6566
        %v6589 = vpop.f32.mrf.mxu0
        %v6590 = vadd.f32 0.0, %v6589
        %v6591 = vpop.f32.mrf.mxu0
        %v6592 = vadd.f32 0.0, %v6591
        %6593 = vmatmul.bf16.gmra.mxu0 %v6569
        %v6594 = vpop.f32.mrf.mxu0
        %v6595 = vadd.f32 0.0, %v6594
        %v6596 = vpop.f32.mrf.mxu0
        %v6597 = vadd.f32 0.0, %v6596
        %6598 = vmatmul.bf16.gmra.mxu0 %v6572
        %v6599 = vpop.f32.mrf.mxu0
        %v6600 = vadd.f32 0.0, %v6599
        %v6601 = vpop.f32.mrf.mxu0
        %v6602 = vadd.f32 0.0, %v6601
        %6603 = vmatmul.bf16.gmra.mxu0 %v6575
        %v6604 = vpop.f32.mrf.mxu0
        %v6605 = vadd.f32 0.0, %v6604
        %v6606 = vpop.f32.mrf.mxu0
        %v6607 = vadd.f32 0.0, %v6606
        %6608 = vmatmul.bf16.gmra.mxu0 %v6578
        %v6609 = vpop.f32.mrf.mxu0
        %v6610 = vadd.f32 0.0, %v6609
        %v6611 = vpop.f32.mrf.mxu0
        %v6612 = vadd.f32 0.0, %v6611
        %6613 = vdwg.mxu0
        %v6618 = vunpack.c.l.b16 %v6529
        %v6619 = vunpack.c.l.b16 %v6530
        %v6620 = vunpack.c.l.b16 %v6531
        %v6621 = vunpack.c.l.b16 %v6532
        %v6622 = vpack.c.b16 %v6619, %v6618
        %v6623 = vpack.c.b16 %v6621, %v6620
        %v6627 = vsel %vm4542, %v6524, 0
        %v6630 = vsel %vm4542, %v6525, 0
        %v6633 = vsel %vm4542, %v6526, 0
        %v6636 = vsel %vm4542, %v6527, 0
        %v6639 = vsel %vm4542, %v6528, 0
        %6641 = vmatpush.bf16.msra.mxu0 0
        %6642 = vmatpush.bf16.msra.mxu0 0
        %6643 = vmatpush.bf16.msra.mxu0 0
        %6644 = vmatpush.bf16.msra.mxu0 0
        %6645 = vmatpush.bf16.msra.mxu0 0
        %6646 = vmatpush.bf16.msra.mxu0 0
        %6647 = vmatpush.bf16.msra.mxu0 %v6623
        %6648 = vmatpush.bf16.msra.mxu0 %v6622
        %6649 = vmatmul.bf16.gmra.mxu0 %v6627
        %v6650 = vpop.f32.mrf.mxu0
        %v6651 = vadd.f32 %v6590, %v6650
        %v6652 = vpop.f32.mrf.mxu0
        %v6653 = vadd.f32 %v6592, %v6652
        %6654 = vmatmul.bf16.gmra.mxu0 %v6630
        %v6655 = vpop.f32.mrf.mxu0
        %v6656 = vadd.f32 %v6595, %v6655
        %v6657 = vpop.f32.mrf.mxu0
        %v6658 = vadd.f32 %v6597, %v6657
        %6659 = vmatmul.bf16.gmra.mxu0 %v6633
        %v6660 = vpop.f32.mrf.mxu0
        %v6661 = vadd.f32 %v6600, %v6660
        %v6662 = vpop.f32.mrf.mxu0
        %v6663 = vadd.f32 %v6602, %v6662
        %6664 = vmatmul.bf16.gmra.mxu0 %v6636
        %v6665 = vpop.f32.mrf.mxu0
        %v6666 = vadd.f32 %v6605, %v6665
        %v6667 = vpop.f32.mrf.mxu0
        %v6668 = vadd.f32 %v6607, %v6667
        %6669 = vmatmul.bf16.gmra.mxu0 %v6639
        %v6670 = vpop.f32.mrf.mxu0
        %v6671 = vadd.f32 %v6610, %v6670
        %v6672 = vpop.f32.mrf.mxu0
        %v6673 = vadd.f32 %v6612, %v6672
        %6674 = vdwg.mxu0
        %v6675 = vld [vmem:[#allocation5 + $0x2] sm:$0xff]
        %v6676 = vld [vmem:[#allocation5 + $0xa] sm:$0xff]
        %v6677 = vld [vmem:[#allocation5 + $0x12] sm:$0xff]
        %v6678 = vld [vmem:[#allocation5 + $0x1a] sm:$0xff]
        %v6679 = vld [vmem:[#allocation5 + $0x22] sm:$0xff]
        %v6680 = vld [vmem:[#allocation5 + $0x2a] sm:$0xff]
        %v6681 = vld [vmem:[#allocation5 + $0x32] sm:$0xff]
        %v6682 = vld [vmem:[#allocation5 + $0x3a] sm:$0xff]
        %v6683 = vld [vmem:[#allocation5 + $0x42] sm:$0xff]
        %v6684 = vld [vmem:[#allocation5 + $0x4a] sm:$0x3f]
        %v6685 = vpack.c.bf16 %v6676, %v6675
        %v6686 = vpack.c.bf16 %v6678, %v6677
        %v6687 = vpack.c.bf16 %v6680, %v6679
        %v6688 = vpack.c.bf16 %v6682, %v6681
        %v6689 = vpack.c.bf16 %v6684, %v6683
        %s6690 = scalar_lea.vmem %s27, 32
        %v6691 = vld [vmem:[%s6690] sm:$0xf]
        %v6692 = vld [vmem:[%s6690 + $0x4] sm:$0xf]
        %v6693 = vld [vmem:[%s6690 + $0x8] sm:$0xf]
        %v6694 = vld [vmem:[%s6690 + $0xc] sm:$0xf]
        %v6699 = vunpack.c.l.b16 %v6691
        %v6700 = vunpack.c.l.b16 %v6692
        %v6701 = vunpack.c.l.b16 %v6693
        %v6702 = vunpack.c.l.b16 %v6694
        %v6703 = vpack.c.b16 %v6700, %v6699
        %v6704 = vpack.c.b16 %v6702, %v6701
        %v6708 = vsel %vm4542, %v6685, 0
        %v6711 = vsel %vm4542, %v6686, 0
        %v6714 = vsel %vm4542, %v6687, 0
        %v6717 = vsel %vm4542, %v6688, 0
        %v6720 = vsel %vm4542, %v6689, 0
        %6722 = vmatpush.bf16.msra.mxu0 0
        %6723 = vmatpush.bf16.msra.mxu0 0
        %6724 = vmatpush.bf16.msra.mxu0 0
        %6725 = vmatpush.bf16.msra.mxu0 0
        %6726 = vmatpush.bf16.msra.mxu0 0
        %6727 = vmatpush.bf16.msra.mxu0 0
        %6728 = vmatpush.bf16.msra.mxu0 %v6704
        %6729 = vmatpush.bf16.msra.mxu0 %v6703
        %6730 = vmatmul.bf16.gmra.mxu0 %v6708
        %v6731 = vpop.f32.mrf.mxu0
        %v6732 = vadd.f32 0.0, %v6731
        %v6733 = vpop.f32.mrf.mxu0
        %v6734 = vadd.f32 0.0, %v6733
        %6735 = vmatmul.bf16.gmra.mxu0 %v6711
        %v6736 = vpop.f32.mrf.mxu0
        %v6737 = vadd.f32 0.0, %v6736
        %v6738 = vpop.f32.mrf.mxu0
        %v6739 = vadd.f32 0.0, %v6738
        %6740 = vmatmul.bf16.gmra.mxu0 %v6714
        %v6741 = vpop.f32.mrf.mxu0
        %v6742 = vadd.f32 0.0, %v6741
        %v6743 = vpop.f32.mrf.mxu0
        %v6744 = vadd.f32 0.0, %v6743
        %6745 = vmatmul.bf16.gmra.mxu0 %v6717
        %v6746 = vpop.f32.mrf.mxu0
        %v6747 = vadd.f32 0.0, %v6746
        %v6748 = vpop.f32.mrf.mxu0
        %v6749 = vadd.f32 0.0, %v6748
        %6750 = vmatmul.bf16.gmra.mxu0 %v6720
        %v6751 = vpop.f32.mrf.mxu0
        %v6752 = vadd.f32 0.0, %v6751
        %v6753 = vpop.f32.mrf.mxu0
        %v6754 = vadd.f32 0.0, %v6753
        %6755 = vdwg.mxu0
        %v6756 = vadd.f32 %v6651, %v6732
        %v6757 = vadd.f32 %v6653, %v6734
        %v6758 = vadd.f32 %v6656, %v6737
        %v6759 = vadd.f32 %v6658, %v6739
        %v6760 = vadd.f32 %v6661, %v6742
        %v6761 = vadd.f32 %v6663, %v6744
        %v6762 = vadd.f32 %v6666, %v6747
        %v6763 = vadd.f32 %v6668, %v6749
        %v6764 = vadd.f32 %v6671, %v6752
        %v6765 = vadd.f32 %v6673, %v6754
        %v6766 = vld [vmem:[#allocation5 + $0xa] sm:$0xff]
        %v6767 = vld [vmem:[#allocation5 + $0x12] sm:$0xff]
        %v6768 = vld [vmem:[#allocation5 + $0x1a] sm:$0xff]
        %v6769 = vld [vmem:[#allocation5 + $0x22] sm:$0xff]
        %v6770 = vld [vmem:[#allocation5 + $0x2a] sm:$0xff]
        %v6771 = vld [vmem:[#allocation5 + $0x32] sm:$0xff]
        %v6772 = vld [vmem:[#allocation5 + $0x3a] sm:$0xff]
        %v6773 = vld [vmem:[#allocation5 + $0x42] sm:$0xff]
        %v6774 = vld [vmem:[#allocation5 + $0x4a] sm:$0xff]
        %v6775 = vld [vmem:[#allocation5 + $0x52] sm:$0x3f]
        %v6776 = vpack.c.bf16 %v6767, %v6766
        %v6777 = vpack.c.bf16 %v6769, %v6768
        %v6778 = vpack.c.bf16 %v6771, %v6770
        %v6779 = vpack.c.bf16 %v6773, %v6772
        %v6780 = vpack.c.bf16 %v6775, %v6774
        %s6781 = scalar_lea.vmem %s27, 48
        %v6782 = vld [vmem:[%s6781] sm:$0xf]
        %v6783 = vld [vmem:[%s6781 + $0x4] sm:$0xf]
        %v6784 = vld [vmem:[%s6781 + $0x8] sm:$0xf]
        %v6785 = vld [vmem:[%s6781 + $0xc] sm:$0xf]
        %v6790 = vunpack.c.l.b16 %v6782
        %v6791 = vunpack.c.l.b16 %v6783
        %v6792 = vunpack.c.l.b16 %v6784
        %v6793 = vunpack.c.l.b16 %v6785
        %v6794 = vpack.c.b16 %v6791, %v6790
        %v6795 = vpack.c.b16 %v6793, %v6792
        %v6799 = vsel %vm4542, %v6776, 0
        %v6802 = vsel %vm4542, %v6777, 0
        %v6805 = vsel %vm4542, %v6778, 0
        %v6808 = vsel %vm4542, %v6779, 0
        %v6811 = vsel %vm4542, %v6780, 0
        %6813 = vmatpush.bf16.msra.mxu0 0
        %6814 = vmatpush.bf16.msra.mxu0 0
        %6815 = vmatpush.bf16.msra.mxu0 0
        %6816 = vmatpush.bf16.msra.mxu0 0
        %6817 = vmatpush.bf16.msra.mxu0 0
        %6818 = vmatpush.bf16.msra.mxu0 0
        %6819 = vmatpush.bf16.msra.mxu0 %v6795
        %6820 = vmatpush.bf16.msra.mxu0 %v6794
        %6821 = vmatmul.bf16.gmra.mxu0 %v6799
        %v6822 = vpop.f32.mrf.mxu0
        %v6823 = vadd.f32 0.0, %v6822
        %v6824 = vpop.f32.mrf.mxu0
        %v6825 = vadd.f32 0.0, %v6824
        %6826 = vmatmul.bf16.gmra.mxu0 %v6802
        %v6827 = vpop.f32.mrf.mxu0
        %v6828 = vadd.f32 0.0, %v6827
        %v6829 = vpop.f32.mrf.mxu0
        %v6830 = vadd.f32 0.0, %v6829
        %6831 = vmatmul.bf16.gmra.mxu0 %v6805
        %v6832 = vpop.f32.mrf.mxu0
        %v6833 = vadd.f32 0.0, %v6832
        %v6834 = vpop.f32.mrf.mxu0
        %v6835 = vadd.f32 0.0, %v6834
        %6836 = vmatmul.bf16.gmra.mxu0 %v6808
        %v6837 = vpop.f32.mrf.mxu0
        %v6838 = vadd.f32 0.0, %v6837
        %v6839 = vpop.f32.mrf.mxu0
        %v6840 = vadd.f32 0.0, %v6839
        %6841 = vmatmul.bf16.gmra.mxu0 %v6811
        %v6842 = vpop.f32.mrf.mxu0
        %v6843 = vadd.f32 0.0, %v6842
        %v6844 = vpop.f32.mrf.mxu0
        %v6845 = vadd.f32 0.0, %v6844
        %6846 = vdwg.mxu0
        %v6847 = vadd.f32 %v6756, %v6823
        %v6848 = vadd.f32 %v6757, %v6825
        %v6849 = vadd.f32 %v6758, %v6828
        %v6850 = vadd.f32 %v6759, %v6830
        %v6851 = vadd.f32 %v6760, %v6833
        %v6852 = vadd.f32 %v6761, %v6835
        %v6853 = vadd.f32 %v6762, %v6838
        %v6854 = vadd.f32 %v6763, %v6840
        %v6855 = vadd.f32 %v6764, %v6843
        %v6856 = vadd.f32 %v6765, %v6845
        %v6857 = vld [vmem:[#allocation5 + $0xb] sm:$0xff]
        %v6858 = vld [vmem:[#allocation5 + $0x13] sm:$0xff]
        %v6859 = vld [vmem:[#allocation5 + $0x1b] sm:$0xff]
        %v6860 = vld [vmem:[#allocation5 + $0x23] sm:$0xff]
        %v6861 = vld [vmem:[#allocation5 + $0x2b] sm:$0xff]
        %v6862 = vld [vmem:[#allocation5 + $0x33] sm:$0xff]
        %v6863 = vld [vmem:[#allocation5 + $0x3b] sm:$0xff]
        %v6864 = vld [vmem:[#allocation5 + $0x43] sm:$0xff]
        %v6865 = vld [vmem:[#allocation5 + $0x4b] sm:$0xff]
        %v6866 = vld [vmem:[#allocation5 + $0x53] sm:$0x3f]
        %v6867 = vpack.c.bf16 %v6858, %v6857
        %v6868 = vpack.c.bf16 %v6860, %v6859
        %v6869 = vpack.c.bf16 %v6862, %v6861
        %v6870 = vpack.c.bf16 %v6864, %v6863
        %v6871 = vpack.c.bf16 %v6866, %v6865
        %s6872 = scalar_lea.vmem %s27, 64
        %v6873 = vld [vmem:[%s6872] sm:$0xf]
        %v6874 = vld [vmem:[%s6872 + $0x4] sm:$0xf]
        %v6875 = vld [vmem:[%s6872 + $0x8] sm:$0xf]
        %v6876 = vld [vmem:[%s6872 + $0xc] sm:$0xf]
        %v6881 = vunpack.c.l.b16 %v6873
        %v6882 = vunpack.c.l.b16 %v6874
        %v6883 = vunpack.c.l.b16 %v6875
        %v6884 = vunpack.c.l.b16 %v6876
        %v6885 = vpack.c.b16 %v6882, %v6881
        %v6886 = vpack.c.b16 %v6884, %v6883
        %v6890 = vsel %vm4542, %v6867, 0
        %v6893 = vsel %vm4542, %v6868, 0
        %v6896 = vsel %vm4542, %v6869, 0
        %v6899 = vsel %vm4542, %v6870, 0
        %v6902 = vsel %vm4542, %v6871, 0
        %6904 = vmatpush.bf16.msra.mxu0 0
        %6905 = vmatpush.bf16.msra.mxu0 0
        %6906 = vmatpush.bf16.msra.mxu0 0
        %6907 = vmatpush.bf16.msra.mxu0 0
        %6908 = vmatpush.bf16.msra.mxu0 0
        %6909 = vmatpush.bf16.msra.mxu0 0
        %6910 = vmatpush.bf16.msra.mxu0 %v6886
        %6911 = vmatpush.bf16.msra.mxu0 %v6885
        %6912 = vmatmul.bf16.gmra.mxu0 %v6890
        %v6913 = vpop.f32.mrf.mxu0
        %v6914 = vadd.f32 0.0, %v6913
        %v6915 = vpop.f32.mrf.mxu0
        %v6916 = vadd.f32 0.0, %v6915
        %6917 = vmatmul.bf16.gmra.mxu0 %v6893
        %v6918 = vpop.f32.mrf.mxu0
        %v6919 = vadd.f32 0.0, %v6918
        %v6920 = vpop.f32.mrf.mxu0
        %v6921 = vadd.f32 0.0, %v6920
        %6922 = vmatmul.bf16.gmra.mxu0 %v6896
        %v6923 = vpop.f32.mrf.mxu0
        %v6924 = vadd.f32 0.0, %v6923
        %v6925 = vpop.f32.mrf.mxu0
        %v6926 = vadd.f32 0.0, %v6925
        %6927 = vmatmul.bf16.gmra.mxu0 %v6899
        %v6928 = vpop.f32.mrf.mxu0
        %v6929 = vadd.f32 0.0, %v6928
        %v6930 = vpop.f32.mrf.mxu0
        %v6931 = vadd.f32 0.0, %v6930
        %6932 = vmatmul.bf16.gmra.mxu0 %v6902
        %v6933 = vpop.f32.mrf.mxu0
        %v6934 = vadd.f32 0.0, %v6933
        %v6935 = vpop.f32.mrf.mxu0
        %v6936 = vadd.f32 0.0, %v6935
        %6937 = vdwg.mxu0
        %v6938 = vadd.f32 %v6847, %v6914
        %v6939 = vadd.f32 %v6848, %v6916
        %v6940 = vadd.f32 %v6849, %v6919
        %v6941 = vadd.f32 %v6850, %v6921
        %v6942 = vadd.f32 %v6851, %v6924
        %v6943 = vadd.f32 %v6852, %v6926
        %v6944 = vadd.f32 %v6853, %v6929
        %v6945 = vadd.f32 %v6854, %v6931
        %v6946 = vadd.f32 %v6855, %v6934
        %v6947 = vadd.f32 %v6856, %v6936
        %v6948 = vld [vmem:[#allocation5 + $0xc] sm:$0xff]
        %v6949 = vld [vmem:[#allocation5 + $0x14] sm:$0xff]
        %v6950 = vld [vmem:[#allocation5 + $0x1c] sm:$0xff]
        %v6951 = vld [vmem:[#allocation5 + $0x24] sm:$0xff]
        %v6952 = vld [vmem:[#allocation5 + $0x2c] sm:$0xff]
        %v6953 = vld [vmem:[#allocation5 + $0x34] sm:$0xff]
        %v6954 = vld [vmem:[#allocation5 + $0x3c] sm:$0xff]
        %v6955 = vld [vmem:[#allocation5 + $0x44] sm:$0xff]
        %v6956 = vld [vmem:[#allocation5 + $0x4c] sm:$0xff]
        %v6957 = vld [vmem:[#allocation5 + $0x54] sm:$0x3f]
        %v6958 = vpack.c.bf16 %v6949, %v6948
        %v6959 = vpack.c.bf16 %v6951, %v6950
        %v6960 = vpack.c.bf16 %v6953, %v6952
        %v6961 = vpack.c.bf16 %v6955, %v6954
        %v6962 = vpack.c.bf16 %v6957, %v6956
        %s6963 = scalar_lea.vmem %s27, 80
        %v6964 = vld [vmem:[%s6963] sm:$0xf]
        %v6965 = vld [vmem:[%s6963 + $0x4] sm:$0xf]
        %v6966 = vld [vmem:[%s6963 + $0x8] sm:$0xf]
        %v6967 = vld [vmem:[%s6963 + $0xc] sm:$0xf]
        %v6972 = vunpack.c.l.b16 %v6964
        %v6973 = vunpack.c.l.b16 %v6965
        %v6974 = vunpack.c.l.b16 %v6966
        %v6975 = vunpack.c.l.b16 %v6967
        %v6976 = vpack.c.b16 %v6973, %v6972
        %v6977 = vpack.c.b16 %v6975, %v6974
        %v6981 = vsel %vm4542, %v6958, 0
        %v6984 = vsel %vm4542, %v6959, 0
        %v6987 = vsel %vm4542, %v6960, 0
        %v6990 = vsel %vm4542, %v6961, 0
        %v6993 = vsel %vm4542, %v6962, 0
        %6995 = vmatpush.bf16.msra.mxu0 0
        %6996 = vmatpush.bf16.msra.mxu0 0
        %6997 = vmatpush.bf16.msra.mxu0 0
        %6998 = vmatpush.bf16.msra.mxu0 0
        %6999 = vmatpush.bf16.msra.mxu0 0
        %7000 = vmatpush.bf16.msra.mxu0 0
        %7001 = vmatpush.bf16.msra.mxu0 %v6977
        %7002 = vmatpush.bf16.msra.mxu0 %v6976
        %7003 = vmatmul.bf16.gmra.mxu0 %v6981
        %v7004 = vpop.f32.mrf.mxu0
        %v7005 = vadd.f32 0.0, %v7004
        %v7006 = vpop.f32.mrf.mxu0
        %v7007 = vadd.f32 0.0, %v7006
        %7008 = vmatmul.bf16.gmra.mxu0 %v6984
        %v7009 = vpop.f32.mrf.mxu0
        %v7010 = vadd.f32 0.0, %v7009
        %v7011 = vpop.f32.mrf.mxu0
        %v7012 = vadd.f32 0.0, %v7011
        %7013 = vmatmul.bf16.gmra.mxu0 %v6987
        %v7014 = vpop.f32.mrf.mxu0
        %v7015 = vadd.f32 0.0, %v7014
        %v7016 = vpop.f32.mrf.mxu0
        %v7017 = vadd.f32 0.0, %v7016
        %7018 = vmatmul.bf16.gmra.mxu0 %v6990
        %v7019 = vpop.f32.mrf.mxu0
        %v7020 = vadd.f32 0.0, %v7019
        %v7021 = vpop.f32.mrf.mxu0
        %v7022 = vadd.f32 0.0, %v7021
        %7023 = vmatmul.bf16.gmra.mxu0 %v6993
        %v7024 = vpop.f32.mrf.mxu0
        %v7025 = vadd.f32 0.0, %v7024
        %v7026 = vpop.f32.mrf.mxu0
        %v7027 = vadd.f32 0.0, %v7026
        %7028 = vdwg.mxu0
        %v7029 = vadd.f32 %v6938, %v7005
        %v7030 = vadd.f32 %v6939, %v7007
        %v7031 = vadd.f32 %v6940, %v7010
        %v7032 = vadd.f32 %v6941, %v7012
        %v7033 = vadd.f32 %v6942, %v7015
        %v7034 = vadd.f32 %v6943, %v7017
        %v7035 = vadd.f32 %v6944, %v7020
        %v7036 = vadd.f32 %v6945, %v7022
        %v7037 = vadd.f32 %v6946, %v7025
        %v7038 = vadd.f32 %v6947, %v7027
        %v7039 = vld [vmem:[#allocation5 + $0x14] sm:$0xff]
        %v7040 = vld [vmem:[#allocation5 + $0x1c] sm:$0xff]
        %v7041 = vld [vmem:[#allocation5 + $0x24] sm:$0xff]
        %v7042 = vld [vmem:[#allocation5 + $0x2c] sm:$0xff]
        %v7043 = vld [vmem:[#allocation5 + $0x34] sm:$0xff]
        %v7044 = vld [vmem:[#allocation5 + $0x3c] sm:$0xff]
        %v7045 = vld [vmem:[#allocation5 + $0x44] sm:$0xff]
        %v7046 = vld [vmem:[#allocation5 + $0x4c] sm:$0xff]
        %v7047 = vld [vmem:[#allocation5 + $0x54] sm:$0xff]
        %v7048 = vld [vmem:[#allocation5 + $0x5c] sm:$0x3f]
        %v7049 = vpack.c.bf16 %v7040, %v7039
        %v7050 = vpack.c.bf16 %v7042, %v7041
        %v7051 = vpack.c.bf16 %v7044, %v7043
        %v7052 = vpack.c.bf16 %v7046, %v7045
        %v7053 = vpack.c.bf16 %v7048, %v7047
        %s7054 = scalar_lea.vmem %s27, 96
        %v7055 = vld [vmem:[%s7054] sm:$0xf]
        %v7056 = vld [vmem:[%s7054 + $0x4] sm:$0xf]
        %v7057 = vld [vmem:[%s7054 + $0x8] sm:$0xf]
        %v7058 = vld [vmem:[%s7054 + $0xc] sm:$0xf]
        %v7063 = vunpack.c.l.b16 %v7055
        %v7064 = vunpack.c.l.b16 %v7056
        %v7065 = vunpack.c.l.b16 %v7057
        %v7066 = vunpack.c.l.b16 %v7058
        %v7067 = vpack.c.b16 %v7064, %v7063
        %v7068 = vpack.c.b16 %v7066, %v7065
        %v7072 = vsel %vm4542, %v7049, 0
        %v7075 = vsel %vm4542, %v7050, 0
        %v7078 = vsel %vm4542, %v7051, 0
        %v7081 = vsel %vm4542, %v7052, 0
        %v7084 = vsel %vm4542, %v7053, 0
        %7086 = vmatpush.bf16.msra.mxu0 0
        %7087 = vmatpush.bf16.msra.mxu0 0
        %7088 = vmatpush.bf16.msra.mxu0 0
        %7089 = vmatpush.bf16.msra.mxu0 0
        %7090 = vmatpush.bf16.msra.mxu0 0
        %7091 = vmatpush.bf16.msra.mxu0 0
        %7092 = vmatpush.bf16.msra.mxu0 %v7068
        %7093 = vmatpush.bf16.msra.mxu0 %v7067
        %7094 = vmatmul.bf16.gmra.mxu0 %v7072
        %v7095 = vpop.f32.mrf.mxu0
        %v7096 = vadd.f32 0.0, %v7095
        %v7097 = vpop.f32.mrf.mxu0
        %v7098 = vadd.f32 0.0, %v7097
        %7099 = vmatmul.bf16.gmra.mxu0 %v7075
        %v7100 = vpop.f32.mrf.mxu0
        %v7101 = vadd.f32 0.0, %v7100
        %v7102 = vpop.f32.mrf.mxu0
        %v7103 = vadd.f32 0.0, %v7102
        %7104 = vmatmul.bf16.gmra.mxu0 %v7078
        %v7105 = vpop.f32.mrf.mxu0
        %v7106 = vadd.f32 0.0, %v7105
        %v7107 = vpop.f32.mrf.mxu0
        %v7108 = vadd.f32 0.0, %v7107
        %7109 = vmatmul.bf16.gmra.mxu0 %v7081
        %v7110 = vpop.f32.mrf.mxu0
        %v7111 = vadd.f32 0.0, %v7110
        %v7112 = vpop.f32.mrf.mxu0
        %v7113 = vadd.f32 0.0, %v7112
        %7114 = vmatmul.bf16.gmra.mxu0 %v7084
        %v7115 = vpop.f32.mrf.mxu0
        %v7116 = vadd.f32 0.0, %v7115
        %v7117 = vpop.f32.mrf.mxu0
        %v7118 = vadd.f32 0.0, %v7117
        %7119 = vdwg.mxu0
        %v7120 = vadd.f32 %v7029, %v7096
        %v7121 = vadd.f32 %v7030, %v7098
        %v7122 = vadd.f32 %v7031, %v7101
        %v7123 = vadd.f32 %v7032, %v7103
        %v7124 = vadd.f32 %v7033, %v7106
        %v7125 = vadd.f32 %v7034, %v7108
        %v7126 = vadd.f32 %v7035, %v7111
        %v7127 = vadd.f32 %v7036, %v7113
        %v7128 = vadd.f32 %v7037, %v7116
        %v7129 = vadd.f32 %v7038, %v7118
        %v7130 = vld [vmem:[#allocation5 + $0x15] sm:$0xff]
        %v7131 = vld [vmem:[#allocation5 + $0x1d] sm:$0xff]
        %v7132 = vld [vmem:[#allocation5 + $0x25] sm:$0xff]
        %v7133 = vld [vmem:[#allocation5 + $0x2d] sm:$0xff]
        %v7134 = vld [vmem:[#allocation5 + $0x35] sm:$0xff]
        %v7135 = vld [vmem:[#allocation5 + $0x3d] sm:$0xff]
        %v7136 = vld [vmem:[#allocation5 + $0x45] sm:$0xff]
        %v7137 = vld [vmem:[#allocation5 + $0x4d] sm:$0xff]
        %v7138 = vld [vmem:[#allocation5 + $0x55] sm:$0xff]
        %v7139 = vld [vmem:[#allocation5 + $0x5d] sm:$0x3f]
        %v7140 = vpack.c.bf16 %v7131, %v7130
        %v7141 = vpack.c.bf16 %v7133, %v7132
        %v7142 = vpack.c.bf16 %v7135, %v7134
        %v7143 = vpack.c.bf16 %v7137, %v7136
        %v7144 = vpack.c.bf16 %v7139, %v7138
        %s7145 = scalar_lea.vmem %s27, 112
        %v7146 = vld [vmem:[%s7145] sm:$0xf]
        %v7147 = vld [vmem:[%s7145 + $0x4] sm:$0xf]
        %v7148 = vld [vmem:[%s7145 + $0x8] sm:$0xf]
        %v7149 = vld [vmem:[%s7145 + $0xc] sm:$0xf]
        %v7154 = vunpack.c.l.b16 %v7146
        %v7155 = vunpack.c.l.b16 %v7147
        %v7156 = vunpack.c.l.b16 %v7148
        %v7157 = vunpack.c.l.b16 %v7149
        %v7158 = vpack.c.b16 %v7155, %v7154
        %v7159 = vpack.c.b16 %v7157, %v7156
        %v7163 = vsel %vm4542, %v7140, 0
        %v7166 = vsel %vm4542, %v7141, 0
        %v7169 = vsel %vm4542, %v7142, 0
        %v7172 = vsel %vm4542, %v7143, 0
        %v7175 = vsel %vm4542, %v7144, 0
        %7177 = vmatpush.bf16.msra.mxu0 0
        %7178 = vmatpush.bf16.msra.mxu0 0
        %7179 = vmatpush.bf16.msra.mxu0 0
        %7180 = vmatpush.bf16.msra.mxu0 0
        %7181 = vmatpush.bf16.msra.mxu0 0
        %7182 = vmatpush.bf16.msra.mxu0 0
        %7183 = vmatpush.bf16.msra.mxu0 %v7159
        %7184 = vmatpush.bf16.msra.mxu0 %v7158
        %7185 = vmatmul.bf16.gmra.mxu0 %v7163
        %v7186 = vpop.f32.mrf.mxu0
        %v7187 = vadd.f32 0.0, %v7186
        %v7188 = vpop.f32.mrf.mxu0
        %v7189 = vadd.f32 0.0, %v7188
        %7190 = vmatmul.bf16.gmra.mxu0 %v7166
        %v7191 = vpop.f32.mrf.mxu0
        %v7192 = vadd.f32 0.0, %v7191
        %v7193 = vpop.f32.mrf.mxu0
        %v7194 = vadd.f32 0.0, %v7193
        %7195 = vmatmul.bf16.gmra.mxu0 %v7169
        %v7196 = vpop.f32.mrf.mxu0
        %v7197 = vadd.f32 0.0, %v7196
        %v7198 = vpop.f32.mrf.mxu0
        %v7199 = vadd.f32 0.0, %v7198
        %7200 = vmatmul.bf16.gmra.mxu0 %v7172
        %v7201 = vpop.f32.mrf.mxu0
        %v7202 = vadd.f32 0.0, %v7201
        %v7203 = vpop.f32.mrf.mxu0
        %v7204 = vadd.f32 0.0, %v7203
        %7205 = vmatmul.bf16.gmra.mxu0 %v7175
        %v7206 = vpop.f32.mrf.mxu0
        %v7207 = vadd.f32 0.0, %v7206
        %v7208 = vpop.f32.mrf.mxu0
        %v7209 = vadd.f32 0.0, %v7208
        %7210 = vdwg.mxu0
        %v7211 = vadd.f32 %v7120, %v7187
        %v7212 = vadd.f32 %v7121, %v7189
        %v7213 = vadd.f32 %v7122, %v7192
        %v7214 = vadd.f32 %v7123, %v7194
        %v7215 = vadd.f32 %v7124, %v7197
        %v7216 = vadd.f32 %v7125, %v7199
        %v7217 = vadd.f32 %v7126, %v7202
        %v7218 = vadd.f32 %v7127, %v7204
        %v7219 = vadd.f32 %v7128, %v7207
        %v7220 = vadd.f32 %v7129, %v7209
        %v7221 = vld [vmem:[#allocation5 + $0x16] sm:$0xff]
        %v7222 = vld [vmem:[#allocation5 + $0x1e] sm:$0xff]
        %v7223 = vld [vmem:[#allocation5 + $0x26] sm:$0xff]
        %v7224 = vld [vmem:[#allocation5 + $0x2e] sm:$0xff]
        %v7225 = vld [vmem:[#allocation5 + $0x36] sm:$0xff]
        %v7226 = vld [vmem:[#allocation5 + $0x3e] sm:$0xff]
        %v7227 = vld [vmem:[#allocation5 + $0x46] sm:$0xff]
        %v7228 = vld [vmem:[#allocation5 + $0x4e] sm:$0xff]
        %v7229 = vld [vmem:[#allocation5 + $0x56] sm:$0xff]
        %v7230 = vld [vmem:[#allocation5 + $0x5e] sm:$0x3f]
        %v7231 = vpack.c.bf16 %v7222, %v7221
        %v7232 = vpack.c.bf16 %v7224, %v7223
        %v7233 = vpack.c.bf16 %v7226, %v7225
        %v7234 = vpack.c.bf16 %v7228, %v7227
        %v7235 = vpack.c.bf16 %v7230, %v7229
        %s7236 = scalar_lea.vmem %s27, 128
        %v7237 = vld [vmem:[%s7236] sm:$0xf]
        %v7238 = vld [vmem:[%s7236 + $0x4] sm:$0xf]
        %v7239 = vld [vmem:[%s7236 + $0x8] sm:$0xf]
        %v7240 = vld [vmem:[%s7236 + $0xc] sm:$0xf]
        %v7245 = vunpack.c.l.b16 %v7237
        %v7246 = vunpack.c.l.b16 %v7238
        %v7247 = vunpack.c.l.b16 %v7239
        %v7248 = vunpack.c.l.b16 %v7240
        %v7249 = vpack.c.b16 %v7246, %v7245
        %v7250 = vpack.c.b16 %v7248, %v7247
        %v7254 = vsel %vm4542, %v7231, 0
        %v7257 = vsel %vm4542, %v7232, 0
        %v7260 = vsel %vm4542, %v7233, 0
        %v7263 = vsel %vm4542, %v7234, 0
        %v7266 = vsel %vm4542, %v7235, 0
        %7268 = vmatpush.bf16.msra.mxu0 0
        %7269 = vmatpush.bf16.msra.mxu0 0
        %7270 = vmatpush.bf16.msra.mxu0 0
        %7271 = vmatpush.bf16.msra.mxu0 0
        %7272 = vmatpush.bf16.msra.mxu0 0
        %7273 = vmatpush.bf16.msra.mxu0 0
        %7274 = vmatpush.bf16.msra.mxu0 %v7250
        %7275 = vmatpush.bf16.msra.mxu0 %v7249
        %7276 = vmatmul.bf16.gmra.mxu0 %v7254
        %v7277 = vpop.f32.mrf.mxu0
        %v7278 = vadd.f32 0.0, %v7277
        %v7279 = vpop.f32.mrf.mxu0
        %v7280 = vadd.f32 0.0, %v7279
        %7281 = vmatmul.bf16.gmra.mxu0 %v7257
        %v7282 = vpop.f32.mrf.mxu0
        %v7283 = vadd.f32 0.0, %v7282
        %v7284 = vpop.f32.mrf.mxu0
        %v7285 = vadd.f32 0.0, %v7284
        %7286 = vmatmul.bf16.gmra.mxu0 %v7260
        %v7287 = vpop.f32.mrf.mxu0
        %v7288 = vadd.f32 0.0, %v7287
        %v7289 = vpop.f32.mrf.mxu0
        %v7290 = vadd.f32 0.0, %v7289
        %7291 = vmatmul.bf16.gmra.mxu0 %v7263
        %v7292 = vpop.f32.mrf.mxu0
        %v7293 = vadd.f32 0.0, %v7292
        %v7294 = vpop.f32.mrf.mxu0
        %v7295 = vadd.f32 0.0, %v7294
        %7296 = vmatmul.bf16.gmra.mxu0 %v7266
        %v7297 = vpop.f32.mrf.mxu0
        %v7298 = vadd.f32 0.0, %v7297
        %v7299 = vpop.f32.mrf.mxu0
        %v7300 = vadd.f32 0.0, %v7299
        %7301 = vdwg.mxu0
        %v7302 = vadd.f32 %v7211, %v7278
        %v7303 = vadd.f32 %v7212, %v7280
        %v7304 = vadd.f32 %v7213, %v7283
        %v7305 = vadd.f32 %v7214, %v7285
        %v7306 = vadd.f32 %v7215, %v7288
        %v7307 = vadd.f32 %v7216, %v7290
        %v7308 = vadd.f32 %v7217, %v7293
        %v7309 = vadd.f32 %v7218, %v7295
        %v7310 = vadd.f32 %v7219, %v7298
        %v7311 = vadd.f32 %v7220, %v7300
        %v7312 = vld [vmem:[%s29] sm:$0x1]
        %v7314 = vperm.slane %v7312, 0
        %v7316 = vadd.f32 %v7302, %v7314
        %v7317 = vadd.f32 %v7303, %v7314
        %v7318 = vadd.f32 %v7304, %v7314
        %v7319 = vadd.f32 %v7305, %v7314
        %v7320 = vadd.f32 %v7306, %v7314
        %v7321 = vadd.f32 %v7307, %v7314
        %v7322 = vadd.f32 %v7308, %v7314
        %v7323 = vadd.f32 %v7309, %v7314
        %v7324 = vadd.f32 %v7310, %v7314
        %v7325 = vadd.f32 %v7311, %v7314
        %7326 = vst.msk [vmem:[%s953] sm:$0xff] %vm4542, %v7316
        %7327 = vst.msk [vmem:[%s953 + $0x8] sm:$0xff] %vm4542, %v7317
        %7328 = vst.msk [vmem:[%s953 + $0x10] sm:$0xff] %vm4542, %v7318
        %7329 = vst.msk [vmem:[%s953 + $0x18] sm:$0xff] %vm4542, %v7319
        %7330 = vst.msk [vmem:[%s953 + $0x20] sm:$0xff] %vm4542, %v7320
        %7331 = vst.msk [vmem:[%s953 + $0x28] sm:$0xff] %vm4542, %v7321
        %7332 = vst.msk [vmem:[%s953 + $0x30] sm:$0xff] %vm4542, %v7322
        %7333 = vst.msk [vmem:[%s953 + $0x38] sm:$0xff] %vm4542, %v7323
        %7334 = vst.msk [vmem:[%s953 + $0x40] sm:$0xff] %vm4542, %v7324
        %7335 = vst.msk [vmem:[%s953 + $0x48] sm:$0x3f] %vm4552, %v7325
        %p7336 = scmp.lt.s32.totalorder %s76, 1
        %s7337 = scalar_select %p7336, %s76, 1
        %s7338 = smul.addr %s7337, 10
        %s7339 = smul.addr %s7338, 8
        %s7340 = scalar_lea.vmem %s55, %s7339
        %p7341 = scmp.lt.s32.totalorder %s76, 1
        %s7342 = scalar_select %p7341, %s76, 1
        %s7343 = smul.addr %s7342, 3
        %s7344 = smul.addr %s7343, 8
        %s7345 = scalar_lea.vmem %s57, %s7344
        %p7346 = scmp.lt.s32.totalorder %s76, 1
        %s7347 = scalar_select %p7346, %s76, 1
        %s7348 = smul.addr %s7347, 8
        %s7349 = scalar_lea.vmem %s59, %s7348
        %s7350 = sand.u32 %s734, 1
        %s7351 = scalar_lea.sflag [#allocation12], %s7350
        %s7352 = sand.u32 %s734, 1
        %s7353 = scalar_lea.vmem [#allocation11], %s7352
        // Predicated region
        $region129: #{backbone_with_fpn_forward.1} parent=127 // pred_check
          %p7354 = pneg %p666
        $region130: #{backbone_with_fpn_forward.1} parent=127 // pred_check_branch
          %7356 = sbr.rel (%p7354) target = $region132
        $region131: #{backbone_with_fpn_forward.1} parent=127 // pred_region
          _
        $region132: #{backbone_with_fpn_forward.1} parent=127 // pred_fallthru
          _
        // Predicated region
        $region133: #{backbone_with_fpn_forward.1} parent=127 // pred_check
          %p7357 = pneg %p692
        $region134: #{backbone_with_fpn_forward.1} parent=127 // pred_check_branch
          %7359 = sbr.rel (%p7357) target = $region136
        $region135: #{backbone_with_fpn_forward.1} parent=127 // pred_region
          _
        $region136: #{backbone_with_fpn_forward.1} parent=127 // pred_fallthru
          _
        // Predicated region
        $region137: #{backbone_with_fpn_forward.1} parent=127 // pred_check
          %p7360 = pneg %p718
        $region138: #{backbone_with_fpn_forward.1} parent=127 // pred_check_branch
          %7362 = sbr.rel (%p7360) target = $region140
        $region139: #{backbone_with_fpn_forward.1} parent=127 // pred_region
          _
        $region140: #{backbone_with_fpn_forward.1} parent=127 // pred_fallthru
          _
        // Predicated region
        $region141: #{backbone_with_fpn_forward.1} parent=127 // pred_check
          %p7363 = pneg %p744
        $region142: #{backbone_with_fpn_forward.1} parent=127 // pred_check_branch
          %7365 = sbr.rel (%p7363) target = $region144
        $region143: #{backbone_with_fpn_forward.1} parent=127 // pred_region
          %7367 = vsyncadd %s7351, 0
          %s7368 = scalar_lea.hbm %s61, %s76
          %s7370 = sshll.u32 %s7353, 4
          %s7371 = int_to_ptr.vmem [resolvable:$true] %s7370
          %s7372 = sshll.u32 %s7368, 4
          %s7373 = int_to_ptr.hbm [resolvable:$true] %s7372
          %7375 = dma.vmem_to_hbm [thread:$0]  %s7371, 16, %s7373, %s7351
        $region144: #{backbone_with_fpn_forward.1} parent=127 // pred_fallthru
          _
      $region128: #{backbone_with_fpn_forward.1} parent=5 // pred_fallthru
        _
      %p7376 = scmp.le.s32.totalorder 2, %s71
      // Predicated region
      $region145: #{backbone_with_fpn_forward.1} parent=5 // pred_check
        %p7377 = pneg %p7376
      $region146: #{backbone_with_fpn_forward.1} parent=5 // pred_check_branch
        %7379 = sbr.rel (%p7377) target = $region148
      $region147: #{backbone_with_fpn_forward.1} parent=5 // pred_region
        %s7380 = ssub.s32 %s71, 2
        // Predicated region
        $region149: #{backbone_with_fpn_forward.1} parent=147 // pred_check
          %p7381 = pneg %p672
        $region150: #{backbone_with_fpn_forward.1} parent=147 // pred_check_branch
          %7383 = sbr.rel (%p7381) target = $region152
        $region151: #{backbone_with_fpn_forward.1} parent=147 // pred_region
          %p7384 = scmp.lt.s32.totalorder %s77, 1
          %s7385 = scalar_select %p7384, %s77, 1
          %s7386 = smul.addr %s7385, 10
          %s7387 = smul.addr %s7386, 8
          %s7388 = scalar_lea.vmem %s55, %s7387
        $region152: #{backbone_with_fpn_forward.1} parent=147 // pred_fallthru
          _
        // Predicated region
        $region153: #{backbone_with_fpn_forward.1} parent=147 // pred_check
          %p7389 = pneg %p698
        $region154: #{backbone_with_fpn_forward.1} parent=147 // pred_check_branch
          %7391 = sbr.rel (%p7389) target = $region156
        $region155: #{backbone_with_fpn_forward.1} parent=147 // pred_region
          %p7392 = scmp.lt.s32.totalorder %s77, 1
          %s7393 = scalar_select %p7392, %s77, 1
          %s7394 = smul.addr %s7393, 3
          %s7395 = smul.addr %s7394, 8
          %s7396 = scalar_lea.vmem %s57, %s7395
        $region156: #{backbone_with_fpn_forward.1} parent=147 // pred_fallthru
          _
        // Predicated region
        $region157: #{backbone_with_fpn_forward.1} parent=147 // pred_check
          %p7397 = pneg %p724
        $region158: #{backbone_with_fpn_forward.1} parent=147 // pred_check_branch
          %7399 = sbr.rel (%p7397) target = $region160
        $region159: #{backbone_with_fpn_forward.1} parent=147 // pred_region
          %p7400 = scmp.lt.s32.totalorder %s77, 1
          %s7401 = scalar_select %p7400, %s77, 1
          %s7402 = smul.addr %s7401, 8
          %s7403 = scalar_lea.vmem %s59, %s7402
        $region160: #{backbone_with_fpn_forward.1} parent=147 // pred_fallthru
          _
        // Predicated region
        $region161: #{backbone_with_fpn_forward.1} parent=147 // pred_check
          %p7404 = pneg %p750
        $region162: #{backbone_with_fpn_forward.1} parent=147 // pred_check_branch
          %7406 = sbr.rel (%p7404) target = $region164
        $region163: #{backbone_with_fpn_forward.1} parent=147 // pred_region
          %s7407 = sand.u32 %s735, 1
          %s7408 = scalar_lea.sflag [#allocation12], %s7407
          %s7409 = sand.u32 %s735, 1
          %s7410 = scalar_lea.vmem [#allocation11], %s7409
          %7412 = dma.done %s7408, 16
        $region164: #{backbone_with_fpn_forward.1} parent=147 // pred_fallthru
          _
      $region148: #{backbone_with_fpn_forward.1} parent=5 // pred_fallthru
        _
    $region6: #{backbone_with_fpn_forward.1} parent=1 // loop_footer
      %s75 = sadd.s32 1, %s71
    $region7: #{backbone_with_fpn_forward.1} parent=1 // loop_footer_branch
      %70 = sbr.rel target = $region3
    $region8: #{backbone_with_fpn_forward.1} parent=1 // loop_exit
      _
    %7413 = vsyncpa [#allocation12], 1
    %s7414 = scalar_lea.sflag [#allocation12], 1
    %7415 = vsyncpa %s7414, 1

</llo_original>
